<compile_context>
chip_gen: v7x
topology: tpu7x:2x2x1
jax: 0.10.0
libtpu: 0.0.40
codegen_flags: <defaults>
</compile_context>

<pallas_src>
import functools

import jax
import jax.numpy as jnp
from jax.experimental import pallas as pl
from jax.experimental.pallas import tpu as pltpu

LEAKY_SLOPE = 0.2
BN_EPS = 1e-5


def _default_vmem_limit():
    # Generation-aware scoped-VMEM limit (~75% of capacity), with a fallback
    # that is safe on every generation (v7x has 64 MiB per TensorCore).
    try:
        cap = getattr(pltpu.get_tpu_info(), "vmem_capacity_bytes", None)
        if cap:
            return int(cap) * 3 // 4
    except Exception:
        pass
    return 48 * 1024 * 1024


_VMEM_LIMIT = _default_vmem_limit()


def _leaky(y):
    # max(y, a*y): 2 VALU ops (mul+max) instead of cmp+mul+select; identical
    # result for 0 < a < 1.
    return jnp.maximum(y, LEAKY_SLOPE * y)


def _tile_n(n, bytes_per_point, fixed_bytes=0):
    """Largest (8,128)-friendly point tile dividing N whose double-buffered
    footprint fits the VMEM budget (bigger tiles amortize per-step overhead)."""
    budget = max(_VMEM_LIMIT // 2 - fixed_bytes, 0)
    for t in (512, 256, 128, 64, 32, 16, 8):
        if n % t == 0 and 2 * t * bytes_per_point <= budget:
            return t
    return n  # full-extent block (always legal)


# ------------------------- Pallas kernels -------------------------

def _knn_score_kernel(xq_ref, xa_ref, sqa_ref, o_ref):
    # score[i, j] = x_i . x_j - 0.5*||x_i||^2 - 0.5*||x_j||^2
    #             = -0.5 * ||x_i - x_j||^2
    # Same per-row kNN ordering as -||x_i - x_j||^2 (positive scale dropped).
    # ||x_j||^2/2 is precomputed in XLA instead of being recomputed from the
    # full (N, C) slab on every row tile; ||x_i||^2/2 is kept so the bf16
    # output stays centered near 0 for close neighbors (conditioning).
    # Operands are bf16 for layers 2-4 (bf16 MXU); layer 1 (C=3) stays f32.
    xq = xq_ref[0]                                               # (TN, C)
    inner = jax.lax.dot_general(                                 # (TN, N) f32 acc
        xq, xa_ref[0], (((1,), (1,)), ((), ())),
        preferred_element_type=jnp.float32)
    sqq = 0.5 * jnp.sum(jnp.square(xq.astype(jnp.float32)),
                        axis=-1, keepdims=True)                  # (TN, 1)
    o_ref[0] = (inner - sqq - sqa_ref[0]).astype(o_ref.dtype)


def _point_matmul_kernel(x_ref, w_ref, o_ref):
    # A = x @ W_a (BN scale folded on host); bf16 operands, f32 MXU accum.
    o_ref[0] = jnp.dot(x_ref[0].astype(jnp.bfloat16), w_ref[...],
                       preferred_element_type=jnp.float32).astype(o_ref.dtype)


def _edge_agg_kernel(nbrmax_ref, x_ref, wb_ref, shift_ref, o_ref):
    # out_i = LeakyReLU(max_j A[j] + x_i @ (W_b - W_a) + bn_shift)
    # The max over neighbors is already folded upstream (LeakyReLU is monotone
    # and the center term is constant over k, so max-then-activate is exact).
    z = jnp.dot(x_ref[0].astype(jnp.bfloat16), wb_ref[...],
                preferred_element_type=jnp.float32)
    y = nbrmax_ref[0].astype(jnp.float32) + z + shift_ref[...]
    o_ref[0] = _leaky(y).astype(o_ref.dtype)


def _conv5_kernel(*refs, has_emb):
    # conv5 (Conv1d 512->512 + BN + LeakyReLU) + global max over points
    # + optional fused embedding Linear (512 -> F).
    if has_emb:
        (x1_ref, x2_ref, x3_ref, x4_ref, w_ref, shift_ref, wemb_ref,
         o_ref, pool_ref) = refs
    else:
        (x1_ref, x2_ref, x3_ref, x4_ref, w_ref, shift_ref,
         o_ref, pool_ref) = refs
        wemb_ref = None

    @pl.when(pl.program_id(1) == 0)
    def _():
        pool_ref[...] = jnp.full(pool_ref.shape, -jnp.inf, pool_ref.dtype)

    # Concatenate in VMEM -> one 512-deep MXU contraction (vs 4 shallow dots).
    xcat = jnp.concatenate(
        [x1_ref[0], x2_ref[0], x3_ref[0], x4_ref[0]], axis=-1)  # (TN, 512) bf16
    y = jnp.dot(xcat, w_ref[...], preferred_element_type=jnp.float32)
    y = _leaky(y + shift_ref[...])                               # (TN, 512) f32
    pool_ref[...] = jnp.maximum(pool_ref[...],
                                jnp.max(y, axis=0, keepdims=True))

    @pl.when(pl.program_id(1) == pl.num_programs(1) - 1)
    def _():
        if has_emb:
            o_ref[0] = jnp.dot(pool_ref[...].astype(jnp.bfloat16),
                               wemb_ref[...],
                               preferred_element_type=jnp.float32)
        else:
            o_ref[0] = pool_ref[...]


# ------------------------- pallas_call wrappers -------------------------

def knn_scores(x):
    B, N, C = x.shape
    itm = jnp.dtype(x.dtype).itemsize
    tn = _tile_n(N, bytes_per_point=C * itm + 2 * N,
                 fixed_bytes=2 * N * (C * itm + 4))
    # Column norms precomputed once (f32), broadcast across row tiles.
    sqa_half = 0.5 * jnp.sum(jnp.square(x.astype(jnp.float32)), axis=-1,
                             keepdims=True)                       # (B, N, 1)
    sqa_half = jnp.swapaxes(sqa_half, 1, 2)                       # (B, 1, N)
    return pl.pallas_call(
        _knn_score_kernel,
        out_shape=jax.ShapeDtypeStruct((B, N, N), jnp.bfloat16),
        grid=(B, N // tn),
        in_specs=[pl.BlockSpec((1, tn, C), lambda b, n: (b, n, 0)),
                  pl.BlockSpec((1, N, C), lambda b, n: (b, 0, 0)),
                  pl.BlockSpec((1, 1, N), lambda b, n: (b, 0, 0))],
        out_specs=pl.BlockSpec((1, tn, N), lambda b, n: (b, n, 0)),
        compiler_params=pltpu.CompilerParams(
            dimension_semantics=("parallel", "parallel"),
            vmem_limit_bytes=_VMEM_LIMIT),
    )(x, x, sqa_half)


def point_matmul(x, w):
    B, N, C = x.shape
    Cout = w.shape[1]
    itm = jnp.dtype(x.dtype).itemsize
    tn = _tile_n(N, bytes_per_point=C * itm + 2 * Cout,
                 fixed_bytes=2 * C * Cout * 2)
    return pl.pallas_call(
        _point_matmul_kernel,
        out_shape=jax.ShapeDtypeStruct((B, N, Cout), jnp.bfloat16),
        grid=(B, N // tn),
        in_specs=[pl.BlockSpec((1, tn, C), lambda b, n: (b, n, 0)),
                  pl.BlockSpec((C, Cout), lambda b, n: (0, 0))],
        out_specs=pl.BlockSpec((1, tn, Cout), lambda b, n: (b, n, 0)),
        compiler_params=pltpu.CompilerParams(
            dimension_semantics=("parallel", "parallel"),
            vmem_limit_bytes=_VMEM_LIMIT),
    )(x, w)


def edge_aggregate(nbr_max, x, wb, shift):
    B, N, Cout = nbr_max.shape
    C = x.shape[2]
    itm = jnp.dtype(x.dtype).itemsize
    tn = _tile_n(N, bytes_per_point=2 * Cout + C * itm + 2 * Cout,
                 fixed_bytes=2 * (C * Cout * 2 + Cout * 4))
    return pl.pallas_call(
        _edge_agg_kernel,
        out_shape=jax.ShapeDtypeStruct((B, N, Cout), jnp.bfloat16),
        grid=(B, N // tn),
        in_specs=[
            pl.BlockSpec((1, tn, Cout), lambda b, n: (b, n, 0)),
            pl.BlockSpec((1, tn, C), lambda b, n: (b, n, 0)),
            pl.BlockSpec((C, Cout), lambda b, n: (0, 0)),
            pl.BlockSpec((1, Cout), lambda b, n: (0, 0)),
        ],
        out_specs=pl.BlockSpec((1, tn, Cout), lambda b, n: (b, n, 0)),
        compiler_params=pltpu.CompilerParams(
            dimension_semantics=("parallel", "parallel"),
            vmem_limit_bytes=_VMEM_LIMIT),
    )(nbr_max, x, wb, shift)


def conv5_pool_embed(x1, x2, x3, x4, w5, shift5, w_emb=None):
    B, N, _ = x1.shape
    has_emb = w_emb is not None
    F = w_emb.shape[1] if has_emb else 512
    fixed = 2 * (512 * 512 * 2 + 512 * 4 + (512 * F * 2 if has_emb else 0))
    tn = _tile_n(N, bytes_per_point=2 * 512, fixed_bytes=fixed)

    in_arrays = [x1, x2, x3, x4, w5, shift5]
    in_specs = [
        pl.BlockSpec((1, tn, 64), lambda b, n: (b, n, 0)),
        pl.BlockSpec((1, tn, 64), lambda b, n: (b, n, 0)),
        pl.BlockSpec((1, tn, 128), lambda b, n: (b, n, 0)),
        pl.BlockSpec((1, tn, 256), lambda b, n: (b, n, 0)),
        pl.BlockSpec((512, 512), lambda b, n: (0, 0)),
        pl.BlockSpec((1, 512), lambda b, n: (0, 0)),
    ]
    if has_emb:
        in_arrays.append(w_emb)
        in_specs.append(pl.BlockSpec((512, F), lambda b, n: (0, 0)))

    out = pl.pallas_call(
        functools.partial(_conv5_kernel, has_emb=has_emb),
        out_shape=jax.ShapeDtypeStruct((B, 1, F), jnp.float32),
        grid=(B, N // tn),
        in_specs=in_specs,
        out_specs=pl.BlockSpec((1, 1, F), lambda b, n: (b, 0, 0)),
        scratch_shapes=[pltpu.VMEM((1, 512), jnp.float32)],
        compiler_params=pltpu.CompilerParams(
            dimension_semantics=("parallel", "arbitrary"),
            vmem_limit_bytes=_VMEM_LIMIT),
    )(*in_arrays)
    return out[:, 0, :]


# ------------------------- JAX glue -------------------------

def edge_conv_layer(x, layer_params, k):
    """One EdgeConv layer:
         out_i = max_{j in knn(i)} LeakyReLU([x_j - x_i, x_i] @ W + bn)
       computed as LeakyReLU(max_j (x_j @ W_a) + x_i @ (W_b - W_a) + bn_shift)
       which is exact (LeakyReLU monotone, center term constant over j)."""
    wa, wb, shift = layer_params["wa"], layer_params["wb"], layer_params["shift"]

    # 1) kNN scores (Pallas, row-tiled, bf16 MXU) + top-k selection (XLA).
    scores = knn_scores(x)                            # (B, N, N) bf16
    _, idx = jax.lax.top_k(scores, k)                 # (B, N, k), includes self

    # 2) Per-point neighbor transform A = x @ W_a (once, not per edge).
    A = point_matmul(x, wa)                           # (B, N, Cout) bf16

    # 3) Gather neighbor rows and max over k in XLA so the (B, N, k, Cout)
    #    intermediate fuses into a single gather+reduce instead of hitting HBM.
    nbr_max = jax.vmap(lambda Ab, ib: jnp.max(Ab[ib], axis=1))(A, idx)

    # 4) Epilogue (Pallas): add center-point term + BN shift, LeakyReLU.
    return edge_aggregate(nbr_max, x, wb, shift)      # (B, N, Cout) bf16


def init_params(key, num_features):
    ks = jax.random.split(key, 6)

    def bn_fold(c):
        gamma = jnp.ones((c,), jnp.float32)
        beta = jnp.zeros((c,), jnp.float32)
        mean = jnp.zeros((c,), jnp.float32)
        var = jnp.ones((c,), jnp.float32)
        scale = gamma / jnp.sqrt(var + BN_EPS)
        shift = beta - mean * scale
        return scale, shift

    def edge_layer(kk, cin, cout):
        # Transposed view of torch Conv2d weight (cout, 2*cin, 1, 1):
        # rows [0:cin] multiply (x_j - x_i), rows [cin:2cin] multiply x_i.
        wt = jax.random.normal(kk, (2 * cin, cout), jnp.float32) / jnp.sqrt(2 * cin)
        scale, shift = bn_fold(cout)
        wt = wt * scale[None, :]                # fold eval-mode BN scale into W
        wa = wt[:cin]                           # applied to neighbor x_j
        wb = wt[cin:] - wt[:cin]                # applied to center   x_i
        return {"wa": wa.astype(jnp.bfloat16),
                "wb": wb.astype(jnp.bfloat16),
                "shift": shift[None, :]}        # f32 (1, cout)

    def conv5_layer(kk):
        wt = jax.random.normal(kk, (512, 512), jnp.float32) / jnp.sqrt(512.0)
        scale, shift = bn_fold(512)
        wt = wt * scale[None, :]
        return wt.astype(jnp.bfloat16), shift[None, :]

    params = {
        "l1": edge_layer(ks[0], 3, 64),
        "l2": edge_layer(ks[1], 64, 64),
        "l3": edge_layer(ks[2], 64, 128),
        "l4": edge_layer(ks[3], 128, 256),
    }
    params["w5"], params["shift5"] = conv5_layer(ks[4])
    if num_features != 512:
        params["w_emb"] = (jax.random.normal(ks[5], (512, num_features),
                                             jnp.float32)
                           / jnp.sqrt(512.0)).astype(jnp.bfloat16)
    return params


def dgcnn_encoder(params, x, k):
    # x: (B, N, 3), same input convention as the torch module.
    x = x.astype(jnp.float32)
    x1 = edge_conv_layer(x, params["l1"], k)     # (B, N, 64)  bf16
    x2 = edge_conv_layer(x1, params["l2"], k)    # (B, N, 64)  bf16
    x3 = edge_conv_layer(x2, params["l3"], k)    # (B, N, 128) bf16
    x4 = edge_conv_layer(x3, params["l4"], k)    # (B, N, 256) bf16
    # conv5 + BN + LeakyReLU + global max pool (+ fused embedding Linear).
    return conv5_pool_embed(x1, x2, x3, x4, params["w5"], params["shift5"],
                            params.get("w_emb"))


if __name__ == "__main__":
    B, N, K, NUM_FEATURES = 2, 32, 8, 32
    key = jax.random.PRNGKey(0)
    kx, kp = jax.random.split(key)
    x = jax.random.normal(kx, (B, N, 3), jnp.float32)
    params = init_params(kp, NUM_FEATURES)

    fwd = jax.jit(functools.partial(dgcnn_encoder, k=K))
    out = jax.block_until_ready(fwd(params, x))
    assert out.shape == (B, NUM_FEATURES), out.shape
    assert bool(jnp.all(jnp.isfinite(out)))
    print("KERNEL_OK")
</pallas_src>

<mosaic_0001>
module attributes {stable_mosaic.version = 11 : i64} {
  func.func @_knn_score_kernel(%arg0: i32, %arg1: i32, %arg2: memref<1x32x3xf32, #tpu.memory_space<vmem>>, %arg3: memref<1x32x3xf32, #tpu.memory_space<vmem>>, %arg4: memref<1x1x32xf32, #tpu.memory_space<vmem>>, %arg5: memref<1x32x32xbf16, #tpu.memory_space<vmem>>) attributes {dimension_semantics = [#tpu.dimension_semantics<parallel>, #tpu.dimension_semantics<parallel>], iteration_bounds = array<i64: 2, 1>, scalar_prefetch = 0 : i64, scratch_operands = 0 : i64, tpu.core_type = #tpu.core_type<tc>, window_params = [{transform_indices = @transform_0, window_bounds = array<i64: 1, 32, 3>}, {transform_indices = @transform_1, window_bounds = array<i64: 1, 32, 3>}, {transform_indices = @transform_2, window_bounds = array<i64: 1, 1, 32>}, {transform_indices = @transform_3, window_bounds = array<i64: 1, 32, 32>}]} {
    %c0 = arith.constant 0 : index
    %c0_0 = arith.constant 0 : index
    %c0_1 = arith.constant 0 : index
    %0 = vector.load %arg2[%c0, %c0_0, %c0_1] : memref<1x32x3xf32, #tpu.memory_space<vmem>>, vector<1x32x3xf32>
    %1 = vector.shape_cast %0 : vector<1x32x3xf32> to vector<32x3xf32>
    %c0_2 = arith.constant 0 : index
    %c0_3 = arith.constant 0 : index
    %c0_4 = arith.constant 0 : index
    %2 = vector.load %arg3[%c0_2, %c0_3, %c0_4] : memref<1x32x3xf32, #tpu.memory_space<vmem>>, vector<1x32x3xf32>
    %3 = vector.shape_cast %2 : vector<1x32x3xf32> to vector<32x3xf32>
    %cst = arith.constant dense<0.000000e+00> : vector<32x32xf32>
    %4 = tpu.matmul %1, %3, %cst {dimension_numbers = #tpu.dot_dimension_numbers<[1], [1], [0], [0], [0, 0, 1, 0], [], []>} : vector<32x3xf32>, vector<32x3xf32>, vector<32x32xf32> -> vector<32x32xf32>
    %5 = arith.mulf %1, %1 : vector<32x3xf32>
    %cst_5 = arith.constant dense<0.000000e+00> : vector<32xf32>
    %6 = vector.multi_reduction <add>, %5, %cst_5 [1] : vector<32x3xf32> to vector<32xf32>
    %7 = vector.shape_cast %6 : vector<32xf32> to vector<32x1xf32>
    %cst_6 = arith.constant 5.000000e-01 : f32
    %8 = vector.broadcast %cst_6 : f32 to vector<32x1xf32>
    %9 = arith.mulf %8, %7 : vector<32x1xf32>
    %10 = vector.broadcast %9 : vector<32x1xf32> to vector<32x32xf32>
    %11 = arith.subf %4, %10 : vector<32x32xf32>
    %c0_7 = arith.constant 0 : index
    %c0_8 = arith.constant 0 : index
    %c0_9 = arith.constant 0 : index
    %12 = vector.load %arg4[%c0_7, %c0_8, %c0_9] : memref<1x1x32xf32, #tpu.memory_space<vmem>>, vector<1x1x32xf32>
    %13 = vector.shape_cast %12 : vector<1x1x32xf32> to vector<1x32xf32>
    %14 = vector.broadcast %13 : vector<1x32xf32> to vector<32x32xf32>
    %15 = arith.subf %11, %14 : vector<32x32xf32>
    %16 = arith.truncf %15 : vector<32x32xf32> to vector<32x32xbf16>
    %c0_10 = arith.constant 0 : index
    %c0_11 = arith.constant 0 : index
    %c0_12 = arith.constant 0 : index
    %17 = vector.load %arg5[%c0_10, %c0_11, %c0_12] : memref<1x32x32xbf16, #tpu.memory_space<vmem>>, vector<1x32x32xbf16>
    %18 = vector.shape_cast %17 : vector<1x32x32xbf16> to vector<32x32xbf16>
    %19 = vector.shape_cast %16 : vector<32x32xbf16> to vector<1x32x32xbf16>
    tpu.vector_store %arg5[%c0_10, %c0_11, %c0_12], %19 {strides = array<i32>} : memref<1x32x32xbf16, #tpu.memory_space<vmem>>, vector<1x32x32xbf16>,
    return
  }
  func.func @transform_0(%arg0: i32, %arg1: i32) -> (i32, i32, i32) {
    %c0_i32 = arith.constant 0 : i32
    %c0_i32_0 = arith.constant 0 : i32
    return %arg0, %arg1, %c0_i32 : i32, i32, i32
  }
  func.func @transform_1(%arg0: i32, %arg1: i32) -> (i32, i32, i32) {
    %c0_i32 = arith.constant 0 : i32
    %c0_i32_0 = arith.constant 0 : i32
    %c0_i32_1 = arith.constant 0 : i32
    return %arg0, %c0_i32, %c0_i32_0 : i32, i32, i32
  }
  func.func @transform_2(%arg0: i32, %arg1: i32) -> (i32, i32, i32) {
    %c0_i32 = arith.constant 0 : i32
    %c0_i32_0 = arith.constant 0 : i32
    %c0_i32_1 = arith.constant 0 : i32
    return %arg0, %c0_i32, %c0_i32_0 : i32, i32, i32
  }
  func.func @transform_3(%arg0: i32, %arg1: i32) -> (i32, i32, i32) {
    %c0_i32 = arith.constant 0 : i32
    %c0_i32_0 = arith.constant 0 : i32
    return %arg0, %arg1, %c0_i32 : i32, i32, i32
  }
}

module attributes {stable_mosaic.version = 11 : i64} {
  func.func @_point_matmul_kernel(%arg0: i32, %arg1: i32, %arg2: memref<1x32x3xf32, #tpu.memory_space<vmem>>, %arg3: memref<3x64xbf16, #tpu.memory_space<vmem>>, %arg4: memref<1x32x64xbf16, #tpu.memory_space<vmem>>) attributes {dimension_semantics = [#tpu.dimension_semantics<parallel>, #tpu.dimension_semantics<parallel>], iteration_bounds = array<i64: 2, 1>, scalar_prefetch = 0 : i64, scratch_operands = 0 : i64, tpu.core_type = #tpu.core_type<tc>, window_params = [{transform_indices = @transform_0, window_bounds = array<i64: 1, 32, 3>}, {pipeline_mode = #tpu.pipeline_mode<synchronous>, transform_indices = @transform_1, window_bounds = array<i64: 3, 64>}, {transform_indices = @transform_2, window_bounds = array<i64: 1, 32, 64>}]} {
    %c0 = arith.constant 0 : index
    %c0_0 = arith.constant 0 : index
    %c0_1 = arith.constant 0 : index
    %0 = vector.load %arg2[%c0, %c0_0, %c0_1] : memref<1x32x3xf32, #tpu.memory_space<vmem>>, vector<1x32x3xf32>
    %1 = vector.shape_cast %0 : vector<1x32x3xf32> to vector<32x3xf32>
    %2 = arith.truncf %1 : vector<32x3xf32> to vector<32x3xbf16>
    %c0_2 = arith.constant 0 : index
    %c0_3 = arith.constant 0 : index
    %3 = vector.load %arg3[%c0_2, %c0_3] : memref<3x64xbf16, #tpu.memory_space<vmem>>, vector<3x64xbf16>
    %cst = arith.constant dense<0.000000e+00> : vector<32x64xf32>
    %4 = tpu.matmul %2, %3, %cst {dimension_numbers = #tpu.dot_dimension_numbers<[1], [0], [0], [1], [0, 0, 1, 1], [], []>} : vector<32x3xbf16>, vector<3x64xbf16>, vector<32x64xf32> -> vector<32x64xf32>
    %5 = arith.truncf %4 : vector<32x64xf32> to vector<32x64xbf16>
    %c0_4 = arith.constant 0 : index
    %c0_5 = arith.constant 0 : index
    %c0_6 = arith.constant 0 : index
    %6 = vector.load %arg4[%c0_4, %c0_5, %c0_6] : memref<1x32x64xbf16, #tpu.memory_space<vmem>>, vector<1x32x64xbf16>
    %7 = vector.shape_cast %6 : vector<1x32x64xbf16> to vector<32x64xbf16>
    %8 = vector.shape_cast %5 : vector<32x64xbf16> to vector<1x32x64xbf16>
    tpu.vector_store %arg4[%c0_4, %c0_5, %c0_6], %8 {strides = array<i32>} : memref<1x32x64xbf16, #tpu.memory_space<vmem>>, vector<1x32x64xbf16>,
    return
  }
  func.func @transform_0(%arg0: i32, %arg1: i32) -> (i32, i32, i32) {
    %c0_i32 = arith.constant 0 : i32
    %c0_i32_0 = arith.constant 0 : i32
    return %arg0, %arg1, %c0_i32 : i32, i32, i32
  }
  func.func @transform_1(%arg0: i32, %arg1: i32) -> (i32, i32) {
    %c0_i32 = arith.constant 0 : i32
    %c0_i32_0 = arith.constant 0 : i32
    %c0_i32_1 = arith.constant 0 : i32
    return %c0_i32, %c0_i32_0 : i32, i32
  }
  func.func @transform_2(%arg0: i32, %arg1: i32) -> (i32, i32, i32) {
    %c0_i32 = arith.constant 0 : i32
    %c0_i32_0 = arith.constant 0 : i32
    return %arg0, %arg1, %c0_i32 : i32, i32, i32
  }
}

module attributes {stable_mosaic.version = 11 : i64} {
  func.func @_edge_agg_kernel(%arg0: i32, %arg1: i32, %arg2: memref<1x32x64xbf16, #tpu.memory_space<vmem>>, %arg3: memref<1x32x3xf32, #tpu.memory_space<vmem>>, %arg4: memref<3x64xbf16, #tpu.memory_space<vmem>>, %arg5: memref<1x64xf32, #tpu.memory_space<vmem>>, %arg6: memref<1x32x64xbf16, #tpu.memory_space<vmem>>) attributes {dimension_semantics = [#tpu.dimension_semantics<parallel>, #tpu.dimension_semantics<parallel>], iteration_bounds = array<i64: 2, 1>, scalar_prefetch = 0 : i64, scratch_operands = 0 : i64, tpu.core_type = #tpu.core_type<tc>, window_params = [{transform_indices = @transform_0, window_bounds = array<i64: 1, 32, 64>}, {transform_indices = @transform_1, window_bounds = array<i64: 1, 32, 3>}, {pipeline_mode = #tpu.pipeline_mode<synchronous>, transform_indices = @transform_2, window_bounds = array<i64: 3, 64>}, {pipeline_mode = #tpu.pipeline_mode<synchronous>, transform_indices = @transform_3, window_bounds = array<i64: 1, 64>}, {transform_indices = @transform_4, window_bounds = array<i64: 1, 32, 64>}]} {
    %c0 = arith.constant 0 : index
    %c0_0 = arith.constant 0 : index
    %c0_1 = arith.constant 0 : index
    %0 = vector.load %arg3[%c0, %c0_0, %c0_1] : memref<1x32x3xf32, #tpu.memory_space<vmem>>, vector<1x32x3xf32>
    %1 = vector.shape_cast %0 : vector<1x32x3xf32> to vector<32x3xf32>
    %2 = arith.truncf %1 : vector<32x3xf32> to vector<32x3xbf16>
    %c0_2 = arith.constant 0 : index
    %c0_3 = arith.constant 0 : index
    %3 = vector.load %arg4[%c0_2, %c0_3] : memref<3x64xbf16, #tpu.memory_space<vmem>>, vector<3x64xbf16>
    %cst = arith.constant dense<0.000000e+00> : vector<32x64xf32>
    %4 = tpu.matmul %2, %3, %cst {dimension_numbers = #tpu.dot_dimension_numbers<[1], [0], [0], [1], [0, 0, 1, 1], [], []>} : vector<32x3xbf16>, vector<3x64xbf16>, vector<32x64xf32> -> vector<32x64xf32>
    %c0_4 = arith.constant 0 : index
    %c0_5 = arith.constant 0 : index
    %c0_6 = arith.constant 0 : index
    %5 = vector.load %arg2[%c0_4, %c0_5, %c0_6] : memref<1x32x64xbf16, #tpu.memory_space<vmem>>, vector<1x32x64xbf16>
    %6 = vector.shape_cast %5 : vector<1x32x64xbf16> to vector<32x64xbf16>
    %7 = arith.extf %6 : vector<32x64xbf16> to vector<32x64xf32>
    %8 = arith.addf %7, %4 : vector<32x64xf32>
    %c0_7 = arith.constant 0 : index
    %c0_8 = arith.constant 0 : index
    %9 = vector.load %arg5[%c0_7, %c0_8] : memref<1x64xf32, #tpu.memory_space<vmem>>, vector<1x64xf32>
    %10 = vector.broadcast %9 : vector<1x64xf32> to vector<32x64xf32>
    %11 = arith.addf %8, %10 : vector<32x64xf32>
    %cst_9 = arith.constant 2.000000e-01 : f32
    %12 = vector.broadcast %cst_9 : f32 to vector<32x64xf32>
    %13 = arith.mulf %12, %11 : vector<32x64xf32>
    %14 = arith.maximumf %11, %13 : vector<32x64xf32>
    %15 = arith.truncf %14 : vector<32x64xf32> to vector<32x64xbf16>
    %c0_10 = arith.constant 0 : index
    %c0_11 = arith.constant 0 : index
    %c0_12 = arith.constant 0 : index
    %16 = vector.load %arg6[%c0_10, %c0_11, %c0_12] : memref<1x32x64xbf16, #tpu.memory_space<vmem>>, vector<1x32x64xbf16>
    %17 = vector.shape_cast %16 : vector<1x32x64xbf16> to vector<32x64xbf16>
    %18 = vector.shape_cast %15 : vector<32x64xbf16> to vector<1x32x64xbf16>
    tpu.vector_store %arg6[%c0_10, %c0_11, %c0_12], %18 {strides = array<i32>} : memref<1x32x64xbf16, #tpu.memory_space<vmem>>, vector<1x32x64xbf16>,
    return
  }
  func.func @transform_0(%arg0: i32, %arg1: i32) -> (i32, i32, i32) {
    %c0_i32 = arith.constant 0 : i32
    %c0_i32_0 = arith.constant 0 : i32
    return %arg0, %arg1, %c0_i32 : i32, i32, i32
  }
  func.func @transform_1(%arg0: i32, %arg1: i32) -> (i32, i32, i32) {
    %c0_i32 = arith.constant 0 : i32
    %c0_i32_0 = arith.constant 0 : i32
    return %arg0, %arg1, %c0_i32 : i32, i32, i32
  }
  func.func @transform_2(%arg0: i32, %arg1: i32) -> (i32, i32) {
    %c0_i32 = arith.constant 0 : i32
    %c0_i32_0 = arith.constant 0 : i32
    %c0_i32_1 = arith.constant 0 : i32
    return %c0_i32, %c0_i32_0 : i32, i32
  }
  func.func @transform_3(%arg0: i32, %arg1: i32) -> (i32, i32) {
    %c0_i32 = arith.constant 0 : i32
    %c0_i32_0 = arith.constant 0 : i32
    %c0_i32_1 = arith.constant 0 : i32
    return %c0_i32, %c0_i32_0 : i32, i32
  }
  func.func @transform_4(%arg0: i32, %arg1: i32) -> (i32, i32, i32) {
    %c0_i32 = arith.constant 0 : i32
    %c0_i32_0 = arith.constant 0 : i32
    return %arg0, %arg1, %c0_i32 : i32, i32, i32
  }
}

module attributes {stable_mosaic.version = 11 : i64} {
  func.func @_knn_score_kernel(%arg0: i32, %arg1: i32, %arg2: memref<1x32x64xbf16, #tpu.memory_space<vmem>>, %arg3: memref<1x32x64xbf16, #tpu.memory_space<vmem>>, %arg4: memref<1x1x32xf32, #tpu.memory_space<vmem>>, %arg5: memref<1x32x32xbf16, #tpu.memory_space<vmem>>) attributes {dimension_semantics = [#tpu.dimension_semantics<parallel>, #tpu.dimension_semantics<parallel>], iteration_bounds = array<i64: 2, 1>, scalar_prefetch = 0 : i64, scratch_operands = 0 : i64, tpu.core_type = #tpu.core_type<tc>, window_params = [{transform_indices = @transform_0, window_bounds = array<i64: 1, 32, 64>}, {transform_indices = @transform_1, window_bounds = array<i64: 1, 32, 64>}, {transform_indices = @transform_2, window_bounds = array<i64: 1, 1, 32>}, {transform_indices = @transform_3, window_bounds = array<i64: 1, 32, 32>}]} {
    %c0 = arith.constant 0 : index
    %c0_0 = arith.constant 0 : index
    %c0_1 = arith.constant 0 : index
    %0 = vector.load %arg2[%c0, %c0_0, %c0_1] : memref<1x32x64xbf16, #tpu.memory_space<vmem>>, vector<1x32x64xbf16>
    %1 = vector.shape_cast %0 : vector<1x32x64xbf16> to vector<32x64xbf16>
    %c0_2 = arith.constant 0 : index
    %c0_3 = arith.constant 0 : index
    %c0_4 = arith.constant 0 : index
    %2 = vector.load %arg3[%c0_2, %c0_3, %c0_4] : memref<1x32x64xbf16, #tpu.memory_space<vmem>>, vector<1x32x64xbf16>
    %3 = vector.shape_cast %2 : vector<1x32x64xbf16> to vector<32x64xbf16>
    %cst = arith.constant dense<0.000000e+00> : vector<32x32xf32>
    %4 = tpu.matmul %1, %3, %cst {dimension_numbers = #tpu.dot_dimension_numbers<[1], [1], [0], [0], [0, 0, 1, 0], [], []>} : vector<32x64xbf16>, vector<32x64xbf16>, vector<32x32xf32> -> vector<32x32xf32>
    %5 = arith.extf %1 : vector<32x64xbf16> to vector<32x64xf32>
    %6 = arith.mulf %5, %5 : vector<32x64xf32>
    %cst_5 = arith.constant dense<0.000000e+00> : vector<32xf32>
    %7 = vector.multi_reduction <add>, %6, %cst_5 [1] : vector<32x64xf32> to vector<32xf32>
    %8 = vector.shape_cast %7 : vector<32xf32> to vector<32x1xf32>
    %cst_6 = arith.constant 5.000000e-01 : f32
    %9 = vector.broadcast %cst_6 : f32 to vector<32x1xf32>
    %10 = arith.mulf %9, %8 : vector<32x1xf32>
    %11 = vector.broadcast %10 : vector<32x1xf32> to vector<32x32xf32>
    %12 = arith.subf %4, %11 : vector<32x32xf32>
    %c0_7 = arith.constant 0 : index
    %c0_8 = arith.constant 0 : index
    %c0_9 = arith.constant 0 : index
    %13 = vector.load %arg4[%c0_7, %c0_8, %c0_9] : memref<1x1x32xf32, #tpu.memory_space<vmem>>, vector<1x1x32xf32>
    %14 = vector.shape_cast %13 : vector<1x1x32xf32> to vector<1x32xf32>
    %15 = vector.broadcast %14 : vector<1x32xf32> to vector<32x32xf32>
    %16 = arith.subf %12, %15 : vector<32x32xf32>
    %17 = arith.truncf %16 : vector<32x32xf32> to vector<32x32xbf16>
    %c0_10 = arith.constant 0 : index
    %c0_11 = arith.constant 0 : index
    %c0_12 = arith.constant 0 : index
    %18 = vector.load %arg5[%c0_10, %c0_11, %c0_12] : memref<1x32x32xbf16, #tpu.memory_space<vmem>>, vector<1x32x32xbf16>
    %19 = vector.shape_cast %18 : vector<1x32x32xbf16> to vector<32x32xbf16>
    %20 = vector.shape_cast %17 : vector<32x32xbf16> to vector<1x32x32xbf16>
    tpu.vector_store %arg5[%c0_10, %c0_11, %c0_12], %20 {strides = array<i32>} : memref<1x32x32xbf16, #tpu.memory_space<vmem>>, vector<1x32x32xbf16>,
    return
  }
  func.func @transform_0(%arg0: i32, %arg1: i32) -> (i32, i32, i32) {
    %c0_i32 = arith.constant 0 : i32
    %c0_i32_0 = arith.constant 0 : i32
    return %arg0, %arg1, %c0_i32 : i32, i32, i32
  }
  func.func @transform_1(%arg0: i32, %arg1: i32) -> (i32, i32, i32) {
    %c0_i32 = arith.constant 0 : i32
    %c0_i32_0 = arith.constant 0 : i32
    %c0_i32_1 = arith.constant 0 : i32
    return %arg0, %c0_i32, %c0_i32_0 : i32, i32, i32
  }
  func.func @transform_2(%arg0: i32, %arg1: i32) -> (i32, i32, i32) {
    %c0_i32 = arith.constant 0 : i32
    %c0_i32_0 = arith.constant 0 : i32
    %c0_i32_1 = arith.constant 0 : i32
    return %arg0, %c0_i32, %c0_i32_0 : i32, i32, i32
  }
  func.func @transform_3(%arg0: i32, %arg1: i32) -> (i32, i32, i32) {
    %c0_i32 = arith.constant 0 : i32
    %c0_i32_0 = arith.constant 0 : i32
    return %arg0, %arg1, %c0_i32 : i32, i32, i32
  }
}

module attributes {stable_mosaic.version = 11 : i64} {
  func.func @_point_matmul_kernel(%arg0: i32, %arg1: i32, %arg2: memref<1x32x64xbf16, #tpu.memory_space<vmem>>, %arg3: memref<64x64xbf16, #tpu.memory_space<vmem>>, %arg4: memref<1x32x64xbf16, #tpu.memory_space<vmem>>) attributes {dimension_semantics = [#tpu.dimension_semantics<parallel>, #tpu.dimension_semantics<parallel>], iteration_bounds = array<i64: 2, 1>, scalar_prefetch = 0 : i64, scratch_operands = 0 : i64, tpu.core_type = #tpu.core_type<tc>, window_params = [{transform_indices = @transform_0, window_bounds = array<i64: 1, 32, 64>}, {pipeline_mode = #tpu.pipeline_mode<synchronous>, transform_indices = @transform_1, window_bounds = array<i64: 64, 64>}, {transform_indices = @transform_2, window_bounds = array<i64: 1, 32, 64>}]} {
    %c0 = arith.constant 0 : index
    %c0_0 = arith.constant 0 : index
    %c0_1 = arith.constant 0 : index
    %0 = vector.load %arg2[%c0, %c0_0, %c0_1] : memref<1x32x64xbf16, #tpu.memory_space<vmem>>, vector<1x32x64xbf16>
    %1 = vector.shape_cast %0 : vector<1x32x64xbf16> to vector<32x64xbf16>
    %c0_2 = arith.constant 0 : index
    %c0_3 = arith.constant 0 : index
    %2 = vector.load %arg3[%c0_2, %c0_3] : memref<64x64xbf16, #tpu.memory_space<vmem>>, vector<64x64xbf16>
    %cst = arith.constant dense<0.000000e+00> : vector<32x64xf32>
    %3 = tpu.matmul %1, %2, %cst {dimension_numbers = #tpu.dot_dimension_numbers<[1], [0], [0], [1], [0, 0, 1, 1], [], []>} : vector<32x64xbf16>, vector<64x64xbf16>, vector<32x64xf32> -> vector<32x64xf32>
    %4 = arith.truncf %3 : vector<32x64xf32> to vector<32x64xbf16>
    %c0_4 = arith.constant 0 : index
    %c0_5 = arith.constant 0 : index
    %c0_6 = arith.constant 0 : index
    %5 = vector.load %arg4[%c0_4, %c0_5, %c0_6] : memref<1x32x64xbf16, #tpu.memory_space<vmem>>, vector<1x32x64xbf16>
    %6 = vector.shape_cast %5 : vector<1x32x64xbf16> to vector<32x64xbf16>
    %7 = vector.shape_cast %4 : vector<32x64xbf16> to vector<1x32x64xbf16>
    tpu.vector_store %arg4[%c0_4, %c0_5, %c0_6], %7 {strides = array<i32>} : memref<1x32x64xbf16, #tpu.memory_space<vmem>>, vector<1x32x64xbf16>,
    return
  }
  func.func @transform_0(%arg0: i32, %arg1: i32) -> (i32, i32, i32) {
    %c0_i32 = arith.constant 0 : i32
    %c0_i32_0 = arith.constant 0 : i32
    return %arg0, %arg1, %c0_i32 : i32, i32, i32
  }
  func.func @transform_1(%arg0: i32, %arg1: i32) -> (i32, i32) {
    %c0_i32 = arith.constant 0 : i32
    %c0_i32_0 = arith.constant 0 : i32
    %c0_i32_1 = arith.constant 0 : i32
    return %c0_i32, %c0_i32_0 : i32, i32
  }
  func.func @transform_2(%arg0: i32, %arg1: i32) -> (i32, i32, i32) {
    %c0_i32 = arith.constant 0 : i32
    %c0_i32_0 = arith.constant 0 : i32
    return %arg0, %arg1, %c0_i32 : i32, i32, i32
  }
}

module attributes {stable_mosaic.version = 11 : i64} {
  func.func @_edge_agg_kernel(%arg0: i32, %arg1: i32, %arg2: memref<1x32x64xbf16, #tpu.memory_space<vmem>>, %arg3: memref<1x32x64xbf16, #tpu.memory_space<vmem>>, %arg4: memref<64x64xbf16, #tpu.memory_space<vmem>>, %arg5: memref<1x64xf32, #tpu.memory_space<vmem>>, %arg6: memref<1x32x64xbf16, #tpu.memory_space<vmem>>) attributes {dimension_semantics = [#tpu.dimension_semantics<parallel>, #tpu.dimension_semantics<parallel>], iteration_bounds = array<i64: 2, 1>, scalar_prefetch = 0 : i64, scratch_operands = 0 : i64, tpu.core_type = #tpu.core_type<tc>, window_params = [{transform_indices = @transform_0, window_bounds = array<i64: 1, 32, 64>}, {transform_indices = @transform_1, window_bounds = array<i64: 1, 32, 64>}, {pipeline_mode = #tpu.pipeline_mode<synchronous>, transform_indices = @transform_2, window_bounds = array<i64: 64, 64>}, {pipeline_mode = #tpu.pipeline_mode<synchronous>, transform_indices = @transform_3, window_bounds = array<i64: 1, 64>}, {transform_indices = @transform_4, window_bounds = array<i64: 1, 32, 64>}]} {
    %c0 = arith.constant 0 : index
    %c0_0 = arith.constant 0 : index
    %c0_1 = arith.constant 0 : index
    %0 = vector.load %arg3[%c0, %c0_0, %c0_1] : memref<1x32x64xbf16, #tpu.memory_space<vmem>>, vector<1x32x64xbf16>
    %1 = vector.shape_cast %0 : vector<1x32x64xbf16> to vector<32x64xbf16>
    %c0_2 = arith.constant 0 : index
    %c0_3 = arith.constant 0 : index
    %2 = vector.load %arg4[%c0_2, %c0_3] : memref<64x64xbf16, #tpu.memory_space<vmem>>, vector<64x64xbf16>
    %cst = arith.constant dense<0.000000e+00> : vector<32x64xf32>
    %3 = tpu.matmul %1, %2, %cst {dimension_numbers = #tpu.dot_dimension_numbers<[1], [0], [0], [1], [0, 0, 1, 1], [], []>} : vector<32x64xbf16>, vector<64x64xbf16>, vector<32x64xf32> -> vector<32x64xf32>
    %c0_4 = arith.constant 0 : index
    %c0_5 = arith.constant 0 : index
    %c0_6 = arith.constant 0 : index
    %4 = vector.load %arg2[%c0_4, %c0_5, %c0_6] : memref<1x32x64xbf16, #tpu.memory_space<vmem>>, vector<1x32x64xbf16>
    %5 = vector.shape_cast %4 : vector<1x32x64xbf16> to vector<32x64xbf16>
    %6 = arith.extf %5 : vector<32x64xbf16> to vector<32x64xf32>
    %7 = arith.addf %6, %3 : vector<32x64xf32>
    %c0_7 = arith.constant 0 : index
    %c0_8 = arith.constant 0 : index
    %8 = vector.load %arg5[%c0_7, %c0_8] : memref<1x64xf32, #tpu.memory_space<vmem>>, vector<1x64xf32>
    %9 = vector.broadcast %8 : vector<1x64xf32> to vector<32x64xf32>
    %10 = arith.addf %7, %9 : vector<32x64xf32>
    %cst_9 = arith.constant 2.000000e-01 : f32
    %11 = vector.broadcast %cst_9 : f32 to vector<32x64xf32>
    %12 = arith.mulf %11, %10 : vector<32x64xf32>
    %13 = arith.maximumf %10, %12 : vector<32x64xf32>
    %14 = arith.truncf %13 : vector<32x64xf32> to vector<32x64xbf16>
    %c0_10 = arith.constant 0 : index
    %c0_11 = arith.constant 0 : index
    %c0_12 = arith.constant 0 : index
    %15 = vector.load %arg6[%c0_10, %c0_11, %c0_12] : memref<1x32x64xbf16, #tpu.memory_space<vmem>>, vector<1x32x64xbf16>
    %16 = vector.shape_cast %15 : vector<1x32x64xbf16> to vector<32x64xbf16>
    %17 = vector.shape_cast %14 : vector<32x64xbf16> to vector<1x32x64xbf16>
    tpu.vector_store %arg6[%c0_10, %c0_11, %c0_12], %17 {strides = array<i32>} : memref<1x32x64xbf16, #tpu.memory_space<vmem>>, vector<1x32x64xbf16>,
    return
  }
  func.func @transform_0(%arg0: i32, %arg1: i32) -> (i32, i32, i32) {
    %c0_i32 = arith.constant 0 : i32
    %c0_i32_0 = arith.constant 0 : i32
    return %arg0, %arg1, %c0_i32 : i32, i32, i32
  }
  func.func @transform_1(%arg0: i32, %arg1: i32) -> (i32, i32, i32) {
    %c0_i32 = arith.constant 0 : i32
    %c0_i32_0 = arith.constant 0 : i32
    return %arg0, %arg1, %c0_i32 : i32, i32, i32
  }
  func.func @transform_2(%arg0: i32, %arg1: i32) -> (i32, i32) {
    %c0_i32 = arith.constant 0 : i32
    %c0_i32_0 = arith.constant 0 : i32
    %c0_i32_1 = arith.constant 0 : i32
    return %c0_i32, %c0_i32_0 : i32, i32
  }
  func.func @transform_3(%arg0: i32, %arg1: i32) -> (i32, i32) {
    %c0_i32 = arith.constant 0 : i32
    %c0_i32_0 = arith.constant 0 : i32
    %c0_i32_1 = arith.constant 0 : i32
    return %c0_i32, %c0_i32_0 : i32, i32
  }
  func.func @transform_4(%arg0: i32, %arg1: i32) -> (i32, i32, i32) {
    %c0_i32 = arith.constant 0 : i32
    %c0_i32_0 = arith.constant 0 : i32
    return %arg0, %arg1, %c0_i32 : i32, i32, i32
  }
}

module attributes {stable_mosaic.version = 11 : i64} {
  func.func @_point_matmul_kernel(%arg0: i32, %arg1: i32, %arg2: memref<1x32x64xbf16, #tpu.memory_space<vmem>>, %arg3: memref<64x128xbf16, #tpu.memory_space<vmem>>, %arg4: memref<1x32x128xbf16, #tpu.memory_space<vmem>>) attributes {dimension_semantics = [#tpu.dimension_semantics<parallel>, #tpu.dimension_semantics<parallel>], iteration_bounds = array<i64: 2, 1>, scalar_prefetch = 0 : i64, scratch_operands = 0 : i64, tpu.core_type = #tpu.core_type<tc>, window_params = [{transform_indices = @transform_0, window_bounds = array<i64: 1, 32, 64>}, {pipeline_mode = #tpu.pipeline_mode<synchronous>, transform_indices = @transform_1, window_bounds = array<i64: 64, 128>}, {transform_indices = @transform_2, window_bounds = array<i64: 1, 32, 128>}]} {
    %c0 = arith.constant 0 : index
    %c0_0 = arith.constant 0 : index
    %c0_1 = arith.constant 0 : index
    %0 = vector.load %arg2[%c0, %c0_0, %c0_1] : memref<1x32x64xbf16, #tpu.memory_space<vmem>>, vector<1x32x64xbf16>
    %1 = vector.shape_cast %0 : vector<1x32x64xbf16> to vector<32x64xbf16>
    %c0_2 = arith.constant 0 : index
    %c0_3 = arith.constant 0 : index
    %2 = vector.load %arg3[%c0_2, %c0_3] : memref<64x128xbf16, #tpu.memory_space<vmem>>, vector<64x128xbf16>
    %cst = arith.constant dense<0.000000e+00> : vector<32x128xf32>
    %3 = tpu.matmul %1, %2, %cst {dimension_numbers = #tpu.dot_dimension_numbers<[1], [0], [0], [1], [0, 0, 1, 1], [], []>} : vector<32x64xbf16>, vector<64x128xbf16>, vector<32x128xf32> -> vector<32x128xf32>
    %4 = arith.truncf %3 : vector<32x128xf32> to vector<32x128xbf16>
    %c0_4 = arith.constant 0 : index
    %c0_5 = arith.constant 0 : index
    %c0_6 = arith.constant 0 : index
    %5 = vector.load %arg4[%c0_4, %c0_5, %c0_6] : memref<1x32x128xbf16, #tpu.memory_space<vmem>>, vector<1x32x128xbf16>
    %6 = vector.shape_cast %5 : vector<1x32x128xbf16> to vector<32x128xbf16>
    %7 = vector.shape_cast %4 : vector<32x128xbf16> to vector<1x32x128xbf16>
    tpu.vector_store %arg4[%c0_4, %c0_5, %c0_6], %7 {strides = array<i32>} : memref<1x32x128xbf16, #tpu.memory_space<vmem>>, vector<1x32x128xbf16>,
    return
  }
  func.func @transform_0(%arg0: i32, %arg1: i32) -> (i32, i32, i32) {
    %c0_i32 = arith.constant 0 : i32
    %c0_i32_0 = arith.constant 0 : i32
    return %arg0, %arg1, %c0_i32 : i32, i32, i32
  }
  func.func @transform_1(%arg0: i32, %arg1: i32) -> (i32, i32) {
    %c0_i32 = arith.constant 0 : i32
    %c0_i32_0 = arith.constant 0 : i32
    %c0_i32_1 = arith.constant 0 : i32
    return %c0_i32, %c0_i32_0 : i32, i32
  }
  func.func @transform_2(%arg0: i32, %arg1: i32) -> (i32, i32, i32) {
    %c0_i32 = arith.constant 0 : i32
    %c0_i32_0 = arith.constant 0 : i32
    return %arg0, %arg1, %c0_i32 : i32, i32, i32
  }
}

module attributes {stable_mosaic.version = 11 : i64} {
  func.func @_edge_agg_kernel(%arg0: i32, %arg1: i32, %arg2: memref<1x32x128xbf16, #tpu.memory_space<vmem>>, %arg3: memref<1x32x64xbf16, #tpu.memory_space<vmem>>, %arg4: memref<64x128xbf16, #tpu.memory_space<vmem>>, %arg5: memref<1x128xf32, #tpu.memory_space<vmem>>, %arg6: memref<1x32x128xbf16, #tpu.memory_space<vmem>>) attributes {dimension_semantics = [#tpu.dimension_semantics<parallel>, #tpu.dimension_semantics<parallel>], iteration_bounds = array<i64: 2, 1>, scalar_prefetch = 0 : i64, scratch_operands = 0 : i64, tpu.core_type = #tpu.core_type<tc>, window_params = [{transform_indices = @transform_0, window_bounds = array<i64: 1, 32, 128>}, {transform_indices = @transform_1, window_bounds = array<i64: 1, 32, 64>}, {pipeline_mode = #tpu.pipeline_mode<synchronous>, transform_indices = @transform_2, window_bounds = array<i64: 64, 128>}, {pipeline_mode = #tpu.pipeline_mode<synchronous>, transform_indices = @transform_3, window_bounds = array<i64: 1, 128>}, {transform_indices = @transform_4, window_bounds = array<i64: 1, 32, 128>}]} {
    %c0 = arith.constant 0 : index
    %c0_0 = arith.constant 0 : index
    %c0_1 = arith.constant 0 : index
    %0 = vector.load %arg3[%c0, %c0_0, %c0_1] : memref<1x32x64xbf16, #tpu.memory_space<vmem>>, vector<1x32x64xbf16>
    %1 = vector.shape_cast %0 : vector<1x32x64xbf16> to vector<32x64xbf16>
    %c0_2 = arith.constant 0 : index
    %c0_3 = arith.constant 0 : index
    %2 = vector.load %arg4[%c0_2, %c0_3] : memref<64x128xbf16, #tpu.memory_space<vmem>>, vector<64x128xbf16>
    %cst = arith.constant dense<0.000000e+00> : vector<32x128xf32>
    %3 = tpu.matmul %1, %2, %cst {dimension_numbers = #tpu.dot_dimension_numbers<[1], [0], [0], [1], [0, 0, 1, 1], [], []>} : vector<32x64xbf16>, vector<64x128xbf16>, vector<32x128xf32> -> vector<32x128xf32>
    %c0_4 = arith.constant 0 : index
    %c0_5 = arith.constant 0 : index
    %c0_6 = arith.constant 0 : index
    %4 = vector.load %arg2[%c0_4, %c0_5, %c0_6] : memref<1x32x128xbf16, #tpu.memory_space<vmem>>, vector<1x32x128xbf16>
    %5 = vector.shape_cast %4 : vector<1x32x128xbf16> to vector<32x128xbf16>
    %6 = arith.extf %5 : vector<32x128xbf16> to vector<32x128xf32>
    %7 = arith.addf %6, %3 : vector<32x128xf32>
    %c0_7 = arith.constant 0 : index
    %c0_8 = arith.constant 0 : index
    %8 = vector.load %arg5[%c0_7, %c0_8] : memref<1x128xf32, #tpu.memory_space<vmem>>, vector<1x128xf32>
    %9 = vector.broadcast %8 : vector<1x128xf32> to vector<32x128xf32>
    %10 = arith.addf %7, %9 : vector<32x128xf32>
    %cst_9 = arith.constant 2.000000e-01 : f32
    %11 = vector.broadcast %cst_9 : f32 to vector<32x128xf32>
    %12 = arith.mulf %11, %10 : vector<32x128xf32>
    %13 = arith.maximumf %10, %12 : vector<32x128xf32>
    %14 = arith.truncf %13 : vector<32x128xf32> to vector<32x128xbf16>
    %c0_10 = arith.constant 0 : index
    %c0_11 = arith.constant 0 : index
    %c0_12 = arith.constant 0 : index
    %15 = vector.load %arg6[%c0_10, %c0_11, %c0_12] : memref<1x32x128xbf16, #tpu.memory_space<vmem>>, vector<1x32x128xbf16>
    %16 = vector.shape_cast %15 : vector<1x32x128xbf16> to vector<32x128xbf16>
    %17 = vector.shape_cast %14 : vector<32x128xbf16> to vector<1x32x128xbf16>
    tpu.vector_store %arg6[%c0_10, %c0_11, %c0_12], %17 {strides = array<i32>} : memref<1x32x128xbf16, #tpu.memory_space<vmem>>, vector<1x32x128xbf16>,
    return
  }
  func.func @transform_0(%arg0: i32, %arg1: i32) -> (i32, i32, i32) {
    %c0_i32 = arith.constant 0 : i32
    %c0_i32_0 = arith.constant 0 : i32
    return %arg0, %arg1, %c0_i32 : i32, i32, i32
  }
  func.func @transform_1(%arg0: i32, %arg1: i32) -> (i32, i32, i32) {
    %c0_i32 = arith.constant 0 : i32
    %c0_i32_0 = arith.constant 0 : i32
    return %arg0, %arg1, %c0_i32 : i32, i32, i32
  }
  func.func @transform_2(%arg0: i32, %arg1: i32) -> (i32, i32) {
    %c0_i32 = arith.constant 0 : i32
    %c0_i32_0 = arith.constant 0 : i32
    %c0_i32_1 = arith.constant 0 : i32
    return %c0_i32, %c0_i32_0 : i32, i32
  }
  func.func @transform_3(%arg0: i32, %arg1: i32) -> (i32, i32) {
    %c0_i32 = arith.constant 0 : i32
    %c0_i32_0 = arith.constant 0 : i32
    %c0_i32_1 = arith.constant 0 : i32
    return %c0_i32, %c0_i32_0 : i32, i32
  }
  func.func @transform_4(%arg0: i32, %arg1: i32) -> (i32, i32, i32) {
    %c0_i32 = arith.constant 0 : i32
    %c0_i32_0 = arith.constant 0 : i32
    return %arg0, %arg1, %c0_i32 : i32, i32, i32
  }
}

module attributes {stable_mosaic.version = 11 : i64} {
  func.func @_knn_score_kernel(%arg0: i32, %arg1: i32, %arg2: memref<1x32x128xbf16, #tpu.memory_space<vmem>>, %arg3: memref<1x32x128xbf16, #tpu.memory_space<vmem>>, %arg4: memref<1x1x32xf32, #tpu.memory_space<vmem>>, %arg5: memref<1x32x32xbf16, #tpu.memory_space<vmem>>) attributes {dimension_semantics = [#tpu.dimension_semantics<parallel>, #tpu.dimension_semantics<parallel>], iteration_bounds = array<i64: 2, 1>, scalar_prefetch = 0 : i64, scratch_operands = 0 : i64, tpu.core_type = #tpu.core_type<tc>, window_params = [{transform_indices = @transform_0, window_bounds = array<i64: 1, 32, 128>}, {transform_indices = @transform_1, window_bounds = array<i64: 1, 32, 128>}, {transform_indices = @transform_2, window_bounds = array<i64: 1, 1, 32>}, {transform_indices = @transform_3, window_bounds = array<i64: 1, 32, 32>}]} {
    %c0 = arith.constant 0 : index
    %c0_0 = arith.constant 0 : index
    %c0_1 = arith.constant 0 : index
    %0 = vector.load %arg2[%c0, %c0_0, %c0_1] : memref<1x32x128xbf16, #tpu.memory_space<vmem>>, vector<1x32x128xbf16>
    %1 = vector.shape_cast %0 : vector<1x32x128xbf16> to vector<32x128xbf16>
    %c0_2 = arith.constant 0 : index
    %c0_3 = arith.constant 0 : index
    %c0_4 = arith.constant 0 : index
    %2 = vector.load %arg3[%c0_2, %c0_3, %c0_4] : memref<1x32x128xbf16, #tpu.memory_space<vmem>>, vector<1x32x128xbf16>
    %3 = vector.shape_cast %2 : vector<1x32x128xbf16> to vector<32x128xbf16>
    %cst = arith.constant dense<0.000000e+00> : vector<32x32xf32>
    %4 = tpu.matmul %1, %3, %cst {dimension_numbers = #tpu.dot_dimension_numbers<[1], [1], [0], [0], [0, 0, 1, 0], [], []>} : vector<32x128xbf16>, vector<32x128xbf16>, vector<32x32xf32> -> vector<32x32xf32>
    %5 = arith.extf %1 : vector<32x128xbf16> to vector<32x128xf32>
    %6 = arith.mulf %5, %5 : vector<32x128xf32>
    %cst_5 = arith.constant dense<0.000000e+00> : vector<32xf32>
    %7 = vector.multi_reduction <add>, %6, %cst_5 [1] : vector<32x128xf32> to vector<32xf32>
    %8 = vector.shape_cast %7 : vector<32xf32> to vector<32x1xf32>
    %cst_6 = arith.constant 5.000000e-01 : f32
    %9 = vector.broadcast %cst_6 : f32 to vector<32x1xf32>
    %10 = arith.mulf %9, %8 : vector<32x1xf32>
    %11 = vector.broadcast %10 : vector<32x1xf32> to vector<32x32xf32>
    %12 = arith.subf %4, %11 : vector<32x32xf32>
    %c0_7 = arith.constant 0 : index
    %c0_8 = arith.constant 0 : index
    %c0_9 = arith.constant 0 : index
    %13 = vector.load %arg4[%c0_7, %c0_8, %c0_9] : memref<1x1x32xf32, #tpu.memory_space<vmem>>, vector<1x1x32xf32>
    %14 = vector.shape_cast %13 : vector<1x1x32xf32> to vector<1x32xf32>
    %15 = vector.broadcast %14 : vector<1x32xf32> to vector<32x32xf32>
    %16 = arith.subf %12, %15 : vector<32x32xf32>
    %17 = arith.truncf %16 : vector<32x32xf32> to vector<32x32xbf16>
    %c0_10 = arith.constant 0 : index
    %c0_11 = arith.constant 0 : index
    %c0_12 = arith.constant 0 : index
    %18 = vector.load %arg5[%c0_10, %c0_11, %c0_12] : memref<1x32x32xbf16, #tpu.memory_space<vmem>>, vector<1x32x32xbf16>
    %19 = vector.shape_cast %18 : vector<1x32x32xbf16> to vector<32x32xbf16>
    %20 = vector.shape_cast %17 : vector<32x32xbf16> to vector<1x32x32xbf16>
    tpu.vector_store %arg5[%c0_10, %c0_11, %c0_12], %20 {strides = array<i32>} : memref<1x32x32xbf16, #tpu.memory_space<vmem>>, vector<1x32x32xbf16>,
    return
  }
  func.func @transform_0(%arg0: i32, %arg1: i32) -> (i32, i32, i32) {
    %c0_i32 = arith.constant 0 : i32
    %c0_i32_0 = arith.constant 0 : i32
    return %arg0, %arg1, %c0_i32 : i32, i32, i32
  }
  func.func @transform_1(%arg0: i32, %arg1: i32) -> (i32, i32, i32) {
    %c0_i32 = arith.constant 0 : i32
    %c0_i32_0 = arith.constant 0 : i32
    %c0_i32_1 = arith.constant 0 : i32
    return %arg0, %c0_i32, %c0_i32_0 : i32, i32, i32
  }
  func.func @transform_2(%arg0: i32, %arg1: i32) -> (i32, i32, i32) {
    %c0_i32 = arith.constant 0 : i32
    %c0_i32_0 = arith.constant 0 : i32
    %c0_i32_1 = arith.constant 0 : i32
    return %arg0, %c0_i32, %c0_i32_0 : i32, i32, i32
  }
  func.func @transform_3(%arg0: i32, %arg1: i32) -> (i32, i32, i32) {
    %c0_i32 = arith.constant 0 : i32
    %c0_i32_0 = arith.constant 0 : i32
    return %arg0, %arg1, %c0_i32 : i32, i32, i32
  }
}

module attributes {stable_mosaic.version = 11 : i64} {
  func.func @_point_matmul_kernel(%arg0: i32, %arg1: i32, %arg2: memref<1x32x128xbf16, #tpu.memory_space<vmem>>, %arg3: memref<128x256xbf16, #tpu.memory_space<vmem>>, %arg4: memref<1x32x256xbf16, #tpu.memory_space<vmem>>) attributes {dimension_semantics = [#tpu.dimension_semantics<parallel>, #tpu.dimension_semantics<parallel>], iteration_bounds = array<i64: 2, 1>, scalar_prefetch = 0 : i64, scratch_operands = 0 : i64, tpu.core_type = #tpu.core_type<tc>, window_params = [{transform_indices = @transform_0, window_bounds = array<i64: 1, 32, 128>}, {pipeline_mode = #tpu.pipeline_mode<synchronous>, transform_indices = @transform_1, window_bounds = array<i64: 128, 256>}, {transform_indices = @transform_2, window_bounds = array<i64: 1, 32, 256>}]} {
    %c0 = arith.constant 0 : index
    %c0_0 = arith.constant 0 : index
    %c0_1 = arith.constant 0 : index
    %0 = vector.load %arg2[%c0, %c0_0, %c0_1] : memref<1x32x128xbf16, #tpu.memory_space<vmem>>, vector<1x32x128xbf16>
    %1 = vector.shape_cast %0 : vector<1x32x128xbf16> to vector<32x128xbf16>
    %c0_2 = arith.constant 0 : index
    %c0_3 = arith.constant 0 : index
    %2 = vector.load %arg3[%c0_2, %c0_3] : memref<128x256xbf16, #tpu.memory_space<vmem>>, vector<128x256xbf16>
    %cst = arith.constant dense<0.000000e+00> : vector<32x256xf32>
    %3 = tpu.matmul %1, %2, %cst {dimension_numbers = #tpu.dot_dimension_numbers<[1], [0], [0], [1], [0, 0, 1, 1], [], []>} : vector<32x128xbf16>, vector<128x256xbf16>, vector<32x256xf32> -> vector<32x256xf32>
    %4 = arith.truncf %3 : vector<32x256xf32> to vector<32x256xbf16>
    %c0_4 = arith.constant 0 : index
    %c0_5 = arith.constant 0 : index
    %c0_6 = arith.constant 0 : index
    %5 = vector.load %arg4[%c0_4, %c0_5, %c0_6] : memref<1x32x256xbf16, #tpu.memory_space<vmem>>, vector<1x32x256xbf16>
    %6 = vector.shape_cast %5 : vector<1x32x256xbf16> to vector<32x256xbf16>
    %7 = vector.shape_cast %4 : vector<32x256xbf16> to vector<1x32x256xbf16>
    tpu.vector_store %arg4[%c0_4, %c0_5, %c0_6], %7 {strides = array<i32>} : memref<1x32x256xbf16, #tpu.memory_space<vmem>>, vector<1x32x256xbf16>,
    return
  }
  func.func @transform_0(%arg0: i32, %arg1: i32) -> (i32, i32, i32) {
    %c0_i32 = arith.constant 0 : i32
    %c0_i32_0 = arith.constant 0 : i32
    return %arg0, %arg1, %c0_i32 : i32, i32, i32
  }
  func.func @transform_1(%arg0: i32, %arg1: i32) -> (i32, i32) {
    %c0_i32 = arith.constant 0 : i32
    %c0_i32_0 = arith.constant 0 : i32
    %c0_i32_1 = arith.constant 0 : i32
    return %c0_i32, %c0_i32_0 : i32, i32
  }
  func.func @transform_2(%arg0: i32, %arg1: i32) -> (i32, i32, i32) {
    %c0_i32 = arith.constant 0 : i32
    %c0_i32_0 = arith.constant 0 : i32
    return %arg0, %arg1, %c0_i32 : i32, i32, i32
  }
}

module attributes {stable_mosaic.version = 11 : i64} {
  func.func @_edge_agg_kernel(%arg0: i32, %arg1: i32, %arg2: memref<1x32x256xbf16, #tpu.memory_space<vmem>>, %arg3: memref<1x32x128xbf16, #tpu.memory_space<vmem>>, %arg4: memref<128x256xbf16, #tpu.memory_space<vmem>>, %arg5: memref<1x256xf32, #tpu.memory_space<vmem>>, %arg6: memref<1x32x256xbf16, #tpu.memory_space<vmem>>) attributes {dimension_semantics = [#tpu.dimension_semantics<parallel>, #tpu.dimension_semantics<parallel>], iteration_bounds = array<i64: 2, 1>, scalar_prefetch = 0 : i64, scratch_operands = 0 : i64, tpu.core_type = #tpu.core_type<tc>, window_params = [{transform_indices = @transform_0, window_bounds = array<i64: 1, 32, 256>}, {transform_indices = @transform_1, window_bounds = array<i64: 1, 32, 128>}, {pipeline_mode = #tpu.pipeline_mode<synchronous>, transform_indices = @transform_2, window_bounds = array<i64: 128, 256>}, {pipeline_mode = #tpu.pipeline_mode<synchronous>, transform_indices = @transform_3, window_bounds = array<i64: 1, 256>}, {transform_indices = @transform_4, window_bounds = array<i64: 1, 32, 256>}]} {
    %c0 = arith.constant 0 : index
    %c0_0 = arith.constant 0 : index
    %c0_1 = arith.constant 0 : index
    %0 = vector.load %arg3[%c0, %c0_0, %c0_1] : memref<1x32x128xbf16, #tpu.memory_space<vmem>>, vector<1x32x128xbf16>
    %1 = vector.shape_cast %0 : vector<1x32x128xbf16> to vector<32x128xbf16>
    %c0_2 = arith.constant 0 : index
    %c0_3 = arith.constant 0 : index
    %2 = vector.load %arg4[%c0_2, %c0_3] : memref<128x256xbf16, #tpu.memory_space<vmem>>, vector<128x256xbf16>
    %cst = arith.constant dense<0.000000e+00> : vector<32x256xf32>
    %3 = tpu.matmul %1, %2, %cst {dimension_numbers = #tpu.dot_dimension_numbers<[1], [0], [0], [1], [0, 0, 1, 1], [], []>} : vector<32x128xbf16>, vector<128x256xbf16>, vector<32x256xf32> -> vector<32x256xf32>
    %c0_4 = arith.constant 0 : index
    %c0_5 = arith.constant 0 : index
    %c0_6 = arith.constant 0 : index
    %4 = vector.load %arg2[%c0_4, %c0_5, %c0_6] : memref<1x32x256xbf16, #tpu.memory_space<vmem>>, vector<1x32x256xbf16>
    %5 = vector.shape_cast %4 : vector<1x32x256xbf16> to vector<32x256xbf16>
    %6 = arith.extf %5 : vector<32x256xbf16> to vector<32x256xf32>
    %7 = arith.addf %6, %3 : vector<32x256xf32>
    %c0_7 = arith.constant 0 : index
    %c0_8 = arith.constant 0 : index
    %8 = vector.load %arg5[%c0_7, %c0_8] : memref<1x256xf32, #tpu.memory_space<vmem>>, vector<1x256xf32>
    %9 = vector.broadcast %8 : vector<1x256xf32> to vector<32x256xf32>
    %10 = arith.addf %7, %9 : vector<32x256xf32>
    %cst_9 = arith.constant 2.000000e-01 : f32
    %11 = vector.broadcast %cst_9 : f32 to vector<32x256xf32>
    %12 = arith.mulf %11, %10 : vector<32x256xf32>
    %13 = arith.maximumf %10, %12 : vector<32x256xf32>
    %14 = arith.truncf %13 : vector<32x256xf32> to vector<32x256xbf16>
    %c0_10 = arith.constant 0 : index
    %c0_11 = arith.constant 0 : index
    %c0_12 = arith.constant 0 : index
    %15 = vector.load %arg6[%c0_10, %c0_11, %c0_12] : memref<1x32x256xbf16, #tpu.memory_space<vmem>>, vector<1x32x256xbf16>
    %16 = vector.shape_cast %15 : vector<1x32x256xbf16> to vector<32x256xbf16>
    %17 = vector.shape_cast %14 : vector<32x256xbf16> to vector<1x32x256xbf16>
    tpu.vector_store %arg6[%c0_10, %c0_11, %c0_12], %17 {strides = array<i32>} : memref<1x32x256xbf16, #tpu.memory_space<vmem>>, vector<1x32x256xbf16>,
    return
  }
  func.func @transform_0(%arg0: i32, %arg1: i32) -> (i32, i32, i32) {
    %c0_i32 = arith.constant 0 : i32
    %c0_i32_0 = arith.constant 0 : i32
    return %arg0, %arg1, %c0_i32 : i32, i32, i32
  }
  func.func @transform_1(%arg0: i32, %arg1: i32) -> (i32, i32, i32) {
    %c0_i32 = arith.constant 0 : i32
    %c0_i32_0 = arith.constant 0 : i32
    return %arg0, %arg1, %c0_i32 : i32, i32, i32
  }
  func.func @transform_2(%arg0: i32, %arg1: i32) -> (i32, i32) {
    %c0_i32 = arith.constant 0 : i32
    %c0_i32_0 = arith.constant 0 : i32
    %c0_i32_1 = arith.constant 0 : i32
    return %c0_i32, %c0_i32_0 : i32, i32
  }
  func.func @transform_3(%arg0: i32, %arg1: i32) -> (i32, i32) {
    %c0_i32 = arith.constant 0 : i32
    %c0_i32_0 = arith.constant 0 : i32
    %c0_i32_1 = arith.constant 0 : i32
    return %c0_i32, %c0_i32_0 : i32, i32
  }
  func.func @transform_4(%arg0: i32, %arg1: i32) -> (i32, i32, i32) {
    %c0_i32 = arith.constant 0 : i32
    %c0_i32_0 = arith.constant 0 : i32
    return %arg0, %arg1, %c0_i32 : i32, i32, i32
  }
}

module attributes {stable_mosaic.version = 11 : i64} {
  func.func @_conv5_kernel(%arg0: i32, %arg1: i32, %arg2: memref<1x32x64xbf16, #tpu.memory_space<vmem>>, %arg3: memref<1x32x64xbf16, #tpu.memory_space<vmem>>, %arg4: memref<1x32x128xbf16, #tpu.memory_space<vmem>>, %arg5: memref<1x32x256xbf16, #tpu.memory_space<vmem>>, %arg6: memref<512x512xbf16, #tpu.memory_space<vmem>>, %arg7: memref<1x512xf32, #tpu.memory_space<vmem>>, %arg8: memref<512x32xbf16, #tpu.memory_space<vmem>>, %arg9: memref<1x1x32xf32, #tpu.memory_space<vmem>>, %arg10: memref<1x512xf32, #tpu.memory_space<vmem>>) attributes {dimension_semantics = [#tpu.dimension_semantics<parallel>, #tpu.dimension_semantics<arbitrary>], iteration_bounds = array<i64: 2, 1>, scalar_prefetch = 0 : i64, scratch_operands = 1 : i64, tpu.core_type = #tpu.core_type<tc>, window_params = [{transform_indices = @transform_0, window_bounds = array<i64: 1, 32, 64>}, {transform_indices = @transform_1, window_bounds = array<i64: 1, 32, 64>}, {transform_indices = @transform_2, window_bounds = array<i64: 1, 32, 128>}, {transform_indices = @transform_3, window_bounds = array<i64: 1, 32, 256>}, {pipeline_mode = #tpu.pipeline_mode<synchronous>, transform_indices = @transform_4, window_bounds = array<i64: 512, 512>}, {pipeline_mode = #tpu.pipeline_mode<synchronous>, transform_indices = @transform_5, window_bounds = array<i64: 1, 512>}, {pipeline_mode = #tpu.pipeline_mode<synchronous>, transform_indices = @transform_6, window_bounds = array<i64: 512, 32>}, {transform_indices = @transform_7, window_bounds = array<i64: 1, 1, 32>}]} {
    %c0_i32 = arith.constant 0 : i32
    %0 = arith.cmpi eq, %arg1, %c0_i32 : i32
    %1 = arith.extui %0 : i1 to i32
    %c0_i32_0 = arith.constant 0 : i32
    %2 = arith.cmpi ne, %1, %c0_i32_0 : i32
    scf.if %2 {
      %cst_24 = arith.constant 0xFF800000 : f32
      %28 = vector.broadcast %cst_24 : f32 to vector<1x512xf32>
      %c0_25 = arith.constant 0 : index
      %c0_26 = arith.constant 0 : index
      %29 = vector.load %arg10[%c0_25, %c0_26] : memref<1x512xf32, #tpu.memory_space<vmem>>, vector<1x512xf32>
      tpu.vector_store %arg10[%c0_25, %c0_26], %28 {strides = array<i32>} : memref<1x512xf32, #tpu.memory_space<vmem>>, vector<1x512xf32>,
    } else {
    }
    %c0 = arith.constant 0 : index
    %c0_1 = arith.constant 0 : index
    %c0_2 = arith.constant 0 : index
    %3 = vector.load %arg2[%c0, %c0_1, %c0_2] : memref<1x32x64xbf16, #tpu.memory_space<vmem>>, vector<1x32x64xbf16>
    %4 = vector.shape_cast %3 : vector<1x32x64xbf16> to vector<32x64xbf16>
    %c0_3 = arith.constant 0 : index
    %c0_4 = arith.constant 0 : index
    %c0_5 = arith.constant 0 : index
    %5 = vector.load %arg3[%c0_3, %c0_4, %c0_5] : memref<1x32x64xbf16, #tpu.memory_space<vmem>>, vector<1x32x64xbf16>
    %6 = vector.shape_cast %5 : vector<1x32x64xbf16> to vector<32x64xbf16>
    %c0_6 = arith.constant 0 : index
    %c0_7 = arith.constant 0 : index
    %c0_8 = arith.constant 0 : index
    %7 = vector.load %arg4[%c0_6, %c0_7, %c0_8] : memref<1x32x128xbf16, #tpu.memory_space<vmem>>, vector<1x32x128xbf16>
    %8 = vector.shape_cast %7 : vector<1x32x128xbf16> to vector<32x128xbf16>
    %c0_9 = arith.constant 0 : index
    %c0_10 = arith.constant 0 : index
    %c0_11 = arith.constant 0 : index
    %9 = vector.load %arg5[%c0_9, %c0_10, %c0_11] : memref<1x32x256xbf16, #tpu.memory_space<vmem>>, vector<1x32x256xbf16>
    %10 = vector.shape_cast %9 : vector<1x32x256xbf16> to vector<32x256xbf16>
    %11 = tpu.concatenate %4, %6, %8, %10 in 1 : vector<32x64xbf16>, vector<32x64xbf16>, vector<32x128xbf16>, vector<32x256xbf16> -> vector<32x512xbf16>
    %c0_12 = arith.constant 0 : index
    %c0_13 = arith.constant 0 : index
    %12 = vector.load %arg6[%c0_12, %c0_13] : memref<512x512xbf16, #tpu.memory_space<vmem>>, vector<512x512xbf16>
    %cst = arith.constant dense<0.000000e+00> : vector<32x512xf32>
    %13 = tpu.matmul %11, %12, %cst {dimension_numbers = #tpu.dot_dimension_numbers<[1], [0], [0], [1], [0, 0, 1, 1], [], []>} : vector<32x512xbf16>, vector<512x512xbf16>, vector<32x512xf32> -> vector<32x512xf32>
    %c0_14 = arith.constant 0 : index
    %c0_15 = arith.constant 0 : index
    %14 = vector.load %arg7[%c0_14, %c0_15] : memref<1x512xf32, #tpu.memory_space<vmem>>, vector<1x512xf32>
    %15 = vector.broadcast %14 : vector<1x512xf32> to vector<32x512xf32>
    %16 = arith.addf %13, %15 : vector<32x512xf32>
    %cst_16 = arith.constant 2.000000e-01 : f32
    %17 = vector.broadcast %cst_16 : f32 to vector<32x512xf32>
    %18 = arith.mulf %17, %16 : vector<32x512xf32>
    %19 = arith.maximumf %16, %18 : vector<32x512xf32>
    %c0_17 = arith.constant 0 : index
    %c0_18 = arith.constant 0 : index
    %20 = vector.load %arg10[%c0_17, %c0_18] : memref<1x512xf32, #tpu.memory_space<vmem>>, vector<1x512xf32>
    %cst_19 = arith.constant dense<0xFF800000> : vector<512xf32>
    %21 = vector.multi_reduction <maximumf>, %19, %cst_19 [0] : vector<32x512xf32> to vector<512xf32>
    %22 = vector.shape_cast %21 : vector<512xf32> to vector<1x512xf32>
    %23 = arith.maximumf %20, %22 : vector<1x512xf32>
    %c0_20 = arith.constant 0 : index
    %c0_21 = arith.constant 0 : index
    %24 = vector.load %arg10[%c0_20, %c0_21] : memref<1x512xf32, #tpu.memory_space<vmem>>, vector<1x512xf32>
    tpu.vector_store %arg10[%c0_20, %c0_21], %23 {strides = array<i32>} : memref<1x512xf32, #tpu.memory_space<vmem>>, vector<1x512xf32>,
    %c0_i32_22 = arith.constant 0 : i32
    %25 = arith.cmpi eq, %arg1, %c0_i32_22 : i32
    %26 = arith.extui %25 : i1 to i32
    %c0_i32_23 = arith.constant 0 : i32
    %27 = arith.cmpi ne, %26, %c0_i32_23 : i32
    scf.if %27 {
      %c0_24 = arith.constant 0 : index
      %c0_25 = arith.constant 0 : index
      %28 = vector.load %arg10[%c0_24, %c0_25] : memref<1x512xf32, #tpu.memory_space<vmem>>, vector<1x512xf32>
      %29 = arith.truncf %28 : vector<1x512xf32> to vector<1x512xbf16>
      %c0_26 = arith.constant 0 : index
      %c0_27 = arith.constant 0 : index
      %30 = vector.load %arg8[%c0_26, %c0_27] : memref<512x32xbf16, #tpu.memory_space<vmem>>, vector<512x32xbf16>
      %cst_28 = arith.constant dense<0.000000e+00> : vector<1x32xf32>
      %31 = tpu.matmul %29, %30, %cst_28 {dimension_numbers = #tpu.dot_dimension_numbers<[1], [0], [0], [1], [0, 0, 1, 1], [], []>} : vector<1x512xbf16>, vector<512x32xbf16>, vector<1x32xf32> -> vector<1x32xf32>
      %c0_29 = arith.constant 0 : index
      %c0_30 = arith.constant 0 : index
      %c0_31 = arith.constant 0 : index
      %32 = vector.load %arg9[%c0_29, %c0_30, %c0_31] : memref<1x1x32xf32, #tpu.memory_space<vmem>>, vector<1x1x32xf32>
      %33 = vector.shape_cast %32 : vector<1x1x32xf32> to vector<1x32xf32>
      %34 = vector.shape_cast %31 : vector<1x32xf32> to vector<1x1x32xf32>
      tpu.vector_store %arg9[%c0_29, %c0_30, %c0_31], %34 {strides = array<i32>} : memref<1x1x32xf32, #tpu.memory_space<vmem>>, vector<1x1x32xf32>,
    } else {
    }
    return
  }
  func.func @transform_0(%arg0: i32, %arg1: i32) -> (i32, i32, i32) {
    %c0_i32 = arith.constant 0 : i32
    %c0_i32_0 = arith.constant 0 : i32
    return %arg0, %arg1, %c0_i32 : i32, i32, i32
  }
  func.func @transform_1(%arg0: i32, %arg1: i32) -> (i32, i32, i32) {
    %c0_i32 = arith.constant 0 : i32
    %c0_i32_0 = arith.constant 0 : i32
    return %arg0, %arg1, %c0_i32 : i32, i32, i32
  }
  func.func @transform_2(%arg0: i32, %arg1: i32) -> (i32, i32, i32) {
    %c0_i32 = arith.constant 0 : i32
    %c0_i32_0 = arith.constant 0 : i32
    return %arg0, %arg1, %c0_i32 : i32, i32, i32
  }
  func.func @transform_3(%arg0: i32, %arg1: i32) -> (i32, i32, i32) {
    %c0_i32 = arith.constant 0 : i32
    %c0_i32_0 = arith.constant 0 : i32
    return %arg0, %arg1, %c0_i32 : i32, i32, i32
  }
  func.func @transform_4(%arg0: i32, %arg1: i32) -> (i32, i32) {
    %c0_i32 = arith.constant 0 : i32
    %c0_i32_0 = arith.constant 0 : i32
    %c0_i32_1 = arith.constant 0 : i32
    return %c0_i32, %c0_i32_0 : i32, i32
  }
  func.func @transform_5(%arg0: i32, %arg1: i32) -> (i32, i32) {
    %c0_i32 = arith.constant 0 : i32
    %c0_i32_0 = arith.constant 0 : i32
    %c0_i32_1 = arith.constant 0 : i32
    return %c0_i32, %c0_i32_0 : i32, i32
  }
  func.func @transform_6(%arg0: i32, %arg1: i32) -> (i32, i32) {
    %c0_i32 = arith.constant 0 : i32
    %c0_i32_0 = arith.constant 0 : i32
    %c0_i32_1 = arith.constant 0 : i32
    return %c0_i32, %c0_i32_0 : i32, i32
  }
  func.func @transform_7(%arg0: i32, %arg1: i32) -> (i32, i32, i32) {
    %c0_i32 = arith.constant 0 : i32
    %c0_i32_0 = arith.constant 0 : i32
    %c0_i32_1 = arith.constant 0 : i32
    return %arg0, %c0_i32, %c0_i32_0 : i32, i32, i32
  }
}

</mosaic_0001>

<llo_original>
// kernel: dgcnn_encoder.13
$region0: #{dgcnn_encoder.13}
  #allocation0 [shape = 'u32[]', space=smem, size = 0x4, offset = 0x4, fixed_abs, tag = 'smem constant byte address 0x4 - core index']
  #allocation1 [shape = 'u32[144,128]{1,0:T(1,128)}', space=vmem, size = 0x12000, scoped, tag = 'internal scratch']
  %s0 = inlined_call_operand.vmem [shape: f32[2,32,3], index: 0, kind: input, shape index: {}, may-alias: {0,1}]
  %s1 = inlined_call_operand.vmem [shape: f32[2,32,3], index: 1, kind: input, shape index: {}, may-alias: {0,1}]
  %s2 = inlined_call_operand.vmem [shape: f32[2,1,32], index: 2, kind: input, shape index: {}]
  %s3 = inlined_call_operand.vmem [shape: bf16[2,32,32], index: 3, kind: output, shape index: {}]
  %s4 = sld [smem:[#allocation0]]
  $region45: #{dgcnn_encoder.13} parent=0
    _
  %s6 = ssub.s32 1, %s4
  %s7 = scalar_select 0, %s6, %s4
  loop: start=0, step=1, limit=4
  $region2: #{dgcnn_encoder.13} parent=0 // loop_pre_header
    _
  $region3: #{dgcnn_encoder.13} parent=0 // loop_header
    %s9 = sphi 0, %s13
    %p10 = scmp.ge.s32.totalorder %s9, 4
    %s16 = sphi 0, %s28
    %s17 = sphi 0, %s24
    %s18 = sphi 0, %s16
    %s19 = sphi 0, %s17
    %s20 = sphi 0, %s18
    %s21 = sphi 0, %s19
    %s33 = sphi 0, %s35
    %s36 = sphi 0, %s33
    %s37 = sphi 0, %s36
    %s53 = sphi 0, %s37
    %s59 = sphi 0, %s61
    %s62 = sphi 0, %s59
    %s63 = sphi 0, %s62
    %s79 = sphi 0, %s63
    %s85 = sphi 0, %s87
    %s88 = sphi 0, %s85
    %s89 = sphi 0, %s88
    %s105 = sphi 0, %s89
    %s113 = sphi 0, %s115
    %s116 = sphi 0, %s113
    %s117 = sphi 0, %s116
    %s133 = sphi 0, %s117
  $region4: #{dgcnn_encoder.13} parent=0 // loop_header_branch
    %12 = sbr.rel (%p10) target = $region8
  $region5: #{dgcnn_encoder.13} parent=0 // loop_body
    %s14 = ssub.s32 %s9, 1
    %s15 = ssub.s32 %s9, 2
    %s22 = sadd.s32 1, %s17
    %p23 = scmp.ge.s32.totalorder %s22, 1
    %s24 = scalar_select %p23, 0, %s22
    %s25 = sadd.s32 1, %s16
    %s26 = scalar_select %p23, %s25, %s16
    %p27 = scmp.ge.s32.totalorder %s26, 2
    %s28 = scalar_select %p27, 0, %s26
    %s29 = ssub.s32 %s16, %s28
    %s30 = ssub.s32 %s17, %s24
    %s31 = sor.u32 %s29, %s30
    %p32 = scmp.eq.s32.totalorder %s31, 0
    %s34 = sadd.s32 %s33, 1
    %s35 = scalar_select %p32, %s33, %s34
    %p38 = pneg %p32
    %p39 = scmp.eq.s32.totalorder %s9, 1
    %p40 = por %p38, %p39
    %p41 = scmp.ne.s32.totalorder %s33, %s36
    %p42 = scmp.eq.s32.totalorder %s9, 0
    %p43 = por %p41, %p42
    %p44 = scmp.ne.s32.totalorder %s33, %s36
    %p45 = scmp.eq.s32.totalorder %s14, 1
    %p46 = por %p44, %p45
    %p47 = scmp.ne.s32.totalorder %s36, %s37
    %p48 = scmp.eq.s32.totalorder %s14, 0
    %p49 = por %p47, %p48
    %p50 = scmp.ne.s32.totalorder %s36, %s37
    %p51 = scmp.eq.s32.totalorder %s15, 1
    %p52 = por %p50, %p51
    %p54 = scmp.ne.s32.totalorder %s37, %s53
    %p55 = scmp.eq.s32.totalorder %s15, 0
    %p56 = por %p54, %p55
    %s57 = ssub.s32 %s16, %s28
    %p58 = scmp.eq.s32.totalorder %s57, 0
    %s60 = sadd.s32 %s59, 1
    %s61 = scalar_select %p58, %s59, %s60
    %p64 = pneg %p58
    %p65 = scmp.eq.s32.totalorder %s9, 1
    %p66 = por %p64, %p65
    %p67 = scmp.ne.s32.totalorder %s59, %s62
    %p68 = scmp.eq.s32.totalorder %s9, 0
    %p69 = por %p67, %p68
    %p70 = scmp.ne.s32.totalorder %s59, %s62
    %p71 = scmp.eq.s32.totalorder %s14, 1
    %p72 = por %p70, %p71
    %p73 = scmp.ne.s32.totalorder %s62, %s63
    %p74 = scmp.eq.s32.totalorder %s14, 0
    %p75 = por %p73, %p74
    %p76 = scmp.ne.s32.totalorder %s62, %s63
    %p77 = scmp.eq.s32.totalorder %s15, 1
    %p78 = por %p76, %p77
    %p80 = scmp.ne.s32.totalorder %s63, %s79
    %p81 = scmp.eq.s32.totalorder %s15, 0
    %p82 = por %p80, %p81
    %s83 = ssub.s32 %s16, %s28
    %p84 = scmp.eq.s32.totalorder %s83, 0
    %s86 = sadd.s32 %s85, 1
    %s87 = scalar_select %p84, %s85, %s86
    %p90 = pneg %p84
    %p91 = scmp.eq.s32.totalorder %s9, 1
    %p92 = por %p90, %p91
    %p93 = scmp.ne.s32.totalorder %s85, %s88
    %p94 = scmp.eq.s32.totalorder %s9, 0
    %p95 = por %p93, %p94
    %p96 = scmp.ne.s32.totalorder %s85, %s88
    %p97 = scmp.eq.s32.totalorder %s14, 1
    %p98 = por %p96, %p97
    %p99 = scmp.ne.s32.totalorder %s88, %s89
    %p100 = scmp.eq.s32.totalorder %s14, 0
    %p101 = por %p99, %p100
    %p102 = scmp.ne.s32.totalorder %s88, %s89
    %p103 = scmp.eq.s32.totalorder %s15, 1
    %p104 = por %p102, %p103
    %p106 = scmp.ne.s32.totalorder %s89, %s105
    %p107 = scmp.eq.s32.totalorder %s15, 0
    %p108 = por %p106, %p107
    %s109 = ssub.s32 %s16, %s28
    %s110 = ssub.s32 %s17, %s24
    %s111 = sor.u32 %s109, %s110
    %p112 = scmp.eq.s32.totalorder %s111, 0
    %s114 = sadd.s32 %s113, 1
    %s115 = scalar_select %p112, %s113, %s114
    %p118 = pneg %p112
    %p119 = scmp.eq.s32.totalorder %s9, 1
    %p120 = por %p118, %p119
    %p121 = scmp.ne.s32.totalorder %s113, %s116
    %p122 = scmp.eq.s32.totalorder %s9, 0
    %p123 = por %p121, %p122
    %p124 = scmp.ne.s32.totalorder %s113, %s116
    %p125 = scmp.eq.s32.totalorder %s14, 1
    %p126 = por %p124, %p125
    %p127 = scmp.ne.s32.totalorder %s116, %s117
    %p128 = scmp.eq.s32.totalorder %s14, 0
    %p129 = por %p127, %p128
    %p130 = scmp.ne.s32.totalorder %s116, %s117
    %p131 = scmp.eq.s32.totalorder %s15, 1
    %p132 = por %p130, %p131
    %p134 = scmp.ne.s32.totalorder %s117, %s133
    %p135 = scmp.eq.s32.totalorder %s15, 0
    %p136 = por %p134, %p135
    %p137 = scmp.le.s32.totalorder 1, %s9
    %p138 = scmp.lt.s32.totalorder %s9, 3
    %p139 = pnand %p137, %p138
    %p140 = pneg %p139
    // Predicated region
    $region9: #{dgcnn_encoder.13} parent=5 // pred_check
      _
    $region10: #{dgcnn_encoder.13} parent=5 // pred_check_branch
      %142 = sbr.rel (%p139) target = $region12
    $region11: #{dgcnn_encoder.13} parent=5 // pred_region
      %s143 = ssub.s32 %s9, 1
    $region12: #{dgcnn_encoder.13} parent=5 // pred_fallthru
      _
    %p144 = scmp.lt.s32.totalorder %s9, 2
    // Predicated region
    $region13: #{dgcnn_encoder.13} parent=5 // pred_check
      %p145 = pneg %p144
    $region14: #{dgcnn_encoder.13} parent=5 // pred_check_branch
      %147 = sbr.rel (%p145) target = $region16
    $region15: #{dgcnn_encoder.13} parent=5 // pred_region
      // Predicated region
      $region17: #{dgcnn_encoder.13} parent=15 // pred_check
        %p148 = pneg %p43
      $region18: #{dgcnn_encoder.13} parent=15 // pred_check_branch
        %150 = sbr.rel (%p148) target = $region20
      $region19: #{dgcnn_encoder.13} parent=15 // pred_region
        %s151 = smul.u32 4, %s17
        %p152 = scmp.lt.s32.totalorder %s16, 1
        %s153 = scalar_select %p152, %s16, 1
        %p154 = scmp.lt.s32.totalorder %s151, 3
        %s155 = scalar_select %p154, %s151, 3
        %s156 = smul.addr %s153, 4
        %s157 = sadd.s32 %s155, %s156
        %s158 = smul.addr %s157, 8
        %s159 = scalar_lea.vmem %s0, %s158
        %s160 = smul.u32 4, %s17
      $region20: #{dgcnn_encoder.13} parent=15 // pred_fallthru
        _
      // Predicated region
      $region21: #{dgcnn_encoder.13} parent=15 // pred_check
        %p161 = pneg %p69
      $region22: #{dgcnn_encoder.13} parent=15 // pred_check_branch
        %163 = sbr.rel (%p161) target = $region24
      $region23: #{dgcnn_encoder.13} parent=15 // pred_region
        %p164 = scmp.lt.s32.totalorder %s16, 1
        %s165 = scalar_select %p164, %s16, 1
        %s166 = smul.addr %s165, 4
        %s167 = smul.addr %s166, 8
        %s168 = scalar_lea.vmem %s1, %s167
      $region24: #{dgcnn_encoder.13} parent=15 // pred_fallthru
        _
      // Predicated region
      $region25: #{dgcnn_encoder.13} parent=15 // pred_check
        %p169 = pneg %p95
      $region26: #{dgcnn_encoder.13} parent=15 // pred_check_branch
        %171 = sbr.rel (%p169) target = $region28
      $region27: #{dgcnn_encoder.13} parent=15 // pred_region
        %p172 = scmp.lt.s32.totalorder %s16, 1
        %s173 = scalar_select %p172, %s16, 1
        %s174 = scalar_lea.vmem %s2, %s173
      $region28: #{dgcnn_encoder.13} parent=15 // pred_fallthru
        _
    $region16: #{dgcnn_encoder.13} parent=5 // pred_fallthru
      _
    %p175 = scmp.le.s32.totalorder 1, %s9
    %p176 = scmp.lt.s32.totalorder %s9, 3
    %p177 = pnand %p175, %p176
    %p178 = pneg %p177
    // Predicated region
    $region29: #{dgcnn_encoder.13} parent=5 // pred_check
      _
    $region30: #{dgcnn_encoder.13} parent=5 // pred_check_branch
      %180 = sbr.rel (%p177) target = $region32
    $region31: #{dgcnn_encoder.13} parent=5 // pred_region
      %s181 = ssub.s32 %s9, 1
      %s182 = smul.u32 4, %s19
      %p183 = scmp.lt.s32.totalorder %s18, 1
      %s184 = scalar_select %p183, %s18, 1
      %p185 = scmp.lt.s32.totalorder %s182, 3
      %s186 = scalar_select %p185, %s182, 3
      %s187 = smul.addr %s184, 4
      %s188 = sadd.s32 %s186, %s187
      %s189 = smul.addr %s188, 8
      %s190 = scalar_lea.vmem %s0, %s189
      %p191 = pneg %p49
      %p192 = pneg %p46
      %p193 = scmp.lt.s32.totalorder %s18, 1
      %s194 = scalar_select %p193, %s18, 1
      %s195 = smul.addr %s194, 4
      %s196 = smul.addr %s195, 8
      %s197 = scalar_lea.vmem %s1, %s196
      %p198 = pneg %p75
      %p199 = pneg %p72
      %p200 = scmp.lt.s32.totalorder %s18, 1
      %s201 = scalar_select %p200, %s18, 1
      %s202 = scalar_lea.vmem %s2, %s201
      %p203 = pneg %p101
      %p204 = pneg %p98
      %p205 = pneg %p129
      %p206 = pneg %p126
      %s207 = smul.u32 4, %s19
      %p208 = scmp.lt.s32.totalorder %s18, 1
      %s209 = scalar_select %p208, %s18, 1
      %p210 = scmp.lt.s32.totalorder %s207, 3
      %s211 = scalar_select %p210, %s207, 3
      %s212 = smul.addr %s209, 4
      %s213 = sadd.s32 %s211, %s212
      %s214 = smul.addr %s213, 4
      %s215 = scalar_lea.vmem %s3, %s214
      %s216 = smul.u32 4, %s19
      %p217 = scmp.lt.s32.totalorder %s18, 1
      %s218 = scalar_select %p217, %s18, 1
      %p219 = scmp.lt.s32.totalorder %s216, 3
      %s220 = scalar_select %p219, %s216, 3
      %s221 = smul.addr %s218, 4
      %s222 = sadd.s32 %s220, %s221
      %s223 = smul.addr %s222, 8
      %s224 = scalar_lea.vmem %s0, %s223
      %s225 = smul.u32 4, %s19
      %p226 = scmp.lt.s32.totalorder %s18, 1
      %s227 = scalar_select %p226, %s18, 1
      %s228 = smul.addr %s227, 4
      %s229 = smul.addr %s228, 8
      %s230 = scalar_lea.vmem %s1, %s229
      %p231 = scmp.lt.s32.totalorder %s18, 1
      %s232 = scalar_select %p231, %s18, 1
      %s233 = scalar_lea.vmem %s2, %s232
      %s234 = smul.u32 4, %s19
      %p235 = scmp.lt.s32.totalorder %s18, 1
      %s236 = scalar_select %p235, %s18, 1
      %p237 = scmp.lt.s32.totalorder %s234, 3
      %s238 = scalar_select %p237, %s234, 3
      %s239 = smul.addr %s236, 4
      %s240 = sadd.s32 %s238, %s239
      %s241 = smul.addr %s240, 4
      %s242 = scalar_lea.vmem %s3, %s241
      %s243 = smul.u32 4, %s19
      %v244 = vld [vmem:[%s224] sm:$0xff]
      %v245 = vld [vmem:[%s224 + $0x8] sm:$0xff]
      %v246 = vld [vmem:[%s224 + $0x10] sm:$0xff]
      %v247 = vld [vmem:[%s224 + $0x18] sm:$0xff]
      %v248 = vld [vmem:[%s230] sm:$0xff]
      %v249 = vld [vmem:[%s230 + $0x8] sm:$0xff]
      %v250 = vld [vmem:[%s230 + $0x10] sm:$0xff]
      %v251 = vld [vmem:[%s230 + $0x18] sm:$0xff]
      %vm252 = vcmask 23552
      %v254 = vsel %vm252, %v244, 0
      %v257 = vsel %vm252, %v245, 0
      %v260 = vsel %vm252, %v246, 0
      %v263 = vsel %vm252, %v247, 0
      %v266 = vsel %vm252, %v248, 0
      %v269 = vsel %vm252, %v249, 0
      %v272 = vsel %vm252, %v250, 0
      %v275 = vsel %vm252, %v251, 0
      %277 = vmatprep.subr.mxu0 0.0
      %278 = vmatpush1.xpose.msra.mxu0 %v266
      %279 = vmatprep.subr.mxu0 0.0
      %280 = vmatpush1.xpose.msra.mxu0 %v269
      %281 = vmatprep.subr.mxu0 0.0
      %282 = vmatpush1.xpose.msra.mxu0 %v272
      %283 = vmatprep.subr.mxu0 0.0
      %284 = vmatpush1.xpose.msra.mxu0 %v275
      %285 = vmatprep.subr.mxu0 0.0
      %286 = vmatpush1.xpose.msra.mxu0 0.0
      %287 = vmatprep.subr.mxu0 0.0
      %288 = vmatpush1.xpose.msra.mxu0 0.0
      %289 = vmatprep.subr.mxu0 0.0
      %290 = vmatpush1.xpose.msra.mxu0 0.0
      %291 = vmatprep.subr.mxu0 0.0
      %292 = vmatpush1.xpose.msra.mxu0 0.0
      %293 = vmatprep.subr.mxu0 0.0
      %294 = vmatpush1.xpose.msra.mxu0 0.0
      %295 = vmatprep.subr.mxu0 0.0
      %296 = vmatpush1.xpose.msra.mxu0 0.0
      %297 = vmatprep.subr.mxu0 0.0
      %298 = vmatpush1.xpose.msra.mxu0 0.0
      %299 = vmatprep.subr.mxu0 0.0
      %300 = vmatpush1.xpose.msra.mxu0 0.0
      %301 = vmatprep.subr.mxu0 0.0
      %302 = vmatpush1.xpose.msra.mxu0 0.0
      %303 = vmatprep.subr.mxu0 0.0
      %304 = vmatpush1.xpose.msra.mxu0 0.0
      %305 = vmatprep.subr.mxu0 0.0
      %306 = vmatpush1.xpose.msra.mxu0 0.0
      %307 = vmatprep.subr.mxu0 0.0
      %308 = vmatpush1.xpose.msra.mxu0 0.0
      %309 = vmatprep.subr.mxu0 0.0
      %310 = vmatpush1.xpose.msra.mxu0 0.0
      %311 = vmatprep.subr.mxu0 0.0
      %312 = vmatpush1.xpose.msra.mxu0 0.0
      %313 = vmatprep.subr.mxu0 0.0
      %314 = vmatpush1.xpose.msra.mxu0 0.0
      %315 = vmatprep.subr.mxu0 0.0
      %316 = vmatpush1.xpose.msra.mxu0 0.0
      %317 = vmatprep.subr.mxu0 0.0
      %318 = vmatpush1.xpose.msra.mxu0 0.0
      %319 = vmatprep.subr.mxu0 0.0
      %320 = vmatpush1.xpose.msra.mxu0 0.0
      %321 = vmatprep.subr.mxu0 0.0
      %322 = vmatpush1.xpose.msra.mxu0 0.0
      %323 = vmatprep.subr.mxu0 0.0
      %324 = vmatpush1.xpose.msra.mxu0 0.0
      %325 = vmatprep.subr.mxu0 0.0
      %326 = vmatpush1.xpose.msra.mxu0 0.0
      %327 = vmatprep.subr.mxu0 0.0
      %328 = vmatpush1.xpose.msra.mxu0 0.0
      %329 = vmatprep.subr.mxu0 0.0
      %330 = vmatpush1.xpose.msra.mxu0 0.0
      %331 = vmatprep.subr.mxu0 0.0
      %332 = vmatpush1.xpose.msra.mxu0 0.0
      %333 = vmatprep.subr.mxu0 0.0
      %334 = vmatpush1.xpose.msra.mxu0 0.0
      %335 = vmatprep.subr.mxu0 0.0
      %336 = vmatpush1.xpose.msra.mxu0 0.0
      %337 = vmatprep.subr.mxu0 0.0
      %338 = vmatpush1.xpose.msra.mxu0 0.0
      %339 = vmatprep.subr.mxu0 0.0
      %340 = vmatpush1.xpose.msra.mxu0 0.0
      %341 = vmatprep.mubr.f32.mxu0 0.0
      %342 = vmatmul.mubr.f32.gmra.mrb[0].mxu0 %v254
      %v343 = vpop.f32.mrb[0].mxu0
      %v344 = vadd.f32 0.0, %v343
      %v345 = vpop.f32.mrb[0].mxu0
      %346 = vmatprep.mubr.f32.mxu0 0.0
      %347 = vmatmul.mubr.f32.gmra.mrb[0].mxu0 %v257
      %v348 = vpop.f32.mrb[0].mxu0
      %v349 = vadd.f32 0.0, %v348
      %v350 = vpop.f32.mrb[0].mxu0
      %351 = vmatprep.mubr.f32.mxu0 0.0
      %352 = vmatmul.mubr.f32.gmra.mrb[0].mxu0 %v260
      %v353 = vpop.f32.mrb[0].mxu0
      %v354 = vadd.f32 0.0, %v353
      %v355 = vpop.f32.mrb[0].mxu0
      %356 = vmatprep.mubr.f32.mxu0 0.0
      %357 = vmatmul.mubr.f32.gmra.mrb[0].mxu0 %v263
      %v358 = vpop.f32.mrb[0].mxu0
      %v359 = vadd.f32 0.0, %v358
      %v360 = vpop.f32.mrb[0].mxu0
      %361 = vdwg.mxu0
      %v362 = vmul.f32 %v244, %v244
      %v363 = vmul.f32 %v245, %v245
      %v364 = vmul.f32 %v246, %v246
      %v365 = vmul.f32 %v247, %v247
      %v366 = vsel %vm252, %v362, 0.0
      %367 = vadd.xlane.f32.xlu0 %v366
      %v368 = vpop.xlane.xlu0 %367
      %v369 = vsel %vm252, %v363, 0.0
      %370 = vadd.xlane.f32.xlu0 %v369
      %v371 = vpop.xlane.xlu0 %370
      %v372 = vsel %vm252, %v364, 0.0
      %373 = vadd.xlane.f32.xlu0 %v372
      %v374 = vpop.xlane.xlu0 %373
      %v375 = vsel %vm252, %v365, 0.0
      %376 = vadd.xlane.f32.xlu0 %v375
      %v377 = vpop.xlane.xlu0 %376
      %v378 = vmul.f32 %v368, 0.5
      %v379 = vmul.f32 %v371, 0.5
      %v380 = vmul.f32 %v374, 0.5
      %v381 = vmul.f32 %v377, 0.5
      %v382 = vsub.f32 %v344, %v378
      %v383 = vsub.f32 %v349, %v379
      %v384 = vsub.f32 %v354, %v380
      %v385 = vsub.f32 %v359, %v381
      %v386 = vld [vmem:[%s233] sm:$0x1]
      %v388 = vlaneseq
      %v389 = vshrl.u32 %v388, 7
      %v390 = vsub.s32 0, %v389
      %v391 = vrot.slane %v386, %v390
      %v393 = vsub.f32 %v382, %v391
      %v394 = vsub.f32 %v383, %v391
      %v395 = vsub.f32 %v384, %v391
      %v396 = vsub.f32 %v385, %v391
      %v397 = vpack.c.bf16 %v394, %v393
      %v398 = vpack.c.bf16 %v396, %v395
      %v401 = vunpack.c.l.b16 %v397
      %v402 = vunpack.c.h.b16 %v397
      %v403 = vunpack.c.l.b16 %v398
      %v404 = vunpack.c.h.b16 %v398
      %v405 = vpack.c.b16 %v401, %v401
      %v406 = vpack.c.b16 %v402, %v402
      %v407 = vpack.c.b16 %v403, %v403
      %v408 = vpack.c.b16 %v404, %v404
      %vm413 = vcmask 257024
      %414 = vst.msk [vmem:[%s242] sm:$0xf] %vm413, %v405
      %415 = vst.msk [vmem:[%s242 + $0x4] sm:$0xf] %vm413, %v406
      %416 = vst.msk [vmem:[%s242 + $0x8] sm:$0xf] %vm413, %v407
      %417 = vst.msk [vmem:[%s242 + $0xc] sm:$0xf] %vm413, %v408
      %s418 = smul.u32 4, %s19
      %p419 = scmp.lt.s32.totalorder %s18, 1
      %s420 = scalar_select %p419, %s18, 1
      %p421 = scmp.lt.s32.totalorder %s418, 3
      %s422 = scalar_select %p421, %s418, 3
      %s423 = smul.addr %s420, 4
      %s424 = sadd.s32 %s422, %s423
      %s425 = smul.addr %s424, 4
      %s426 = scalar_lea.vmem %s3, %s425
      // Predicated region
      $region33: #{dgcnn_encoder.13} parent=31 // pred_check
        %p427 = pneg %p126
      $region34: #{dgcnn_encoder.13} parent=31 // pred_check_branch
        %429 = sbr.rel (%p427) target = $region36
      $region35: #{dgcnn_encoder.13} parent=31 // pred_region
        %s430 = smul.u32 4, %s19
      $region36: #{dgcnn_encoder.13} parent=31 // pred_fallthru
        _
    $region32: #{dgcnn_encoder.13} parent=5 // pred_fallthru
      _
    %p431 = scmp.le.s32.totalorder 2, %s9
    // Predicated region
    $region37: #{dgcnn_encoder.13} parent=5 // pred_check
      %p432 = pneg %p431
    $region38: #{dgcnn_encoder.13} parent=5 // pred_check_branch
      %434 = sbr.rel (%p432) target = $region40
    $region39: #{dgcnn_encoder.13} parent=5 // pred_region
      %s435 = ssub.s32 %s9, 2
      // Predicated region
      $region41: #{dgcnn_encoder.13} parent=39 // pred_check
        %p436 = pneg %p132
      $region42: #{dgcnn_encoder.13} parent=39 // pred_check_branch
        %438 = sbr.rel (%p436) target = $region44
      $region43: #{dgcnn_encoder.13} parent=39 // pred_region
        %s439 = smul.u32 4, %s21
        %p440 = scmp.lt.s32.totalorder %s20, 1
        %s441 = scalar_select %p440, %s20, 1
        %p442 = scmp.lt.s32.totalorder %s439, 3
        %s443 = scalar_select %p442, %s439, 3
        %s444 = smul.addr %s441, 4
        %s445 = sadd.s32 %s443, %s444
        %s446 = smul.addr %s445, 4
        %s447 = scalar_lea.vmem %s3, %s446
      $region44: #{dgcnn_encoder.13} parent=39 // pred_fallthru
        _
    $region40: #{dgcnn_encoder.13} parent=5 // pred_fallthru
      _
  $region6: #{dgcnn_encoder.13} parent=0 // loop_footer
    %s13 = sadd.s32 1, %s9
  $region7: #{dgcnn_encoder.13} parent=0 // loop_footer_branch
    %8 = sbr.rel target = $region3
  $region8: #{dgcnn_encoder.13} parent=0 // loop_exit
    _

// kernel: dgcnn_encoder.14
$region0: #{dgcnn_encoder.14}
  #allocation0 [shape = 'u32[]', space=smem, size = 0x4, offset = 0x4, fixed_abs, tag = 'smem constant byte address 0x4 - core index']
  #allocation1 [shape = 'u32[144,128]{1,0:T(1,128)}', space=vmem, size = 0x12000, scoped, tag = 'internal scratch']
  %s0 = inlined_call_operand.vmem [shape: f32[2,32,3], index: 0, kind: input, shape index: {}]
  %s1 = inlined_call_operand.vmem [shape: bf16[3,64], index: 1, kind: input, shape index: {}]
  %s2 = inlined_call_operand.vmem [shape: bf16[2,32,64], index: 2, kind: output, shape index: {}]
  %s3 = sld [smem:[#allocation0]]
  $region41: #{dgcnn_encoder.14} parent=0
    _
  %s5 = ssub.s32 1, %s3
  %s6 = scalar_select 0, %s5, %s3
  loop: start=0, step=1, limit=4
  $region2: #{dgcnn_encoder.14} parent=0 // loop_pre_header
    _
  $region3: #{dgcnn_encoder.14} parent=0 // loop_header
    %s8 = sphi 0, %s12
    %p9 = scmp.ge.s32.totalorder %s8, 4
    %s15 = sphi 0, %s27
    %s16 = sphi 0, %s23
    %s17 = sphi 0, %s15
    %s18 = sphi 0, %s16
    %s19 = sphi 0, %s17
    %s20 = sphi 0, %s18
    %s32 = sphi 0, %s34
    %s35 = sphi 0, %s32
    %s36 = sphi 0, %s35
    %s52 = sphi 0, %s36
    %s56 = sphi 0, %s56
    %s58 = sphi 0, %s56
    %s59 = sphi 0, %s58
    %s73 = sphi 0, %s59
    %s81 = sphi 0, %s83
    %s84 = sphi 0, %s81
    %s85 = sphi 0, %s84
    %s101 = sphi 0, %s85
  $region4: #{dgcnn_encoder.14} parent=0 // loop_header_branch
    %11 = sbr.rel (%p9) target = $region8
  $region5: #{dgcnn_encoder.14} parent=0 // loop_body
    %s13 = ssub.s32 %s8, 1
    %s14 = ssub.s32 %s8, 2
    %s21 = sadd.s32 1, %s16
    %p22 = scmp.ge.s32.totalorder %s21, 1
    %s23 = scalar_select %p22, 0, %s21
    %s24 = sadd.s32 1, %s15
    %s25 = scalar_select %p22, %s24, %s15
    %p26 = scmp.ge.s32.totalorder %s25, 2
    %s27 = scalar_select %p26, 0, %s25
    %s28 = ssub.s32 %s15, %s27
    %s29 = ssub.s32 %s16, %s23
    %s30 = sor.u32 %s28, %s29
    %p31 = scmp.eq.s32.totalorder %s30, 0
    %s33 = sadd.s32 %s32, 1
    %s34 = scalar_select %p31, %s32, %s33
    %p37 = pneg %p31
    %p38 = scmp.eq.s32.totalorder %s8, 1
    %p39 = por %p37, %p38
    %p40 = scmp.ne.s32.totalorder %s32, %s35
    %p41 = scmp.eq.s32.totalorder %s8, 0
    %p42 = por %p40, %p41
    %p43 = scmp.ne.s32.totalorder %s32, %s35
    %p44 = scmp.eq.s32.totalorder %s13, 1
    %p45 = por %p43, %p44
    %p46 = scmp.ne.s32.totalorder %s35, %s36
    %p47 = scmp.eq.s32.totalorder %s13, 0
    %p48 = por %p46, %p47
    %p49 = scmp.ne.s32.totalorder %s35, %s36
    %p50 = scmp.eq.s32.totalorder %s14, 1
    %p51 = por %p49, %p50
    %p53 = scmp.ne.s32.totalorder %s36, %s52
    %p54 = scmp.eq.s32.totalorder %s14, 0
    %p55 = por %p53, %p54
    %s57 = sadd.s32 %s56, 1
    %p60 = scmp.eq.s32.totalorder %s8, 1
    %p61 = scmp.ne.s32.totalorder %s56, %s58
    %p62 = scmp.eq.s32.totalorder %s8, 0
    %p63 = por %p61, %p62
    %p64 = scmp.ne.s32.totalorder %s56, %s58
    %p65 = scmp.eq.s32.totalorder %s13, 1
    %p66 = por %p64, %p65
    %p67 = scmp.ne.s32.totalorder %s58, %s59
    %p68 = scmp.eq.s32.totalorder %s13, 0
    %p69 = por %p67, %p68
    %p70 = scmp.ne.s32.totalorder %s58, %s59
    %p71 = scmp.eq.s32.totalorder %s14, 1
    %p72 = por %p70, %p71
    %p74 = scmp.ne.s32.totalorder %s59, %s73
    %p75 = scmp.eq.s32.totalorder %s14, 0
    %p76 = por %p74, %p75
    %s77 = ssub.s32 %s15, %s27
    %s78 = ssub.s32 %s16, %s23
    %s79 = sor.u32 %s77, %s78
    %p80 = scmp.eq.s32.totalorder %s79, 0
    %s82 = sadd.s32 %s81, 1
    %s83 = scalar_select %p80, %s81, %s82
    %p86 = pneg %p80
    %p87 = scmp.eq.s32.totalorder %s8, 1
    %p88 = por %p86, %p87
    %p89 = scmp.ne.s32.totalorder %s81, %s84
    %p90 = scmp.eq.s32.totalorder %s8, 0
    %p91 = por %p89, %p90
    %p92 = scmp.ne.s32.totalorder %s81, %s84
    %p93 = scmp.eq.s32.totalorder %s13, 1
    %p94 = por %p92, %p93
    %p95 = scmp.ne.s32.totalorder %s84, %s85
    %p96 = scmp.eq.s32.totalorder %s13, 0
    %p97 = por %p95, %p96
    %p98 = scmp.ne.s32.totalorder %s84, %s85
    %p99 = scmp.eq.s32.totalorder %s14, 1
    %p100 = por %p98, %p99
    %p102 = scmp.ne.s32.totalorder %s85, %s101
    %p103 = scmp.eq.s32.totalorder %s14, 0
    %p104 = por %p102, %p103
    %p105 = scmp.le.s32.totalorder 1, %s8
    %p106 = scmp.lt.s32.totalorder %s8, 3
    %p107 = pnand %p105, %p106
    %p108 = pneg %p107
    // Predicated region
    $region9: #{dgcnn_encoder.14} parent=5 // pred_check
      _
    $region10: #{dgcnn_encoder.14} parent=5 // pred_check_branch
      %110 = sbr.rel (%p107) target = $region12
    $region11: #{dgcnn_encoder.14} parent=5 // pred_region
      %s111 = ssub.s32 %s8, 1
      // Predicated region
      $region13: #{dgcnn_encoder.14} parent=11 // pred_check
        %p112 = pneg %p69
      $region14: #{dgcnn_encoder.14} parent=11 // pred_check_branch
        %114 = sbr.rel (%p112) target = $region16
      $region15: #{dgcnn_encoder.14} parent=11 // pred_region
        _
      $region16: #{dgcnn_encoder.14} parent=11 // pred_fallthru
        _
    $region12: #{dgcnn_encoder.14} parent=5 // pred_fallthru
      _
    %p115 = scmp.lt.s32.totalorder %s8, 2
    // Predicated region
    $region17: #{dgcnn_encoder.14} parent=5 // pred_check
      %p116 = pneg %p115
    $region18: #{dgcnn_encoder.14} parent=5 // pred_check_branch
      %118 = sbr.rel (%p116) target = $region20
    $region19: #{dgcnn_encoder.14} parent=5 // pred_region
      // Predicated region
      $region21: #{dgcnn_encoder.14} parent=19 // pred_check
        %p119 = pneg %p42
      $region22: #{dgcnn_encoder.14} parent=19 // pred_check_branch
        %121 = sbr.rel (%p119) target = $region24
      $region23: #{dgcnn_encoder.14} parent=19 // pred_region
        %s122 = smul.u32 4, %s16
        %p123 = scmp.lt.s32.totalorder %s15, 1
        %s124 = scalar_select %p123, %s15, 1
        %p125 = scmp.lt.s32.totalorder %s122, 3
        %s126 = scalar_select %p125, %s122, 3
        %s127 = smul.addr %s124, 4
        %s128 = sadd.s32 %s126, %s127
        %s129 = smul.addr %s128, 8
        %s130 = scalar_lea.vmem %s0, %s129
        %s131 = smul.u32 4, %s16
      $region24: #{dgcnn_encoder.14} parent=19 // pred_fallthru
        _
    $region20: #{dgcnn_encoder.14} parent=5 // pred_fallthru
      _
    %p132 = scmp.le.s32.totalorder 1, %s8
    %p133 = scmp.lt.s32.totalorder %s8, 3
    %p134 = pnand %p132, %p133
    %p135 = pneg %p134
    // Predicated region
    $region25: #{dgcnn_encoder.14} parent=5 // pred_check
      _
    $region26: #{dgcnn_encoder.14} parent=5 // pred_check_branch
      %137 = sbr.rel (%p134) target = $region28
    $region27: #{dgcnn_encoder.14} parent=5 // pred_region
      %s138 = ssub.s32 %s8, 1
      %s139 = smul.u32 4, %s18
      %p140 = scmp.lt.s32.totalorder %s17, 1
      %s141 = scalar_select %p140, %s17, 1
      %p142 = scmp.lt.s32.totalorder %s139, 3
      %s143 = scalar_select %p142, %s139, 3
      %s144 = smul.addr %s141, 4
      %s145 = sadd.s32 %s143, %s144
      %s146 = smul.addr %s145, 8
      %s147 = scalar_lea.vmem %s0, %s146
      %p148 = pneg %p48
      %p149 = pneg %p45
      %p150 = pneg %p69
      %p151 = pneg %p66
      %p152 = pneg %p97
      %p153 = pneg %p94
      %s154 = smul.u32 4, %s18
      %p155 = scmp.lt.s32.totalorder %s17, 1
      %s156 = scalar_select %p155, %s17, 1
      %p157 = scmp.lt.s32.totalorder %s154, 3
      %s158 = scalar_select %p157, %s154, 3
      %s159 = smul.addr %s156, 4
      %s160 = sadd.s32 %s158, %s159
      %s161 = smul.addr %s160, 4
      %s162 = scalar_lea.vmem %s2, %s161
      %s163 = smul.u32 4, %s18
      %p164 = scmp.lt.s32.totalorder %s17, 1
      %s165 = scalar_select %p164, %s17, 1
      %p166 = scmp.lt.s32.totalorder %s163, 3
      %s167 = scalar_select %p166, %s163, 3
      %s168 = smul.addr %s165, 4
      %s169 = sadd.s32 %s167, %s168
      %s170 = smul.addr %s169, 8
      %s171 = scalar_lea.vmem %s0, %s170
      %s172 = smul.u32 4, %s18
      %s173 = smul.u32 4, %s18
      %p174 = scmp.lt.s32.totalorder %s17, 1
      %s175 = scalar_select %p174, %s17, 1
      %p176 = scmp.lt.s32.totalorder %s173, 3
      %s177 = scalar_select %p176, %s173, 3
      %s178 = smul.addr %s175, 4
      %s179 = sadd.s32 %s177, %s178
      %s180 = smul.addr %s179, 4
      %s181 = scalar_lea.vmem %s2, %s180
      %s182 = smul.u32 4, %s18
      %v184 = vld [vmem:[%s171] sm:$0xff]
      %v185 = vld [vmem:[%s171 + $0x8] sm:$0xff]
      %v186 = vld [vmem:[%s171 + $0x10] sm:$0xff]
      %v187 = vld [vmem:[%s171 + $0x18] sm:$0xff]
      %v188 = vpack.c.bf16 %v185, %v184
      %v189 = vpack.c.bf16 %v187, %v186
      %v190 = vld [vmem:[%s1] sm:$0x3]
      %vm191 = vcmask 23552
      %v193 = vsel %vm191, %v188, 0
      %v196 = vsel %vm191, %v189, 0
      %vm198 = vcmask 1040384
      %vm199 = vcmask 1041408
      %v200 = vsel %vm198, 4294967295, 65535
      %v201 = vsel %vm199, %v200, 0
      %v203 = vand.u32 %v190, %v201
      %205 = vmatprep.subr.bf16.mxu0 0
      %206 = vmatpush1.bf16.msra.mxu0 %v203
      %207 = vmatprep.subr.bf16.mxu0 0
      %208 = vmatpush1.bf16.msra.mxu0 0
      %209 = vmatprep.subr.bf16.mxu0 0
      %210 = vmatpush1.bf16.msra.mxu0 0
      %211 = vmatprep.subr.bf16.mxu0 0
      %212 = vmatpush1.bf16.msra.mxu0 0
      %213 = vmatprep.subr.bf16.mxu0 0
      %214 = vmatpush1.bf16.msra.mxu0 0
      %215 = vmatprep.subr.bf16.mxu0 0
      %216 = vmatpush1.bf16.msra.mxu0 0
      %217 = vmatprep.subr.bf16.mxu0 0
      %218 = vmatpush1.bf16.msra.mxu0 0
      %219 = vmatprep.subr.bf16.mxu0 0
      %220 = vmatpush1.bf16.msra.mxu0 0
      %221 = vmatprep.subr.bf16.mxu0 0
      %222 = vmatpush1.bf16.msra.mxu0 0
      %223 = vmatprep.subr.bf16.mxu0 0
      %224 = vmatpush1.bf16.msra.mxu0 0
      %225 = vmatprep.subr.bf16.mxu0 0
      %226 = vmatpush1.bf16.msra.mxu0 0
      %227 = vmatprep.subr.bf16.mxu0 0
      %228 = vmatpush1.bf16.msra.mxu0 0
      %229 = vmatprep.subr.bf16.mxu0 0
      %230 = vmatpush1.bf16.msra.mxu0 0
      %231 = vmatprep.subr.bf16.mxu0 0
      %232 = vmatpush1.bf16.msra.mxu0 0
      %233 = vmatprep.subr.bf16.mxu0 0
      %234 = vmatpush1.bf16.msra.mxu0 0
      %235 = vmatprep.subr.bf16.mxu0 0
      %236 = vmatpush1.bf16.msra.mxu0 0
      %237 = vmatprep.mubr.bf16.mxu0 0
      %238 = vmatmul.mubr.bf16.gmra.mrb[0].mxu0 %v193
      %v239 = vpop.f32.mrb[0].mxu0
      %v240 = vadd.f32 0.0, %v239
      %v241 = vpop.f32.mrb[0].mxu0
      %v242 = vpop.f32.mrb[0].mxu0
      %v243 = vadd.f32 0.0, %v242
      %v244 = vpop.f32.mrb[0].mxu0
      %245 = vmatprep.mubr.bf16.mxu0 0
      %246 = vmatmul.mubr.bf16.gmra.mrb[0].mxu0 %v196
      %v247 = vpop.f32.mrb[0].mxu0
      %v248 = vadd.f32 0.0, %v247
      %v249 = vpop.f32.mrb[0].mxu0
      %v250 = vpop.f32.mrb[0].mxu0
      %v251 = vadd.f32 0.0, %v250
      %v252 = vpop.f32.mrb[0].mxu0
      %253 = vdwg.mxu0
      %v254 = vpack.c.bf16 %v243, %v240
      %v255 = vpack.c.bf16 %v251, %v248
      %v258 = vunpack.c.l.b16 %v254
      %v259 = vunpack.c.h.b16 %v254
      %v260 = vunpack.c.l.b16 %v255
      %v261 = vunpack.c.h.b16 %v255
      %v262 = vpack.c.b16 %v258, %v258
      %v263 = vpack.c.b16 %v259, %v259
      %v264 = vpack.c.b16 %v260, %v260
      %v265 = vpack.c.b16 %v261, %v261
      %vm270 = vcmask 519168
      %271 = vst.msk [vmem:[%s181] sm:$0xf] %vm270, %v262
      %272 = vst.msk [vmem:[%s181 + $0x4] sm:$0xf] %vm270, %v263
      %273 = vst.msk [vmem:[%s181 + $0x8] sm:$0xf] %vm270, %v264
      %274 = vst.msk [vmem:[%s181 + $0xc] sm:$0xf] %vm270, %v265
      %s275 = smul.u32 4, %s18
      %p276 = scmp.lt.s32.totalorder %s17, 1
      %s277 = scalar_select %p276, %s17, 1
      %p278 = scmp.lt.s32.totalorder %s275, 3
      %s279 = scalar_select %p278, %s275, 3
      %s280 = smul.addr %s277, 4
      %s281 = sadd.s32 %s279, %s280
      %s282 = smul.addr %s281, 4
      %s283 = scalar_lea.vmem %s2, %s282
      // Predicated region
      $region29: #{dgcnn_encoder.14} parent=27 // pred_check
        %p284 = pneg %p94
      $region30: #{dgcnn_encoder.14} parent=27 // pred_check_branch
        %286 = sbr.rel (%p284) target = $region32
      $region31: #{dgcnn_encoder.14} parent=27 // pred_region
        %s287 = smul.u32 4, %s18
      $region32: #{dgcnn_encoder.14} parent=27 // pred_fallthru
        _
    $region28: #{dgcnn_encoder.14} parent=5 // pred_fallthru
      _
    %p288 = scmp.le.s32.totalorder 2, %s8
    // Predicated region
    $region33: #{dgcnn_encoder.14} parent=5 // pred_check
      %p289 = pneg %p288
    $region34: #{dgcnn_encoder.14} parent=5 // pred_check_branch
      %291 = sbr.rel (%p289) target = $region36
    $region35: #{dgcnn_encoder.14} parent=5 // pred_region
      %s292 = ssub.s32 %s8, 2
      // Predicated region
      $region37: #{dgcnn_encoder.14} parent=35 // pred_check
        %p293 = pneg %p100
      $region38: #{dgcnn_encoder.14} parent=35 // pred_check_branch
        %295 = sbr.rel (%p293) target = $region40
      $region39: #{dgcnn_encoder.14} parent=35 // pred_region
        %s296 = smul.u32 4, %s20
        %p297 = scmp.lt.s32.totalorder %s19, 1
        %s298 = scalar_select %p297, %s19, 1
        %p299 = scmp.lt.s32.totalorder %s296, 3
        %s300 = scalar_select %p299, %s296, 3
        %s301 = smul.addr %s298, 4
        %s302 = sadd.s32 %s300, %s301
        %s303 = smul.addr %s302, 4
        %s304 = scalar_lea.vmem %s2, %s303
      $region40: #{dgcnn_encoder.14} parent=35 // pred_fallthru
        _
    $region36: #{dgcnn_encoder.14} parent=5 // pred_fallthru
      _
  $region6: #{dgcnn_encoder.14} parent=0 // loop_footer
    %s12 = sadd.s32 1, %s8
  $region7: #{dgcnn_encoder.14} parent=0 // loop_footer_branch
    %7 = sbr.rel target = $region3
  $region8: #{dgcnn_encoder.14} parent=0 // loop_exit
    _

// kernel: dgcnn_encoder.15
$region0: #{dgcnn_encoder.15}
  #allocation0 [shape = 'u32[]', space=smem, size = 0x4, offset = 0x4, fixed_abs, tag = 'smem constant byte address 0x4 - core index']
  #allocation1 [shape = 'u32[144,128]{1,0:T(1,128)}', space=vmem, size = 0x12000, scoped, tag = 'internal scratch']
  %s0 = inlined_call_operand.vmem [shape: bf16[2,32,64], index: 0, kind: input, shape index: {}]
  %s1 = inlined_call_operand.vmem [shape: f32[2,32,3], index: 1, kind: input, shape index: {}]
  %s2 = inlined_call_operand.vmem [shape: bf16[3,64], index: 2, kind: input, shape index: {}]
  %s3 = inlined_call_operand.vmem [shape: f32[1,64], index: 3, kind: input, shape index: {}]
  %s4 = inlined_call_operand.vmem [shape: bf16[2,32,64], index: 4, kind: output, shape index: {}]
  %s5 = sld [smem:[#allocation0]]
  $region49: #{dgcnn_encoder.15} parent=0
    _
  %s7 = ssub.s32 1, %s5
  %s8 = scalar_select 0, %s7, %s5
  loop: start=0, step=1, limit=4
  $region2: #{dgcnn_encoder.15} parent=0 // loop_pre_header
    _
  $region3: #{dgcnn_encoder.15} parent=0 // loop_header
    %s10 = sphi 0, %s14
    %p11 = scmp.ge.s32.totalorder %s10, 4
    %s17 = sphi 0, %s29
    %s18 = sphi 0, %s25
    %s19 = sphi 0, %s17
    %s20 = sphi 0, %s18
    %s21 = sphi 0, %s19
    %s22 = sphi 0, %s20
    %s34 = sphi 0, %s36
    %s37 = sphi 0, %s34
    %s38 = sphi 0, %s37
    %s54 = sphi 0, %s38
    %s62 = sphi 0, %s64
    %s65 = sphi 0, %s62
    %s66 = sphi 0, %s65
    %s82 = sphi 0, %s66
    %s86 = sphi 0, %s86
    %s88 = sphi 0, %s86
    %s89 = sphi 0, %s88
    %s103 = sphi 0, %s89
    %s107 = sphi 0, %s107
    %s109 = sphi 0, %s107
    %s110 = sphi 0, %s109
    %s124 = sphi 0, %s110
    %s132 = sphi 0, %s134
    %s135 = sphi 0, %s132
    %s136 = sphi 0, %s135
    %s152 = sphi 0, %s136
  $region4: #{dgcnn_encoder.15} parent=0 // loop_header_branch
    %13 = sbr.rel (%p11) target = $region8
  $region5: #{dgcnn_encoder.15} parent=0 // loop_body
    %s15 = ssub.s32 %s10, 1
    %s16 = ssub.s32 %s10, 2
    %s23 = sadd.s32 1, %s18
    %p24 = scmp.ge.s32.totalorder %s23, 1
    %s25 = scalar_select %p24, 0, %s23
    %s26 = sadd.s32 1, %s17
    %s27 = scalar_select %p24, %s26, %s17
    %p28 = scmp.ge.s32.totalorder %s27, 2
    %s29 = scalar_select %p28, 0, %s27
    %s30 = ssub.s32 %s17, %s29
    %s31 = ssub.s32 %s18, %s25
    %s32 = sor.u32 %s30, %s31
    %p33 = scmp.eq.s32.totalorder %s32, 0
    %s35 = sadd.s32 %s34, 1
    %s36 = scalar_select %p33, %s34, %s35
    %p39 = pneg %p33
    %p40 = scmp.eq.s32.totalorder %s10, 1
    %p41 = por %p39, %p40
    %p42 = scmp.ne.s32.totalorder %s34, %s37
    %p43 = scmp.eq.s32.totalorder %s10, 0
    %p44 = por %p42, %p43
    %p45 = scmp.ne.s32.totalorder %s34, %s37
    %p46 = scmp.eq.s32.totalorder %s15, 1
    %p47 = por %p45, %p46
    %p48 = scmp.ne.s32.totalorder %s37, %s38
    %p49 = scmp.eq.s32.totalorder %s15, 0
    %p50 = por %p48, %p49
    %p51 = scmp.ne.s32.totalorder %s37, %s38
    %p52 = scmp.eq.s32.totalorder %s16, 1
    %p53 = por %p51, %p52
    %p55 = scmp.ne.s32.totalorder %s38, %s54
    %p56 = scmp.eq.s32.totalorder %s16, 0
    %p57 = por %p55, %p56
    %s58 = ssub.s32 %s17, %s29
    %s59 = ssub.s32 %s18, %s25
    %s60 = sor.u32 %s58, %s59
    %p61 = scmp.eq.s32.totalorder %s60, 0
    %s63 = sadd.s32 %s62, 1
    %s64 = scalar_select %p61, %s62, %s63
    %p67 = pneg %p61
    %p68 = scmp.eq.s32.totalorder %s10, 1
    %p69 = por %p67, %p68
    %p70 = scmp.ne.s32.totalorder %s62, %s65
    %p71 = scmp.eq.s32.totalorder %s10, 0
    %p72 = por %p70, %p71
    %p73 = scmp.ne.s32.totalorder %s62, %s65
    %p74 = scmp.eq.s32.totalorder %s15, 1
    %p75 = por %p73, %p74
    %p76 = scmp.ne.s32.totalorder %s65, %s66
    %p77 = scmp.eq.s32.totalorder %s15, 0
    %p78 = por %p76, %p77
    %p79 = scmp.ne.s32.totalorder %s65, %s66
    %p80 = scmp.eq.s32.totalorder %s16, 1
    %p81 = por %p79, %p80
    %p83 = scmp.ne.s32.totalorder %s66, %s82
    %p84 = scmp.eq.s32.totalorder %s16, 0
    %p85 = por %p83, %p84
    %s87 = sadd.s32 %s86, 1
    %p90 = scmp.eq.s32.totalorder %s10, 1
    %p91 = scmp.ne.s32.totalorder %s86, %s88
    %p92 = scmp.eq.s32.totalorder %s10, 0
    %p93 = por %p91, %p92
    %p94 = scmp.ne.s32.totalorder %s86, %s88
    %p95 = scmp.eq.s32.totalorder %s15, 1
    %p96 = por %p94, %p95
    %p97 = scmp.ne.s32.totalorder %s88, %s89
    %p98 = scmp.eq.s32.totalorder %s15, 0
    %p99 = por %p97, %p98
    %p100 = scmp.ne.s32.totalorder %s88, %s89
    %p101 = scmp.eq.s32.totalorder %s16, 1
    %p102 = por %p100, %p101
    %p104 = scmp.ne.s32.totalorder %s89, %s103
    %p105 = scmp.eq.s32.totalorder %s16, 0
    %p106 = por %p104, %p105
    %s108 = sadd.s32 %s107, 1
    %p111 = scmp.eq.s32.totalorder %s10, 1
    %p112 = scmp.ne.s32.totalorder %s107, %s109
    %p113 = scmp.eq.s32.totalorder %s10, 0
    %p114 = por %p112, %p113
    %p115 = scmp.ne.s32.totalorder %s107, %s109
    %p116 = scmp.eq.s32.totalorder %s15, 1
    %p117 = por %p115, %p116
    %p118 = scmp.ne.s32.totalorder %s109, %s110
    %p119 = scmp.eq.s32.totalorder %s15, 0
    %p120 = por %p118, %p119
    %p121 = scmp.ne.s32.totalorder %s109, %s110
    %p122 = scmp.eq.s32.totalorder %s16, 1
    %p123 = por %p121, %p122
    %p125 = scmp.ne.s32.totalorder %s110, %s124
    %p126 = scmp.eq.s32.totalorder %s16, 0
    %p127 = por %p125, %p126
    %s128 = ssub.s32 %s17, %s29
    %s129 = ssub.s32 %s18, %s25
    %s130 = sor.u32 %s128, %s129
    %p131 = scmp.eq.s32.totalorder %s130, 0
    %s133 = sadd.s32 %s132, 1
    %s134 = scalar_select %p131, %s132, %s133
    %p137 = pneg %p131
    %p138 = scmp.eq.s32.totalorder %s10, 1
    %p139 = por %p137, %p138
    %p140 = scmp.ne.s32.totalorder %s132, %s135
    %p141 = scmp.eq.s32.totalorder %s10, 0
    %p142 = por %p140, %p141
    %p143 = scmp.ne.s32.totalorder %s132, %s135
    %p144 = scmp.eq.s32.totalorder %s15, 1
    %p145 = por %p143, %p144
    %p146 = scmp.ne.s32.totalorder %s135, %s136
    %p147 = scmp.eq.s32.totalorder %s15, 0
    %p148 = por %p146, %p147
    %p149 = scmp.ne.s32.totalorder %s135, %s136
    %p150 = scmp.eq.s32.totalorder %s16, 1
    %p151 = por %p149, %p150
    %p153 = scmp.ne.s32.totalorder %s136, %s152
    %p154 = scmp.eq.s32.totalorder %s16, 0
    %p155 = por %p153, %p154
    %p156 = scmp.le.s32.totalorder 1, %s10
    %p157 = scmp.lt.s32.totalorder %s10, 3
    %p158 = pnand %p156, %p157
    %p159 = pneg %p158
    // Predicated region
    $region9: #{dgcnn_encoder.15} parent=5 // pred_check
      _
    $region10: #{dgcnn_encoder.15} parent=5 // pred_check_branch
      %161 = sbr.rel (%p158) target = $region12
    $region11: #{dgcnn_encoder.15} parent=5 // pred_region
      %s162 = ssub.s32 %s10, 1
      // Predicated region
      $region13: #{dgcnn_encoder.15} parent=11 // pred_check
        %p163 = pneg %p99
      $region14: #{dgcnn_encoder.15} parent=11 // pred_check_branch
        %165 = sbr.rel (%p163) target = $region16
      $region15: #{dgcnn_encoder.15} parent=11 // pred_region
        _
      $region16: #{dgcnn_encoder.15} parent=11 // pred_fallthru
        _
      // Predicated region
      $region17: #{dgcnn_encoder.15} parent=11 // pred_check
        %p166 = pneg %p120
      $region18: #{dgcnn_encoder.15} parent=11 // pred_check_branch
        %168 = sbr.rel (%p166) target = $region20
      $region19: #{dgcnn_encoder.15} parent=11 // pred_region
        _
      $region20: #{dgcnn_encoder.15} parent=11 // pred_fallthru
        _
    $region12: #{dgcnn_encoder.15} parent=5 // pred_fallthru
      _
    %p169 = scmp.lt.s32.totalorder %s10, 2
    // Predicated region
    $region21: #{dgcnn_encoder.15} parent=5 // pred_check
      %p170 = pneg %p169
    $region22: #{dgcnn_encoder.15} parent=5 // pred_check_branch
      %172 = sbr.rel (%p170) target = $region24
    $region23: #{dgcnn_encoder.15} parent=5 // pred_region
      // Predicated region
      $region25: #{dgcnn_encoder.15} parent=23 // pred_check
        %p173 = pneg %p44
      $region26: #{dgcnn_encoder.15} parent=23 // pred_check_branch
        %175 = sbr.rel (%p173) target = $region28
      $region27: #{dgcnn_encoder.15} parent=23 // pred_region
        %s176 = smul.u32 4, %s18
        %p177 = scmp.lt.s32.totalorder %s17, 1
        %s178 = scalar_select %p177, %s17, 1
        %p179 = scmp.lt.s32.totalorder %s176, 3
        %s180 = scalar_select %p179, %s176, 3
        %s181 = smul.addr %s178, 4
        %s182 = sadd.s32 %s180, %s181
        %s183 = smul.addr %s182, 4
        %s184 = scalar_lea.vmem %s0, %s183
        %s185 = smul.u32 4, %s18
      $region28: #{dgcnn_encoder.15} parent=23 // pred_fallthru
        _
      // Predicated region
      $region29: #{dgcnn_encoder.15} parent=23 // pred_check
        %p186 = pneg %p72
      $region30: #{dgcnn_encoder.15} parent=23 // pred_check_branch
        %188 = sbr.rel (%p186) target = $region32
      $region31: #{dgcnn_encoder.15} parent=23 // pred_region
        %s189 = smul.u32 4, %s18
        %p190 = scmp.lt.s32.totalorder %s17, 1
        %s191 = scalar_select %p190, %s17, 1
        %p192 = scmp.lt.s32.totalorder %s189, 3
        %s193 = scalar_select %p192, %s189, 3
        %s194 = smul.addr %s191, 4
        %s195 = sadd.s32 %s193, %s194
        %s196 = smul.addr %s195, 8
        %s197 = scalar_lea.vmem %s1, %s196
        %s198 = smul.u32 4, %s18
      $region32: #{dgcnn_encoder.15} parent=23 // pred_fallthru
        _
    $region24: #{dgcnn_encoder.15} parent=5 // pred_fallthru
      _
    %p199 = scmp.le.s32.totalorder 1, %s10
    %p200 = scmp.lt.s32.totalorder %s10, 3
    %p201 = pnand %p199, %p200
    %p202 = pneg %p201
    // Predicated region
    $region33: #{dgcnn_encoder.15} parent=5 // pred_check
      _
    $region34: #{dgcnn_encoder.15} parent=5 // pred_check_branch
      %204 = sbr.rel (%p201) target = $region36
    $region35: #{dgcnn_encoder.15} parent=5 // pred_region
      %s205 = ssub.s32 %s10, 1
      %s206 = smul.u32 4, %s20
      %p207 = scmp.lt.s32.totalorder %s19, 1
      %s208 = scalar_select %p207, %s19, 1
      %p209 = scmp.lt.s32.totalorder %s206, 3
      %s210 = scalar_select %p209, %s206, 3
      %s211 = smul.addr %s208, 4
      %s212 = sadd.s32 %s210, %s211
      %s213 = smul.addr %s212, 4
      %s214 = scalar_lea.vmem %s0, %s213
      %p215 = pneg %p50
      %p216 = pneg %p47
      %s217 = smul.u32 4, %s20
      %p218 = scmp.lt.s32.totalorder %s19, 1
      %s219 = scalar_select %p218, %s19, 1
      %p220 = scmp.lt.s32.totalorder %s217, 3
      %s221 = scalar_select %p220, %s217, 3
      %s222 = smul.addr %s219, 4
      %s223 = sadd.s32 %s221, %s222
      %s224 = smul.addr %s223, 8
      %s225 = scalar_lea.vmem %s1, %s224
      %p226 = pneg %p78
      %p227 = pneg %p75
      %p228 = pneg %p99
      %p229 = pneg %p96
      %p230 = pneg %p120
      %p231 = pneg %p117
      %p232 = pneg %p148
      %p233 = pneg %p145
      %s234 = smul.u32 4, %s20
      %p235 = scmp.lt.s32.totalorder %s19, 1
      %s236 = scalar_select %p235, %s19, 1
      %p237 = scmp.lt.s32.totalorder %s234, 3
      %s238 = scalar_select %p237, %s234, 3
      %s239 = smul.addr %s236, 4
      %s240 = sadd.s32 %s238, %s239
      %s241 = smul.addr %s240, 4
      %s242 = scalar_lea.vmem %s4, %s241
      %s243 = smul.u32 4, %s20
      %p244 = scmp.lt.s32.totalorder %s19, 1
      %s245 = scalar_select %p244, %s19, 1
      %p246 = scmp.lt.s32.totalorder %s243, 3
      %s247 = scalar_select %p246, %s243, 3
      %s248 = smul.addr %s245, 4
      %s249 = sadd.s32 %s247, %s248
      %s250 = smul.addr %s249, 4
      %s251 = scalar_lea.vmem %s0, %s250
      %s252 = smul.u32 4, %s20
      %s253 = smul.u32 4, %s20
      %p254 = scmp.lt.s32.totalorder %s19, 1
      %s255 = scalar_select %p254, %s19, 1
      %p256 = scmp.lt.s32.totalorder %s253, 3
      %s257 = scalar_select %p256, %s253, 3
      %s258 = smul.addr %s255, 4
      %s259 = sadd.s32 %s257, %s258
      %s260 = smul.addr %s259, 8
      %s261 = scalar_lea.vmem %s1, %s260
      %s262 = smul.u32 4, %s20
      %s263 = smul.u32 4, %s20
      %p264 = scmp.lt.s32.totalorder %s19, 1
      %s265 = scalar_select %p264, %s19, 1
      %p266 = scmp.lt.s32.totalorder %s263, 3
      %s267 = scalar_select %p266, %s263, 3
      %s268 = smul.addr %s265, 4
      %s269 = sadd.s32 %s267, %s268
      %s270 = smul.addr %s269, 4
      %s271 = scalar_lea.vmem %s4, %s270
      %s272 = smul.u32 4, %s20
      %v274 = vld [vmem:[%s261] sm:$0xff]
      %v275 = vld [vmem:[%s261 + $0x8] sm:$0xff]
      %v276 = vld [vmem:[%s261 + $0x10] sm:$0xff]
      %v277 = vld [vmem:[%s261 + $0x18] sm:$0xff]
      %v278 = vpack.c.bf16 %v275, %v274
      %v279 = vpack.c.bf16 %v277, %v276
      %v280 = vld [vmem:[%s2] sm:$0x3]
      %vm281 = vcmask 23552
      %v283 = vsel %vm281, %v278, 0
      %v286 = vsel %vm281, %v279, 0
      %vm288 = vcmask 1040384
      %vm289 = vcmask 1041408
      %v290 = vsel %vm288, 4294967295, 65535
      %v291 = vsel %vm289, %v290, 0
      %v293 = vand.u32 %v280, %v291
      %295 = vmatprep.subr.bf16.mxu0 0
      %296 = vmatpush1.bf16.msra.mxu0 %v293
      %297 = vmatprep.subr.bf16.mxu0 0
      %298 = vmatpush1.bf16.msra.mxu0 0
      %299 = vmatprep.subr.bf16.mxu0 0
      %300 = vmatpush1.bf16.msra.mxu0 0
      %301 = vmatprep.subr.bf16.mxu0 0
      %302 = vmatpush1.bf16.msra.mxu0 0
      %303 = vmatprep.subr.bf16.mxu0 0
      %304 = vmatpush1.bf16.msra.mxu0 0
      %305 = vmatprep.subr.bf16.mxu0 0
      %306 = vmatpush1.bf16.msra.mxu0 0
      %307 = vmatprep.subr.bf16.mxu0 0
      %308 = vmatpush1.bf16.msra.mxu0 0
      %309 = vmatprep.subr.bf16.mxu0 0
      %310 = vmatpush1.bf16.msra.mxu0 0
      %311 = vmatprep.subr.bf16.mxu0 0
      %312 = vmatpush1.bf16.msra.mxu0 0
      %313 = vmatprep.subr.bf16.mxu0 0
      %314 = vmatpush1.bf16.msra.mxu0 0
      %315 = vmatprep.subr.bf16.mxu0 0
      %316 = vmatpush1.bf16.msra.mxu0 0
      %317 = vmatprep.subr.bf16.mxu0 0
      %318 = vmatpush1.bf16.msra.mxu0 0
      %319 = vmatprep.subr.bf16.mxu0 0
      %320 = vmatpush1.bf16.msra.mxu0 0
      %321 = vmatprep.subr.bf16.mxu0 0
      %322 = vmatpush1.bf16.msra.mxu0 0
      %323 = vmatprep.subr.bf16.mxu0 0
      %324 = vmatpush1.bf16.msra.mxu0 0
      %325 = vmatprep.subr.bf16.mxu0 0
      %326 = vmatpush1.bf16.msra.mxu0 0
      %327 = vmatprep.mubr.bf16.mxu0 0
      %328 = vmatmul.mubr.bf16.gmra.mrb[0].mxu0 %v283
      %v329 = vpop.f32.mrb[0].mxu0
      %v330 = vadd.f32 0.0, %v329
      %v331 = vpop.f32.mrb[0].mxu0
      %v332 = vpop.f32.mrb[0].mxu0
      %v333 = vadd.f32 0.0, %v332
      %v334 = vpop.f32.mrb[0].mxu0
      %335 = vmatprep.mubr.bf16.mxu0 0
      %336 = vmatmul.mubr.bf16.gmra.mrb[0].mxu0 %v286
      %v337 = vpop.f32.mrb[0].mxu0
      %v338 = vadd.f32 0.0, %v337
      %v339 = vpop.f32.mrb[0].mxu0
      %v340 = vpop.f32.mrb[0].mxu0
      %v341 = vadd.f32 0.0, %v340
      %v342 = vpop.f32.mrb[0].mxu0
      %343 = vdwg.mxu0
      %v344 = vld [vmem:[%s251] sm:$0xf]
      %v345 = vld [vmem:[%s251 + $0x4] sm:$0xf]
      %v346 = vld [vmem:[%s251 + $0x8] sm:$0xf]
      %v347 = vld [vmem:[%s251 + $0xc] sm:$0xf]
      %v348 = vunpack.c.l.bf16 %v344
      %v349 = vunpack.c.l.bf16 %v345
      %v350 = vunpack.c.l.bf16 %v346
      %v351 = vunpack.c.l.bf16 %v347
      %v352 = vadd.f32 %v348, %v330
      %v353 = vadd.f32 %v349, %v333
      %v354 = vadd.f32 %v350, %v338
      %v355 = vadd.f32 %v351, %v341
      %v356 = vld [vmem:[%s3] sm:$0x1]
      %v358 = vlaneseq
      %v359 = vshrl.u32 %v358, 7
      %v360 = vsub.s32 0, %v359
      %v361 = vrot.slane %v356, %v360
      %v363 = vadd.f32 %v352, %v361
      %v364 = vadd.f32 %v353, %v361
      %v365 = vadd.f32 %v354, %v361
      %v366 = vadd.f32 %v355, %v361
      %v367 = vmul.f32 %v363, 0.2
      %v368 = vmul.f32 %v364, 0.2
      %v369 = vmul.f32 %v365, 0.2
      %v370 = vmul.f32 %v366, 0.2
      %v371 = vmax.f32 %v363, %v367
      %v372 = vmax.f32 %v364, %v368
      %v373 = vmax.f32 %v365, %v369
      %v374 = vmax.f32 %v366, %v370
      %v375 = vpack.c.bf16 %v372, %v371
      %v376 = vpack.c.bf16 %v374, %v373
      %v379 = vunpack.c.l.b16 %v375
      %v380 = vunpack.c.h.b16 %v375
      %v381 = vunpack.c.l.b16 %v376
      %v382 = vunpack.c.h.b16 %v376
      %v383 = vpack.c.b16 %v379, %v379
      %v384 = vpack.c.b16 %v380, %v380
      %v385 = vpack.c.b16 %v381, %v381
      %v386 = vpack.c.b16 %v382, %v382
      %vm391 = vcmask 519168
      %392 = vst.msk [vmem:[%s271] sm:$0xf] %vm391, %v383
      %393 = vst.msk [vmem:[%s271 + $0x4] sm:$0xf] %vm391, %v384
      %394 = vst.msk [vmem:[%s271 + $0x8] sm:$0xf] %vm391, %v385
      %395 = vst.msk [vmem:[%s271 + $0xc] sm:$0xf] %vm391, %v386
      %s396 = smul.u32 4, %s20
      %p397 = scmp.lt.s32.totalorder %s19, 1
      %s398 = scalar_select %p397, %s19, 1
      %p399 = scmp.lt.s32.totalorder %s396, 3
      %s400 = scalar_select %p399, %s396, 3
      %s401 = smul.addr %s398, 4
      %s402 = sadd.s32 %s400, %s401
      %s403 = smul.addr %s402, 4
      %s404 = scalar_lea.vmem %s4, %s403
      // Predicated region
      $region37: #{dgcnn_encoder.15} parent=35 // pred_check
        %p405 = pneg %p145
      $region38: #{dgcnn_encoder.15} parent=35 // pred_check_branch
        %407 = sbr.rel (%p405) target = $region40
      $region39: #{dgcnn_encoder.15} parent=35 // pred_region
        %s408 = smul.u32 4, %s20
      $region40: #{dgcnn_encoder.15} parent=35 // pred_fallthru
        _
    $region36: #{dgcnn_encoder.15} parent=5 // pred_fallthru
      _
    %p409 = scmp.le.s32.totalorder 2, %s10
    // Predicated region
    $region41: #{dgcnn_encoder.15} parent=5 // pred_check
      %p410 = pneg %p409
    $region42: #{dgcnn_encoder.15} parent=5 // pred_check_branch
      %412 = sbr.rel (%p410) target = $region44
    $region43: #{dgcnn_encoder.15} parent=5 // pred_region
      %s413 = ssub.s32 %s10, 2
      // Predicated region
      $region45: #{dgcnn_encoder.15} parent=43 // pred_check
        %p414 = pneg %p151
      $region46: #{dgcnn_encoder.15} parent=43 // pred_check_branch
        %416 = sbr.rel (%p414) target = $region48
      $region47: #{dgcnn_encoder.15} parent=43 // pred_region
        %s417 = smul.u32 4, %s22
        %p418 = scmp.lt.s32.totalorder %s21, 1
        %s419 = scalar_select %p418, %s21, 1
        %p420 = scmp.lt.s32.totalorder %s417, 3
        %s421 = scalar_select %p420, %s417, 3
        %s422 = smul.addr %s419, 4
        %s423 = sadd.s32 %s421, %s422
        %s424 = smul.addr %s423, 4
        %s425 = scalar_lea.vmem %s4, %s424
      $region48: #{dgcnn_encoder.15} parent=43 // pred_fallthru
        _
    $region44: #{dgcnn_encoder.15} parent=5 // pred_fallthru
      _
  $region6: #{dgcnn_encoder.15} parent=0 // loop_footer
    %s14 = sadd.s32 1, %s10
  $region7: #{dgcnn_encoder.15} parent=0 // loop_footer_branch
    %9 = sbr.rel target = $region3
  $region8: #{dgcnn_encoder.15} parent=0 // loop_exit
    _

// kernel: dgcnn_encoder.16
$region0: #{dgcnn_encoder.16}
  #allocation0 [shape = 'u32[]', space=smem, size = 0x4, offset = 0x4, fixed_abs, tag = 'smem constant byte address 0x4 - core index']
  #allocation1 [shape = 'u32[144,128]{1,0:T(1,128)}', space=vmem, size = 0x12000, scoped, tag = 'internal scratch']
  %s0 = inlined_call_operand.vmem [shape: bf16[2,32,64], index: 0, kind: input, shape index: {}, may-alias: {0,1}]
  %s1 = inlined_call_operand.vmem [shape: bf16[2,32,64], index: 1, kind: input, shape index: {}, may-alias: {0,1}]
  %s2 = inlined_call_operand.vmem [shape: f32[2,1,32], index: 2, kind: input, shape index: {}]
  %s3 = inlined_call_operand.vmem [shape: bf16[2,32,32], index: 3, kind: output, shape index: {}]
  %s4 = sld [smem:[#allocation0]]
  $region45: #{dgcnn_encoder.16} parent=0
    _
  %s6 = ssub.s32 1, %s4
  %s7 = scalar_select 0, %s6, %s4
  loop: start=0, step=1, limit=4
  $region2: #{dgcnn_encoder.16} parent=0 // loop_pre_header
    _
  $region3: #{dgcnn_encoder.16} parent=0 // loop_header
    %s9 = sphi 0, %s13
    %p10 = scmp.ge.s32.totalorder %s9, 4
    %s16 = sphi 0, %s28
    %s17 = sphi 0, %s24
    %s18 = sphi 0, %s16
    %s19 = sphi 0, %s17
    %s20 = sphi 0, %s18
    %s21 = sphi 0, %s19
    %s33 = sphi 0, %s35
    %s36 = sphi 0, %s33
    %s37 = sphi 0, %s36
    %s53 = sphi 0, %s37
    %s59 = sphi 0, %s61
    %s62 = sphi 0, %s59
    %s63 = sphi 0, %s62
    %s79 = sphi 0, %s63
    %s85 = sphi 0, %s87
    %s88 = sphi 0, %s85
    %s89 = sphi 0, %s88
    %s105 = sphi 0, %s89
    %s113 = sphi 0, %s115
    %s116 = sphi 0, %s113
    %s117 = sphi 0, %s116
    %s133 = sphi 0, %s117
  $region4: #{dgcnn_encoder.16} parent=0 // loop_header_branch
    %12 = sbr.rel (%p10) target = $region8
  $region5: #{dgcnn_encoder.16} parent=0 // loop_body
    %s14 = ssub.s32 %s9, 1
    %s15 = ssub.s32 %s9, 2
    %s22 = sadd.s32 1, %s17
    %p23 = scmp.ge.s32.totalorder %s22, 1
    %s24 = scalar_select %p23, 0, %s22
    %s25 = sadd.s32 1, %s16
    %s26 = scalar_select %p23, %s25, %s16
    %p27 = scmp.ge.s32.totalorder %s26, 2
    %s28 = scalar_select %p27, 0, %s26
    %s29 = ssub.s32 %s16, %s28
    %s30 = ssub.s32 %s17, %s24
    %s31 = sor.u32 %s29, %s30
    %p32 = scmp.eq.s32.totalorder %s31, 0
    %s34 = sadd.s32 %s33, 1
    %s35 = scalar_select %p32, %s33, %s34
    %p38 = pneg %p32
    %p39 = scmp.eq.s32.totalorder %s9, 1
    %p40 = por %p38, %p39
    %p41 = scmp.ne.s32.totalorder %s33, %s36
    %p42 = scmp.eq.s32.totalorder %s9, 0
    %p43 = por %p41, %p42
    %p44 = scmp.ne.s32.totalorder %s33, %s36
    %p45 = scmp.eq.s32.totalorder %s14, 1
    %p46 = por %p44, %p45
    %p47 = scmp.ne.s32.totalorder %s36, %s37
    %p48 = scmp.eq.s32.totalorder %s14, 0
    %p49 = por %p47, %p48
    %p50 = scmp.ne.s32.totalorder %s36, %s37
    %p51 = scmp.eq.s32.totalorder %s15, 1
    %p52 = por %p50, %p51
    %p54 = scmp.ne.s32.totalorder %s37, %s53
    %p55 = scmp.eq.s32.totalorder %s15, 0
    %p56 = por %p54, %p55
    %s57 = ssub.s32 %s16, %s28
    %p58 = scmp.eq.s32.totalorder %s57, 0
    %s60 = sadd.s32 %s59, 1
    %s61 = scalar_select %p58, %s59, %s60
    %p64 = pneg %p58
    %p65 = scmp.eq.s32.totalorder %s9, 1
    %p66 = por %p64, %p65
    %p67 = scmp.ne.s32.totalorder %s59, %s62
    %p68 = scmp.eq.s32.totalorder %s9, 0
    %p69 = por %p67, %p68
    %p70 = scmp.ne.s32.totalorder %s59, %s62
    %p71 = scmp.eq.s32.totalorder %s14, 1
    %p72 = por %p70, %p71
    %p73 = scmp.ne.s32.totalorder %s62, %s63
    %p74 = scmp.eq.s32.totalorder %s14, 0
    %p75 = por %p73, %p74
    %p76 = scmp.ne.s32.totalorder %s62, %s63
    %p77 = scmp.eq.s32.totalorder %s15, 1
    %p78 = por %p76, %p77
    %p80 = scmp.ne.s32.totalorder %s63, %s79
    %p81 = scmp.eq.s32.totalorder %s15, 0
    %p82 = por %p80, %p81
    %s83 = ssub.s32 %s16, %s28
    %p84 = scmp.eq.s32.totalorder %s83, 0
    %s86 = sadd.s32 %s85, 1
    %s87 = scalar_select %p84, %s85, %s86
    %p90 = pneg %p84
    %p91 = scmp.eq.s32.totalorder %s9, 1
    %p92 = por %p90, %p91
    %p93 = scmp.ne.s32.totalorder %s85, %s88
    %p94 = scmp.eq.s32.totalorder %s9, 0
    %p95 = por %p93, %p94
    %p96 = scmp.ne.s32.totalorder %s85, %s88
    %p97 = scmp.eq.s32.totalorder %s14, 1
    %p98 = por %p96, %p97
    %p99 = scmp.ne.s32.totalorder %s88, %s89
    %p100 = scmp.eq.s32.totalorder %s14, 0
    %p101 = por %p99, %p100
    %p102 = scmp.ne.s32.totalorder %s88, %s89
    %p103 = scmp.eq.s32.totalorder %s15, 1
    %p104 = por %p102, %p103
    %p106 = scmp.ne.s32.totalorder %s89, %s105
    %p107 = scmp.eq.s32.totalorder %s15, 0
    %p108 = por %p106, %p107
    %s109 = ssub.s32 %s16, %s28
    %s110 = ssub.s32 %s17, %s24
    %s111 = sor.u32 %s109, %s110
    %p112 = scmp.eq.s32.totalorder %s111, 0
    %s114 = sadd.s32 %s113, 1
    %s115 = scalar_select %p112, %s113, %s114
    %p118 = pneg %p112
    %p119 = scmp.eq.s32.totalorder %s9, 1
    %p120 = por %p118, %p119
    %p121 = scmp.ne.s32.totalorder %s113, %s116
    %p122 = scmp.eq.s32.totalorder %s9, 0
    %p123 = por %p121, %p122
    %p124 = scmp.ne.s32.totalorder %s113, %s116
    %p125 = scmp.eq.s32.totalorder %s14, 1
    %p126 = por %p124, %p125
    %p127 = scmp.ne.s32.totalorder %s116, %s117
    %p128 = scmp.eq.s32.totalorder %s14, 0
    %p129 = por %p127, %p128
    %p130 = scmp.ne.s32.totalorder %s116, %s117
    %p131 = scmp.eq.s32.totalorder %s15, 1
    %p132 = por %p130, %p131
    %p134 = scmp.ne.s32.totalorder %s117, %s133
    %p135 = scmp.eq.s32.totalorder %s15, 0
    %p136 = por %p134, %p135
    %p137 = scmp.le.s32.totalorder 1, %s9
    %p138 = scmp.lt.s32.totalorder %s9, 3
    %p139 = pnand %p137, %p138
    %p140 = pneg %p139
    // Predicated region
    $region9: #{dgcnn_encoder.16} parent=5 // pred_check
      _
    $region10: #{dgcnn_encoder.16} parent=5 // pred_check_branch
      %142 = sbr.rel (%p139) target = $region12
    $region11: #{dgcnn_encoder.16} parent=5 // pred_region
      %s143 = ssub.s32 %s9, 1
    $region12: #{dgcnn_encoder.16} parent=5 // pred_fallthru
      _
    %p144 = scmp.lt.s32.totalorder %s9, 2
    // Predicated region
    $region13: #{dgcnn_encoder.16} parent=5 // pred_check
      %p145 = pneg %p144
    $region14: #{dgcnn_encoder.16} parent=5 // pred_check_branch
      %147 = sbr.rel (%p145) target = $region16
    $region15: #{dgcnn_encoder.16} parent=5 // pred_region
      // Predicated region
      $region17: #{dgcnn_encoder.16} parent=15 // pred_check
        %p148 = pneg %p43
      $region18: #{dgcnn_encoder.16} parent=15 // pred_check_branch
        %150 = sbr.rel (%p148) target = $region20
      $region19: #{dgcnn_encoder.16} parent=15 // pred_region
        %s151 = smul.u32 4, %s17
        %p152 = scmp.lt.s32.totalorder %s16, 1
        %s153 = scalar_select %p152, %s16, 1
        %p154 = scmp.lt.s32.totalorder %s151, 3
        %s155 = scalar_select %p154, %s151, 3
        %s156 = smul.addr %s153, 4
        %s157 = sadd.s32 %s155, %s156
        %s158 = smul.addr %s157, 4
        %s159 = scalar_lea.vmem %s0, %s158
        %s160 = smul.u32 4, %s17
      $region20: #{dgcnn_encoder.16} parent=15 // pred_fallthru
        _
      // Predicated region
      $region21: #{dgcnn_encoder.16} parent=15 // pred_check
        %p161 = pneg %p69
      $region22: #{dgcnn_encoder.16} parent=15 // pred_check_branch
        %163 = sbr.rel (%p161) target = $region24
      $region23: #{dgcnn_encoder.16} parent=15 // pred_region
        %p164 = scmp.lt.s32.totalorder %s16, 1
        %s165 = scalar_select %p164, %s16, 1
        %s166 = smul.addr %s165, 4
        %s167 = smul.addr %s166, 4
        %s168 = scalar_lea.vmem %s1, %s167
      $region24: #{dgcnn_encoder.16} parent=15 // pred_fallthru
        _
      // Predicated region
      $region25: #{dgcnn_encoder.16} parent=15 // pred_check
        %p169 = pneg %p95
      $region26: #{dgcnn_encoder.16} parent=15 // pred_check_branch
        %171 = sbr.rel (%p169) target = $region28
      $region27: #{dgcnn_encoder.16} parent=15 // pred_region
        %p172 = scmp.lt.s32.totalorder %s16, 1
        %s173 = scalar_select %p172, %s16, 1
        %s174 = scalar_lea.vmem %s2, %s173
      $region28: #{dgcnn_encoder.16} parent=15 // pred_fallthru
        _
    $region16: #{dgcnn_encoder.16} parent=5 // pred_fallthru
      _
    %p175 = scmp.le.s32.totalorder 1, %s9
    %p176 = scmp.lt.s32.totalorder %s9, 3
    %p177 = pnand %p175, %p176
    %p178 = pneg %p177
    // Predicated region
    $region29: #{dgcnn_encoder.16} parent=5 // pred_check
      _
    $region30: #{dgcnn_encoder.16} parent=5 // pred_check_branch
      %180 = sbr.rel (%p177) target = $region32
    $region31: #{dgcnn_encoder.16} parent=5 // pred_region
      %s181 = ssub.s32 %s9, 1
      %s182 = smul.u32 4, %s19
      %p183 = scmp.lt.s32.totalorder %s18, 1
      %s184 = scalar_select %p183, %s18, 1
      %p185 = scmp.lt.s32.totalorder %s182, 3
      %s186 = scalar_select %p185, %s182, 3
      %s187 = smul.addr %s184, 4
      %s188 = sadd.s32 %s186, %s187
      %s189 = smul.addr %s188, 4
      %s190 = scalar_lea.vmem %s0, %s189
      %p191 = pneg %p49
      %p192 = pneg %p46
      %p193 = scmp.lt.s32.totalorder %s18, 1
      %s194 = scalar_select %p193, %s18, 1
      %s195 = smul.addr %s194, 4
      %s196 = smul.addr %s195, 4
      %s197 = scalar_lea.vmem %s1, %s196
      %p198 = pneg %p75
      %p199 = pneg %p72
      %p200 = scmp.lt.s32.totalorder %s18, 1
      %s201 = scalar_select %p200, %s18, 1
      %s202 = scalar_lea.vmem %s2, %s201
      %p203 = pneg %p101
      %p204 = pneg %p98
      %p205 = pneg %p129
      %p206 = pneg %p126
      %s207 = smul.u32 4, %s19
      %p208 = scmp.lt.s32.totalorder %s18, 1
      %s209 = scalar_select %p208, %s18, 1
      %p210 = scmp.lt.s32.totalorder %s207, 3
      %s211 = scalar_select %p210, %s207, 3
      %s212 = smul.addr %s209, 4
      %s213 = sadd.s32 %s211, %s212
      %s214 = smul.addr %s213, 4
      %s215 = scalar_lea.vmem %s3, %s214
      %s216 = smul.u32 4, %s19
      %p217 = scmp.lt.s32.totalorder %s18, 1
      %s218 = scalar_select %p217, %s18, 1
      %p219 = scmp.lt.s32.totalorder %s216, 3
      %s220 = scalar_select %p219, %s216, 3
      %s221 = smul.addr %s218, 4
      %s222 = sadd.s32 %s220, %s221
      %s223 = smul.addr %s222, 4
      %s224 = scalar_lea.vmem %s0, %s223
      %s225 = smul.u32 4, %s19
      %p226 = scmp.lt.s32.totalorder %s18, 1
      %s227 = scalar_select %p226, %s18, 1
      %s228 = smul.addr %s227, 4
      %s229 = smul.addr %s228, 4
      %s230 = scalar_lea.vmem %s1, %s229
      %p231 = scmp.lt.s32.totalorder %s18, 1
      %s232 = scalar_select %p231, %s18, 1
      %s233 = scalar_lea.vmem %s2, %s232
      %s234 = smul.u32 4, %s19
      %p235 = scmp.lt.s32.totalorder %s18, 1
      %s236 = scalar_select %p235, %s18, 1
      %p237 = scmp.lt.s32.totalorder %s234, 3
      %s238 = scalar_select %p237, %s234, 3
      %s239 = smul.addr %s236, 4
      %s240 = sadd.s32 %s238, %s239
      %s241 = smul.addr %s240, 4
      %s242 = scalar_lea.vmem %s3, %s241
      %s243 = smul.u32 4, %s19
      %v245 = vld [vmem:[%s224] sm:$0xf]
      %v246 = vld [vmem:[%s224 + $0x4] sm:$0xf]
      %v247 = vld [vmem:[%s224 + $0x8] sm:$0xf]
      %v248 = vld [vmem:[%s224 + $0xc] sm:$0xf]
      %v249 = vld [vmem:[%s230] sm:$0xf]
      %v250 = vld [vmem:[%s230 + $0x4] sm:$0xf]
      %v251 = vld [vmem:[%s230 + $0x8] sm:$0xf]
      %v252 = vld [vmem:[%s230 + $0xc] sm:$0xf]
      %v257 = vunpack.c.l.b16 %v245
      %v258 = vunpack.c.l.b16 %v246
      %v259 = vunpack.c.l.b16 %v247
      %v260 = vunpack.c.l.b16 %v248
      %v261 = vpack.c.b16 %v258, %v257
      %v262 = vpack.c.b16 %v260, %v259
      %v267 = vunpack.c.l.b16 %v249
      %v268 = vunpack.c.l.b16 %v250
      %v269 = vunpack.c.l.b16 %v251
      %v270 = vunpack.c.l.b16 %v252
      %v271 = vpack.c.b16 %v268, %v267
      %v272 = vpack.c.b16 %v270, %v269
      %vm273 = vcmask 523264
      %v275 = vsel %vm273, %v261, 0
      %v278 = vsel %vm273, %v262, 0
      %v281 = vsel %vm273, %v271, 0
      %v284 = vsel %vm273, %v272, 0
      %286 = vmatprep.subr.bf16.mxu0 0
      %287 = vmatpush1.bf16.xpose.msra.mxu0 %v281
      %288 = vmatprep.subr.bf16.mxu0 0
      %289 = vmatpush1.bf16.xpose.msra.mxu0 %v284
      %290 = vmatprep.subr.bf16.mxu0 0
      %291 = vmatpush1.bf16.xpose.msra.mxu0 0
      %292 = vmatprep.subr.bf16.mxu0 0
      %293 = vmatpush1.bf16.xpose.msra.mxu0 0
      %294 = vmatprep.subr.bf16.mxu0 0
      %295 = vmatpush1.bf16.xpose.msra.mxu0 0
      %296 = vmatprep.subr.bf16.mxu0 0
      %297 = vmatpush1.bf16.xpose.msra.mxu0 0
      %298 = vmatprep.subr.bf16.mxu0 0
      %299 = vmatpush1.bf16.xpose.msra.mxu0 0
      %300 = vmatprep.subr.bf16.mxu0 0
      %301 = vmatpush1.bf16.xpose.msra.mxu0 0
      %302 = vmatprep.subr.bf16.mxu0 0
      %303 = vmatpush1.bf16.xpose.msra.mxu0 0
      %304 = vmatprep.subr.bf16.mxu0 0
      %305 = vmatpush1.bf16.xpose.msra.mxu0 0
      %306 = vmatprep.subr.bf16.mxu0 0
      %307 = vmatpush1.bf16.xpose.msra.mxu0 0
      %308 = vmatprep.subr.bf16.mxu0 0
      %309 = vmatpush1.bf16.xpose.msra.mxu0 0
      %310 = vmatprep.subr.bf16.mxu0 0
      %311 = vmatpush1.bf16.xpose.msra.mxu0 0
      %312 = vmatprep.subr.bf16.mxu0 0
      %313 = vmatpush1.bf16.xpose.msra.mxu0 0
      %314 = vmatprep.subr.bf16.mxu0 0
      %315 = vmatpush1.bf16.xpose.msra.mxu0 0
      %316 = vmatprep.subr.bf16.mxu0 0
      %317 = vmatpush1.bf16.xpose.msra.mxu0 0
      %318 = vmatprep.mubr.bf16.mxu0 0
      %319 = vmatmul.mubr.bf16.gmra.mrb[0].mxu0 %v275
      %v320 = vpop.f32.mrb[0].mxu0
      %v321 = vadd.f32 0.0, %v320
      %v322 = vpop.f32.mrb[0].mxu0
      %v323 = vpop.f32.mrb[0].mxu0
      %v324 = vadd.f32 0.0, %v323
      %v325 = vpop.f32.mrb[0].mxu0
      %326 = vmatprep.mubr.bf16.mxu0 0
      %327 = vmatmul.mubr.bf16.gmra.mrb[0].mxu0 %v278
      %v328 = vpop.f32.mrb[0].mxu0
      %v329 = vadd.f32 0.0, %v328
      %v330 = vpop.f32.mrb[0].mxu0
      %v331 = vpop.f32.mrb[0].mxu0
      %v332 = vadd.f32 0.0, %v331
      %v333 = vpop.f32.mrb[0].mxu0
      %334 = vdwg.mxu0
      %v335 = vunpack.c.l.bf16 %v245
      %v336 = vunpack.c.l.bf16 %v246
      %v337 = vunpack.c.l.bf16 %v247
      %v338 = vunpack.c.l.bf16 %v248
      %v339 = vmul.f32 %v335, %v335
      %v340 = vmul.f32 %v336, %v336
      %v341 = vmul.f32 %v337, %v337
      %v342 = vmul.f32 %v338, %v338
      %v343 = vsel %vm273, %v339, 0.0
      %344 = vadd.xlane.f32.xlu0 %v343
      %v345 = vpop.xlane.xlu0 %344
      %v346 = vsel %vm273, %v340, 0.0
      %347 = vadd.xlane.f32.xlu0 %v346
      %v348 = vpop.xlane.xlu0 %347
      %v349 = vsel %vm273, %v341, 0.0
      %350 = vadd.xlane.f32.xlu0 %v349
      %v351 = vpop.xlane.xlu0 %350
      %v352 = vsel %vm273, %v342, 0.0
      %353 = vadd.xlane.f32.xlu0 %v352
      %v354 = vpop.xlane.xlu0 %353
      %v355 = vmul.f32 %v345, 0.5
      %v356 = vmul.f32 %v348, 0.5
      %v357 = vmul.f32 %v351, 0.5
      %v358 = vmul.f32 %v354, 0.5
      %v359 = vsub.f32 %v321, %v355
      %v360 = vsub.f32 %v324, %v356
      %v361 = vsub.f32 %v329, %v357
      %v362 = vsub.f32 %v332, %v358
      %v363 = vld [vmem:[%s233] sm:$0x1]
      %v365 = vlaneseq
      %v366 = vshrl.u32 %v365, 7
      %v367 = vsub.s32 0, %v366
      %v368 = vrot.slane %v363, %v367
      %v370 = vsub.f32 %v359, %v368
      %v371 = vsub.f32 %v360, %v368
      %v372 = vsub.f32 %v361, %v368
      %v373 = vsub.f32 %v362, %v368
      %v374 = vpack.c.bf16 %v371, %v370
      %v375 = vpack.c.bf16 %v373, %v372
      %v378 = vunpack.c.l.b16 %v374
      %v379 = vunpack.c.h.b16 %v374
      %v380 = vunpack.c.l.b16 %v375
      %v381 = vunpack.c.h.b16 %v375
      %v382 = vpack.c.b16 %v378, %v378
      %v383 = vpack.c.b16 %v379, %v379
      %v384 = vpack.c.b16 %v380, %v380
      %v385 = vpack.c.b16 %v381, %v381
      %vm390 = vcmask 257024
      %391 = vst.msk [vmem:[%s242] sm:$0xf] %vm390, %v382
      %392 = vst.msk [vmem:[%s242 + $0x4] sm:$0xf] %vm390, %v383
      %393 = vst.msk [vmem:[%s242 + $0x8] sm:$0xf] %vm390, %v384
      %394 = vst.msk [vmem:[%s242 + $0xc] sm:$0xf] %vm390, %v385
      %s395 = smul.u32 4, %s19
      %p396 = scmp.lt.s32.totalorder %s18, 1
      %s397 = scalar_select %p396, %s18, 1
      %p398 = scmp.lt.s32.totalorder %s395, 3
      %s399 = scalar_select %p398, %s395, 3
      %s400 = smul.addr %s397, 4
      %s401 = sadd.s32 %s399, %s400
      %s402 = smul.addr %s401, 4
      %s403 = scalar_lea.vmem %s3, %s402
      // Predicated region
      $region33: #{dgcnn_encoder.16} parent=31 // pred_check
        %p404 = pneg %p126
      $region34: #{dgcnn_encoder.16} parent=31 // pred_check_branch
        %406 = sbr.rel (%p404) target = $region36
      $region35: #{dgcnn_encoder.16} parent=31 // pred_region
        %s407 = smul.u32 4, %s19
      $region36: #{dgcnn_encoder.16} parent=31 // pred_fallthru
        _
    $region32: #{dgcnn_encoder.16} parent=5 // pred_fallthru
      _
    %p408 = scmp.le.s32.totalorder 2, %s9
    // Predicated region
    $region37: #{dgcnn_encoder.16} parent=5 // pred_check
      %p409 = pneg %p408
    $region38: #{dgcnn_encoder.16} parent=5 // pred_check_branch
      %411 = sbr.rel (%p409) target = $region40
    $region39: #{dgcnn_encoder.16} parent=5 // pred_region
      %s412 = ssub.s32 %s9, 2
      // Predicated region
      $region41: #{dgcnn_encoder.16} parent=39 // pred_check
        %p413 = pneg %p132
      $region42: #{dgcnn_encoder.16} parent=39 // pred_check_branch
        %415 = sbr.rel (%p413) target = $region44
      $region43: #{dgcnn_encoder.16} parent=39 // pred_region
        %s416 = smul.u32 4, %s21
        %p417 = scmp.lt.s32.totalorder %s20, 1
        %s418 = scalar_select %p417, %s20, 1
        %p419 = scmp.lt.s32.totalorder %s416, 3
        %s420 = scalar_select %p419, %s416, 3
        %s421 = smul.addr %s418, 4
        %s422 = sadd.s32 %s420, %s421
        %s423 = smul.addr %s422, 4
        %s424 = scalar_lea.vmem %s3, %s423
      $region44: #{dgcnn_encoder.16} parent=39 // pred_fallthru
        _
    $region40: #{dgcnn_encoder.16} parent=5 // pred_fallthru
      _
  $region6: #{dgcnn_encoder.16} parent=0 // loop_footer
    %s13 = sadd.s32 1, %s9
  $region7: #{dgcnn_encoder.16} parent=0 // loop_footer_branch
    %8 = sbr.rel target = $region3
  $region8: #{dgcnn_encoder.16} parent=0 // loop_exit
    _

// kernel: dgcnn_encoder.17
$region0: #{dgcnn_encoder.17}
  #allocation0 [shape = 'u32[]', space=smem, size = 0x4, offset = 0x4, fixed_abs, tag = 'smem constant byte address 0x4 - core index']
  #allocation1 [shape = 'u32[144,128]{1,0:T(1,128)}', space=vmem, size = 0x12000, scoped, tag = 'internal scratch']
  %s0 = inlined_call_operand.vmem [shape: bf16[2,32,64], index: 0, kind: input, shape index: {}]
  %s1 = inlined_call_operand.vmem [shape: bf16[64,64], index: 1, kind: input, shape index: {}]
  %s2 = inlined_call_operand.vmem [shape: bf16[2,32,64], index: 2, kind: output, shape index: {}]
  %s3 = sld [smem:[#allocation0]]
  $region41: #{dgcnn_encoder.17} parent=0
    _
  %s5 = ssub.s32 1, %s3
  %s6 = scalar_select 0, %s5, %s3
  loop: start=0, step=1, limit=4
  $region2: #{dgcnn_encoder.17} parent=0 // loop_pre_header
    _
  $region3: #{dgcnn_encoder.17} parent=0 // loop_header
    %s8 = sphi 0, %s12
    %p9 = scmp.ge.s32.totalorder %s8, 4
    %s15 = sphi 0, %s27
    %s16 = sphi 0, %s23
    %s17 = sphi 0, %s15
    %s18 = sphi 0, %s16
    %s19 = sphi 0, %s17
    %s20 = sphi 0, %s18
    %s32 = sphi 0, %s34
    %s35 = sphi 0, %s32
    %s36 = sphi 0, %s35
    %s52 = sphi 0, %s36
    %s56 = sphi 0, %s56
    %s58 = sphi 0, %s56
    %s59 = sphi 0, %s58
    %s73 = sphi 0, %s59
    %s81 = sphi 0, %s83
    %s84 = sphi 0, %s81
    %s85 = sphi 0, %s84
    %s101 = sphi 0, %s85
  $region4: #{dgcnn_encoder.17} parent=0 // loop_header_branch
    %11 = sbr.rel (%p9) target = $region8
  $region5: #{dgcnn_encoder.17} parent=0 // loop_body
    %s13 = ssub.s32 %s8, 1
    %s14 = ssub.s32 %s8, 2
    %s21 = sadd.s32 1, %s16
    %p22 = scmp.ge.s32.totalorder %s21, 1
    %s23 = scalar_select %p22, 0, %s21
    %s24 = sadd.s32 1, %s15
    %s25 = scalar_select %p22, %s24, %s15
    %p26 = scmp.ge.s32.totalorder %s25, 2
    %s27 = scalar_select %p26, 0, %s25
    %s28 = ssub.s32 %s15, %s27
    %s29 = ssub.s32 %s16, %s23
    %s30 = sor.u32 %s28, %s29
    %p31 = scmp.eq.s32.totalorder %s30, 0
    %s33 = sadd.s32 %s32, 1
    %s34 = scalar_select %p31, %s32, %s33
    %p37 = pneg %p31
    %p38 = scmp.eq.s32.totalorder %s8, 1
    %p39 = por %p37, %p38
    %p40 = scmp.ne.s32.totalorder %s32, %s35
    %p41 = scmp.eq.s32.totalorder %s8, 0
    %p42 = por %p40, %p41
    %p43 = scmp.ne.s32.totalorder %s32, %s35
    %p44 = scmp.eq.s32.totalorder %s13, 1
    %p45 = por %p43, %p44
    %p46 = scmp.ne.s32.totalorder %s35, %s36
    %p47 = scmp.eq.s32.totalorder %s13, 0
    %p48 = por %p46, %p47
    %p49 = scmp.ne.s32.totalorder %s35, %s36
    %p50 = scmp.eq.s32.totalorder %s14, 1
    %p51 = por %p49, %p50
    %p53 = scmp.ne.s32.totalorder %s36, %s52
    %p54 = scmp.eq.s32.totalorder %s14, 0
    %p55 = por %p53, %p54
    %s57 = sadd.s32 %s56, 1
    %p60 = scmp.eq.s32.totalorder %s8, 1
    %p61 = scmp.ne.s32.totalorder %s56, %s58
    %p62 = scmp.eq.s32.totalorder %s8, 0
    %p63 = por %p61, %p62
    %p64 = scmp.ne.s32.totalorder %s56, %s58
    %p65 = scmp.eq.s32.totalorder %s13, 1
    %p66 = por %p64, %p65
    %p67 = scmp.ne.s32.totalorder %s58, %s59
    %p68 = scmp.eq.s32.totalorder %s13, 0
    %p69 = por %p67, %p68
    %p70 = scmp.ne.s32.totalorder %s58, %s59
    %p71 = scmp.eq.s32.totalorder %s14, 1
    %p72 = por %p70, %p71
    %p74 = scmp.ne.s32.totalorder %s59, %s73
    %p75 = scmp.eq.s32.totalorder %s14, 0
    %p76 = por %p74, %p75
    %s77 = ssub.s32 %s15, %s27
    %s78 = ssub.s32 %s16, %s23
    %s79 = sor.u32 %s77, %s78
    %p80 = scmp.eq.s32.totalorder %s79, 0
    %s82 = sadd.s32 %s81, 1
    %s83 = scalar_select %p80, %s81, %s82
    %p86 = pneg %p80
    %p87 = scmp.eq.s32.totalorder %s8, 1
    %p88 = por %p86, %p87
    %p89 = scmp.ne.s32.totalorder %s81, %s84
    %p90 = scmp.eq.s32.totalorder %s8, 0
    %p91 = por %p89, %p90
    %p92 = scmp.ne.s32.totalorder %s81, %s84
    %p93 = scmp.eq.s32.totalorder %s13, 1
    %p94 = por %p92, %p93
    %p95 = scmp.ne.s32.totalorder %s84, %s85
    %p96 = scmp.eq.s32.totalorder %s13, 0
    %p97 = por %p95, %p96
    %p98 = scmp.ne.s32.totalorder %s84, %s85
    %p99 = scmp.eq.s32.totalorder %s14, 1
    %p100 = por %p98, %p99
    %p102 = scmp.ne.s32.totalorder %s85, %s101
    %p103 = scmp.eq.s32.totalorder %s14, 0
    %p104 = por %p102, %p103
    %p105 = scmp.le.s32.totalorder 1, %s8
    %p106 = scmp.lt.s32.totalorder %s8, 3
    %p107 = pnand %p105, %p106
    %p108 = pneg %p107
    // Predicated region
    $region9: #{dgcnn_encoder.17} parent=5 // pred_check
      _
    $region10: #{dgcnn_encoder.17} parent=5 // pred_check_branch
      %110 = sbr.rel (%p107) target = $region12
    $region11: #{dgcnn_encoder.17} parent=5 // pred_region
      %s111 = ssub.s32 %s8, 1
      // Predicated region
      $region13: #{dgcnn_encoder.17} parent=11 // pred_check
        %p112 = pneg %p69
      $region14: #{dgcnn_encoder.17} parent=11 // pred_check_branch
        %114 = sbr.rel (%p112) target = $region16
      $region15: #{dgcnn_encoder.17} parent=11 // pred_region
        _
      $region16: #{dgcnn_encoder.17} parent=11 // pred_fallthru
        _
    $region12: #{dgcnn_encoder.17} parent=5 // pred_fallthru
      _
    %p115 = scmp.lt.s32.totalorder %s8, 2
    // Predicated region
    $region17: #{dgcnn_encoder.17} parent=5 // pred_check
      %p116 = pneg %p115
    $region18: #{dgcnn_encoder.17} parent=5 // pred_check_branch
      %118 = sbr.rel (%p116) target = $region20
    $region19: #{dgcnn_encoder.17} parent=5 // pred_region
      // Predicated region
      $region21: #{dgcnn_encoder.17} parent=19 // pred_check
        %p119 = pneg %p42
      $region22: #{dgcnn_encoder.17} parent=19 // pred_check_branch
        %121 = sbr.rel (%p119) target = $region24
      $region23: #{dgcnn_encoder.17} parent=19 // pred_region
        %s122 = smul.u32 4, %s16
        %p123 = scmp.lt.s32.totalorder %s15, 1
        %s124 = scalar_select %p123, %s15, 1
        %p125 = scmp.lt.s32.totalorder %s122, 3
        %s126 = scalar_select %p125, %s122, 3
        %s127 = smul.addr %s124, 4
        %s128 = sadd.s32 %s126, %s127
        %s129 = smul.addr %s128, 4
        %s130 = scalar_lea.vmem %s0, %s129
        %s131 = smul.u32 4, %s16
      $region24: #{dgcnn_encoder.17} parent=19 // pred_fallthru
        _
    $region20: #{dgcnn_encoder.17} parent=5 // pred_fallthru
      _
    %p132 = scmp.le.s32.totalorder 1, %s8
    %p133 = scmp.lt.s32.totalorder %s8, 3
    %p134 = pnand %p132, %p133
    %p135 = pneg %p134
    // Predicated region
    $region25: #{dgcnn_encoder.17} parent=5 // pred_check
      _
    $region26: #{dgcnn_encoder.17} parent=5 // pred_check_branch
      %137 = sbr.rel (%p134) target = $region28
    $region27: #{dgcnn_encoder.17} parent=5 // pred_region
      %s138 = ssub.s32 %s8, 1
      %s139 = smul.u32 4, %s18
      %p140 = scmp.lt.s32.totalorder %s17, 1
      %s141 = scalar_select %p140, %s17, 1
      %p142 = scmp.lt.s32.totalorder %s139, 3
      %s143 = scalar_select %p142, %s139, 3
      %s144 = smul.addr %s141, 4
      %s145 = sadd.s32 %s143, %s144
      %s146 = smul.addr %s145, 4
      %s147 = scalar_lea.vmem %s0, %s146
      %p148 = pneg %p48
      %p149 = pneg %p45
      %p150 = pneg %p69
      %p151 = pneg %p66
      %p152 = pneg %p97
      %p153 = pneg %p94
      %s154 = smul.u32 4, %s18
      %p155 = scmp.lt.s32.totalorder %s17, 1
      %s156 = scalar_select %p155, %s17, 1
      %p157 = scmp.lt.s32.totalorder %s154, 3
      %s158 = scalar_select %p157, %s154, 3
      %s159 = smul.addr %s156, 4
      %s160 = sadd.s32 %s158, %s159
      %s161 = smul.addr %s160, 4
      %s162 = scalar_lea.vmem %s2, %s161
      %s163 = smul.u32 4, %s18
      %p164 = scmp.lt.s32.totalorder %s17, 1
      %s165 = scalar_select %p164, %s17, 1
      %p166 = scmp.lt.s32.totalorder %s163, 3
      %s167 = scalar_select %p166, %s163, 3
      %s168 = smul.addr %s165, 4
      %s169 = sadd.s32 %s167, %s168
      %s170 = smul.addr %s169, 4
      %s171 = scalar_lea.vmem %s0, %s170
      %s172 = smul.u32 4, %s18
      %s173 = smul.u32 4, %s18
      %p174 = scmp.lt.s32.totalorder %s17, 1
      %s175 = scalar_select %p174, %s17, 1
      %p176 = scmp.lt.s32.totalorder %s173, 3
      %s177 = scalar_select %p176, %s173, 3
      %s178 = smul.addr %s175, 4
      %s179 = sadd.s32 %s177, %s178
      %s180 = smul.addr %s179, 4
      %s181 = scalar_lea.vmem %s2, %s180
      %s182 = smul.u32 4, %s18
      %v184 = vld [vmem:[%s171] sm:$0xf]
      %v185 = vld [vmem:[%s171 + $0x4] sm:$0xf]
      %v186 = vld [vmem:[%s171 + $0x8] sm:$0xf]
      %v187 = vld [vmem:[%s171 + $0xc] sm:$0xf]
      %v188 = vld [vmem:[%s1] sm:$0xf]
      %v189 = vld [vmem:[%s1 + $0x4] sm:$0xf]
      %v190 = vld [vmem:[%s1 + $0x8] sm:$0xf]
      %v191 = vld [vmem:[%s1 + $0xc] sm:$0xf]
      %v192 = vld [vmem:[%s1 + $0x10] sm:$0xf]
      %v193 = vld [vmem:[%s1 + $0x14] sm:$0xf]
      %v194 = vld [vmem:[%s1 + $0x18] sm:$0xf]
      %v195 = vld [vmem:[%s1 + $0x1c] sm:$0xf]
      %v200 = vunpack.c.l.b16 %v184
      %v201 = vunpack.c.l.b16 %v185
      %v202 = vunpack.c.l.b16 %v186
      %v203 = vunpack.c.l.b16 %v187
      %v204 = vpack.c.b16 %v201, %v200
      %v205 = vpack.c.b16 %v203, %v202
      %v214 = vunpack.c.l.b16 %v188
      %v215 = vunpack.c.l.b16 %v189
      %v216 = vunpack.c.l.b16 %v190
      %v217 = vunpack.c.l.b16 %v191
      %v218 = vunpack.c.l.b16 %v192
      %v219 = vunpack.c.l.b16 %v193
      %v220 = vunpack.c.l.b16 %v194
      %v221 = vunpack.c.l.b16 %v195
      %v222 = vpack.c.b16 %v215, %v214
      %v223 = vpack.c.b16 %v217, %v216
      %v224 = vpack.c.b16 %v219, %v218
      %v225 = vpack.c.b16 %v221, %v220
      %vm230 = vcmask 523264
      %v232 = vsel %vm230, %v204, 0
      %v235 = vsel %vm230, %v205, 0
      %237 = vmatprep.subr.bf16.mxu0 0
      %238 = vmatpush1.bf16.msra.mxu0 %v222
      %239 = vmatprep.subr.bf16.mxu0 0
      %240 = vmatpush1.bf16.msra.mxu0 %v223
      %241 = vmatprep.subr.bf16.mxu0 0
      %242 = vmatpush1.bf16.msra.mxu0 %v224
      %243 = vmatprep.subr.bf16.mxu0 0
      %244 = vmatpush1.bf16.msra.mxu0 %v225
      %245 = vmatprep.subr.bf16.mxu0 0
      %246 = vmatpush1.bf16.msra.mxu0 0
      %247 = vmatprep.subr.bf16.mxu0 0
      %248 = vmatpush1.bf16.msra.mxu0 0
      %249 = vmatprep.subr.bf16.mxu0 0
      %250 = vmatpush1.bf16.msra.mxu0 0
      %251 = vmatprep.subr.bf16.mxu0 0
      %252 = vmatpush1.bf16.msra.mxu0 0
      %253 = vmatprep.subr.bf16.mxu0 0
      %254 = vmatpush1.bf16.msra.mxu0 0
      %255 = vmatprep.subr.bf16.mxu0 0
      %256 = vmatpush1.bf16.msra.mxu0 0
      %257 = vmatprep.subr.bf16.mxu0 0
      %258 = vmatpush1.bf16.msra.mxu0 0
      %259 = vmatprep.subr.bf16.mxu0 0
      %260 = vmatpush1.bf16.msra.mxu0 0
      %261 = vmatprep.subr.bf16.mxu0 0
      %262 = vmatpush1.bf16.msra.mxu0 0
      %263 = vmatprep.subr.bf16.mxu0 0
      %264 = vmatpush1.bf16.msra.mxu0 0
      %265 = vmatprep.subr.bf16.mxu0 0
      %266 = vmatpush1.bf16.msra.mxu0 0
      %267 = vmatprep.subr.bf16.mxu0 0
      %268 = vmatpush1.bf16.msra.mxu0 0
      %269 = vmatprep.mubr.bf16.mxu0 0
      %270 = vmatmul.mubr.bf16.gmra.mrb[0].mxu0 %v232
      %v271 = vpop.f32.mrb[0].mxu0
      %v272 = vadd.f32 0.0, %v271
      %v273 = vpop.f32.mrb[0].mxu0
      %v274 = vpop.f32.mrb[0].mxu0
      %v275 = vadd.f32 0.0, %v274
      %v276 = vpop.f32.mrb[0].mxu0
      %277 = vmatprep.mubr.bf16.mxu0 0
      %278 = vmatmul.mubr.bf16.gmra.mrb[0].mxu0 %v235
      %v279 = vpop.f32.mrb[0].mxu0
      %v280 = vadd.f32 0.0, %v279
      %v281 = vpop.f32.mrb[0].mxu0
      %v282 = vpop.f32.mrb[0].mxu0
      %v283 = vadd.f32 0.0, %v282
      %v284 = vpop.f32.mrb[0].mxu0
      %285 = vdwg.mxu0
      %v286 = vpack.c.bf16 %v275, %v272
      %v287 = vpack.c.bf16 %v283, %v280
      %v290 = vunpack.c.l.b16 %v286
      %v291 = vunpack.c.h.b16 %v286
      %v292 = vunpack.c.l.b16 %v287
      %v293 = vunpack.c.h.b16 %v287
      %v294 = vpack.c.b16 %v290, %v290
      %v295 = vpack.c.b16 %v291, %v291
      %v296 = vpack.c.b16 %v292, %v292
      %v297 = vpack.c.b16 %v293, %v293
      %vm302 = vcmask 519168
      %303 = vst.msk [vmem:[%s181] sm:$0xf] %vm302, %v294
      %304 = vst.msk [vmem:[%s181 + $0x4] sm:$0xf] %vm302, %v295
      %305 = vst.msk [vmem:[%s181 + $0x8] sm:$0xf] %vm302, %v296
      %306 = vst.msk [vmem:[%s181 + $0xc] sm:$0xf] %vm302, %v297
      %s307 = smul.u32 4, %s18
      %p308 = scmp.lt.s32.totalorder %s17, 1
      %s309 = scalar_select %p308, %s17, 1
      %p310 = scmp.lt.s32.totalorder %s307, 3
      %s311 = scalar_select %p310, %s307, 3
      %s312 = smul.addr %s309, 4
      %s313 = sadd.s32 %s311, %s312
      %s314 = smul.addr %s313, 4
      %s315 = scalar_lea.vmem %s2, %s314
      // Predicated region
      $region29: #{dgcnn_encoder.17} parent=27 // pred_check
        %p316 = pneg %p94
      $region30: #{dgcnn_encoder.17} parent=27 // pred_check_branch
        %318 = sbr.rel (%p316) target = $region32
      $region31: #{dgcnn_encoder.17} parent=27 // pred_region
        %s319 = smul.u32 4, %s18
      $region32: #{dgcnn_encoder.17} parent=27 // pred_fallthru
        _
    $region28: #{dgcnn_encoder.17} parent=5 // pred_fallthru
      _
    %p320 = scmp.le.s32.totalorder 2, %s8
    // Predicated region
    $region33: #{dgcnn_encoder.17} parent=5 // pred_check
      %p321 = pneg %p320
    $region34: #{dgcnn_encoder.17} parent=5 // pred_check_branch
      %323 = sbr.rel (%p321) target = $region36
    $region35: #{dgcnn_encoder.17} parent=5 // pred_region
      %s324 = ssub.s32 %s8, 2
      // Predicated region
      $region37: #{dgcnn_encoder.17} parent=35 // pred_check
        %p325 = pneg %p100
      $region38: #{dgcnn_encoder.17} parent=35 // pred_check_branch
        %327 = sbr.rel (%p325) target = $region40
      $region39: #{dgcnn_encoder.17} parent=35 // pred_region
        %s328 = smul.u32 4, %s20
        %p329 = scmp.lt.s32.totalorder %s19, 1
        %s330 = scalar_select %p329, %s19, 1
        %p331 = scmp.lt.s32.totalorder %s328, 3
        %s332 = scalar_select %p331, %s328, 3
        %s333 = smul.addr %s330, 4
        %s334 = sadd.s32 %s332, %s333
        %s335 = smul.addr %s334, 4
        %s336 = scalar_lea.vmem %s2, %s335
      $region40: #{dgcnn_encoder.17} parent=35 // pred_fallthru
        _
    $region36: #{dgcnn_encoder.17} parent=5 // pred_fallthru
      _
  $region6: #{dgcnn_encoder.17} parent=0 // loop_footer
    %s12 = sadd.s32 1, %s8
  $region7: #{dgcnn_encoder.17} parent=0 // loop_footer_branch
    %7 = sbr.rel target = $region3
  $region8: #{dgcnn_encoder.17} parent=0 // loop_exit
    _

// kernel: dgcnn_encoder.18
$region0: #{dgcnn_encoder.18}
  #allocation0 [shape = 'u32[]', space=smem, size = 0x4, offset = 0x4, fixed_abs, tag = 'smem constant byte address 0x4 - core index']
  #allocation1 [shape = 'u32[144,128]{1,0:T(1,128)}', space=vmem, size = 0x12000, scoped, tag = 'internal scratch']
  %s0 = inlined_call_operand.vmem [shape: bf16[2,32,64], index: 0, kind: input, shape index: {}]
  %s1 = inlined_call_operand.vmem [shape: bf16[2,32,64], index: 1, kind: input, shape index: {}]
  %s2 = inlined_call_operand.vmem [shape: bf16[64,64], index: 2, kind: input, shape index: {}]
  %s3 = inlined_call_operand.vmem [shape: f32[1,64], index: 3, kind: input, shape index: {}]
  %s4 = inlined_call_operand.vmem [shape: bf16[2,32,64], index: 4, kind: output, shape index: {}]
  %s5 = sld [smem:[#allocation0]]
  $region49: #{dgcnn_encoder.18} parent=0
    _
  %s7 = ssub.s32 1, %s5
  %s8 = scalar_select 0, %s7, %s5
  loop: start=0, step=1, limit=4
  $region2: #{dgcnn_encoder.18} parent=0 // loop_pre_header
    _
  $region3: #{dgcnn_encoder.18} parent=0 // loop_header
    %s10 = sphi 0, %s14
    %p11 = scmp.ge.s32.totalorder %s10, 4
    %s17 = sphi 0, %s29
    %s18 = sphi 0, %s25
    %s19 = sphi 0, %s17
    %s20 = sphi 0, %s18
    %s21 = sphi 0, %s19
    %s22 = sphi 0, %s20
    %s34 = sphi 0, %s36
    %s37 = sphi 0, %s34
    %s38 = sphi 0, %s37
    %s54 = sphi 0, %s38
    %s62 = sphi 0, %s64
    %s65 = sphi 0, %s62
    %s66 = sphi 0, %s65
    %s82 = sphi 0, %s66
    %s86 = sphi 0, %s86
    %s88 = sphi 0, %s86
    %s89 = sphi 0, %s88
    %s103 = sphi 0, %s89
    %s107 = sphi 0, %s107
    %s109 = sphi 0, %s107
    %s110 = sphi 0, %s109
    %s124 = sphi 0, %s110
    %s132 = sphi 0, %s134
    %s135 = sphi 0, %s132
    %s136 = sphi 0, %s135
    %s152 = sphi 0, %s136
  $region4: #{dgcnn_encoder.18} parent=0 // loop_header_branch
    %13 = sbr.rel (%p11) target = $region8
  $region5: #{dgcnn_encoder.18} parent=0 // loop_body
    %s15 = ssub.s32 %s10, 1
    %s16 = ssub.s32 %s10, 2
    %s23 = sadd.s32 1, %s18
    %p24 = scmp.ge.s32.totalorder %s23, 1
    %s25 = scalar_select %p24, 0, %s23
    %s26 = sadd.s32 1, %s17
    %s27 = scalar_select %p24, %s26, %s17
    %p28 = scmp.ge.s32.totalorder %s27, 2
    %s29 = scalar_select %p28, 0, %s27
    %s30 = ssub.s32 %s17, %s29
    %s31 = ssub.s32 %s18, %s25
    %s32 = sor.u32 %s30, %s31
    %p33 = scmp.eq.s32.totalorder %s32, 0
    %s35 = sadd.s32 %s34, 1
    %s36 = scalar_select %p33, %s34, %s35
    %p39 = pneg %p33
    %p40 = scmp.eq.s32.totalorder %s10, 1
    %p41 = por %p39, %p40
    %p42 = scmp.ne.s32.totalorder %s34, %s37
    %p43 = scmp.eq.s32.totalorder %s10, 0
    %p44 = por %p42, %p43
    %p45 = scmp.ne.s32.totalorder %s34, %s37
    %p46 = scmp.eq.s32.totalorder %s15, 1
    %p47 = por %p45, %p46
    %p48 = scmp.ne.s32.totalorder %s37, %s38
    %p49 = scmp.eq.s32.totalorder %s15, 0
    %p50 = por %p48, %p49
    %p51 = scmp.ne.s32.totalorder %s37, %s38
    %p52 = scmp.eq.s32.totalorder %s16, 1
    %p53 = por %p51, %p52
    %p55 = scmp.ne.s32.totalorder %s38, %s54
    %p56 = scmp.eq.s32.totalorder %s16, 0
    %p57 = por %p55, %p56
    %s58 = ssub.s32 %s17, %s29
    %s59 = ssub.s32 %s18, %s25
    %s60 = sor.u32 %s58, %s59
    %p61 = scmp.eq.s32.totalorder %s60, 0
    %s63 = sadd.s32 %s62, 1
    %s64 = scalar_select %p61, %s62, %s63
    %p67 = pneg %p61
    %p68 = scmp.eq.s32.totalorder %s10, 1
    %p69 = por %p67, %p68
    %p70 = scmp.ne.s32.totalorder %s62, %s65
    %p71 = scmp.eq.s32.totalorder %s10, 0
    %p72 = por %p70, %p71
    %p73 = scmp.ne.s32.totalorder %s62, %s65
    %p74 = scmp.eq.s32.totalorder %s15, 1
    %p75 = por %p73, %p74
    %p76 = scmp.ne.s32.totalorder %s65, %s66
    %p77 = scmp.eq.s32.totalorder %s15, 0
    %p78 = por %p76, %p77
    %p79 = scmp.ne.s32.totalorder %s65, %s66
    %p80 = scmp.eq.s32.totalorder %s16, 1
    %p81 = por %p79, %p80
    %p83 = scmp.ne.s32.totalorder %s66, %s82
    %p84 = scmp.eq.s32.totalorder %s16, 0
    %p85 = por %p83, %p84
    %s87 = sadd.s32 %s86, 1
    %p90 = scmp.eq.s32.totalorder %s10, 1
    %p91 = scmp.ne.s32.totalorder %s86, %s88
    %p92 = scmp.eq.s32.totalorder %s10, 0
    %p93 = por %p91, %p92
    %p94 = scmp.ne.s32.totalorder %s86, %s88
    %p95 = scmp.eq.s32.totalorder %s15, 1
    %p96 = por %p94, %p95
    %p97 = scmp.ne.s32.totalorder %s88, %s89
    %p98 = scmp.eq.s32.totalorder %s15, 0
    %p99 = por %p97, %p98
    %p100 = scmp.ne.s32.totalorder %s88, %s89
    %p101 = scmp.eq.s32.totalorder %s16, 1
    %p102 = por %p100, %p101
    %p104 = scmp.ne.s32.totalorder %s89, %s103
    %p105 = scmp.eq.s32.totalorder %s16, 0
    %p106 = por %p104, %p105
    %s108 = sadd.s32 %s107, 1
    %p111 = scmp.eq.s32.totalorder %s10, 1
    %p112 = scmp.ne.s32.totalorder %s107, %s109
    %p113 = scmp.eq.s32.totalorder %s10, 0
    %p114 = por %p112, %p113
    %p115 = scmp.ne.s32.totalorder %s107, %s109
    %p116 = scmp.eq.s32.totalorder %s15, 1
    %p117 = por %p115, %p116
    %p118 = scmp.ne.s32.totalorder %s109, %s110
    %p119 = scmp.eq.s32.totalorder %s15, 0
    %p120 = por %p118, %p119
    %p121 = scmp.ne.s32.totalorder %s109, %s110
    %p122 = scmp.eq.s32.totalorder %s16, 1
    %p123 = por %p121, %p122
    %p125 = scmp.ne.s32.totalorder %s110, %s124
    %p126 = scmp.eq.s32.totalorder %s16, 0
    %p127 = por %p125, %p126
    %s128 = ssub.s32 %s17, %s29
    %s129 = ssub.s32 %s18, %s25
    %s130 = sor.u32 %s128, %s129
    %p131 = scmp.eq.s32.totalorder %s130, 0
    %s133 = sadd.s32 %s132, 1
    %s134 = scalar_select %p131, %s132, %s133
    %p137 = pneg %p131
    %p138 = scmp.eq.s32.totalorder %s10, 1
    %p139 = por %p137, %p138
    %p140 = scmp.ne.s32.totalorder %s132, %s135
    %p141 = scmp.eq.s32.totalorder %s10, 0
    %p142 = por %p140, %p141
    %p143 = scmp.ne.s32.totalorder %s132, %s135
    %p144 = scmp.eq.s32.totalorder %s15, 1
    %p145 = por %p143, %p144
    %p146 = scmp.ne.s32.totalorder %s135, %s136
    %p147 = scmp.eq.s32.totalorder %s15, 0
    %p148 = por %p146, %p147
    %p149 = scmp.ne.s32.totalorder %s135, %s136
    %p150 = scmp.eq.s32.totalorder %s16, 1
    %p151 = por %p149, %p150
    %p153 = scmp.ne.s32.totalorder %s136, %s152
    %p154 = scmp.eq.s32.totalorder %s16, 0
    %p155 = por %p153, %p154
    %p156 = scmp.le.s32.totalorder 1, %s10
    %p157 = scmp.lt.s32.totalorder %s10, 3
    %p158 = pnand %p156, %p157
    %p159 = pneg %p158
    // Predicated region
    $region9: #{dgcnn_encoder.18} parent=5 // pred_check
      _
    $region10: #{dgcnn_encoder.18} parent=5 // pred_check_branch
      %161 = sbr.rel (%p158) target = $region12
    $region11: #{dgcnn_encoder.18} parent=5 // pred_region
      %s162 = ssub.s32 %s10, 1
      // Predicated region
      $region13: #{dgcnn_encoder.18} parent=11 // pred_check
        %p163 = pneg %p99
      $region14: #{dgcnn_encoder.18} parent=11 // pred_check_branch
        %165 = sbr.rel (%p163) target = $region16
      $region15: #{dgcnn_encoder.18} parent=11 // pred_region
        _
      $region16: #{dgcnn_encoder.18} parent=11 // pred_fallthru
        _
      // Predicated region
      $region17: #{dgcnn_encoder.18} parent=11 // pred_check
        %p166 = pneg %p120
      $region18: #{dgcnn_encoder.18} parent=11 // pred_check_branch
        %168 = sbr.rel (%p166) target = $region20
      $region19: #{dgcnn_encoder.18} parent=11 // pred_region
        _
      $region20: #{dgcnn_encoder.18} parent=11 // pred_fallthru
        _
    $region12: #{dgcnn_encoder.18} parent=5 // pred_fallthru
      _
    %p169 = scmp.lt.s32.totalorder %s10, 2
    // Predicated region
    $region21: #{dgcnn_encoder.18} parent=5 // pred_check
      %p170 = pneg %p169
    $region22: #{dgcnn_encoder.18} parent=5 // pred_check_branch
      %172 = sbr.rel (%p170) target = $region24
    $region23: #{dgcnn_encoder.18} parent=5 // pred_region
      // Predicated region
      $region25: #{dgcnn_encoder.18} parent=23 // pred_check
        %p173 = pneg %p44
      $region26: #{dgcnn_encoder.18} parent=23 // pred_check_branch
        %175 = sbr.rel (%p173) target = $region28
      $region27: #{dgcnn_encoder.18} parent=23 // pred_region
        %s176 = smul.u32 4, %s18
        %p177 = scmp.lt.s32.totalorder %s17, 1
        %s178 = scalar_select %p177, %s17, 1
        %p179 = scmp.lt.s32.totalorder %s176, 3
        %s180 = scalar_select %p179, %s176, 3
        %s181 = smul.addr %s178, 4
        %s182 = sadd.s32 %s180, %s181
        %s183 = smul.addr %s182, 4
        %s184 = scalar_lea.vmem %s0, %s183
        %s185 = smul.u32 4, %s18
      $region28: #{dgcnn_encoder.18} parent=23 // pred_fallthru
        _
      // Predicated region
      $region29: #{dgcnn_encoder.18} parent=23 // pred_check
        %p186 = pneg %p72
      $region30: #{dgcnn_encoder.18} parent=23 // pred_check_branch
        %188 = sbr.rel (%p186) target = $region32
      $region31: #{dgcnn_encoder.18} parent=23 // pred_region
        %s189 = smul.u32 4, %s18
        %p190 = scmp.lt.s32.totalorder %s17, 1
        %s191 = scalar_select %p190, %s17, 1
        %p192 = scmp.lt.s32.totalorder %s189, 3
        %s193 = scalar_select %p192, %s189, 3
        %s194 = smul.addr %s191, 4
        %s195 = sadd.s32 %s193, %s194
        %s196 = smul.addr %s195, 4
        %s197 = scalar_lea.vmem %s1, %s196
        %s198 = smul.u32 4, %s18
      $region32: #{dgcnn_encoder.18} parent=23 // pred_fallthru
        _
    $region24: #{dgcnn_encoder.18} parent=5 // pred_fallthru
      _
    %p199 = scmp.le.s32.totalorder 1, %s10
    %p200 = scmp.lt.s32.totalorder %s10, 3
    %p201 = pnand %p199, %p200
    %p202 = pneg %p201
    // Predicated region
    $region33: #{dgcnn_encoder.18} parent=5 // pred_check
      _
    $region34: #{dgcnn_encoder.18} parent=5 // pred_check_branch
      %204 = sbr.rel (%p201) target = $region36
    $region35: #{dgcnn_encoder.18} parent=5 // pred_region
      %s205 = ssub.s32 %s10, 1
      %s206 = smul.u32 4, %s20
      %p207 = scmp.lt.s32.totalorder %s19, 1
      %s208 = scalar_select %p207, %s19, 1
      %p209 = scmp.lt.s32.totalorder %s206, 3
      %s210 = scalar_select %p209, %s206, 3
      %s211 = smul.addr %s208, 4
      %s212 = sadd.s32 %s210, %s211
      %s213 = smul.addr %s212, 4
      %s214 = scalar_lea.vmem %s0, %s213
      %p215 = pneg %p50
      %p216 = pneg %p47
      %s217 = smul.u32 4, %s20
      %p218 = scmp.lt.s32.totalorder %s19, 1
      %s219 = scalar_select %p218, %s19, 1
      %p220 = scmp.lt.s32.totalorder %s217, 3
      %s221 = scalar_select %p220, %s217, 3
      %s222 = smul.addr %s219, 4
      %s223 = sadd.s32 %s221, %s222
      %s224 = smul.addr %s223, 4
      %s225 = scalar_lea.vmem %s1, %s224
      %p226 = pneg %p78
      %p227 = pneg %p75
      %p228 = pneg %p99
      %p229 = pneg %p96
      %p230 = pneg %p120
      %p231 = pneg %p117
      %p232 = pneg %p148
      %p233 = pneg %p145
      %s234 = smul.u32 4, %s20
      %p235 = scmp.lt.s32.totalorder %s19, 1
      %s236 = scalar_select %p235, %s19, 1
      %p237 = scmp.lt.s32.totalorder %s234, 3
      %s238 = scalar_select %p237, %s234, 3
      %s239 = smul.addr %s236, 4
      %s240 = sadd.s32 %s238, %s239
      %s241 = smul.addr %s240, 4
      %s242 = scalar_lea.vmem %s4, %s241
      %s243 = smul.u32 4, %s20
      %p244 = scmp.lt.s32.totalorder %s19, 1
      %s245 = scalar_select %p244, %s19, 1
      %p246 = scmp.lt.s32.totalorder %s243, 3
      %s247 = scalar_select %p246, %s243, 3
      %s248 = smul.addr %s245, 4
      %s249 = sadd.s32 %s247, %s248
      %s250 = smul.addr %s249, 4
      %s251 = scalar_lea.vmem %s0, %s250
      %s252 = smul.u32 4, %s20
      %s253 = smul.u32 4, %s20
      %p254 = scmp.lt.s32.totalorder %s19, 1
      %s255 = scalar_select %p254, %s19, 1
      %p256 = scmp.lt.s32.totalorder %s253, 3
      %s257 = scalar_select %p256, %s253, 3
      %s258 = smul.addr %s255, 4
      %s259 = sadd.s32 %s257, %s258
      %s260 = smul.addr %s259, 4
      %s261 = scalar_lea.vmem %s1, %s260
      %s262 = smul.u32 4, %s20
      %s263 = smul.u32 4, %s20
      %p264 = scmp.lt.s32.totalorder %s19, 1
      %s265 = scalar_select %p264, %s19, 1
      %p266 = scmp.lt.s32.totalorder %s263, 3
      %s267 = scalar_select %p266, %s263, 3
      %s268 = smul.addr %s265, 4
      %s269 = sadd.s32 %s267, %s268
      %s270 = smul.addr %s269, 4
      %s271 = scalar_lea.vmem %s4, %s270
      %s272 = smul.u32 4, %s20
      %v274 = vld [vmem:[%s261] sm:$0xf]
      %v275 = vld [vmem:[%s261 + $0x4] sm:$0xf]
      %v276 = vld [vmem:[%s261 + $0x8] sm:$0xf]
      %v277 = vld [vmem:[%s261 + $0xc] sm:$0xf]
      %v278 = vld [vmem:[%s2] sm:$0xf]
      %v279 = vld [vmem:[%s2 + $0x4] sm:$0xf]
      %v280 = vld [vmem:[%s2 + $0x8] sm:$0xf]
      %v281 = vld [vmem:[%s2 + $0xc] sm:$0xf]
      %v282 = vld [vmem:[%s2 + $0x10] sm:$0xf]
      %v283 = vld [vmem:[%s2 + $0x14] sm:$0xf]
      %v284 = vld [vmem:[%s2 + $0x18] sm:$0xf]
      %v285 = vld [vmem:[%s2 + $0x1c] sm:$0xf]
      %v290 = vunpack.c.l.b16 %v274
      %v291 = vunpack.c.l.b16 %v275
      %v292 = vunpack.c.l.b16 %v276
      %v293 = vunpack.c.l.b16 %v277
      %v294 = vpack.c.b16 %v291, %v290
      %v295 = vpack.c.b16 %v293, %v292
      %v304 = vunpack.c.l.b16 %v278
      %v305 = vunpack.c.l.b16 %v279
      %v306 = vunpack.c.l.b16 %v280
      %v307 = vunpack.c.l.b16 %v281
      %v308 = vunpack.c.l.b16 %v282
      %v309 = vunpack.c.l.b16 %v283
      %v310 = vunpack.c.l.b16 %v284
      %v311 = vunpack.c.l.b16 %v285
      %v312 = vpack.c.b16 %v305, %v304
      %v313 = vpack.c.b16 %v307, %v306
      %v314 = vpack.c.b16 %v309, %v308
      %v315 = vpack.c.b16 %v311, %v310
      %vm320 = vcmask 523264
      %v322 = vsel %vm320, %v294, 0
      %v325 = vsel %vm320, %v295, 0
      %327 = vmatprep.subr.bf16.mxu0 0
      %328 = vmatpush1.bf16.msra.mxu0 %v312
      %329 = vmatprep.subr.bf16.mxu0 0
      %330 = vmatpush1.bf16.msra.mxu0 %v313
      %331 = vmatprep.subr.bf16.mxu0 0
      %332 = vmatpush1.bf16.msra.mxu0 %v314
      %333 = vmatprep.subr.bf16.mxu0 0
      %334 = vmatpush1.bf16.msra.mxu0 %v315
      %335 = vmatprep.subr.bf16.mxu0 0
      %336 = vmatpush1.bf16.msra.mxu0 0
      %337 = vmatprep.subr.bf16.mxu0 0
      %338 = vmatpush1.bf16.msra.mxu0 0
      %339 = vmatprep.subr.bf16.mxu0 0
      %340 = vmatpush1.bf16.msra.mxu0 0
      %341 = vmatprep.subr.bf16.mxu0 0
      %342 = vmatpush1.bf16.msra.mxu0 0
      %343 = vmatprep.subr.bf16.mxu0 0
      %344 = vmatpush1.bf16.msra.mxu0 0
      %345 = vmatprep.subr.bf16.mxu0 0
      %346 = vmatpush1.bf16.msra.mxu0 0
      %347 = vmatprep.subr.bf16.mxu0 0
      %348 = vmatpush1.bf16.msra.mxu0 0
      %349 = vmatprep.subr.bf16.mxu0 0
      %350 = vmatpush1.bf16.msra.mxu0 0
      %351 = vmatprep.subr.bf16.mxu0 0
      %352 = vmatpush1.bf16.msra.mxu0 0
      %353 = vmatprep.subr.bf16.mxu0 0
      %354 = vmatpush1.bf16.msra.mxu0 0
      %355 = vmatprep.subr.bf16.mxu0 0
      %356 = vmatpush1.bf16.msra.mxu0 0
      %357 = vmatprep.subr.bf16.mxu0 0
      %358 = vmatpush1.bf16.msra.mxu0 0
      %359 = vmatprep.mubr.bf16.mxu0 0
      %360 = vmatmul.mubr.bf16.gmra.mrb[0].mxu0 %v322
      %v361 = vpop.f32.mrb[0].mxu0
      %v362 = vadd.f32 0.0, %v361
      %v363 = vpop.f32.mrb[0].mxu0
      %v364 = vpop.f32.mrb[0].mxu0
      %v365 = vadd.f32 0.0, %v364
      %v366 = vpop.f32.mrb[0].mxu0
      %367 = vmatprep.mubr.bf16.mxu0 0
      %368 = vmatmul.mubr.bf16.gmra.mrb[0].mxu0 %v325
      %v369 = vpop.f32.mrb[0].mxu0
      %v370 = vadd.f32 0.0, %v369
      %v371 = vpop.f32.mrb[0].mxu0
      %v372 = vpop.f32.mrb[0].mxu0
      %v373 = vadd.f32 0.0, %v372
      %v374 = vpop.f32.mrb[0].mxu0
      %375 = vdwg.mxu0
      %v376 = vld [vmem:[%s251] sm:$0xf]
      %v377 = vld [vmem:[%s251 + $0x4] sm:$0xf]
      %v378 = vld [vmem:[%s251 + $0x8] sm:$0xf]
      %v379 = vld [vmem:[%s251 + $0xc] sm:$0xf]
      %v380 = vunpack.c.l.bf16 %v376
      %v381 = vunpack.c.l.bf16 %v377
      %v382 = vunpack.c.l.bf16 %v378
      %v383 = vunpack.c.l.bf16 %v379
      %v384 = vadd.f32 %v380, %v362
      %v385 = vadd.f32 %v381, %v365
      %v386 = vadd.f32 %v382, %v370
      %v387 = vadd.f32 %v383, %v373
      %v388 = vld [vmem:[%s3] sm:$0x1]
      %v390 = vlaneseq
      %v391 = vshrl.u32 %v390, 7
      %v392 = vsub.s32 0, %v391
      %v393 = vrot.slane %v388, %v392
      %v395 = vadd.f32 %v384, %v393
      %v396 = vadd.f32 %v385, %v393
      %v397 = vadd.f32 %v386, %v393
      %v398 = vadd.f32 %v387, %v393
      %v399 = vmul.f32 %v395, 0.2
      %v400 = vmul.f32 %v396, 0.2
      %v401 = vmul.f32 %v397, 0.2
      %v402 = vmul.f32 %v398, 0.2
      %v403 = vmax.f32 %v395, %v399
      %v404 = vmax.f32 %v396, %v400
      %v405 = vmax.f32 %v397, %v401
      %v406 = vmax.f32 %v398, %v402
      %v407 = vpack.c.bf16 %v404, %v403
      %v408 = vpack.c.bf16 %v406, %v405
      %v411 = vunpack.c.l.b16 %v407
      %v412 = vunpack.c.h.b16 %v407
      %v413 = vunpack.c.l.b16 %v408
      %v414 = vunpack.c.h.b16 %v408
      %v415 = vpack.c.b16 %v411, %v411
      %v416 = vpack.c.b16 %v412, %v412
      %v417 = vpack.c.b16 %v413, %v413
      %v418 = vpack.c.b16 %v414, %v414
      %vm423 = vcmask 519168
      %424 = vst.msk [vmem:[%s271] sm:$0xf] %vm423, %v415
      %425 = vst.msk [vmem:[%s271 + $0x4] sm:$0xf] %vm423, %v416
      %426 = vst.msk [vmem:[%s271 + $0x8] sm:$0xf] %vm423, %v417
      %427 = vst.msk [vmem:[%s271 + $0xc] sm:$0xf] %vm423, %v418
      %s428 = smul.u32 4, %s20
      %p429 = scmp.lt.s32.totalorder %s19, 1
      %s430 = scalar_select %p429, %s19, 1
      %p431 = scmp.lt.s32.totalorder %s428, 3
      %s432 = scalar_select %p431, %s428, 3
      %s433 = smul.addr %s430, 4
      %s434 = sadd.s32 %s432, %s433
      %s435 = smul.addr %s434, 4
      %s436 = scalar_lea.vmem %s4, %s435
      // Predicated region
      $region37: #{dgcnn_encoder.18} parent=35 // pred_check
        %p437 = pneg %p145
      $region38: #{dgcnn_encoder.18} parent=35 // pred_check_branch
        %439 = sbr.rel (%p437) target = $region40
      $region39: #{dgcnn_encoder.18} parent=35 // pred_region
        %s440 = smul.u32 4, %s20
      $region40: #{dgcnn_encoder.18} parent=35 // pred_fallthru
        _
    $region36: #{dgcnn_encoder.18} parent=5 // pred_fallthru
      _
    %p441 = scmp.le.s32.totalorder 2, %s10
    // Predicated region
    $region41: #{dgcnn_encoder.18} parent=5 // pred_check
      %p442 = pneg %p441
    $region42: #{dgcnn_encoder.18} parent=5 // pred_check_branch
      %444 = sbr.rel (%p442) target = $region44
    $region43: #{dgcnn_encoder.18} parent=5 // pred_region
      %s445 = ssub.s32 %s10, 2
      // Predicated region
      $region45: #{dgcnn_encoder.18} parent=43 // pred_check
        %p446 = pneg %p151
      $region46: #{dgcnn_encoder.18} parent=43 // pred_check_branch
        %448 = sbr.rel (%p446) target = $region48
      $region47: #{dgcnn_encoder.18} parent=43 // pred_region
        %s449 = smul.u32 4, %s22
        %p450 = scmp.lt.s32.totalorder %s21, 1
        %s451 = scalar_select %p450, %s21, 1
        %p452 = scmp.lt.s32.totalorder %s449, 3
        %s453 = scalar_select %p452, %s449, 3
        %s454 = smul.addr %s451, 4
        %s455 = sadd.s32 %s453, %s454
        %s456 = smul.addr %s455, 4
        %s457 = scalar_lea.vmem %s4, %s456
      $region48: #{dgcnn_encoder.18} parent=43 // pred_fallthru
        _
    $region44: #{dgcnn_encoder.18} parent=5 // pred_fallthru
      _
  $region6: #{dgcnn_encoder.18} parent=0 // loop_footer
    %s14 = sadd.s32 1, %s10
  $region7: #{dgcnn_encoder.18} parent=0 // loop_footer_branch
    %9 = sbr.rel target = $region3
  $region8: #{dgcnn_encoder.18} parent=0 // loop_exit
    _

// kernel: dgcnn_encoder.20
$region0: #{dgcnn_encoder.20}
  #allocation0 [shape = 'u32[]', space=smem, size = 0x4, offset = 0x4, fixed_abs, tag = 'smem constant byte address 0x4 - core index']
  #allocation1 [shape = 'u32[144,128]{1,0:T(1,128)}', space=vmem, size = 0x12000, scoped, tag = 'internal scratch']
  %s0 = inlined_call_operand.vmem [shape: bf16[2,32,64], index: 0, kind: input, shape index: {}]
  %s1 = inlined_call_operand.vmem [shape: bf16[64,128], index: 1, kind: input, shape index: {}]
  %s2 = inlined_call_operand.vmem [shape: bf16[2,32,128], index: 2, kind: output, shape index: {}]
  %s3 = sld [smem:[#allocation0]]
  $region41: #{dgcnn_encoder.20} parent=0
    _
  %s5 = ssub.s32 1, %s3
  %s6 = scalar_select 0, %s5, %s3
  loop: start=0, step=1, limit=4
  $region2: #{dgcnn_encoder.20} parent=0 // loop_pre_header
    _
  $region3: #{dgcnn_encoder.20} parent=0 // loop_header
    %s8 = sphi 0, %s12
    %p9 = scmp.ge.s32.totalorder %s8, 4
    %s15 = sphi 0, %s27
    %s16 = sphi 0, %s23
    %s17 = sphi 0, %s15
    %s18 = sphi 0, %s16
    %s19 = sphi 0, %s17
    %s20 = sphi 0, %s18
    %s32 = sphi 0, %s34
    %s35 = sphi 0, %s32
    %s36 = sphi 0, %s35
    %s52 = sphi 0, %s36
    %s56 = sphi 0, %s56
    %s58 = sphi 0, %s56
    %s59 = sphi 0, %s58
    %s73 = sphi 0, %s59
    %s81 = sphi 0, %s83
    %s84 = sphi 0, %s81
    %s85 = sphi 0, %s84
    %s101 = sphi 0, %s85
  $region4: #{dgcnn_encoder.20} parent=0 // loop_header_branch
    %11 = sbr.rel (%p9) target = $region8
  $region5: #{dgcnn_encoder.20} parent=0 // loop_body
    %s13 = ssub.s32 %s8, 1
    %s14 = ssub.s32 %s8, 2
    %s21 = sadd.s32 1, %s16
    %p22 = scmp.ge.s32.totalorder %s21, 1
    %s23 = scalar_select %p22, 0, %s21
    %s24 = sadd.s32 1, %s15
    %s25 = scalar_select %p22, %s24, %s15
    %p26 = scmp.ge.s32.totalorder %s25, 2
    %s27 = scalar_select %p26, 0, %s25
    %s28 = ssub.s32 %s15, %s27
    %s29 = ssub.s32 %s16, %s23
    %s30 = sor.u32 %s28, %s29
    %p31 = scmp.eq.s32.totalorder %s30, 0
    %s33 = sadd.s32 %s32, 1
    %s34 = scalar_select %p31, %s32, %s33
    %p37 = pneg %p31
    %p38 = scmp.eq.s32.totalorder %s8, 1
    %p39 = por %p37, %p38
    %p40 = scmp.ne.s32.totalorder %s32, %s35
    %p41 = scmp.eq.s32.totalorder %s8, 0
    %p42 = por %p40, %p41
    %p43 = scmp.ne.s32.totalorder %s32, %s35
    %p44 = scmp.eq.s32.totalorder %s13, 1
    %p45 = por %p43, %p44
    %p46 = scmp.ne.s32.totalorder %s35, %s36
    %p47 = scmp.eq.s32.totalorder %s13, 0
    %p48 = por %p46, %p47
    %p49 = scmp.ne.s32.totalorder %s35, %s36
    %p50 = scmp.eq.s32.totalorder %s14, 1
    %p51 = por %p49, %p50
    %p53 = scmp.ne.s32.totalorder %s36, %s52
    %p54 = scmp.eq.s32.totalorder %s14, 0
    %p55 = por %p53, %p54
    %s57 = sadd.s32 %s56, 1
    %p60 = scmp.eq.s32.totalorder %s8, 1
    %p61 = scmp.ne.s32.totalorder %s56, %s58
    %p62 = scmp.eq.s32.totalorder %s8, 0
    %p63 = por %p61, %p62
    %p64 = scmp.ne.s32.totalorder %s56, %s58
    %p65 = scmp.eq.s32.totalorder %s13, 1
    %p66 = por %p64, %p65
    %p67 = scmp.ne.s32.totalorder %s58, %s59
    %p68 = scmp.eq.s32.totalorder %s13, 0
    %p69 = por %p67, %p68
    %p70 = scmp.ne.s32.totalorder %s58, %s59
    %p71 = scmp.eq.s32.totalorder %s14, 1
    %p72 = por %p70, %p71
    %p74 = scmp.ne.s32.totalorder %s59, %s73
    %p75 = scmp.eq.s32.totalorder %s14, 0
    %p76 = por %p74, %p75
    %s77 = ssub.s32 %s15, %s27
    %s78 = ssub.s32 %s16, %s23
    %s79 = sor.u32 %s77, %s78
    %p80 = scmp.eq.s32.totalorder %s79, 0
    %s82 = sadd.s32 %s81, 1
    %s83 = scalar_select %p80, %s81, %s82
    %p86 = pneg %p80
    %p87 = scmp.eq.s32.totalorder %s8, 1
    %p88 = por %p86, %p87
    %p89 = scmp.ne.s32.totalorder %s81, %s84
    %p90 = scmp.eq.s32.totalorder %s8, 0
    %p91 = por %p89, %p90
    %p92 = scmp.ne.s32.totalorder %s81, %s84
    %p93 = scmp.eq.s32.totalorder %s13, 1
    %p94 = por %p92, %p93
    %p95 = scmp.ne.s32.totalorder %s84, %s85
    %p96 = scmp.eq.s32.totalorder %s13, 0
    %p97 = por %p95, %p96
    %p98 = scmp.ne.s32.totalorder %s84, %s85
    %p99 = scmp.eq.s32.totalorder %s14, 1
    %p100 = por %p98, %p99
    %p102 = scmp.ne.s32.totalorder %s85, %s101
    %p103 = scmp.eq.s32.totalorder %s14, 0
    %p104 = por %p102, %p103
    %p105 = scmp.le.s32.totalorder 1, %s8
    %p106 = scmp.lt.s32.totalorder %s8, 3
    %p107 = pnand %p105, %p106
    %p108 = pneg %p107
    // Predicated region
    $region9: #{dgcnn_encoder.20} parent=5 // pred_check
      _
    $region10: #{dgcnn_encoder.20} parent=5 // pred_check_branch
      %110 = sbr.rel (%p107) target = $region12
    $region11: #{dgcnn_encoder.20} parent=5 // pred_region
      %s111 = ssub.s32 %s8, 1
      // Predicated region
      $region13: #{dgcnn_encoder.20} parent=11 // pred_check
        %p112 = pneg %p69
      $region14: #{dgcnn_encoder.20} parent=11 // pred_check_branch
        %114 = sbr.rel (%p112) target = $region16
      $region15: #{dgcnn_encoder.20} parent=11 // pred_region
        _
      $region16: #{dgcnn_encoder.20} parent=11 // pred_fallthru
        _
    $region12: #{dgcnn_encoder.20} parent=5 // pred_fallthru
      _
    %p115 = scmp.lt.s32.totalorder %s8, 2
    // Predicated region
    $region17: #{dgcnn_encoder.20} parent=5 // pred_check
      %p116 = pneg %p115
    $region18: #{dgcnn_encoder.20} parent=5 // pred_check_branch
      %118 = sbr.rel (%p116) target = $region20
    $region19: #{dgcnn_encoder.20} parent=5 // pred_region
      // Predicated region
      $region21: #{dgcnn_encoder.20} parent=19 // pred_check
        %p119 = pneg %p42
      $region22: #{dgcnn_encoder.20} parent=19 // pred_check_branch
        %121 = sbr.rel (%p119) target = $region24
      $region23: #{dgcnn_encoder.20} parent=19 // pred_region
        %s122 = smul.u32 4, %s16
        %p123 = scmp.lt.s32.totalorder %s15, 1
        %s124 = scalar_select %p123, %s15, 1
        %p125 = scmp.lt.s32.totalorder %s122, 3
        %s126 = scalar_select %p125, %s122, 3
        %s127 = smul.addr %s124, 4
        %s128 = sadd.s32 %s126, %s127
        %s129 = smul.addr %s128, 4
        %s130 = scalar_lea.vmem %s0, %s129
        %s131 = smul.u32 4, %s16
      $region24: #{dgcnn_encoder.20} parent=19 // pred_fallthru
        _
    $region20: #{dgcnn_encoder.20} parent=5 // pred_fallthru
      _
    %p132 = scmp.le.s32.totalorder 1, %s8
    %p133 = scmp.lt.s32.totalorder %s8, 3
    %p134 = pnand %p132, %p133
    %p135 = pneg %p134
    // Predicated region
    $region25: #{dgcnn_encoder.20} parent=5 // pred_check
      _
    $region26: #{dgcnn_encoder.20} parent=5 // pred_check_branch
      %137 = sbr.rel (%p134) target = $region28
    $region27: #{dgcnn_encoder.20} parent=5 // pred_region
      %s138 = ssub.s32 %s8, 1
      %s139 = smul.u32 4, %s18
      %p140 = scmp.lt.s32.totalorder %s17, 1
      %s141 = scalar_select %p140, %s17, 1
      %p142 = scmp.lt.s32.totalorder %s139, 3
      %s143 = scalar_select %p142, %s139, 3
      %s144 = smul.addr %s141, 4
      %s145 = sadd.s32 %s143, %s144
      %s146 = smul.addr %s145, 4
      %s147 = scalar_lea.vmem %s0, %s146
      %p148 = pneg %p48
      %p149 = pneg %p45
      %p150 = pneg %p69
      %p151 = pneg %p66
      %p152 = pneg %p97
      %p153 = pneg %p94
      %s154 = smul.u32 4, %s18
      %p155 = scmp.lt.s32.totalorder %s17, 1
      %s156 = scalar_select %p155, %s17, 1
      %p157 = scmp.lt.s32.totalorder %s154, 3
      %s158 = scalar_select %p157, %s154, 3
      %s159 = smul.addr %s156, 4
      %s160 = sadd.s32 %s158, %s159
      %s161 = smul.addr %s160, 4
      %s162 = scalar_lea.vmem %s2, %s161
      %s163 = smul.u32 4, %s18
      %p164 = scmp.lt.s32.totalorder %s17, 1
      %s165 = scalar_select %p164, %s17, 1
      %p166 = scmp.lt.s32.totalorder %s163, 3
      %s167 = scalar_select %p166, %s163, 3
      %s168 = smul.addr %s165, 4
      %s169 = sadd.s32 %s167, %s168
      %s170 = smul.addr %s169, 4
      %s171 = scalar_lea.vmem %s0, %s170
      %s172 = smul.u32 4, %s18
      %s173 = smul.u32 4, %s18
      %p174 = scmp.lt.s32.totalorder %s17, 1
      %s175 = scalar_select %p174, %s17, 1
      %p176 = scmp.lt.s32.totalorder %s173, 3
      %s177 = scalar_select %p176, %s173, 3
      %s178 = smul.addr %s175, 4
      %s179 = sadd.s32 %s177, %s178
      %s180 = smul.addr %s179, 4
      %s181 = scalar_lea.vmem %s2, %s180
      %s182 = smul.u32 4, %s18
      %v184 = vld [vmem:[%s171] sm:$0xf]
      %v185 = vld [vmem:[%s171 + $0x4] sm:$0xf]
      %v186 = vld [vmem:[%s171 + $0x8] sm:$0xf]
      %v187 = vld [vmem:[%s171 + $0xc] sm:$0xf]
      %v188 = vld [vmem:[%s1] sm:$0xf]
      %v189 = vld [vmem:[%s1 + $0x4] sm:$0xf]
      %v190 = vld [vmem:[%s1 + $0x8] sm:$0xf]
      %v191 = vld [vmem:[%s1 + $0xc] sm:$0xf]
      %v192 = vld [vmem:[%s1 + $0x10] sm:$0xf]
      %v193 = vld [vmem:[%s1 + $0x14] sm:$0xf]
      %v194 = vld [vmem:[%s1 + $0x18] sm:$0xf]
      %v195 = vld [vmem:[%s1 + $0x1c] sm:$0xf]
      %v200 = vunpack.c.l.b16 %v184
      %v201 = vunpack.c.l.b16 %v185
      %v202 = vunpack.c.l.b16 %v186
      %v203 = vunpack.c.l.b16 %v187
      %v204 = vpack.c.b16 %v201, %v200
      %v205 = vpack.c.b16 %v203, %v202
      %v214 = vunpack.c.l.b16 %v188
      %v215 = vunpack.c.l.b16 %v189
      %v216 = vunpack.c.l.b16 %v190
      %v217 = vunpack.c.l.b16 %v191
      %v218 = vunpack.c.l.b16 %v192
      %v219 = vunpack.c.l.b16 %v193
      %v220 = vunpack.c.l.b16 %v194
      %v221 = vunpack.c.l.b16 %v195
      %v222 = vpack.c.b16 %v215, %v214
      %v223 = vpack.c.b16 %v217, %v216
      %v224 = vpack.c.b16 %v219, %v218
      %v225 = vpack.c.b16 %v221, %v220
      %vm230 = vcmask 523264
      %v232 = vsel %vm230, %v204, 0
      %v235 = vsel %vm230, %v205, 0
      %237 = vmatprep.subr.bf16.mxu0 0
      %238 = vmatpush1.bf16.msra.mxu0 %v222
      %239 = vmatprep.subr.bf16.mxu0 0
      %240 = vmatpush1.bf16.msra.mxu0 %v223
      %241 = vmatprep.subr.bf16.mxu0 0
      %242 = vmatpush1.bf16.msra.mxu0 %v224
      %243 = vmatprep.subr.bf16.mxu0 0
      %244 = vmatpush1.bf16.msra.mxu0 %v225
      %245 = vmatprep.subr.bf16.mxu0 0
      %246 = vmatpush1.bf16.msra.mxu0 0
      %247 = vmatprep.subr.bf16.mxu0 0
      %248 = vmatpush1.bf16.msra.mxu0 0
      %249 = vmatprep.subr.bf16.mxu0 0
      %250 = vmatpush1.bf16.msra.mxu0 0
      %251 = vmatprep.subr.bf16.mxu0 0
      %252 = vmatpush1.bf16.msra.mxu0 0
      %253 = vmatprep.subr.bf16.mxu0 0
      %254 = vmatpush1.bf16.msra.mxu0 0
      %255 = vmatprep.subr.bf16.mxu0 0
      %256 = vmatpush1.bf16.msra.mxu0 0
      %257 = vmatprep.subr.bf16.mxu0 0
      %258 = vmatpush1.bf16.msra.mxu0 0
      %259 = vmatprep.subr.bf16.mxu0 0
      %260 = vmatpush1.bf16.msra.mxu0 0
      %261 = vmatprep.subr.bf16.mxu0 0
      %262 = vmatpush1.bf16.msra.mxu0 0
      %263 = vmatprep.subr.bf16.mxu0 0
      %264 = vmatpush1.bf16.msra.mxu0 0
      %265 = vmatprep.subr.bf16.mxu0 0
      %266 = vmatpush1.bf16.msra.mxu0 0
      %267 = vmatprep.subr.bf16.mxu0 0
      %268 = vmatpush1.bf16.msra.mxu0 0
      %269 = vmatprep.mubr.bf16.mxu0 0
      %270 = vmatmul.mubr.bf16.gmra.mrb[0].mxu0 %v232
      %v271 = vpop.f32.mrb[0].mxu0
      %v272 = vadd.f32 0.0, %v271
      %v273 = vpop.f32.mrb[0].mxu0
      %v274 = vpop.f32.mrb[0].mxu0
      %v275 = vadd.f32 0.0, %v274
      %v276 = vpop.f32.mrb[0].mxu0
      %277 = vmatprep.mubr.bf16.mxu0 0
      %278 = vmatmul.mubr.bf16.gmra.mrb[0].mxu0 %v235
      %v279 = vpop.f32.mrb[0].mxu0
      %v280 = vadd.f32 0.0, %v279
      %v281 = vpop.f32.mrb[0].mxu0
      %v282 = vpop.f32.mrb[0].mxu0
      %v283 = vadd.f32 0.0, %v282
      %v284 = vpop.f32.mrb[0].mxu0
      %285 = vdwg.mxu0
      %v286 = vpack.c.bf16 %v275, %v272
      %v287 = vpack.c.bf16 %v283, %v280
      %v290 = vunpack.c.l.b16 %v286
      %v291 = vunpack.c.h.b16 %v286
      %v292 = vunpack.c.l.b16 %v287
      %v293 = vunpack.c.h.b16 %v287
      %v294 = vpack.c.b16 %v290, %v290
      %v295 = vpack.c.b16 %v291, %v291
      %v296 = vpack.c.b16 %v292, %v292
      %v297 = vpack.c.b16 %v293, %v293
      %302 = vst [vmem:[%s181] sm:$0xf] %v294
      %303 = vst [vmem:[%s181 + $0x4] sm:$0xf] %v295
      %304 = vst [vmem:[%s181 + $0x8] sm:$0xf] %v296
      %305 = vst [vmem:[%s181 + $0xc] sm:$0xf] %v297
      %s306 = smul.u32 4, %s18
      %p307 = scmp.lt.s32.totalorder %s17, 1
      %s308 = scalar_select %p307, %s17, 1
      %p309 = scmp.lt.s32.totalorder %s306, 3
      %s310 = scalar_select %p309, %s306, 3
      %s311 = smul.addr %s308, 4
      %s312 = sadd.s32 %s310, %s311
      %s313 = smul.addr %s312, 4
      %s314 = scalar_lea.vmem %s2, %s313
      // Predicated region
      $region29: #{dgcnn_encoder.20} parent=27 // pred_check
        %p315 = pneg %p94
      $region30: #{dgcnn_encoder.20} parent=27 // pred_check_branch
        %317 = sbr.rel (%p315) target = $region32
      $region31: #{dgcnn_encoder.20} parent=27 // pred_region
        %s318 = smul.u32 4, %s18
      $region32: #{dgcnn_encoder.20} parent=27 // pred_fallthru
        _
    $region28: #{dgcnn_encoder.20} parent=5 // pred_fallthru
      _
    %p319 = scmp.le.s32.totalorder 2, %s8
    // Predicated region
    $region33: #{dgcnn_encoder.20} parent=5 // pred_check
      %p320 = pneg %p319
    $region34: #{dgcnn_encoder.20} parent=5 // pred_check_branch
      %322 = sbr.rel (%p320) target = $region36
    $region35: #{dgcnn_encoder.20} parent=5 // pred_region
      %s323 = ssub.s32 %s8, 2
      // Predicated region
      $region37: #{dgcnn_encoder.20} parent=35 // pred_check
        %p324 = pneg %p100
      $region38: #{dgcnn_encoder.20} parent=35 // pred_check_branch
        %326 = sbr.rel (%p324) target = $region40
      $region39: #{dgcnn_encoder.20} parent=35 // pred_region
        %s327 = smul.u32 4, %s20
        %p328 = scmp.lt.s32.totalorder %s19, 1
        %s329 = scalar_select %p328, %s19, 1
        %p330 = scmp.lt.s32.totalorder %s327, 3
        %s331 = scalar_select %p330, %s327, 3
        %s332 = smul.addr %s329, 4
        %s333 = sadd.s32 %s331, %s332
        %s334 = smul.addr %s333, 4
        %s335 = scalar_lea.vmem %s2, %s334
      $region40: #{dgcnn_encoder.20} parent=35 // pred_fallthru
        _
    $region36: #{dgcnn_encoder.20} parent=5 // pred_fallthru
      _
  $region6: #{dgcnn_encoder.20} parent=0 // loop_footer
    %s12 = sadd.s32 1, %s8
  $region7: #{dgcnn_encoder.20} parent=0 // loop_footer_branch
    %7 = sbr.rel target = $region3
  $region8: #{dgcnn_encoder.20} parent=0 // loop_exit
    _

// kernel: dgcnn_encoder.21
$region0: #{dgcnn_encoder.21}
  #allocation0 [shape = 'u32[]', space=smem, size = 0x4, offset = 0x4, fixed_abs, tag = 'smem constant byte address 0x4 - core index']
  #allocation1 [shape = 'u32[144,128]{1,0:T(1,128)}', space=vmem, size = 0x12000, scoped, tag = 'internal scratch']
  %s0 = inlined_call_operand.vmem [shape: bf16[2,32,128], index: 0, kind: input, shape index: {}]
  %s1 = inlined_call_operand.vmem [shape: bf16[2,32,64], index: 1, kind: input, shape index: {}]
  %s2 = inlined_call_operand.vmem [shape: bf16[64,128], index: 2, kind: input, shape index: {}]
  %s3 = inlined_call_operand.vmem [shape: f32[1,128], index: 3, kind: input, shape index: {}]
  %s4 = inlined_call_operand.vmem [shape: bf16[2,32,128], index: 4, kind: output, shape index: {}]
  %s5 = sld [smem:[#allocation0]]
  $region49: #{dgcnn_encoder.21} parent=0
    _
  %s7 = ssub.s32 1, %s5
  %s8 = scalar_select 0, %s7, %s5
  loop: start=0, step=1, limit=4
  $region2: #{dgcnn_encoder.21} parent=0 // loop_pre_header
    _
  $region3: #{dgcnn_encoder.21} parent=0 // loop_header
    %s10 = sphi 0, %s14
    %p11 = scmp.ge.s32.totalorder %s10, 4
    %s17 = sphi 0, %s29
    %s18 = sphi 0, %s25
    %s19 = sphi 0, %s17
    %s20 = sphi 0, %s18
    %s21 = sphi 0, %s19
    %s22 = sphi 0, %s20
    %s34 = sphi 0, %s36
    %s37 = sphi 0, %s34
    %s38 = sphi 0, %s37
    %s54 = sphi 0, %s38
    %s62 = sphi 0, %s64
    %s65 = sphi 0, %s62
    %s66 = sphi 0, %s65
    %s82 = sphi 0, %s66
    %s86 = sphi 0, %s86
    %s88 = sphi 0, %s86
    %s89 = sphi 0, %s88
    %s103 = sphi 0, %s89
    %s107 = sphi 0, %s107
    %s109 = sphi 0, %s107
    %s110 = sphi 0, %s109
    %s124 = sphi 0, %s110
    %s132 = sphi 0, %s134
    %s135 = sphi 0, %s132
    %s136 = sphi 0, %s135
    %s152 = sphi 0, %s136
  $region4: #{dgcnn_encoder.21} parent=0 // loop_header_branch
    %13 = sbr.rel (%p11) target = $region8
  $region5: #{dgcnn_encoder.21} parent=0 // loop_body
    %s15 = ssub.s32 %s10, 1
    %s16 = ssub.s32 %s10, 2
    %s23 = sadd.s32 1, %s18
    %p24 = scmp.ge.s32.totalorder %s23, 1
    %s25 = scalar_select %p24, 0, %s23
    %s26 = sadd.s32 1, %s17
    %s27 = scalar_select %p24, %s26, %s17
    %p28 = scmp.ge.s32.totalorder %s27, 2
    %s29 = scalar_select %p28, 0, %s27
    %s30 = ssub.s32 %s17, %s29
    %s31 = ssub.s32 %s18, %s25
    %s32 = sor.u32 %s30, %s31
    %p33 = scmp.eq.s32.totalorder %s32, 0
    %s35 = sadd.s32 %s34, 1
    %s36 = scalar_select %p33, %s34, %s35
    %p39 = pneg %p33
    %p40 = scmp.eq.s32.totalorder %s10, 1
    %p41 = por %p39, %p40
    %p42 = scmp.ne.s32.totalorder %s34, %s37
    %p43 = scmp.eq.s32.totalorder %s10, 0
    %p44 = por %p42, %p43
    %p45 = scmp.ne.s32.totalorder %s34, %s37
    %p46 = scmp.eq.s32.totalorder %s15, 1
    %p47 = por %p45, %p46
    %p48 = scmp.ne.s32.totalorder %s37, %s38
    %p49 = scmp.eq.s32.totalorder %s15, 0
    %p50 = por %p48, %p49
    %p51 = scmp.ne.s32.totalorder %s37, %s38
    %p52 = scmp.eq.s32.totalorder %s16, 1
    %p53 = por %p51, %p52
    %p55 = scmp.ne.s32.totalorder %s38, %s54
    %p56 = scmp.eq.s32.totalorder %s16, 0
    %p57 = por %p55, %p56
    %s58 = ssub.s32 %s17, %s29
    %s59 = ssub.s32 %s18, %s25
    %s60 = sor.u32 %s58, %s59
    %p61 = scmp.eq.s32.totalorder %s60, 0
    %s63 = sadd.s32 %s62, 1
    %s64 = scalar_select %p61, %s62, %s63
    %p67 = pneg %p61
    %p68 = scmp.eq.s32.totalorder %s10, 1
    %p69 = por %p67, %p68
    %p70 = scmp.ne.s32.totalorder %s62, %s65
    %p71 = scmp.eq.s32.totalorder %s10, 0
    %p72 = por %p70, %p71
    %p73 = scmp.ne.s32.totalorder %s62, %s65
    %p74 = scmp.eq.s32.totalorder %s15, 1
    %p75 = por %p73, %p74
    %p76 = scmp.ne.s32.totalorder %s65, %s66
    %p77 = scmp.eq.s32.totalorder %s15, 0
    %p78 = por %p76, %p77
    %p79 = scmp.ne.s32.totalorder %s65, %s66
    %p80 = scmp.eq.s32.totalorder %s16, 1
    %p81 = por %p79, %p80
    %p83 = scmp.ne.s32.totalorder %s66, %s82
    %p84 = scmp.eq.s32.totalorder %s16, 0
    %p85 = por %p83, %p84
    %s87 = sadd.s32 %s86, 1
    %p90 = scmp.eq.s32.totalorder %s10, 1
    %p91 = scmp.ne.s32.totalorder %s86, %s88
    %p92 = scmp.eq.s32.totalorder %s10, 0
    %p93 = por %p91, %p92
    %p94 = scmp.ne.s32.totalorder %s86, %s88
    %p95 = scmp.eq.s32.totalorder %s15, 1
    %p96 = por %p94, %p95
    %p97 = scmp.ne.s32.totalorder %s88, %s89
    %p98 = scmp.eq.s32.totalorder %s15, 0
    %p99 = por %p97, %p98
    %p100 = scmp.ne.s32.totalorder %s88, %s89
    %p101 = scmp.eq.s32.totalorder %s16, 1
    %p102 = por %p100, %p101
    %p104 = scmp.ne.s32.totalorder %s89, %s103
    %p105 = scmp.eq.s32.totalorder %s16, 0
    %p106 = por %p104, %p105
    %s108 = sadd.s32 %s107, 1
    %p111 = scmp.eq.s32.totalorder %s10, 1
    %p112 = scmp.ne.s32.totalorder %s107, %s109
    %p113 = scmp.eq.s32.totalorder %s10, 0
    %p114 = por %p112, %p113
    %p115 = scmp.ne.s32.totalorder %s107, %s109
    %p116 = scmp.eq.s32.totalorder %s15, 1
    %p117 = por %p115, %p116
    %p118 = scmp.ne.s32.totalorder %s109, %s110
    %p119 = scmp.eq.s32.totalorder %s15, 0
    %p120 = por %p118, %p119
    %p121 = scmp.ne.s32.totalorder %s109, %s110
    %p122 = scmp.eq.s32.totalorder %s16, 1
    %p123 = por %p121, %p122
    %p125 = scmp.ne.s32.totalorder %s110, %s124
    %p126 = scmp.eq.s32.totalorder %s16, 0
    %p127 = por %p125, %p126
    %s128 = ssub.s32 %s17, %s29
    %s129 = ssub.s32 %s18, %s25
    %s130 = sor.u32 %s128, %s129
    %p131 = scmp.eq.s32.totalorder %s130, 0
    %s133 = sadd.s32 %s132, 1
    %s134 = scalar_select %p131, %s132, %s133
    %p137 = pneg %p131
    %p138 = scmp.eq.s32.totalorder %s10, 1
    %p139 = por %p137, %p138
    %p140 = scmp.ne.s32.totalorder %s132, %s135
    %p141 = scmp.eq.s32.totalorder %s10, 0
    %p142 = por %p140, %p141
    %p143 = scmp.ne.s32.totalorder %s132, %s135
    %p144 = scmp.eq.s32.totalorder %s15, 1
    %p145 = por %p143, %p144
    %p146 = scmp.ne.s32.totalorder %s135, %s136
    %p147 = scmp.eq.s32.totalorder %s15, 0
    %p148 = por %p146, %p147
    %p149 = scmp.ne.s32.totalorder %s135, %s136
    %p150 = scmp.eq.s32.totalorder %s16, 1
    %p151 = por %p149, %p150
    %p153 = scmp.ne.s32.totalorder %s136, %s152
    %p154 = scmp.eq.s32.totalorder %s16, 0
    %p155 = por %p153, %p154
    %p156 = scmp.le.s32.totalorder 1, %s10
    %p157 = scmp.lt.s32.totalorder %s10, 3
    %p158 = pnand %p156, %p157
    %p159 = pneg %p158
    // Predicated region
    $region9: #{dgcnn_encoder.21} parent=5 // pred_check
      _
    $region10: #{dgcnn_encoder.21} parent=5 // pred_check_branch
      %161 = sbr.rel (%p158) target = $region12
    $region11: #{dgcnn_encoder.21} parent=5 // pred_region
      %s162 = ssub.s32 %s10, 1
      // Predicated region
      $region13: #{dgcnn_encoder.21} parent=11 // pred_check
        %p163 = pneg %p99
      $region14: #{dgcnn_encoder.21} parent=11 // pred_check_branch
        %165 = sbr.rel (%p163) target = $region16
      $region15: #{dgcnn_encoder.21} parent=11 // pred_region
        _
      $region16: #{dgcnn_encoder.21} parent=11 // pred_fallthru
        _
      // Predicated region
      $region17: #{dgcnn_encoder.21} parent=11 // pred_check
        %p166 = pneg %p120
      $region18: #{dgcnn_encoder.21} parent=11 // pred_check_branch
        %168 = sbr.rel (%p166) target = $region20
      $region19: #{dgcnn_encoder.21} parent=11 // pred_region
        _
      $region20: #{dgcnn_encoder.21} parent=11 // pred_fallthru
        _
    $region12: #{dgcnn_encoder.21} parent=5 // pred_fallthru
      _
    %p169 = scmp.lt.s32.totalorder %s10, 2
    // Predicated region
    $region21: #{dgcnn_encoder.21} parent=5 // pred_check
      %p170 = pneg %p169
    $region22: #{dgcnn_encoder.21} parent=5 // pred_check_branch
      %172 = sbr.rel (%p170) target = $region24
    $region23: #{dgcnn_encoder.21} parent=5 // pred_region
      // Predicated region
      $region25: #{dgcnn_encoder.21} parent=23 // pred_check
        %p173 = pneg %p44
      $region26: #{dgcnn_encoder.21} parent=23 // pred_check_branch
        %175 = sbr.rel (%p173) target = $region28
      $region27: #{dgcnn_encoder.21} parent=23 // pred_region
        %s176 = smul.u32 4, %s18
        %p177 = scmp.lt.s32.totalorder %s17, 1
        %s178 = scalar_select %p177, %s17, 1
        %p179 = scmp.lt.s32.totalorder %s176, 3
        %s180 = scalar_select %p179, %s176, 3
        %s181 = smul.addr %s178, 4
        %s182 = sadd.s32 %s180, %s181
        %s183 = smul.addr %s182, 4
        %s184 = scalar_lea.vmem %s0, %s183
        %s185 = smul.u32 4, %s18
      $region28: #{dgcnn_encoder.21} parent=23 // pred_fallthru
        _
      // Predicated region
      $region29: #{dgcnn_encoder.21} parent=23 // pred_check
        %p186 = pneg %p72
      $region30: #{dgcnn_encoder.21} parent=23 // pred_check_branch
        %188 = sbr.rel (%p186) target = $region32
      $region31: #{dgcnn_encoder.21} parent=23 // pred_region
        %s189 = smul.u32 4, %s18
        %p190 = scmp.lt.s32.totalorder %s17, 1
        %s191 = scalar_select %p190, %s17, 1
        %p192 = scmp.lt.s32.totalorder %s189, 3
        %s193 = scalar_select %p192, %s189, 3
        %s194 = smul.addr %s191, 4
        %s195 = sadd.s32 %s193, %s194
        %s196 = smul.addr %s195, 4
        %s197 = scalar_lea.vmem %s1, %s196
        %s198 = smul.u32 4, %s18
      $region32: #{dgcnn_encoder.21} parent=23 // pred_fallthru
        _
    $region24: #{dgcnn_encoder.21} parent=5 // pred_fallthru
      _
    %p199 = scmp.le.s32.totalorder 1, %s10
    %p200 = scmp.lt.s32.totalorder %s10, 3
    %p201 = pnand %p199, %p200
    %p202 = pneg %p201
    // Predicated region
    $region33: #{dgcnn_encoder.21} parent=5 // pred_check
      _
    $region34: #{dgcnn_encoder.21} parent=5 // pred_check_branch
      %204 = sbr.rel (%p201) target = $region36
    $region35: #{dgcnn_encoder.21} parent=5 // pred_region
      %s205 = ssub.s32 %s10, 1
      %s206 = smul.u32 4, %s20
      %p207 = scmp.lt.s32.totalorder %s19, 1
      %s208 = scalar_select %p207, %s19, 1
      %p209 = scmp.lt.s32.totalorder %s206, 3
      %s210 = scalar_select %p209, %s206, 3
      %s211 = smul.addr %s208, 4
      %s212 = sadd.s32 %s210, %s211
      %s213 = smul.addr %s212, 4
      %s214 = scalar_lea.vmem %s0, %s213
      %p215 = pneg %p50
      %p216 = pneg %p47
      %s217 = smul.u32 4, %s20
      %p218 = scmp.lt.s32.totalorder %s19, 1
      %s219 = scalar_select %p218, %s19, 1
      %p220 = scmp.lt.s32.totalorder %s217, 3
      %s221 = scalar_select %p220, %s217, 3
      %s222 = smul.addr %s219, 4
      %s223 = sadd.s32 %s221, %s222
      %s224 = smul.addr %s223, 4
      %s225 = scalar_lea.vmem %s1, %s224
      %p226 = pneg %p78
      %p227 = pneg %p75
      %p228 = pneg %p99
      %p229 = pneg %p96
      %p230 = pneg %p120
      %p231 = pneg %p117
      %p232 = pneg %p148
      %p233 = pneg %p145
      %s234 = smul.u32 4, %s20
      %p235 = scmp.lt.s32.totalorder %s19, 1
      %s236 = scalar_select %p235, %s19, 1
      %p237 = scmp.lt.s32.totalorder %s234, 3
      %s238 = scalar_select %p237, %s234, 3
      %s239 = smul.addr %s236, 4
      %s240 = sadd.s32 %s238, %s239
      %s241 = smul.addr %s240, 4
      %s242 = scalar_lea.vmem %s4, %s241
      %s243 = smul.u32 4, %s20
      %p244 = scmp.lt.s32.totalorder %s19, 1
      %s245 = scalar_select %p244, %s19, 1
      %p246 = scmp.lt.s32.totalorder %s243, 3
      %s247 = scalar_select %p246, %s243, 3
      %s248 = smul.addr %s245, 4
      %s249 = sadd.s32 %s247, %s248
      %s250 = smul.addr %s249, 4
      %s251 = scalar_lea.vmem %s0, %s250
      %s252 = smul.u32 4, %s20
      %s253 = smul.u32 4, %s20
      %p254 = scmp.lt.s32.totalorder %s19, 1
      %s255 = scalar_select %p254, %s19, 1
      %p256 = scmp.lt.s32.totalorder %s253, 3
      %s257 = scalar_select %p256, %s253, 3
      %s258 = smul.addr %s255, 4
      %s259 = sadd.s32 %s257, %s258
      %s260 = smul.addr %s259, 4
      %s261 = scalar_lea.vmem %s1, %s260
      %s262 = smul.u32 4, %s20
      %s263 = smul.u32 4, %s20
      %p264 = scmp.lt.s32.totalorder %s19, 1
      %s265 = scalar_select %p264, %s19, 1
      %p266 = scmp.lt.s32.totalorder %s263, 3
      %s267 = scalar_select %p266, %s263, 3
      %s268 = smul.addr %s265, 4
      %s269 = sadd.s32 %s267, %s268
      %s270 = smul.addr %s269, 4
      %s271 = scalar_lea.vmem %s4, %s270
      %s272 = smul.u32 4, %s20
      %v274 = vld [vmem:[%s261] sm:$0xf]
      %v275 = vld [vmem:[%s261 + $0x4] sm:$0xf]
      %v276 = vld [vmem:[%s261 + $0x8] sm:$0xf]
      %v277 = vld [vmem:[%s261 + $0xc] sm:$0xf]
      %v278 = vld [vmem:[%s2] sm:$0xf]
      %v279 = vld [vmem:[%s2 + $0x4] sm:$0xf]
      %v280 = vld [vmem:[%s2 + $0x8] sm:$0xf]
      %v281 = vld [vmem:[%s2 + $0xc] sm:$0xf]
      %v282 = vld [vmem:[%s2 + $0x10] sm:$0xf]
      %v283 = vld [vmem:[%s2 + $0x14] sm:$0xf]
      %v284 = vld [vmem:[%s2 + $0x18] sm:$0xf]
      %v285 = vld [vmem:[%s2 + $0x1c] sm:$0xf]
      %v290 = vunpack.c.l.b16 %v274
      %v291 = vunpack.c.l.b16 %v275
      %v292 = vunpack.c.l.b16 %v276
      %v293 = vunpack.c.l.b16 %v277
      %v294 = vpack.c.b16 %v291, %v290
      %v295 = vpack.c.b16 %v293, %v292
      %v304 = vunpack.c.l.b16 %v278
      %v305 = vunpack.c.l.b16 %v279
      %v306 = vunpack.c.l.b16 %v280
      %v307 = vunpack.c.l.b16 %v281
      %v308 = vunpack.c.l.b16 %v282
      %v309 = vunpack.c.l.b16 %v283
      %v310 = vunpack.c.l.b16 %v284
      %v311 = vunpack.c.l.b16 %v285
      %v312 = vpack.c.b16 %v305, %v304
      %v313 = vpack.c.b16 %v307, %v306
      %v314 = vpack.c.b16 %v309, %v308
      %v315 = vpack.c.b16 %v311, %v310
      %vm320 = vcmask 523264
      %v322 = vsel %vm320, %v294, 0
      %v325 = vsel %vm320, %v295, 0
      %327 = vmatprep.subr.bf16.mxu0 0
      %328 = vmatpush1.bf16.msra.mxu0 %v312
      %329 = vmatprep.subr.bf16.mxu0 0
      %330 = vmatpush1.bf16.msra.mxu0 %v313
      %331 = vmatprep.subr.bf16.mxu0 0
      %332 = vmatpush1.bf16.msra.mxu0 %v314
      %333 = vmatprep.subr.bf16.mxu0 0
      %334 = vmatpush1.bf16.msra.mxu0 %v315
      %335 = vmatprep.subr.bf16.mxu0 0
      %336 = vmatpush1.bf16.msra.mxu0 0
      %337 = vmatprep.subr.bf16.mxu0 0
      %338 = vmatpush1.bf16.msra.mxu0 0
      %339 = vmatprep.subr.bf16.mxu0 0
      %340 = vmatpush1.bf16.msra.mxu0 0
      %341 = vmatprep.subr.bf16.mxu0 0
      %342 = vmatpush1.bf16.msra.mxu0 0
      %343 = vmatprep.subr.bf16.mxu0 0
      %344 = vmatpush1.bf16.msra.mxu0 0
      %345 = vmatprep.subr.bf16.mxu0 0
      %346 = vmatpush1.bf16.msra.mxu0 0
      %347 = vmatprep.subr.bf16.mxu0 0
      %348 = vmatpush1.bf16.msra.mxu0 0
      %349 = vmatprep.subr.bf16.mxu0 0
      %350 = vmatpush1.bf16.msra.mxu0 0
      %351 = vmatprep.subr.bf16.mxu0 0
      %352 = vmatpush1.bf16.msra.mxu0 0
      %353 = vmatprep.subr.bf16.mxu0 0
      %354 = vmatpush1.bf16.msra.mxu0 0
      %355 = vmatprep.subr.bf16.mxu0 0
      %356 = vmatpush1.bf16.msra.mxu0 0
      %357 = vmatprep.subr.bf16.mxu0 0
      %358 = vmatpush1.bf16.msra.mxu0 0
      %359 = vmatprep.mubr.bf16.mxu0 0
      %360 = vmatmul.mubr.bf16.gmra.mrb[0].mxu0 %v322
      %v361 = vpop.f32.mrb[0].mxu0
      %v362 = vadd.f32 0.0, %v361
      %v363 = vpop.f32.mrb[0].mxu0
      %v364 = vpop.f32.mrb[0].mxu0
      %v365 = vadd.f32 0.0, %v364
      %v366 = vpop.f32.mrb[0].mxu0
      %367 = vmatprep.mubr.bf16.mxu0 0
      %368 = vmatmul.mubr.bf16.gmra.mrb[0].mxu0 %v325
      %v369 = vpop.f32.mrb[0].mxu0
      %v370 = vadd.f32 0.0, %v369
      %v371 = vpop.f32.mrb[0].mxu0
      %v372 = vpop.f32.mrb[0].mxu0
      %v373 = vadd.f32 0.0, %v372
      %v374 = vpop.f32.mrb[0].mxu0
      %375 = vdwg.mxu0
      %v376 = vld [vmem:[%s251] sm:$0xf]
      %v377 = vld [vmem:[%s251 + $0x4] sm:$0xf]
      %v378 = vld [vmem:[%s251 + $0x8] sm:$0xf]
      %v379 = vld [vmem:[%s251 + $0xc] sm:$0xf]
      %v380 = vunpack.c.l.bf16 %v376
      %v381 = vunpack.c.l.bf16 %v377
      %v382 = vunpack.c.l.bf16 %v378
      %v383 = vunpack.c.l.bf16 %v379
      %v384 = vadd.f32 %v380, %v362
      %v385 = vadd.f32 %v381, %v365
      %v386 = vadd.f32 %v382, %v370
      %v387 = vadd.f32 %v383, %v373
      %v388 = vld [vmem:[%s3] sm:$0x1]
      %v390 = vlaneseq
      %v391 = vshrl.u32 %v390, 7
      %v392 = vsub.s32 0, %v391
      %v393 = vrot.slane %v388, %v392
      %v395 = vadd.f32 %v384, %v393
      %v396 = vadd.f32 %v385, %v393
      %v397 = vadd.f32 %v386, %v393
      %v398 = vadd.f32 %v387, %v393
      %v399 = vmul.f32 %v395, 0.2
      %v400 = vmul.f32 %v396, 0.2
      %v401 = vmul.f32 %v397, 0.2
      %v402 = vmul.f32 %v398, 0.2
      %v403 = vmax.f32 %v395, %v399
      %v404 = vmax.f32 %v396, %v400
      %v405 = vmax.f32 %v397, %v401
      %v406 = vmax.f32 %v398, %v402
      %v407 = vpack.c.bf16 %v404, %v403
      %v408 = vpack.c.bf16 %v406, %v405
      %v411 = vunpack.c.l.b16 %v407
      %v412 = vunpack.c.h.b16 %v407
      %v413 = vunpack.c.l.b16 %v408
      %v414 = vunpack.c.h.b16 %v408
      %v415 = vpack.c.b16 %v411, %v411
      %v416 = vpack.c.b16 %v412, %v412
      %v417 = vpack.c.b16 %v413, %v413
      %v418 = vpack.c.b16 %v414, %v414
      %423 = vst [vmem:[%s271] sm:$0xf] %v415
      %424 = vst [vmem:[%s271 + $0x4] sm:$0xf] %v416
      %425 = vst [vmem:[%s271 + $0x8] sm:$0xf] %v417
      %426 = vst [vmem:[%s271 + $0xc] sm:$0xf] %v418
      %s427 = smul.u32 4, %s20
      %p428 = scmp.lt.s32.totalorder %s19, 1
      %s429 = scalar_select %p428, %s19, 1
      %p430 = scmp.lt.s32.totalorder %s427, 3
      %s431 = scalar_select %p430, %s427, 3
      %s432 = smul.addr %s429, 4
      %s433 = sadd.s32 %s431, %s432
      %s434 = smul.addr %s433, 4
      %s435 = scalar_lea.vmem %s4, %s434
      // Predicated region
      $region37: #{dgcnn_encoder.21} parent=35 // pred_check
        %p436 = pneg %p145
      $region38: #{dgcnn_encoder.21} parent=35 // pred_check_branch
        %438 = sbr.rel (%p436) target = $region40
      $region39: #{dgcnn_encoder.21} parent=35 // pred_region
        %s439 = smul.u32 4, %s20
      $region40: #{dgcnn_encoder.21} parent=35 // pred_fallthru
        _
    $region36: #{dgcnn_encoder.21} parent=5 // pred_fallthru
      _
    %p440 = scmp.le.s32.totalorder 2, %s10
    // Predicated region
    $region41: #{dgcnn_encoder.21} parent=5 // pred_check
      %p441 = pneg %p440
    $region42: #{dgcnn_encoder.21} parent=5 // pred_check_branch
      %443 = sbr.rel (%p441) target = $region44
    $region43: #{dgcnn_encoder.21} parent=5 // pred_region
      %s444 = ssub.s32 %s10, 2
      // Predicated region
      $region45: #{dgcnn_encoder.21} parent=43 // pred_check
        %p445 = pneg %p151
      $region46: #{dgcnn_encoder.21} parent=43 // pred_check_branch
        %447 = sbr.rel (%p445) target = $region48
      $region47: #{dgcnn_encoder.21} parent=43 // pred_region
        %s448 = smul.u32 4, %s22
        %p449 = scmp.lt.s32.totalorder %s21, 1
        %s450 = scalar_select %p449, %s21, 1
        %p451 = scmp.lt.s32.totalorder %s448, 3
        %s452 = scalar_select %p451, %s448, 3
        %s453 = smul.addr %s450, 4
        %s454 = sadd.s32 %s452, %s453
        %s455 = smul.addr %s454, 4
        %s456 = scalar_lea.vmem %s4, %s455
      $region48: #{dgcnn_encoder.21} parent=43 // pred_fallthru
        _
    $region44: #{dgcnn_encoder.21} parent=5 // pred_fallthru
      _
  $region6: #{dgcnn_encoder.21} parent=0 // loop_footer
    %s14 = sadd.s32 1, %s10
  $region7: #{dgcnn_encoder.21} parent=0 // loop_footer_branch
    %9 = sbr.rel target = $region3
  $region8: #{dgcnn_encoder.21} parent=0 // loop_exit
    _

// kernel: dgcnn_encoder.22
$region0: #{dgcnn_encoder.22}
  #allocation0 [shape = 'u32[]', space=smem, size = 0x4, offset = 0x4, fixed_abs, tag = 'smem constant byte address 0x4 - core index']
  #allocation1 [shape = 'u32[144,128]{1,0:T(1,128)}', space=vmem, size = 0x12000, scoped, tag = 'internal scratch']
  %s0 = inlined_call_operand.vmem [shape: bf16[2,32,128], index: 0, kind: input, shape index: {}, may-alias: {0,1}]
  %s1 = inlined_call_operand.vmem [shape: bf16[2,32,128], index: 1, kind: input, shape index: {}, may-alias: {0,1}]
  %s2 = inlined_call_operand.vmem [shape: f32[2,1,32], index: 2, kind: input, shape index: {}]
  %s3 = inlined_call_operand.vmem [shape: bf16[2,32,32], index: 3, kind: output, shape index: {}]
  %s4 = sld [smem:[#allocation0]]
  $region45: #{dgcnn_encoder.22} parent=0
    _
  %s6 = ssub.s32 1, %s4
  %s7 = scalar_select 0, %s6, %s4
  loop: start=0, step=1, limit=4
  $region2: #{dgcnn_encoder.22} parent=0 // loop_pre_header
    _
  $region3: #{dgcnn_encoder.22} parent=0 // loop_header
    %s9 = sphi 0, %s13
    %p10 = scmp.ge.s32.totalorder %s9, 4
    %s16 = sphi 0, %s28
    %s17 = sphi 0, %s24
    %s18 = sphi 0, %s16
    %s19 = sphi 0, %s17
    %s20 = sphi 0, %s18
    %s21 = sphi 0, %s19
    %s33 = sphi 0, %s35
    %s36 = sphi 0, %s33
    %s37 = sphi 0, %s36
    %s53 = sphi 0, %s37
    %s59 = sphi 0, %s61
    %s62 = sphi 0, %s59
    %s63 = sphi 0, %s62
    %s79 = sphi 0, %s63
    %s85 = sphi 0, %s87
    %s88 = sphi 0, %s85
    %s89 = sphi 0, %s88
    %s105 = sphi 0, %s89
    %s113 = sphi 0, %s115
    %s116 = sphi 0, %s113
    %s117 = sphi 0, %s116
    %s133 = sphi 0, %s117
  $region4: #{dgcnn_encoder.22} parent=0 // loop_header_branch
    %12 = sbr.rel (%p10) target = $region8
  $region5: #{dgcnn_encoder.22} parent=0 // loop_body
    %s14 = ssub.s32 %s9, 1
    %s15 = ssub.s32 %s9, 2
    %s22 = sadd.s32 1, %s17
    %p23 = scmp.ge.s32.totalorder %s22, 1
    %s24 = scalar_select %p23, 0, %s22
    %s25 = sadd.s32 1, %s16
    %s26 = scalar_select %p23, %s25, %s16
    %p27 = scmp.ge.s32.totalorder %s26, 2
    %s28 = scalar_select %p27, 0, %s26
    %s29 = ssub.s32 %s16, %s28
    %s30 = ssub.s32 %s17, %s24
    %s31 = sor.u32 %s29, %s30
    %p32 = scmp.eq.s32.totalorder %s31, 0
    %s34 = sadd.s32 %s33, 1
    %s35 = scalar_select %p32, %s33, %s34
    %p38 = pneg %p32
    %p39 = scmp.eq.s32.totalorder %s9, 1
    %p40 = por %p38, %p39
    %p41 = scmp.ne.s32.totalorder %s33, %s36
    %p42 = scmp.eq.s32.totalorder %s9, 0
    %p43 = por %p41, %p42
    %p44 = scmp.ne.s32.totalorder %s33, %s36
    %p45 = scmp.eq.s32.totalorder %s14, 1
    %p46 = por %p44, %p45
    %p47 = scmp.ne.s32.totalorder %s36, %s37
    %p48 = scmp.eq.s32.totalorder %s14, 0
    %p49 = por %p47, %p48
    %p50 = scmp.ne.s32.totalorder %s36, %s37
    %p51 = scmp.eq.s32.totalorder %s15, 1
    %p52 = por %p50, %p51
    %p54 = scmp.ne.s32.totalorder %s37, %s53
    %p55 = scmp.eq.s32.totalorder %s15, 0
    %p56 = por %p54, %p55
    %s57 = ssub.s32 %s16, %s28
    %p58 = scmp.eq.s32.totalorder %s57, 0
    %s60 = sadd.s32 %s59, 1
    %s61 = scalar_select %p58, %s59, %s60
    %p64 = pneg %p58
    %p65 = scmp.eq.s32.totalorder %s9, 1
    %p66 = por %p64, %p65
    %p67 = scmp.ne.s32.totalorder %s59, %s62
    %p68 = scmp.eq.s32.totalorder %s9, 0
    %p69 = por %p67, %p68
    %p70 = scmp.ne.s32.totalorder %s59, %s62
    %p71 = scmp.eq.s32.totalorder %s14, 1
    %p72 = por %p70, %p71
    %p73 = scmp.ne.s32.totalorder %s62, %s63
    %p74 = scmp.eq.s32.totalorder %s14, 0
    %p75 = por %p73, %p74
    %p76 = scmp.ne.s32.totalorder %s62, %s63
    %p77 = scmp.eq.s32.totalorder %s15, 1
    %p78 = por %p76, %p77
    %p80 = scmp.ne.s32.totalorder %s63, %s79
    %p81 = scmp.eq.s32.totalorder %s15, 0
    %p82 = por %p80, %p81
    %s83 = ssub.s32 %s16, %s28
    %p84 = scmp.eq.s32.totalorder %s83, 0
    %s86 = sadd.s32 %s85, 1
    %s87 = scalar_select %p84, %s85, %s86
    %p90 = pneg %p84
    %p91 = scmp.eq.s32.totalorder %s9, 1
    %p92 = por %p90, %p91
    %p93 = scmp.ne.s32.totalorder %s85, %s88
    %p94 = scmp.eq.s32.totalorder %s9, 0
    %p95 = por %p93, %p94
    %p96 = scmp.ne.s32.totalorder %s85, %s88
    %p97 = scmp.eq.s32.totalorder %s14, 1
    %p98 = por %p96, %p97
    %p99 = scmp.ne.s32.totalorder %s88, %s89
    %p100 = scmp.eq.s32.totalorder %s14, 0
    %p101 = por %p99, %p100
    %p102 = scmp.ne.s32.totalorder %s88, %s89
    %p103 = scmp.eq.s32.totalorder %s15, 1
    %p104 = por %p102, %p103
    %p106 = scmp.ne.s32.totalorder %s89, %s105
    %p107 = scmp.eq.s32.totalorder %s15, 0
    %p108 = por %p106, %p107
    %s109 = ssub.s32 %s16, %s28
    %s110 = ssub.s32 %s17, %s24
    %s111 = sor.u32 %s109, %s110
    %p112 = scmp.eq.s32.totalorder %s111, 0
    %s114 = sadd.s32 %s113, 1
    %s115 = scalar_select %p112, %s113, %s114
    %p118 = pneg %p112
    %p119 = scmp.eq.s32.totalorder %s9, 1
    %p120 = por %p118, %p119
    %p121 = scmp.ne.s32.totalorder %s113, %s116
    %p122 = scmp.eq.s32.totalorder %s9, 0
    %p123 = por %p121, %p122
    %p124 = scmp.ne.s32.totalorder %s113, %s116
    %p125 = scmp.eq.s32.totalorder %s14, 1
    %p126 = por %p124, %p125
    %p127 = scmp.ne.s32.totalorder %s116, %s117
    %p128 = scmp.eq.s32.totalorder %s14, 0
    %p129 = por %p127, %p128
    %p130 = scmp.ne.s32.totalorder %s116, %s117
    %p131 = scmp.eq.s32.totalorder %s15, 1
    %p132 = por %p130, %p131
    %p134 = scmp.ne.s32.totalorder %s117, %s133
    %p135 = scmp.eq.s32.totalorder %s15, 0
    %p136 = por %p134, %p135
    %p137 = scmp.le.s32.totalorder 1, %s9
    %p138 = scmp.lt.s32.totalorder %s9, 3
    %p139 = pnand %p137, %p138
    %p140 = pneg %p139
    // Predicated region
    $region9: #{dgcnn_encoder.22} parent=5 // pred_check
      _
    $region10: #{dgcnn_encoder.22} parent=5 // pred_check_branch
      %142 = sbr.rel (%p139) target = $region12
    $region11: #{dgcnn_encoder.22} parent=5 // pred_region
      %s143 = ssub.s32 %s9, 1
    $region12: #{dgcnn_encoder.22} parent=5 // pred_fallthru
      _
    %p144 = scmp.lt.s32.totalorder %s9, 2
    // Predicated region
    $region13: #{dgcnn_encoder.22} parent=5 // pred_check
      %p145 = pneg %p144
    $region14: #{dgcnn_encoder.22} parent=5 // pred_check_branch
      %147 = sbr.rel (%p145) target = $region16
    $region15: #{dgcnn_encoder.22} parent=5 // pred_region
      // Predicated region
      $region17: #{dgcnn_encoder.22} parent=15 // pred_check
        %p148 = pneg %p43
      $region18: #{dgcnn_encoder.22} parent=15 // pred_check_branch
        %150 = sbr.rel (%p148) target = $region20
      $region19: #{dgcnn_encoder.22} parent=15 // pred_region
        %s151 = smul.u32 4, %s17
        %p152 = scmp.lt.s32.totalorder %s16, 1
        %s153 = scalar_select %p152, %s16, 1
        %p154 = scmp.lt.s32.totalorder %s151, 3
        %s155 = scalar_select %p154, %s151, 3
        %s156 = smul.addr %s153, 4
        %s157 = sadd.s32 %s155, %s156
        %s158 = smul.addr %s157, 4
        %s159 = scalar_lea.vmem %s0, %s158
        %s160 = smul.u32 4, %s17
      $region20: #{dgcnn_encoder.22} parent=15 // pred_fallthru
        _
      // Predicated region
      $region21: #{dgcnn_encoder.22} parent=15 // pred_check
        %p161 = pneg %p69
      $region22: #{dgcnn_encoder.22} parent=15 // pred_check_branch
        %163 = sbr.rel (%p161) target = $region24
      $region23: #{dgcnn_encoder.22} parent=15 // pred_region
        %p164 = scmp.lt.s32.totalorder %s16, 1
        %s165 = scalar_select %p164, %s16, 1
        %s166 = smul.addr %s165, 4
        %s167 = smul.addr %s166, 4
        %s168 = scalar_lea.vmem %s1, %s167
      $region24: #{dgcnn_encoder.22} parent=15 // pred_fallthru
        _
      // Predicated region
      $region25: #{dgcnn_encoder.22} parent=15 // pred_check
        %p169 = pneg %p95
      $region26: #{dgcnn_encoder.22} parent=15 // pred_check_branch
        %171 = sbr.rel (%p169) target = $region28
      $region27: #{dgcnn_encoder.22} parent=15 // pred_region
        %p172 = scmp.lt.s32.totalorder %s16, 1
        %s173 = scalar_select %p172, %s16, 1
        %s174 = scalar_lea.vmem %s2, %s173
      $region28: #{dgcnn_encoder.22} parent=15 // pred_fallthru
        _
    $region16: #{dgcnn_encoder.22} parent=5 // pred_fallthru
      _
    %p175 = scmp.le.s32.totalorder 1, %s9
    %p176 = scmp.lt.s32.totalorder %s9, 3
    %p177 = pnand %p175, %p176
    %p178 = pneg %p177
    // Predicated region
    $region29: #{dgcnn_encoder.22} parent=5 // pred_check
      _
    $region30: #{dgcnn_encoder.22} parent=5 // pred_check_branch
      %180 = sbr.rel (%p177) target = $region32
    $region31: #{dgcnn_encoder.22} parent=5 // pred_region
      %s181 = ssub.s32 %s9, 1
      %s182 = smul.u32 4, %s19
      %p183 = scmp.lt.s32.totalorder %s18, 1
      %s184 = scalar_select %p183, %s18, 1
      %p185 = scmp.lt.s32.totalorder %s182, 3
      %s186 = scalar_select %p185, %s182, 3
      %s187 = smul.addr %s184, 4
      %s188 = sadd.s32 %s186, %s187
      %s189 = smul.addr %s188, 4
      %s190 = scalar_lea.vmem %s0, %s189
      %p191 = pneg %p49
      %p192 = pneg %p46
      %p193 = scmp.lt.s32.totalorder %s18, 1
      %s194 = scalar_select %p193, %s18, 1
      %s195 = smul.addr %s194, 4
      %s196 = smul.addr %s195, 4
      %s197 = scalar_lea.vmem %s1, %s196
      %p198 = pneg %p75
      %p199 = pneg %p72
      %p200 = scmp.lt.s32.totalorder %s18, 1
      %s201 = scalar_select %p200, %s18, 1
      %s202 = scalar_lea.vmem %s2, %s201
      %p203 = pneg %p101
      %p204 = pneg %p98
      %p205 = pneg %p129
      %p206 = pneg %p126
      %s207 = smul.u32 4, %s19
      %p208 = scmp.lt.s32.totalorder %s18, 1
      %s209 = scalar_select %p208, %s18, 1
      %p210 = scmp.lt.s32.totalorder %s207, 3
      %s211 = scalar_select %p210, %s207, 3
      %s212 = smul.addr %s209, 4
      %s213 = sadd.s32 %s211, %s212
      %s214 = smul.addr %s213, 4
      %s215 = scalar_lea.vmem %s3, %s214
      %s216 = smul.u32 4, %s19
      %p217 = scmp.lt.s32.totalorder %s18, 1
      %s218 = scalar_select %p217, %s18, 1
      %p219 = scmp.lt.s32.totalorder %s216, 3
      %s220 = scalar_select %p219, %s216, 3
      %s221 = smul.addr %s218, 4
      %s222 = sadd.s32 %s220, %s221
      %s223 = smul.addr %s222, 4
      %s224 = scalar_lea.vmem %s0, %s223
      %s225 = smul.u32 4, %s19
      %p226 = scmp.lt.s32.totalorder %s18, 1
      %s227 = scalar_select %p226, %s18, 1
      %s228 = smul.addr %s227, 4
      %s229 = smul.addr %s228, 4
      %s230 = scalar_lea.vmem %s1, %s229
      %p231 = scmp.lt.s32.totalorder %s18, 1
      %s232 = scalar_select %p231, %s18, 1
      %s233 = scalar_lea.vmem %s2, %s232
      %s234 = smul.u32 4, %s19
      %p235 = scmp.lt.s32.totalorder %s18, 1
      %s236 = scalar_select %p235, %s18, 1
      %p237 = scmp.lt.s32.totalorder %s234, 3
      %s238 = scalar_select %p237, %s234, 3
      %s239 = smul.addr %s236, 4
      %s240 = sadd.s32 %s238, %s239
      %s241 = smul.addr %s240, 4
      %s242 = scalar_lea.vmem %s3, %s241
      %s243 = smul.u32 4, %s19
      %v245 = vld [vmem:[%s224] sm:$0xf]
      %v246 = vld [vmem:[%s224 + $0x4] sm:$0xf]
      %v247 = vld [vmem:[%s224 + $0x8] sm:$0xf]
      %v248 = vld [vmem:[%s224 + $0xc] sm:$0xf]
      %v249 = vld [vmem:[%s230] sm:$0xf]
      %v250 = vld [vmem:[%s230 + $0x4] sm:$0xf]
      %v251 = vld [vmem:[%s230 + $0x8] sm:$0xf]
      %v252 = vld [vmem:[%s230 + $0xc] sm:$0xf]
      %v257 = vunpack.c.l.b16 %v245
      %v258 = vunpack.c.l.b16 %v246
      %v259 = vunpack.c.l.b16 %v247
      %v260 = vunpack.c.l.b16 %v248
      %v261 = vpack.c.b16 %v258, %v257
      %v262 = vpack.c.b16 %v260, %v259
      %v269 = vunpack.c.l.b16 %v249
      %v270 = vunpack.c.l.b16 %v250
      %v271 = vunpack.c.l.b16 %v251
      %v272 = vunpack.c.l.b16 %v252
      %v273 = vpack.c.b16 %v270, %v269
      %v274 = vpack.c.b16 %v272, %v271
      %277 = vmatprep.subr.bf16.mxu0 0
      %278 = vmatpush1.bf16.xpose.msra.mxu0 %v273
      %279 = vmatprep.subr.bf16.mxu0 0
      %280 = vmatpush1.bf16.xpose.msra.mxu0 %v274
      %281 = vmatprep.subr.bf16.mxu0 0
      %282 = vmatpush1.bf16.xpose.msra.mxu0 0
      %283 = vmatprep.subr.bf16.mxu0 0
      %284 = vmatpush1.bf16.xpose.msra.mxu0 0
      %285 = vmatprep.subr.bf16.mxu0 0
      %286 = vmatpush1.bf16.xpose.msra.mxu0 0
      %287 = vmatprep.subr.bf16.mxu0 0
      %288 = vmatpush1.bf16.xpose.msra.mxu0 0
      %289 = vmatprep.subr.bf16.mxu0 0
      %290 = vmatpush1.bf16.xpose.msra.mxu0 0
      %291 = vmatprep.subr.bf16.mxu0 0
      %292 = vmatpush1.bf16.xpose.msra.mxu0 0
      %293 = vmatprep.subr.bf16.mxu0 0
      %294 = vmatpush1.bf16.xpose.msra.mxu0 0
      %295 = vmatprep.subr.bf16.mxu0 0
      %296 = vmatpush1.bf16.xpose.msra.mxu0 0
      %297 = vmatprep.subr.bf16.mxu0 0
      %298 = vmatpush1.bf16.xpose.msra.mxu0 0
      %299 = vmatprep.subr.bf16.mxu0 0
      %300 = vmatpush1.bf16.xpose.msra.mxu0 0
      %301 = vmatprep.subr.bf16.mxu0 0
      %302 = vmatpush1.bf16.xpose.msra.mxu0 0
      %303 = vmatprep.subr.bf16.mxu0 0
      %304 = vmatpush1.bf16.xpose.msra.mxu0 0
      %305 = vmatprep.subr.bf16.mxu0 0
      %306 = vmatpush1.bf16.xpose.msra.mxu0 0
      %307 = vmatprep.subr.bf16.mxu0 0
      %308 = vmatpush1.bf16.xpose.msra.mxu0 0
      %309 = vmatprep.mubr.bf16.mxu0 0
      %310 = vmatmul.mubr.bf16.gmra.mrb[0].mxu0 %v261
      %v311 = vpop.f32.mrb[0].mxu0
      %v312 = vadd.f32 0.0, %v311
      %v313 = vpop.f32.mrb[0].mxu0
      %v314 = vpop.f32.mrb[0].mxu0
      %v315 = vadd.f32 0.0, %v314
      %v316 = vpop.f32.mrb[0].mxu0
      %317 = vmatprep.mubr.bf16.mxu0 0
      %318 = vmatmul.mubr.bf16.gmra.mrb[0].mxu0 %v262
      %v319 = vpop.f32.mrb[0].mxu0
      %v320 = vadd.f32 0.0, %v319
      %v321 = vpop.f32.mrb[0].mxu0
      %v322 = vpop.f32.mrb[0].mxu0
      %v323 = vadd.f32 0.0, %v322
      %v324 = vpop.f32.mrb[0].mxu0
      %325 = vdwg.mxu0
      %v326 = vunpack.c.l.bf16 %v245
      %v327 = vunpack.c.l.bf16 %v246
      %v328 = vunpack.c.l.bf16 %v247
      %v329 = vunpack.c.l.bf16 %v248
      %v330 = vmul.f32 %v326, %v326
      %v331 = vmul.f32 %v327, %v327
      %v332 = vmul.f32 %v328, %v328
      %v333 = vmul.f32 %v329, %v329
      %334 = vadd.xlane.f32.xlu0 %v330
      %v335 = vpop.xlane.xlu0 %334
      %336 = vadd.xlane.f32.xlu0 %v331
      %v337 = vpop.xlane.xlu0 %336
      %338 = vadd.xlane.f32.xlu0 %v332
      %v339 = vpop.xlane.xlu0 %338
      %340 = vadd.xlane.f32.xlu0 %v333
      %v341 = vpop.xlane.xlu0 %340
      %v342 = vmul.f32 %v335, 0.5
      %v343 = vmul.f32 %v337, 0.5
      %v344 = vmul.f32 %v339, 0.5
      %v345 = vmul.f32 %v341, 0.5
      %v346 = vsub.f32 %v312, %v342
      %v347 = vsub.f32 %v315, %v343
      %v348 = vsub.f32 %v320, %v344
      %v349 = vsub.f32 %v323, %v345
      %v350 = vld [vmem:[%s233] sm:$0x1]
      %v352 = vlaneseq
      %v353 = vshrl.u32 %v352, 7
      %v354 = vsub.s32 0, %v353
      %v355 = vrot.slane %v350, %v354
      %v357 = vsub.f32 %v346, %v355
      %v358 = vsub.f32 %v347, %v355
      %v359 = vsub.f32 %v348, %v355
      %v360 = vsub.f32 %v349, %v355
      %v361 = vpack.c.bf16 %v358, %v357
      %v362 = vpack.c.bf16 %v360, %v359
      %v365 = vunpack.c.l.b16 %v361
      %v366 = vunpack.c.h.b16 %v361
      %v367 = vunpack.c.l.b16 %v362
      %v368 = vunpack.c.h.b16 %v362
      %v369 = vpack.c.b16 %v365, %v365
      %v370 = vpack.c.b16 %v366, %v366
      %v371 = vpack.c.b16 %v367, %v367
      %v372 = vpack.c.b16 %v368, %v368
      %vm377 = vcmask 257024
      %378 = vst.msk [vmem:[%s242] sm:$0xf] %vm377, %v369
      %379 = vst.msk [vmem:[%s242 + $0x4] sm:$0xf] %vm377, %v370
      %380 = vst.msk [vmem:[%s242 + $0x8] sm:$0xf] %vm377, %v371
      %381 = vst.msk [vmem:[%s242 + $0xc] sm:$0xf] %vm377, %v372
      %s382 = smul.u32 4, %s19
      %p383 = scmp.lt.s32.totalorder %s18, 1
      %s384 = scalar_select %p383, %s18, 1
      %p385 = scmp.lt.s32.totalorder %s382, 3
      %s386 = scalar_select %p385, %s382, 3
      %s387 = smul.addr %s384, 4
      %s388 = sadd.s32 %s386, %s387
      %s389 = smul.addr %s388, 4
      %s390 = scalar_lea.vmem %s3, %s389
      // Predicated region
      $region33: #{dgcnn_encoder.22} parent=31 // pred_check
        %p391 = pneg %p126
      $region34: #{dgcnn_encoder.22} parent=31 // pred_check_branch
        %393 = sbr.rel (%p391) target = $region36
      $region35: #{dgcnn_encoder.22} parent=31 // pred_region
        %s394 = smul.u32 4, %s19
      $region36: #{dgcnn_encoder.22} parent=31 // pred_fallthru
        _
    $region32: #{dgcnn_encoder.22} parent=5 // pred_fallthru
      _
    %p395 = scmp.le.s32.totalorder 2, %s9
    // Predicated region
    $region37: #{dgcnn_encoder.22} parent=5 // pred_check
      %p396 = pneg %p395
    $region38: #{dgcnn_encoder.22} parent=5 // pred_check_branch
      %398 = sbr.rel (%p396) target = $region40
    $region39: #{dgcnn_encoder.22} parent=5 // pred_region
      %s399 = ssub.s32 %s9, 2
      // Predicated region
      $region41: #{dgcnn_encoder.22} parent=39 // pred_check
        %p400 = pneg %p132
      $region42: #{dgcnn_encoder.22} parent=39 // pred_check_branch
        %402 = sbr.rel (%p400) target = $region44
      $region43: #{dgcnn_encoder.22} parent=39 // pred_region
        %s403 = smul.u32 4, %s21
        %p404 = scmp.lt.s32.totalorder %s20, 1
        %s405 = scalar_select %p404, %s20, 1
        %p406 = scmp.lt.s32.totalorder %s403, 3
        %s407 = scalar_select %p406, %s403, 3
        %s408 = smul.addr %s405, 4
        %s409 = sadd.s32 %s407, %s408
        %s410 = smul.addr %s409, 4
        %s411 = scalar_lea.vmem %s3, %s410
      $region44: #{dgcnn_encoder.22} parent=39 // pred_fallthru
        _
    $region40: #{dgcnn_encoder.22} parent=5 // pred_fallthru
      _
  $region6: #{dgcnn_encoder.22} parent=0 // loop_footer
    %s13 = sadd.s32 1, %s9
  $region7: #{dgcnn_encoder.22} parent=0 // loop_footer_branch
    %8 = sbr.rel target = $region3
  $region8: #{dgcnn_encoder.22} parent=0 // loop_exit
    _

// kernel: dgcnn_encoder.23
$region0: #{dgcnn_encoder.23}
  #allocation0 [shape = 'u32[]', space=smem, size = 0x4, offset = 0x4, fixed_abs, tag = 'smem constant byte address 0x4 - core index']
  #allocation1 [shape = 'u32[144,128]{1,0:T(1,128)}', space=vmem, size = 0x12000, scoped, tag = 'internal scratch']
  %s0 = inlined_call_operand.vmem [shape: bf16[2,32,128], index: 0, kind: input, shape index: {}]
  %s1 = inlined_call_operand.vmem [shape: bf16[128,256], index: 1, kind: input, shape index: {}]
  %s2 = inlined_call_operand.vmem [shape: bf16[2,32,256], index: 2, kind: output, shape index: {}]
  %s3 = sld [smem:[#allocation0]]
  $region41: #{dgcnn_encoder.23} parent=0
    _
  %s5 = ssub.s32 1, %s3
  %s6 = scalar_select 0, %s5, %s3
  loop: start=0, step=1, limit=4
  $region2: #{dgcnn_encoder.23} parent=0 // loop_pre_header
    _
  $region3: #{dgcnn_encoder.23} parent=0 // loop_header
    %s8 = sphi 0, %s12
    %p9 = scmp.ge.s32.totalorder %s8, 4
    %s15 = sphi 0, %s27
    %s16 = sphi 0, %s23
    %s17 = sphi 0, %s15
    %s18 = sphi 0, %s16
    %s19 = sphi 0, %s17
    %s20 = sphi 0, %s18
    %s32 = sphi 0, %s34
    %s35 = sphi 0, %s32
    %s36 = sphi 0, %s35
    %s52 = sphi 0, %s36
    %s56 = sphi 0, %s56
    %s58 = sphi 0, %s56
    %s59 = sphi 0, %s58
    %s73 = sphi 0, %s59
    %s81 = sphi 0, %s83
    %s84 = sphi 0, %s81
    %s85 = sphi 0, %s84
    %s101 = sphi 0, %s85
  $region4: #{dgcnn_encoder.23} parent=0 // loop_header_branch
    %11 = sbr.rel (%p9) target = $region8
  $region5: #{dgcnn_encoder.23} parent=0 // loop_body
    %s13 = ssub.s32 %s8, 1
    %s14 = ssub.s32 %s8, 2
    %s21 = sadd.s32 1, %s16
    %p22 = scmp.ge.s32.totalorder %s21, 1
    %s23 = scalar_select %p22, 0, %s21
    %s24 = sadd.s32 1, %s15
    %s25 = scalar_select %p22, %s24, %s15
    %p26 = scmp.ge.s32.totalorder %s25, 2
    %s27 = scalar_select %p26, 0, %s25
    %s28 = ssub.s32 %s15, %s27
    %s29 = ssub.s32 %s16, %s23
    %s30 = sor.u32 %s28, %s29
    %p31 = scmp.eq.s32.totalorder %s30, 0
    %s33 = sadd.s32 %s32, 1
    %s34 = scalar_select %p31, %s32, %s33
    %p37 = pneg %p31
    %p38 = scmp.eq.s32.totalorder %s8, 1
    %p39 = por %p37, %p38
    %p40 = scmp.ne.s32.totalorder %s32, %s35
    %p41 = scmp.eq.s32.totalorder %s8, 0
    %p42 = por %p40, %p41
    %p43 = scmp.ne.s32.totalorder %s32, %s35
    %p44 = scmp.eq.s32.totalorder %s13, 1
    %p45 = por %p43, %p44
    %p46 = scmp.ne.s32.totalorder %s35, %s36
    %p47 = scmp.eq.s32.totalorder %s13, 0
    %p48 = por %p46, %p47
    %p49 = scmp.ne.s32.totalorder %s35, %s36
    %p50 = scmp.eq.s32.totalorder %s14, 1
    %p51 = por %p49, %p50
    %p53 = scmp.ne.s32.totalorder %s36, %s52
    %p54 = scmp.eq.s32.totalorder %s14, 0
    %p55 = por %p53, %p54
    %s57 = sadd.s32 %s56, 1
    %p60 = scmp.eq.s32.totalorder %s8, 1
    %p61 = scmp.ne.s32.totalorder %s56, %s58
    %p62 = scmp.eq.s32.totalorder %s8, 0
    %p63 = por %p61, %p62
    %p64 = scmp.ne.s32.totalorder %s56, %s58
    %p65 = scmp.eq.s32.totalorder %s13, 1
    %p66 = por %p64, %p65
    %p67 = scmp.ne.s32.totalorder %s58, %s59
    %p68 = scmp.eq.s32.totalorder %s13, 0
    %p69 = por %p67, %p68
    %p70 = scmp.ne.s32.totalorder %s58, %s59
    %p71 = scmp.eq.s32.totalorder %s14, 1
    %p72 = por %p70, %p71
    %p74 = scmp.ne.s32.totalorder %s59, %s73
    %p75 = scmp.eq.s32.totalorder %s14, 0
    %p76 = por %p74, %p75
    %s77 = ssub.s32 %s15, %s27
    %s78 = ssub.s32 %s16, %s23
    %s79 = sor.u32 %s77, %s78
    %p80 = scmp.eq.s32.totalorder %s79, 0
    %s82 = sadd.s32 %s81, 1
    %s83 = scalar_select %p80, %s81, %s82
    %p86 = pneg %p80
    %p87 = scmp.eq.s32.totalorder %s8, 1
    %p88 = por %p86, %p87
    %p89 = scmp.ne.s32.totalorder %s81, %s84
    %p90 = scmp.eq.s32.totalorder %s8, 0
    %p91 = por %p89, %p90
    %p92 = scmp.ne.s32.totalorder %s81, %s84
    %p93 = scmp.eq.s32.totalorder %s13, 1
    %p94 = por %p92, %p93
    %p95 = scmp.ne.s32.totalorder %s84, %s85
    %p96 = scmp.eq.s32.totalorder %s13, 0
    %p97 = por %p95, %p96
    %p98 = scmp.ne.s32.totalorder %s84, %s85
    %p99 = scmp.eq.s32.totalorder %s14, 1
    %p100 = por %p98, %p99
    %p102 = scmp.ne.s32.totalorder %s85, %s101
    %p103 = scmp.eq.s32.totalorder %s14, 0
    %p104 = por %p102, %p103
    %p105 = scmp.le.s32.totalorder 1, %s8
    %p106 = scmp.lt.s32.totalorder %s8, 3
    %p107 = pnand %p105, %p106
    %p108 = pneg %p107
    // Predicated region
    $region9: #{dgcnn_encoder.23} parent=5 // pred_check
      _
    $region10: #{dgcnn_encoder.23} parent=5 // pred_check_branch
      %110 = sbr.rel (%p107) target = $region12
    $region11: #{dgcnn_encoder.23} parent=5 // pred_region
      %s111 = ssub.s32 %s8, 1
      // Predicated region
      $region13: #{dgcnn_encoder.23} parent=11 // pred_check
        %p112 = pneg %p69
      $region14: #{dgcnn_encoder.23} parent=11 // pred_check_branch
        %114 = sbr.rel (%p112) target = $region16
      $region15: #{dgcnn_encoder.23} parent=11 // pred_region
        _
      $region16: #{dgcnn_encoder.23} parent=11 // pred_fallthru
        _
    $region12: #{dgcnn_encoder.23} parent=5 // pred_fallthru
      _
    %p115 = scmp.lt.s32.totalorder %s8, 2
    // Predicated region
    $region17: #{dgcnn_encoder.23} parent=5 // pred_check
      %p116 = pneg %p115
    $region18: #{dgcnn_encoder.23} parent=5 // pred_check_branch
      %118 = sbr.rel (%p116) target = $region20
    $region19: #{dgcnn_encoder.23} parent=5 // pred_region
      // Predicated region
      $region21: #{dgcnn_encoder.23} parent=19 // pred_check
        %p119 = pneg %p42
      $region22: #{dgcnn_encoder.23} parent=19 // pred_check_branch
        %121 = sbr.rel (%p119) target = $region24
      $region23: #{dgcnn_encoder.23} parent=19 // pred_region
        %s122 = smul.u32 4, %s16
        %p123 = scmp.lt.s32.totalorder %s15, 1
        %s124 = scalar_select %p123, %s15, 1
        %p125 = scmp.lt.s32.totalorder %s122, 3
        %s126 = scalar_select %p125, %s122, 3
        %s127 = smul.addr %s124, 4
        %s128 = sadd.s32 %s126, %s127
        %s129 = smul.addr %s128, 4
        %s130 = scalar_lea.vmem %s0, %s129
        %s131 = smul.u32 4, %s16
      $region24: #{dgcnn_encoder.23} parent=19 // pred_fallthru
        _
    $region20: #{dgcnn_encoder.23} parent=5 // pred_fallthru
      _
    %p132 = scmp.le.s32.totalorder 1, %s8
    %p133 = scmp.lt.s32.totalorder %s8, 3
    %p134 = pnand %p132, %p133
    %p135 = pneg %p134
    // Predicated region
    $region25: #{dgcnn_encoder.23} parent=5 // pred_check
      _
    $region26: #{dgcnn_encoder.23} parent=5 // pred_check_branch
      %137 = sbr.rel (%p134) target = $region28
    $region27: #{dgcnn_encoder.23} parent=5 // pred_region
      %s138 = ssub.s32 %s8, 1
      %s139 = smul.u32 4, %s18
      %p140 = scmp.lt.s32.totalorder %s17, 1
      %s141 = scalar_select %p140, %s17, 1
      %p142 = scmp.lt.s32.totalorder %s139, 3
      %s143 = scalar_select %p142, %s139, 3
      %s144 = smul.addr %s141, 4
      %s145 = sadd.s32 %s143, %s144
      %s146 = smul.addr %s145, 4
      %s147 = scalar_lea.vmem %s0, %s146
      %p148 = pneg %p48
      %p149 = pneg %p45
      %p150 = pneg %p69
      %p151 = pneg %p66
      %p152 = pneg %p97
      %p153 = pneg %p94
      %s154 = smul.u32 4, %s18
      %p155 = scmp.lt.s32.totalorder %s17, 1
      %s156 = scalar_select %p155, %s17, 1
      %p157 = scmp.lt.s32.totalorder %s154, 3
      %s158 = scalar_select %p157, %s154, 3
      %s159 = smul.addr %s158, 2
      %s160 = smul.addr %s156, 8
      %s161 = sadd.s32 %s159, %s160
      %s162 = smul.addr %s161, 4
      %s163 = scalar_lea.vmem %s2, %s162
      %s164 = smul.u32 4, %s18
      %p165 = scmp.lt.s32.totalorder %s17, 1
      %s166 = scalar_select %p165, %s17, 1
      %p167 = scmp.lt.s32.totalorder %s164, 3
      %s168 = scalar_select %p167, %s164, 3
      %s169 = smul.addr %s166, 4
      %s170 = sadd.s32 %s168, %s169
      %s171 = smul.addr %s170, 4
      %s172 = scalar_lea.vmem %s0, %s171
      %s173 = smul.u32 4, %s18
      %s174 = smul.u32 4, %s18
      %p175 = scmp.lt.s32.totalorder %s17, 1
      %s176 = scalar_select %p175, %s17, 1
      %p177 = scmp.lt.s32.totalorder %s174, 3
      %s178 = scalar_select %p177, %s174, 3
      %s179 = smul.addr %s178, 2
      %s180 = smul.addr %s176, 8
      %s181 = sadd.s32 %s179, %s180
      %s182 = smul.addr %s181, 4
      %s183 = scalar_lea.vmem %s2, %s182
      %s184 = smul.u32 4, %s18
      %v186 = vld [vmem:[%s172] sm:$0xf]
      %v187 = vld [vmem:[%s172 + $0x4] sm:$0xf]
      %v188 = vld [vmem:[%s172 + $0x8] sm:$0xf]
      %v189 = vld [vmem:[%s172 + $0xc] sm:$0xf]
      %v190 = vld [vmem:[%s1] sm:$0xff]
      %v191 = vld [vmem:[%s1 + $0x8] sm:$0xff]
      %v192 = vld [vmem:[%s1 + $0x10] sm:$0xff]
      %v193 = vld [vmem:[%s1 + $0x18] sm:$0xff]
      %v194 = vld [vmem:[%s1 + $0x20] sm:$0xff]
      %v195 = vld [vmem:[%s1 + $0x28] sm:$0xff]
      %v196 = vld [vmem:[%s1 + $0x30] sm:$0xff]
      %v197 = vld [vmem:[%s1 + $0x38] sm:$0xff]
      %v198 = vld [vmem:[%s1 + $0x40] sm:$0xff]
      %v199 = vld [vmem:[%s1 + $0x48] sm:$0xff]
      %v200 = vld [vmem:[%s1 + $0x50] sm:$0xff]
      %v201 = vld [vmem:[%s1 + $0x58] sm:$0xff]
      %v202 = vld [vmem:[%s1 + $0x60] sm:$0xff]
      %v203 = vld [vmem:[%s1 + $0x68] sm:$0xff]
      %v204 = vld [vmem:[%s1 + $0x70] sm:$0xff]
      %v205 = vld [vmem:[%s1 + $0x78] sm:$0xff]
      %v210 = vunpack.c.l.b16 %v186
      %v211 = vunpack.c.l.b16 %v187
      %v212 = vunpack.c.l.b16 %v188
      %v213 = vunpack.c.l.b16 %v189
      %v214 = vpack.c.b16 %v211, %v210
      %v215 = vpack.c.b16 %v213, %v212
      %v234 = vunpack.c.l.b16 %v190
      %v235 = vunpack.c.h.b16 %v190
      %v236 = vunpack.c.l.b16 %v191
      %v237 = vunpack.c.h.b16 %v191
      %v238 = vunpack.c.l.b16 %v192
      %v239 = vunpack.c.h.b16 %v192
      %v240 = vunpack.c.l.b16 %v193
      %v241 = vunpack.c.h.b16 %v193
      %v242 = vunpack.c.l.b16 %v194
      %v243 = vunpack.c.h.b16 %v194
      %v244 = vunpack.c.l.b16 %v195
      %v245 = vunpack.c.h.b16 %v195
      %v246 = vunpack.c.l.b16 %v196
      %v247 = vunpack.c.h.b16 %v196
      %v248 = vunpack.c.l.b16 %v197
      %v249 = vunpack.c.h.b16 %v197
      %v250 = vunpack.c.l.b16 %v198
      %v251 = vunpack.c.h.b16 %v198
      %v252 = vunpack.c.l.b16 %v199
      %v253 = vunpack.c.h.b16 %v199
      %v254 = vunpack.c.l.b16 %v200
      %v255 = vunpack.c.h.b16 %v200
      %v256 = vunpack.c.l.b16 %v201
      %v257 = vunpack.c.h.b16 %v201
      %v258 = vunpack.c.l.b16 %v202
      %v259 = vunpack.c.h.b16 %v202
      %v260 = vunpack.c.l.b16 %v203
      %v261 = vunpack.c.h.b16 %v203
      %v262 = vunpack.c.l.b16 %v204
      %v263 = vunpack.c.h.b16 %v204
      %v264 = vunpack.c.l.b16 %v205
      %v265 = vunpack.c.h.b16 %v205
      %v266 = vpack.c.b16 %v236, %v234
      %v267 = vpack.c.b16 %v237, %v235
      %v268 = vpack.c.b16 %v240, %v238
      %v269 = vpack.c.b16 %v241, %v239
      %v270 = vpack.c.b16 %v244, %v242
      %v271 = vpack.c.b16 %v245, %v243
      %v272 = vpack.c.b16 %v248, %v246
      %v273 = vpack.c.b16 %v249, %v247
      %v274 = vpack.c.b16 %v252, %v250
      %v275 = vpack.c.b16 %v253, %v251
      %v276 = vpack.c.b16 %v256, %v254
      %v277 = vpack.c.b16 %v257, %v255
      %v278 = vpack.c.b16 %v260, %v258
      %v279 = vpack.c.b16 %v261, %v259
      %v280 = vpack.c.b16 %v264, %v262
      %v281 = vpack.c.b16 %v265, %v263
      %298 = vmatprep.subr.bf16.mxu0 %v267
      %299 = vmatpush1.bf16.msra.mxu0 %v266
      %300 = vmatprep.subr.bf16.mxu0 %v269
      %301 = vmatpush1.bf16.msra.mxu0 %v268
      %302 = vmatprep.subr.bf16.mxu0 %v271
      %303 = vmatpush1.bf16.msra.mxu0 %v270
      %304 = vmatprep.subr.bf16.mxu0 %v273
      %305 = vmatpush1.bf16.msra.mxu0 %v272
      %306 = vmatprep.subr.bf16.mxu0 %v275
      %307 = vmatpush1.bf16.msra.mxu0 %v274
      %308 = vmatprep.subr.bf16.mxu0 %v277
      %309 = vmatpush1.bf16.msra.mxu0 %v276
      %310 = vmatprep.subr.bf16.mxu0 %v279
      %311 = vmatpush1.bf16.msra.mxu0 %v278
      %312 = vmatprep.subr.bf16.mxu0 %v281
      %313 = vmatpush1.bf16.msra.mxu0 %v280
      %314 = vmatprep.subr.bf16.mxu0 0
      %315 = vmatpush1.bf16.msra.mxu0 0
      %316 = vmatprep.subr.bf16.mxu0 0
      %317 = vmatpush1.bf16.msra.mxu0 0
      %318 = vmatprep.subr.bf16.mxu0 0
      %319 = vmatpush1.bf16.msra.mxu0 0
      %320 = vmatprep.subr.bf16.mxu0 0
      %321 = vmatpush1.bf16.msra.mxu0 0
      %322 = vmatprep.subr.bf16.mxu0 0
      %323 = vmatpush1.bf16.msra.mxu0 0
      %324 = vmatprep.subr.bf16.mxu0 0
      %325 = vmatpush1.bf16.msra.mxu0 0
      %326 = vmatprep.subr.bf16.mxu0 0
      %327 = vmatpush1.bf16.msra.mxu0 0
      %328 = vmatprep.subr.bf16.mxu0 0
      %329 = vmatpush1.bf16.msra.mxu0 0
      %330 = vmatprep.mubr.bf16.mxu0 0
      %331 = vmatmul.mubr.bf16.gmra.mrb[0].mxu0 %v214
      %v332 = vpop.f32.mrb[0].mxu0
      %v333 = vadd.f32 0.0, %v332
      %v334 = vpop.f32.mrb[0].mxu0
      %v335 = vadd.f32 0.0, %v334
      %v336 = vpop.f32.mrb[0].mxu0
      %v337 = vadd.f32 0.0, %v336
      %v338 = vpop.f32.mrb[0].mxu0
      %v339 = vadd.f32 0.0, %v338
      %340 = vmatprep.mubr.bf16.mxu0 0
      %341 = vmatmul.mubr.bf16.gmra.mrb[0].mxu0 %v215
      %v342 = vpop.f32.mrb[0].mxu0
      %v343 = vadd.f32 0.0, %v342
      %v344 = vpop.f32.mrb[0].mxu0
      %v345 = vadd.f32 0.0, %v344
      %v346 = vpop.f32.mrb[0].mxu0
      %v347 = vadd.f32 0.0, %v346
      %v348 = vpop.f32.mrb[0].mxu0
      %v349 = vadd.f32 0.0, %v348
      %350 = vdwg.mxu0
      %v351 = vpack.c.bf16 %v337, %v333
      %v352 = vpack.c.bf16 %v339, %v335
      %v353 = vpack.c.bf16 %v347, %v343
      %v354 = vpack.c.bf16 %v349, %v345
      %v359 = vunpack.c.l.b16 %v351
      %v360 = vunpack.c.l.b16 %v352
      %v361 = vunpack.c.h.b16 %v351
      %v362 = vunpack.c.h.b16 %v352
      %v363 = vunpack.c.l.b16 %v353
      %v364 = vunpack.c.l.b16 %v354
      %v365 = vunpack.c.h.b16 %v353
      %v366 = vunpack.c.h.b16 %v354
      %v367 = vpack.c.b16 %v360, %v359
      %v368 = vpack.c.b16 %v362, %v361
      %v369 = vpack.c.b16 %v364, %v363
      %v370 = vpack.c.b16 %v366, %v365
      %375 = vst [vmem:[%s183] sm:$0xff] %v367
      %376 = vst [vmem:[%s183 + $0x8] sm:$0xff] %v368
      %377 = vst [vmem:[%s183 + $0x10] sm:$0xff] %v369
      %378 = vst [vmem:[%s183 + $0x18] sm:$0xff] %v370
      %s379 = smul.u32 4, %s18
      %p380 = scmp.lt.s32.totalorder %s17, 1
      %s381 = scalar_select %p380, %s17, 1
      %p382 = scmp.lt.s32.totalorder %s379, 3
      %s383 = scalar_select %p382, %s379, 3
      %s384 = smul.addr %s383, 2
      %s385 = smul.addr %s381, 8
      %s386 = sadd.s32 %s384, %s385
      %s387 = smul.addr %s386, 4
      %s388 = scalar_lea.vmem %s2, %s387
      // Predicated region
      $region29: #{dgcnn_encoder.23} parent=27 // pred_check
        %p389 = pneg %p94
      $region30: #{dgcnn_encoder.23} parent=27 // pred_check_branch
        %391 = sbr.rel (%p389) target = $region32
      $region31: #{dgcnn_encoder.23} parent=27 // pred_region
        %s392 = smul.u32 4, %s18
      $region32: #{dgcnn_encoder.23} parent=27 // pred_fallthru
        _
    $region28: #{dgcnn_encoder.23} parent=5 // pred_fallthru
      _
    %p393 = scmp.le.s32.totalorder 2, %s8
    // Predicated region
    $region33: #{dgcnn_encoder.23} parent=5 // pred_check
      %p394 = pneg %p393
    $region34: #{dgcnn_encoder.23} parent=5 // pred_check_branch
      %396 = sbr.rel (%p394) target = $region36
    $region35: #{dgcnn_encoder.23} parent=5 // pred_region
      %s397 = ssub.s32 %s8, 2
      // Predicated region
      $region37: #{dgcnn_encoder.23} parent=35 // pred_check
        %p398 = pneg %p100
      $region38: #{dgcnn_encoder.23} parent=35 // pred_check_branch
        %400 = sbr.rel (%p398) target = $region40
      $region39: #{dgcnn_encoder.23} parent=35 // pred_region
        %s401 = smul.u32 4, %s20
        %p402 = scmp.lt.s32.totalorder %s19, 1
        %s403 = scalar_select %p402, %s19, 1
        %p404 = scmp.lt.s32.totalorder %s401, 3
        %s405 = scalar_select %p404, %s401, 3
        %s406 = smul.addr %s405, 2
        %s407 = smul.addr %s403, 8
        %s408 = sadd.s32 %s406, %s407
        %s409 = smul.addr %s408, 4
        %s410 = scalar_lea.vmem %s2, %s409
      $region40: #{dgcnn_encoder.23} parent=35 // pred_fallthru
        _
    $region36: #{dgcnn_encoder.23} parent=5 // pred_fallthru
      _
  $region6: #{dgcnn_encoder.23} parent=0 // loop_footer
    %s12 = sadd.s32 1, %s8
  $region7: #{dgcnn_encoder.23} parent=0 // loop_footer_branch
    %7 = sbr.rel target = $region3
  $region8: #{dgcnn_encoder.23} parent=0 // loop_exit
    _

// kernel: dgcnn_encoder.24
$region0: #{dgcnn_encoder.24}
  #allocation0 [shape = 'u32[]', space=smem, size = 0x4, offset = 0x4, fixed_abs, tag = 'smem constant byte address 0x4 - core index']
  #allocation1 [shape = 'u32[144,128]{1,0:T(1,128)}', space=vmem, size = 0x12000, scoped, tag = 'internal scratch']
  %s0 = inlined_call_operand.vmem [shape: bf16[2,32,256], index: 0, kind: input, shape index: {}]
  %s1 = inlined_call_operand.vmem [shape: bf16[2,32,128], index: 1, kind: input, shape index: {}]
  %s2 = inlined_call_operand.vmem [shape: bf16[128,256], index: 2, kind: input, shape index: {}]
  %s3 = inlined_call_operand.vmem [shape: f32[1,256], index: 3, kind: input, shape index: {}]
  %s4 = inlined_call_operand.vmem [shape: bf16[2,32,256], index: 4, kind: output, shape index: {}]
  %s5 = sld [smem:[#allocation0]]
  $region49: #{dgcnn_encoder.24} parent=0
    _
  %s7 = ssub.s32 1, %s5
  %s8 = scalar_select 0, %s7, %s5
  loop: start=0, step=1, limit=4
  $region2: #{dgcnn_encoder.24} parent=0 // loop_pre_header
    _
  $region3: #{dgcnn_encoder.24} parent=0 // loop_header
    %s10 = sphi 0, %s14
    %p11 = scmp.ge.s32.totalorder %s10, 4
    %s17 = sphi 0, %s29
    %s18 = sphi 0, %s25
    %s19 = sphi 0, %s17
    %s20 = sphi 0, %s18
    %s21 = sphi 0, %s19
    %s22 = sphi 0, %s20
    %s34 = sphi 0, %s36
    %s37 = sphi 0, %s34
    %s38 = sphi 0, %s37
    %s54 = sphi 0, %s38
    %s62 = sphi 0, %s64
    %s65 = sphi 0, %s62
    %s66 = sphi 0, %s65
    %s82 = sphi 0, %s66
    %s86 = sphi 0, %s86
    %s88 = sphi 0, %s86
    %s89 = sphi 0, %s88
    %s103 = sphi 0, %s89
    %s107 = sphi 0, %s107
    %s109 = sphi 0, %s107
    %s110 = sphi 0, %s109
    %s124 = sphi 0, %s110
    %s132 = sphi 0, %s134
    %s135 = sphi 0, %s132
    %s136 = sphi 0, %s135
    %s152 = sphi 0, %s136
  $region4: #{dgcnn_encoder.24} parent=0 // loop_header_branch
    %13 = sbr.rel (%p11) target = $region8
  $region5: #{dgcnn_encoder.24} parent=0 // loop_body
    %s15 = ssub.s32 %s10, 1
    %s16 = ssub.s32 %s10, 2
    %s23 = sadd.s32 1, %s18
    %p24 = scmp.ge.s32.totalorder %s23, 1
    %s25 = scalar_select %p24, 0, %s23
    %s26 = sadd.s32 1, %s17
    %s27 = scalar_select %p24, %s26, %s17
    %p28 = scmp.ge.s32.totalorder %s27, 2
    %s29 = scalar_select %p28, 0, %s27
    %s30 = ssub.s32 %s17, %s29
    %s31 = ssub.s32 %s18, %s25
    %s32 = sor.u32 %s30, %s31
    %p33 = scmp.eq.s32.totalorder %s32, 0
    %s35 = sadd.s32 %s34, 1
    %s36 = scalar_select %p33, %s34, %s35
    %p39 = pneg %p33
    %p40 = scmp.eq.s32.totalorder %s10, 1
    %p41 = por %p39, %p40
    %p42 = scmp.ne.s32.totalorder %s34, %s37
    %p43 = scmp.eq.s32.totalorder %s10, 0
    %p44 = por %p42, %p43
    %p45 = scmp.ne.s32.totalorder %s34, %s37
    %p46 = scmp.eq.s32.totalorder %s15, 1
    %p47 = por %p45, %p46
    %p48 = scmp.ne.s32.totalorder %s37, %s38
    %p49 = scmp.eq.s32.totalorder %s15, 0
    %p50 = por %p48, %p49
    %p51 = scmp.ne.s32.totalorder %s37, %s38
    %p52 = scmp.eq.s32.totalorder %s16, 1
    %p53 = por %p51, %p52
    %p55 = scmp.ne.s32.totalorder %s38, %s54
    %p56 = scmp.eq.s32.totalorder %s16, 0
    %p57 = por %p55, %p56
    %s58 = ssub.s32 %s17, %s29
    %s59 = ssub.s32 %s18, %s25
    %s60 = sor.u32 %s58, %s59
    %p61 = scmp.eq.s32.totalorder %s60, 0
    %s63 = sadd.s32 %s62, 1
    %s64 = scalar_select %p61, %s62, %s63
    %p67 = pneg %p61
    %p68 = scmp.eq.s32.totalorder %s10, 1
    %p69 = por %p67, %p68
    %p70 = scmp.ne.s32.totalorder %s62, %s65
    %p71 = scmp.eq.s32.totalorder %s10, 0
    %p72 = por %p70, %p71
    %p73 = scmp.ne.s32.totalorder %s62, %s65
    %p74 = scmp.eq.s32.totalorder %s15, 1
    %p75 = por %p73, %p74
    %p76 = scmp.ne.s32.totalorder %s65, %s66
    %p77 = scmp.eq.s32.totalorder %s15, 0
    %p78 = por %p76, %p77
    %p79 = scmp.ne.s32.totalorder %s65, %s66
    %p80 = scmp.eq.s32.totalorder %s16, 1
    %p81 = por %p79, %p80
    %p83 = scmp.ne.s32.totalorder %s66, %s82
    %p84 = scmp.eq.s32.totalorder %s16, 0
    %p85 = por %p83, %p84
    %s87 = sadd.s32 %s86, 1
    %p90 = scmp.eq.s32.totalorder %s10, 1
    %p91 = scmp.ne.s32.totalorder %s86, %s88
    %p92 = scmp.eq.s32.totalorder %s10, 0
    %p93 = por %p91, %p92
    %p94 = scmp.ne.s32.totalorder %s86, %s88
    %p95 = scmp.eq.s32.totalorder %s15, 1
    %p96 = por %p94, %p95
    %p97 = scmp.ne.s32.totalorder %s88, %s89
    %p98 = scmp.eq.s32.totalorder %s15, 0
    %p99 = por %p97, %p98
    %p100 = scmp.ne.s32.totalorder %s88, %s89
    %p101 = scmp.eq.s32.totalorder %s16, 1
    %p102 = por %p100, %p101
    %p104 = scmp.ne.s32.totalorder %s89, %s103
    %p105 = scmp.eq.s32.totalorder %s16, 0
    %p106 = por %p104, %p105
    %s108 = sadd.s32 %s107, 1
    %p111 = scmp.eq.s32.totalorder %s10, 1
    %p112 = scmp.ne.s32.totalorder %s107, %s109
    %p113 = scmp.eq.s32.totalorder %s10, 0
    %p114 = por %p112, %p113
    %p115 = scmp.ne.s32.totalorder %s107, %s109
    %p116 = scmp.eq.s32.totalorder %s15, 1
    %p117 = por %p115, %p116
    %p118 = scmp.ne.s32.totalorder %s109, %s110
    %p119 = scmp.eq.s32.totalorder %s15, 0
    %p120 = por %p118, %p119
    %p121 = scmp.ne.s32.totalorder %s109, %s110
    %p122 = scmp.eq.s32.totalorder %s16, 1
    %p123 = por %p121, %p122
    %p125 = scmp.ne.s32.totalorder %s110, %s124
    %p126 = scmp.eq.s32.totalorder %s16, 0
    %p127 = por %p125, %p126
    %s128 = ssub.s32 %s17, %s29
    %s129 = ssub.s32 %s18, %s25
    %s130 = sor.u32 %s128, %s129
    %p131 = scmp.eq.s32.totalorder %s130, 0
    %s133 = sadd.s32 %s132, 1
    %s134 = scalar_select %p131, %s132, %s133
    %p137 = pneg %p131
    %p138 = scmp.eq.s32.totalorder %s10, 1
    %p139 = por %p137, %p138
    %p140 = scmp.ne.s32.totalorder %s132, %s135
    %p141 = scmp.eq.s32.totalorder %s10, 0
    %p142 = por %p140, %p141
    %p143 = scmp.ne.s32.totalorder %s132, %s135
    %p144 = scmp.eq.s32.totalorder %s15, 1
    %p145 = por %p143, %p144
    %p146 = scmp.ne.s32.totalorder %s135, %s136
    %p147 = scmp.eq.s32.totalorder %s15, 0
    %p148 = por %p146, %p147
    %p149 = scmp.ne.s32.totalorder %s135, %s136
    %p150 = scmp.eq.s32.totalorder %s16, 1
    %p151 = por %p149, %p150
    %p153 = scmp.ne.s32.totalorder %s136, %s152
    %p154 = scmp.eq.s32.totalorder %s16, 0
    %p155 = por %p153, %p154
    %p156 = scmp.le.s32.totalorder 1, %s10
    %p157 = scmp.lt.s32.totalorder %s10, 3
    %p158 = pnand %p156, %p157
    %p159 = pneg %p158
    // Predicated region
    $region9: #{dgcnn_encoder.24} parent=5 // pred_check
      _
    $region10: #{dgcnn_encoder.24} parent=5 // pred_check_branch
      %161 = sbr.rel (%p158) target = $region12
    $region11: #{dgcnn_encoder.24} parent=5 // pred_region
      %s162 = ssub.s32 %s10, 1
      // Predicated region
      $region13: #{dgcnn_encoder.24} parent=11 // pred_check
        %p163 = pneg %p99
      $region14: #{dgcnn_encoder.24} parent=11 // pred_check_branch
        %165 = sbr.rel (%p163) target = $region16
      $region15: #{dgcnn_encoder.24} parent=11 // pred_region
        _
      $region16: #{dgcnn_encoder.24} parent=11 // pred_fallthru
        _
      // Predicated region
      $region17: #{dgcnn_encoder.24} parent=11 // pred_check
        %p166 = pneg %p120
      $region18: #{dgcnn_encoder.24} parent=11 // pred_check_branch
        %168 = sbr.rel (%p166) target = $region20
      $region19: #{dgcnn_encoder.24} parent=11 // pred_region
        _
      $region20: #{dgcnn_encoder.24} parent=11 // pred_fallthru
        _
    $region12: #{dgcnn_encoder.24} parent=5 // pred_fallthru
      _
    %p169 = scmp.lt.s32.totalorder %s10, 2
    // Predicated region
    $region21: #{dgcnn_encoder.24} parent=5 // pred_check
      %p170 = pneg %p169
    $region22: #{dgcnn_encoder.24} parent=5 // pred_check_branch
      %172 = sbr.rel (%p170) target = $region24
    $region23: #{dgcnn_encoder.24} parent=5 // pred_region
      // Predicated region
      $region25: #{dgcnn_encoder.24} parent=23 // pred_check
        %p173 = pneg %p44
      $region26: #{dgcnn_encoder.24} parent=23 // pred_check_branch
        %175 = sbr.rel (%p173) target = $region28
      $region27: #{dgcnn_encoder.24} parent=23 // pred_region
        %s176 = smul.u32 4, %s18
        %p177 = scmp.lt.s32.totalorder %s17, 1
        %s178 = scalar_select %p177, %s17, 1
        %p179 = scmp.lt.s32.totalorder %s176, 3
        %s180 = scalar_select %p179, %s176, 3
        %s181 = smul.addr %s180, 2
        %s182 = smul.addr %s178, 8
        %s183 = sadd.s32 %s181, %s182
        %s184 = smul.addr %s183, 4
        %s185 = scalar_lea.vmem %s0, %s184
        %s186 = smul.u32 4, %s18
      $region28: #{dgcnn_encoder.24} parent=23 // pred_fallthru
        _
      // Predicated region
      $region29: #{dgcnn_encoder.24} parent=23 // pred_check
        %p187 = pneg %p72
      $region30: #{dgcnn_encoder.24} parent=23 // pred_check_branch
        %189 = sbr.rel (%p187) target = $region32
      $region31: #{dgcnn_encoder.24} parent=23 // pred_region
        %s190 = smul.u32 4, %s18
        %p191 = scmp.lt.s32.totalorder %s17, 1
        %s192 = scalar_select %p191, %s17, 1
        %p193 = scmp.lt.s32.totalorder %s190, 3
        %s194 = scalar_select %p193, %s190, 3
        %s195 = smul.addr %s192, 4
        %s196 = sadd.s32 %s194, %s195
        %s197 = smul.addr %s196, 4
        %s198 = scalar_lea.vmem %s1, %s197
        %s199 = smul.u32 4, %s18
      $region32: #{dgcnn_encoder.24} parent=23 // pred_fallthru
        _
    $region24: #{dgcnn_encoder.24} parent=5 // pred_fallthru
      _
    %p200 = scmp.le.s32.totalorder 1, %s10
    %p201 = scmp.lt.s32.totalorder %s10, 3
    %p202 = pnand %p200, %p201
    %p203 = pneg %p202
    // Predicated region
    $region33: #{dgcnn_encoder.24} parent=5 // pred_check
      _
    $region34: #{dgcnn_encoder.24} parent=5 // pred_check_branch
      %205 = sbr.rel (%p202) target = $region36
    $region35: #{dgcnn_encoder.24} parent=5 // pred_region
      %s206 = ssub.s32 %s10, 1
      %s207 = smul.u32 4, %s20
      %p208 = scmp.lt.s32.totalorder %s19, 1
      %s209 = scalar_select %p208, %s19, 1
      %p210 = scmp.lt.s32.totalorder %s207, 3
      %s211 = scalar_select %p210, %s207, 3
      %s212 = smul.addr %s211, 2
      %s213 = smul.addr %s209, 8
      %s214 = sadd.s32 %s212, %s213
      %s215 = smul.addr %s214, 4
      %s216 = scalar_lea.vmem %s0, %s215
      %p217 = pneg %p50
      %p218 = pneg %p47
      %s219 = smul.u32 4, %s20
      %p220 = scmp.lt.s32.totalorder %s19, 1
      %s221 = scalar_select %p220, %s19, 1
      %p222 = scmp.lt.s32.totalorder %s219, 3
      %s223 = scalar_select %p222, %s219, 3
      %s224 = smul.addr %s221, 4
      %s225 = sadd.s32 %s223, %s224
      %s226 = smul.addr %s225, 4
      %s227 = scalar_lea.vmem %s1, %s226
      %p228 = pneg %p78
      %p229 = pneg %p75
      %p230 = pneg %p99
      %p231 = pneg %p96
      %p232 = pneg %p120
      %p233 = pneg %p117
      %p234 = pneg %p148
      %p235 = pneg %p145
      %s236 = smul.u32 4, %s20
      %p237 = scmp.lt.s32.totalorder %s19, 1
      %s238 = scalar_select %p237, %s19, 1
      %p239 = scmp.lt.s32.totalorder %s236, 3
      %s240 = scalar_select %p239, %s236, 3
      %s241 = smul.addr %s240, 2
      %s242 = smul.addr %s238, 8
      %s243 = sadd.s32 %s241, %s242
      %s244 = smul.addr %s243, 4
      %s245 = scalar_lea.vmem %s4, %s244
      %s246 = smul.u32 4, %s20
      %p247 = scmp.lt.s32.totalorder %s19, 1
      %s248 = scalar_select %p247, %s19, 1
      %p249 = scmp.lt.s32.totalorder %s246, 3
      %s250 = scalar_select %p249, %s246, 3
      %s251 = smul.addr %s250, 2
      %s252 = smul.addr %s248, 8
      %s253 = sadd.s32 %s251, %s252
      %s254 = smul.addr %s253, 4
      %s255 = scalar_lea.vmem %s0, %s254
      %s256 = smul.u32 4, %s20
      %s257 = smul.u32 4, %s20
      %p258 = scmp.lt.s32.totalorder %s19, 1
      %s259 = scalar_select %p258, %s19, 1
      %p260 = scmp.lt.s32.totalorder %s257, 3
      %s261 = scalar_select %p260, %s257, 3
      %s262 = smul.addr %s259, 4
      %s263 = sadd.s32 %s261, %s262
      %s264 = smul.addr %s263, 4
      %s265 = scalar_lea.vmem %s1, %s264
      %s266 = smul.u32 4, %s20
      %s267 = smul.u32 4, %s20
      %p268 = scmp.lt.s32.totalorder %s19, 1
      %s269 = scalar_select %p268, %s19, 1
      %p270 = scmp.lt.s32.totalorder %s267, 3
      %s271 = scalar_select %p270, %s267, 3
      %s272 = smul.addr %s271, 2
      %s273 = smul.addr %s269, 8
      %s274 = sadd.s32 %s272, %s273
      %s275 = smul.addr %s274, 4
      %s276 = scalar_lea.vmem %s4, %s275
      %s277 = smul.u32 4, %s20
      %v279 = vld [vmem:[%s265] sm:$0xf]
      %v280 = vld [vmem:[%s265 + $0x4] sm:$0xf]
      %v281 = vld [vmem:[%s265 + $0x8] sm:$0xf]
      %v282 = vld [vmem:[%s265 + $0xc] sm:$0xf]
      %v283 = vld [vmem:[%s2] sm:$0xff]
      %v284 = vld [vmem:[%s2 + $0x8] sm:$0xff]
      %v285 = vld [vmem:[%s2 + $0x10] sm:$0xff]
      %v286 = vld [vmem:[%s2 + $0x18] sm:$0xff]
      %v287 = vld [vmem:[%s2 + $0x20] sm:$0xff]
      %v288 = vld [vmem:[%s2 + $0x28] sm:$0xff]
      %v289 = vld [vmem:[%s2 + $0x30] sm:$0xff]
      %v290 = vld [vmem:[%s2 + $0x38] sm:$0xff]
      %v291 = vld [vmem:[%s2 + $0x40] sm:$0xff]
      %v292 = vld [vmem:[%s2 + $0x48] sm:$0xff]
      %v293 = vld [vmem:[%s2 + $0x50] sm:$0xff]
      %v294 = vld [vmem:[%s2 + $0x58] sm:$0xff]
      %v295 = vld [vmem:[%s2 + $0x60] sm:$0xff]
      %v296 = vld [vmem:[%s2 + $0x68] sm:$0xff]
      %v297 = vld [vmem:[%s2 + $0x70] sm:$0xff]
      %v298 = vld [vmem:[%s2 + $0x78] sm:$0xff]
      %v303 = vunpack.c.l.b16 %v279
      %v304 = vunpack.c.l.b16 %v280
      %v305 = vunpack.c.l.b16 %v281
      %v306 = vunpack.c.l.b16 %v282
      %v307 = vpack.c.b16 %v304, %v303
      %v308 = vpack.c.b16 %v306, %v305
      %v327 = vunpack.c.l.b16 %v283
      %v328 = vunpack.c.h.b16 %v283
      %v329 = vunpack.c.l.b16 %v284
      %v330 = vunpack.c.h.b16 %v284
      %v331 = vunpack.c.l.b16 %v285
      %v332 = vunpack.c.h.b16 %v285
      %v333 = vunpack.c.l.b16 %v286
      %v334 = vunpack.c.h.b16 %v286
      %v335 = vunpack.c.l.b16 %v287
      %v336 = vunpack.c.h.b16 %v287
      %v337 = vunpack.c.l.b16 %v288
      %v338 = vunpack.c.h.b16 %v288
      %v339 = vunpack.c.l.b16 %v289
      %v340 = vunpack.c.h.b16 %v289
      %v341 = vunpack.c.l.b16 %v290
      %v342 = vunpack.c.h.b16 %v290
      %v343 = vunpack.c.l.b16 %v291
      %v344 = vunpack.c.h.b16 %v291
      %v345 = vunpack.c.l.b16 %v292
      %v346 = vunpack.c.h.b16 %v292
      %v347 = vunpack.c.l.b16 %v293
      %v348 = vunpack.c.h.b16 %v293
      %v349 = vunpack.c.l.b16 %v294
      %v350 = vunpack.c.h.b16 %v294
      %v351 = vunpack.c.l.b16 %v295
      %v352 = vunpack.c.h.b16 %v295
      %v353 = vunpack.c.l.b16 %v296
      %v354 = vunpack.c.h.b16 %v296
      %v355 = vunpack.c.l.b16 %v297
      %v356 = vunpack.c.h.b16 %v297
      %v357 = vunpack.c.l.b16 %v298
      %v358 = vunpack.c.h.b16 %v298
      %v359 = vpack.c.b16 %v329, %v327
      %v360 = vpack.c.b16 %v330, %v328
      %v361 = vpack.c.b16 %v333, %v331
      %v362 = vpack.c.b16 %v334, %v332
      %v363 = vpack.c.b16 %v337, %v335
      %v364 = vpack.c.b16 %v338, %v336
      %v365 = vpack.c.b16 %v341, %v339
      %v366 = vpack.c.b16 %v342, %v340
      %v367 = vpack.c.b16 %v345, %v343
      %v368 = vpack.c.b16 %v346, %v344
      %v369 = vpack.c.b16 %v349, %v347
      %v370 = vpack.c.b16 %v350, %v348
      %v371 = vpack.c.b16 %v353, %v351
      %v372 = vpack.c.b16 %v354, %v352
      %v373 = vpack.c.b16 %v357, %v355
      %v374 = vpack.c.b16 %v358, %v356
      %391 = vmatprep.subr.bf16.mxu0 %v360
      %392 = vmatpush1.bf16.msra.mxu0 %v359
      %393 = vmatprep.subr.bf16.mxu0 %v362
      %394 = vmatpush1.bf16.msra.mxu0 %v361
      %395 = vmatprep.subr.bf16.mxu0 %v364
      %396 = vmatpush1.bf16.msra.mxu0 %v363
      %397 = vmatprep.subr.bf16.mxu0 %v366
      %398 = vmatpush1.bf16.msra.mxu0 %v365
      %399 = vmatprep.subr.bf16.mxu0 %v368
      %400 = vmatpush1.bf16.msra.mxu0 %v367
      %401 = vmatprep.subr.bf16.mxu0 %v370
      %402 = vmatpush1.bf16.msra.mxu0 %v369
      %403 = vmatprep.subr.bf16.mxu0 %v372
      %404 = vmatpush1.bf16.msra.mxu0 %v371
      %405 = vmatprep.subr.bf16.mxu0 %v374
      %406 = vmatpush1.bf16.msra.mxu0 %v373
      %407 = vmatprep.subr.bf16.mxu0 0
      %408 = vmatpush1.bf16.msra.mxu0 0
      %409 = vmatprep.subr.bf16.mxu0 0
      %410 = vmatpush1.bf16.msra.mxu0 0
      %411 = vmatprep.subr.bf16.mxu0 0
      %412 = vmatpush1.bf16.msra.mxu0 0
      %413 = vmatprep.subr.bf16.mxu0 0
      %414 = vmatpush1.bf16.msra.mxu0 0
      %415 = vmatprep.subr.bf16.mxu0 0
      %416 = vmatpush1.bf16.msra.mxu0 0
      %417 = vmatprep.subr.bf16.mxu0 0
      %418 = vmatpush1.bf16.msra.mxu0 0
      %419 = vmatprep.subr.bf16.mxu0 0
      %420 = vmatpush1.bf16.msra.mxu0 0
      %421 = vmatprep.subr.bf16.mxu0 0
      %422 = vmatpush1.bf16.msra.mxu0 0
      %423 = vmatprep.mubr.bf16.mxu0 0
      %424 = vmatmul.mubr.bf16.gmra.mrb[0].mxu0 %v307
      %v425 = vpop.f32.mrb[0].mxu0
      %v426 = vadd.f32 0.0, %v425
      %v427 = vpop.f32.mrb[0].mxu0
      %v428 = vadd.f32 0.0, %v427
      %v429 = vpop.f32.mrb[0].mxu0
      %v430 = vadd.f32 0.0, %v429
      %v431 = vpop.f32.mrb[0].mxu0
      %v432 = vadd.f32 0.0, %v431
      %433 = vmatprep.mubr.bf16.mxu0 0
      %434 = vmatmul.mubr.bf16.gmra.mrb[0].mxu0 %v308
      %v435 = vpop.f32.mrb[0].mxu0
      %v436 = vadd.f32 0.0, %v435
      %v437 = vpop.f32.mrb[0].mxu0
      %v438 = vadd.f32 0.0, %v437
      %v439 = vpop.f32.mrb[0].mxu0
      %v440 = vadd.f32 0.0, %v439
      %v441 = vpop.f32.mrb[0].mxu0
      %v442 = vadd.f32 0.0, %v441
      %443 = vdwg.mxu0
      %v444 = vld [vmem:[%s255] sm:$0xff]
      %v445 = vld [vmem:[%s255 + $0x8] sm:$0xff]
      %v446 = vld [vmem:[%s255 + $0x10] sm:$0xff]
      %v447 = vld [vmem:[%s255 + $0x18] sm:$0xff]
      %v448 = vunpack.c.l.bf16 %v444
      %v449 = vunpack.c.h.bf16 %v444
      %v450 = vunpack.c.l.bf16 %v445
      %v451 = vunpack.c.h.bf16 %v445
      %v452 = vunpack.c.l.bf16 %v446
      %v453 = vunpack.c.h.bf16 %v446
      %v454 = vunpack.c.l.bf16 %v447
      %v455 = vunpack.c.h.bf16 %v447
      %v456 = vadd.f32 %v448, %v426
      %v457 = vadd.f32 %v449, %v428
      %v458 = vadd.f32 %v450, %v430
      %v459 = vadd.f32 %v451, %v432
      %v460 = vadd.f32 %v452, %v436
      %v461 = vadd.f32 %v453, %v438
      %v462 = vadd.f32 %v454, %v440
      %v463 = vadd.f32 %v455, %v442
      %v464 = vld [vmem:[%s3] sm:$0x3]
      %v466 = vlaneseq
      %v467 = vshrl.u32 %v466, 7
      %v468 = vsub.s32 0, %v467
      %v469 = vrot.slane %v464, %v468
      %v470 = vlaneseq
      %v471 = vshrl.u32 %v470, 7
      %v472 = vsub.s32 1, %v471
      %v473 = vrot.slane %v464, %v472
      %v476 = vadd.f32 %v456, %v469
      %v477 = vadd.f32 %v457, %v473
      %v478 = vadd.f32 %v458, %v469
      %v479 = vadd.f32 %v459, %v473
      %v480 = vadd.f32 %v460, %v469
      %v481 = vadd.f32 %v461, %v473
      %v482 = vadd.f32 %v462, %v469
      %v483 = vadd.f32 %v463, %v473
      %v484 = vmul.f32 %v476, 0.2
      %v485 = vmul.f32 %v477, 0.2
      %v486 = vmul.f32 %v478, 0.2
      %v487 = vmul.f32 %v479, 0.2
      %v488 = vmul.f32 %v480, 0.2
      %v489 = vmul.f32 %v481, 0.2
      %v490 = vmul.f32 %v482, 0.2
      %v491 = vmul.f32 %v483, 0.2
      %v492 = vmax.f32 %v476, %v484
      %v493 = vmax.f32 %v477, %v485
      %v494 = vmax.f32 %v478, %v486
      %v495 = vmax.f32 %v479, %v487
      %v496 = vmax.f32 %v480, %v488
      %v497 = vmax.f32 %v481, %v489
      %v498 = vmax.f32 %v482, %v490
      %v499 = vmax.f32 %v483, %v491
      %v500 = vpack.c.bf16 %v494, %v492
      %v501 = vpack.c.bf16 %v495, %v493
      %v502 = vpack.c.bf16 %v498, %v496
      %v503 = vpack.c.bf16 %v499, %v497
      %v508 = vunpack.c.l.b16 %v500
      %v509 = vunpack.c.l.b16 %v501
      %v510 = vunpack.c.h.b16 %v500
      %v511 = vunpack.c.h.b16 %v501
      %v512 = vunpack.c.l.b16 %v502
      %v513 = vunpack.c.l.b16 %v503
      %v514 = vunpack.c.h.b16 %v502
      %v515 = vunpack.c.h.b16 %v503
      %v516 = vpack.c.b16 %v509, %v508
      %v517 = vpack.c.b16 %v511, %v510
      %v518 = vpack.c.b16 %v513, %v512
      %v519 = vpack.c.b16 %v515, %v514
      %524 = vst [vmem:[%s276] sm:$0xff] %v516
      %525 = vst [vmem:[%s276 + $0x8] sm:$0xff] %v517
      %526 = vst [vmem:[%s276 + $0x10] sm:$0xff] %v518
      %527 = vst [vmem:[%s276 + $0x18] sm:$0xff] %v519
      %s528 = smul.u32 4, %s20
      %p529 = scmp.lt.s32.totalorder %s19, 1
      %s530 = scalar_select %p529, %s19, 1
      %p531 = scmp.lt.s32.totalorder %s528, 3
      %s532 = scalar_select %p531, %s528, 3
      %s533 = smul.addr %s532, 2
      %s534 = smul.addr %s530, 8
      %s535 = sadd.s32 %s533, %s534
      %s536 = smul.addr %s535, 4
      %s537 = scalar_lea.vmem %s4, %s536
      // Predicated region
      $region37: #{dgcnn_encoder.24} parent=35 // pred_check
        %p538 = pneg %p145
      $region38: #{dgcnn_encoder.24} parent=35 // pred_check_branch
        %540 = sbr.rel (%p538) target = $region40
      $region39: #{dgcnn_encoder.24} parent=35 // pred_region
        %s541 = smul.u32 4, %s20
      $region40: #{dgcnn_encoder.24} parent=35 // pred_fallthru
        _
    $region36: #{dgcnn_encoder.24} parent=5 // pred_fallthru
      _
    %p542 = scmp.le.s32.totalorder 2, %s10
    // Predicated region
    $region41: #{dgcnn_encoder.24} parent=5 // pred_check
      %p543 = pneg %p542
    $region42: #{dgcnn_encoder.24} parent=5 // pred_check_branch
      %545 = sbr.rel (%p543) target = $region44
    $region43: #{dgcnn_encoder.24} parent=5 // pred_region
      %s546 = ssub.s32 %s10, 2
      // Predicated region
      $region45: #{dgcnn_encoder.24} parent=43 // pred_check
        %p547 = pneg %p151
      $region46: #{dgcnn_encoder.24} parent=43 // pred_check_branch
        %549 = sbr.rel (%p547) target = $region48
      $region47: #{dgcnn_encoder.24} parent=43 // pred_region
        %s550 = smul.u32 4, %s22
        %p551 = scmp.lt.s32.totalorder %s21, 1
        %s552 = scalar_select %p551, %s21, 1
        %p553 = scmp.lt.s32.totalorder %s550, 3
        %s554 = scalar_select %p553, %s550, 3
        %s555 = smul.addr %s554, 2
        %s556 = smul.addr %s552, 8
        %s557 = sadd.s32 %s555, %s556
        %s558 = smul.addr %s557, 4
        %s559 = scalar_lea.vmem %s4, %s558
      $region48: #{dgcnn_encoder.24} parent=43 // pred_fallthru
        _
    $region44: #{dgcnn_encoder.24} parent=5 // pred_fallthru
      _
  $region6: #{dgcnn_encoder.24} parent=0 // loop_footer
    %s14 = sadd.s32 1, %s10
  $region7: #{dgcnn_encoder.24} parent=0 // loop_footer_branch
    %9 = sbr.rel target = $region3
  $region8: #{dgcnn_encoder.24} parent=0 // loop_exit
    _

// kernel: dgcnn_encoder.25
$region0: #{dgcnn_encoder.25}
  #allocation0 [shape = 'u32[]', space=smem, size = 0x4, offset = 0x4, fixed_abs, tag = 'smem constant byte address 0x4 - core index']
  #allocation1 [shape = 'u32[144,128]{1,0:T(1,128)}', space=vmem, size = 0x12000, scoped, tag = 'internal scratch']
  #allocation2 [shape = 'f32[1,512]{1,0:T(1,128)}', space=vmem, size = 0x800, scoped, tag = 'scratch operand']
  %s0 = inlined_call_operand.vmem [shape: bf16[2,32,64], index: 0, kind: input, shape index: {}]
  %s1 = inlined_call_operand.vmem [shape: bf16[2,32,64], index: 1, kind: input, shape index: {}]
  %s2 = inlined_call_operand.vmem [shape: bf16[2,32,128], index: 2, kind: input, shape index: {}]
  %s3 = inlined_call_operand.vmem [shape: bf16[2,32,256], index: 3, kind: input, shape index: {}]
  %s4 = inlined_call_operand.vmem [shape: bf16[512,512], index: 4, kind: input, shape index: {}]
  %s5 = inlined_call_operand.vmem [shape: f32[1,512], index: 5, kind: input, shape index: {}]
  %s6 = inlined_call_operand.vmem [shape: bf16[512,32], index: 6, kind: input, shape index: {}]
  %s7 = inlined_call_operand.hbm [shape: f32[2,1,32], index: 7, kind: output, shape index: {}]
  %s8 = sld [smem:[#allocation0]]
  $region69: #{dgcnn_encoder.25} parent=0
    _
  %s10 = ssub.s32 1, %s8
  %s11 = scalar_select 0, %s10, %s8
  $region1: #{dgcnn_encoder.25} parent=0
    #allocation3 [shape = 'u8[1024]{0}', space=vmem, size = 0x400, scoped, tag = 'output window, operand 0']
    #allocation4 [shape = 's32[2]{0}', space=sflag, size = 0x8, scoped, tag = 'scoped memory for dgcnn_encoder.25']
    %12 = vsyncpa [#allocation4], 0
    %s13 = scalar_lea.sflag [#allocation4], 1
    %14 = vsyncpa %s13, 0
    loop: start=0, step=1, limit=4
    $region2: #{dgcnn_encoder.25} parent=1 // loop_pre_header
      _
    $region3: #{dgcnn_encoder.25} parent=1 // loop_header
      %s16 = sphi 0, %s20
      %p17 = scmp.ge.s32.totalorder %s16, 4
      %s23 = sphi 0, %s35
      %s24 = sphi 0, %s31
      %s25 = sphi 0, %s23
      %s26 = sphi 0, %s24
      %s27 = sphi 0, %s25
      %s28 = sphi 0, %s26
      %s40 = sphi 0, %s42
      %s43 = sphi 0, %s40
      %s44 = sphi 0, %s43
      %s60 = sphi 0, %s44
      %s68 = sphi 0, %s70
      %s71 = sphi 0, %s68
      %s72 = sphi 0, %s71
      %s88 = sphi 0, %s72
      %s96 = sphi 0, %s98
      %s99 = sphi 0, %s96
      %s100 = sphi 0, %s99
      %s116 = sphi 0, %s100
      %s124 = sphi 0, %s126
      %s127 = sphi 0, %s124
      %s128 = sphi 0, %s127
      %s144 = sphi 0, %s128
      %s148 = sphi 0, %s148
      %s150 = sphi 0, %s148
      %s151 = sphi 0, %s150
      %s165 = sphi 0, %s151
      %s169 = sphi 0, %s169
      %s171 = sphi 0, %s169
      %s172 = sphi 0, %s171
      %s186 = sphi 0, %s172
      %s190 = sphi 0, %s190
      %s192 = sphi 0, %s190
      %s193 = sphi 0, %s192
      %s207 = sphi 0, %s193
      %s213 = sphi 0, %s215
      %s216 = sphi 0, %s213
      %s217 = sphi 0, %s216
      %s233 = sphi 0, %s217
    $region4: #{dgcnn_encoder.25} parent=1 // loop_header_branch
      %19 = sbr.rel (%p17) target = $region8
    $region5: #{dgcnn_encoder.25} parent=1 // loop_body
      %s21 = ssub.s32 %s16, 1
      %s22 = ssub.s32 %s16, 2
      %s29 = sadd.s32 1, %s24
      %p30 = scmp.ge.s32.totalorder %s29, 1
      %s31 = scalar_select %p30, 0, %s29
      %s32 = sadd.s32 1, %s23
      %s33 = scalar_select %p30, %s32, %s23
      %p34 = scmp.ge.s32.totalorder %s33, 2
      %s35 = scalar_select %p34, 0, %s33
      %s36 = ssub.s32 %s23, %s35
      %s37 = ssub.s32 %s24, %s31
      %s38 = sor.u32 %s36, %s37
      %p39 = scmp.eq.s32.totalorder %s38, 0
      %s41 = sadd.s32 %s40, 1
      %s42 = scalar_select %p39, %s40, %s41
      %p45 = pneg %p39
      %p46 = scmp.eq.s32.totalorder %s16, 1
      %p47 = por %p45, %p46
      %p48 = scmp.ne.s32.totalorder %s40, %s43
      %p49 = scmp.eq.s32.totalorder %s16, 0
      %p50 = por %p48, %p49
      %p51 = scmp.ne.s32.totalorder %s40, %s43
      %p52 = scmp.eq.s32.totalorder %s21, 1
      %p53 = por %p51, %p52
      %p54 = scmp.ne.s32.totalorder %s43, %s44
      %p55 = scmp.eq.s32.totalorder %s21, 0
      %p56 = por %p54, %p55
      %p57 = scmp.ne.s32.totalorder %s43, %s44
      %p58 = scmp.eq.s32.totalorder %s22, 1
      %p59 = por %p57, %p58
      %p61 = scmp.ne.s32.totalorder %s44, %s60
      %p62 = scmp.eq.s32.totalorder %s22, 0
      %p63 = por %p61, %p62
      %s64 = ssub.s32 %s23, %s35
      %s65 = ssub.s32 %s24, %s31
      %s66 = sor.u32 %s64, %s65
      %p67 = scmp.eq.s32.totalorder %s66, 0
      %s69 = sadd.s32 %s68, 1
      %s70 = scalar_select %p67, %s68, %s69
      %p73 = pneg %p67
      %p74 = scmp.eq.s32.totalorder %s16, 1
      %p75 = por %p73, %p74
      %p76 = scmp.ne.s32.totalorder %s68, %s71
      %p77 = scmp.eq.s32.totalorder %s16, 0
      %p78 = por %p76, %p77
      %p79 = scmp.ne.s32.totalorder %s68, %s71
      %p80 = scmp.eq.s32.totalorder %s21, 1
      %p81 = por %p79, %p80
      %p82 = scmp.ne.s32.totalorder %s71, %s72
      %p83 = scmp.eq.s32.totalorder %s21, 0
      %p84 = por %p82, %p83
      %p85 = scmp.ne.s32.totalorder %s71, %s72
      %p86 = scmp.eq.s32.totalorder %s22, 1
      %p87 = por %p85, %p86
      %p89 = scmp.ne.s32.totalorder %s72, %s88
      %p90 = scmp.eq.s32.totalorder %s22, 0
      %p91 = por %p89, %p90
      %s92 = ssub.s32 %s23, %s35
      %s93 = ssub.s32 %s24, %s31
      %s94 = sor.u32 %s92, %s93
      %p95 = scmp.eq.s32.totalorder %s94, 0
      %s97 = sadd.s32 %s96, 1
      %s98 = scalar_select %p95, %s96, %s97
      %p101 = pneg %p95
      %p102 = scmp.eq.s32.totalorder %s16, 1
      %p103 = por %p101, %p102
      %p104 = scmp.ne.s32.totalorder %s96, %s99
      %p105 = scmp.eq.s32.totalorder %s16, 0
      %p106 = por %p104, %p105
      %p107 = scmp.ne.s32.totalorder %s96, %s99
      %p108 = scmp.eq.s32.totalorder %s21, 1
      %p109 = por %p107, %p108
      %p110 = scmp.ne.s32.totalorder %s99, %s100
      %p111 = scmp.eq.s32.totalorder %s21, 0
      %p112 = por %p110, %p111
      %p113 = scmp.ne.s32.totalorder %s99, %s100
      %p114 = scmp.eq.s32.totalorder %s22, 1
      %p115 = por %p113, %p114
      %p117 = scmp.ne.s32.totalorder %s100, %s116
      %p118 = scmp.eq.s32.totalorder %s22, 0
      %p119 = por %p117, %p118
      %s120 = ssub.s32 %s23, %s35
      %s121 = ssub.s32 %s24, %s31
      %s122 = sor.u32 %s120, %s121
      %p123 = scmp.eq.s32.totalorder %s122, 0
      %s125 = sadd.s32 %s124, 1
      %s126 = scalar_select %p123, %s124, %s125
      %p129 = pneg %p123
      %p130 = scmp.eq.s32.totalorder %s16, 1
      %p131 = por %p129, %p130
      %p132 = scmp.ne.s32.totalorder %s124, %s127
      %p133 = scmp.eq.s32.totalorder %s16, 0
      %p134 = por %p132, %p133
      %p135 = scmp.ne.s32.totalorder %s124, %s127
      %p136 = scmp.eq.s32.totalorder %s21, 1
      %p137 = por %p135, %p136
      %p138 = scmp.ne.s32.totalorder %s127, %s128
      %p139 = scmp.eq.s32.totalorder %s21, 0
      %p140 = por %p138, %p139
      %p141 = scmp.ne.s32.totalorder %s127, %s128
      %p142 = scmp.eq.s32.totalorder %s22, 1
      %p143 = por %p141, %p142
      %p145 = scmp.ne.s32.totalorder %s128, %s144
      %p146 = scmp.eq.s32.totalorder %s22, 0
      %p147 = por %p145, %p146
      %s149 = sadd.s32 %s148, 1
      %p152 = scmp.eq.s32.totalorder %s16, 1
      %p153 = scmp.ne.s32.totalorder %s148, %s150
      %p154 = scmp.eq.s32.totalorder %s16, 0
      %p155 = por %p153, %p154
      %p156 = scmp.ne.s32.totalorder %s148, %s150
      %p157 = scmp.eq.s32.totalorder %s21, 1
      %p158 = por %p156, %p157
      %p159 = scmp.ne.s32.totalorder %s150, %s151
      %p160 = scmp.eq.s32.totalorder %s21, 0
      %p161 = por %p159, %p160
      %p162 = scmp.ne.s32.totalorder %s150, %s151
      %p163 = scmp.eq.s32.totalorder %s22, 1
      %p164 = por %p162, %p163
      %p166 = scmp.ne.s32.totalorder %s151, %s165
      %p167 = scmp.eq.s32.totalorder %s22, 0
      %p168 = por %p166, %p167
      %s170 = sadd.s32 %s169, 1
      %p173 = scmp.eq.s32.totalorder %s16, 1
      %p174 = scmp.ne.s32.totalorder %s169, %s171
      %p175 = scmp.eq.s32.totalorder %s16, 0
      %p176 = por %p174, %p175
      %p177 = scmp.ne.s32.totalorder %s169, %s171
      %p178 = scmp.eq.s32.totalorder %s21, 1
      %p179 = por %p177, %p178
      %p180 = scmp.ne.s32.totalorder %s171, %s172
      %p181 = scmp.eq.s32.totalorder %s21, 0
      %p182 = por %p180, %p181
      %p183 = scmp.ne.s32.totalorder %s171, %s172
      %p184 = scmp.eq.s32.totalorder %s22, 1
      %p185 = por %p183, %p184
      %p187 = scmp.ne.s32.totalorder %s172, %s186
      %p188 = scmp.eq.s32.totalorder %s22, 0
      %p189 = por %p187, %p188
      %s191 = sadd.s32 %s190, 1
      %p194 = scmp.eq.s32.totalorder %s16, 1
      %p195 = scmp.ne.s32.totalorder %s190, %s192
      %p196 = scmp.eq.s32.totalorder %s16, 0
      %p197 = por %p195, %p196
      %p198 = scmp.ne.s32.totalorder %s190, %s192
      %p199 = scmp.eq.s32.totalorder %s21, 1
      %p200 = por %p198, %p199
      %p201 = scmp.ne.s32.totalorder %s192, %s193
      %p202 = scmp.eq.s32.totalorder %s21, 0
      %p203 = por %p201, %p202
      %p204 = scmp.ne.s32.totalorder %s192, %s193
      %p205 = scmp.eq.s32.totalorder %s22, 1
      %p206 = por %p204, %p205
      %p208 = scmp.ne.s32.totalorder %s193, %s207
      %p209 = scmp.eq.s32.totalorder %s22, 0
      %p210 = por %p208, %p209
      %s211 = ssub.s32 %s23, %s35
      %p212 = scmp.eq.s32.totalorder %s211, 0
      %s214 = sadd.s32 %s213, 1
      %s215 = scalar_select %p212, %s213, %s214
      %p218 = pneg %p212
      %p219 = scmp.eq.s32.totalorder %s16, 1
      %p220 = por %p218, %p219
      %p221 = scmp.ne.s32.totalorder %s213, %s216
      %p222 = scmp.eq.s32.totalorder %s16, 0
      %p223 = por %p221, %p222
      %p224 = scmp.ne.s32.totalorder %s213, %s216
      %p225 = scmp.eq.s32.totalorder %s21, 1
      %p226 = por %p224, %p225
      %p227 = scmp.ne.s32.totalorder %s216, %s217
      %p228 = scmp.eq.s32.totalorder %s21, 0
      %p229 = por %p227, %p228
      %p230 = scmp.ne.s32.totalorder %s216, %s217
      %p231 = scmp.eq.s32.totalorder %s22, 1
      %p232 = por %p230, %p231
      %p234 = scmp.ne.s32.totalorder %s217, %s233
      %p235 = scmp.eq.s32.totalorder %s22, 0
      %p236 = por %p234, %p235
      %p237 = scmp.le.s32.totalorder 1, %s16
      %p238 = scmp.lt.s32.totalorder %s16, 3
      %p239 = pnand %p237, %p238
      %p240 = pneg %p239
      // Predicated region
      $region9: #{dgcnn_encoder.25} parent=5 // pred_check
        _
      $region10: #{dgcnn_encoder.25} parent=5 // pred_check_branch
        %242 = sbr.rel (%p239) target = $region12
      $region11: #{dgcnn_encoder.25} parent=5 // pred_region
        %s243 = ssub.s32 %s16, 1
        // Predicated region
        $region13: #{dgcnn_encoder.25} parent=11 // pred_check
          %p244 = pneg %p161
        $region14: #{dgcnn_encoder.25} parent=11 // pred_check_branch
          %246 = sbr.rel (%p244) target = $region16
        $region15: #{dgcnn_encoder.25} parent=11 // pred_region
          _
        $region16: #{dgcnn_encoder.25} parent=11 // pred_fallthru
          _
        // Predicated region
        $region17: #{dgcnn_encoder.25} parent=11 // pred_check
          %p247 = pneg %p182
        $region18: #{dgcnn_encoder.25} parent=11 // pred_check_branch
          %249 = sbr.rel (%p247) target = $region20
        $region19: #{dgcnn_encoder.25} parent=11 // pred_region
          _
        $region20: #{dgcnn_encoder.25} parent=11 // pred_fallthru
          _
        // Predicated region
        $region21: #{dgcnn_encoder.25} parent=11 // pred_check
          %p250 = pneg %p203
        $region22: #{dgcnn_encoder.25} parent=11 // pred_check_branch
          %252 = sbr.rel (%p250) target = $region24
        $region23: #{dgcnn_encoder.25} parent=11 // pred_region
          _
        $region24: #{dgcnn_encoder.25} parent=11 // pred_fallthru
          _
      $region12: #{dgcnn_encoder.25} parent=5 // pred_fallthru
        _
      %p253 = scmp.lt.s32.totalorder %s16, 2
      // Predicated region
      $region25: #{dgcnn_encoder.25} parent=5 // pred_check
        %p254 = pneg %p253
      $region26: #{dgcnn_encoder.25} parent=5 // pred_check_branch
        %256 = sbr.rel (%p254) target = $region28
      $region27: #{dgcnn_encoder.25} parent=5 // pred_region
        // Predicated region
        $region29: #{dgcnn_encoder.25} parent=27 // pred_check
          %p257 = pneg %p50
        $region30: #{dgcnn_encoder.25} parent=27 // pred_check_branch
          %259 = sbr.rel (%p257) target = $region32
        $region31: #{dgcnn_encoder.25} parent=27 // pred_region
          %s260 = smul.u32 4, %s24
          %p261 = scmp.lt.s32.totalorder %s23, 1
          %s262 = scalar_select %p261, %s23, 1
          %p263 = scmp.lt.s32.totalorder %s260, 3
          %s264 = scalar_select %p263, %s260, 3
          %s265 = smul.addr %s262, 4
          %s266 = sadd.s32 %s264, %s265
          %s267 = smul.addr %s266, 4
          %s268 = scalar_lea.vmem %s0, %s267
          %s269 = smul.u32 4, %s24
        $region32: #{dgcnn_encoder.25} parent=27 // pred_fallthru
          _
        // Predicated region
        $region33: #{dgcnn_encoder.25} parent=27 // pred_check
          %p270 = pneg %p78
        $region34: #{dgcnn_encoder.25} parent=27 // pred_check_branch
          %272 = sbr.rel (%p270) target = $region36
        $region35: #{dgcnn_encoder.25} parent=27 // pred_region
          %s273 = smul.u32 4, %s24
          %p274 = scmp.lt.s32.totalorder %s23, 1
          %s275 = scalar_select %p274, %s23, 1
          %p276 = scmp.lt.s32.totalorder %s273, 3
          %s277 = scalar_select %p276, %s273, 3
          %s278 = smul.addr %s275, 4
          %s279 = sadd.s32 %s277, %s278
          %s280 = smul.addr %s279, 4
          %s281 = scalar_lea.vmem %s1, %s280
          %s282 = smul.u32 4, %s24
        $region36: #{dgcnn_encoder.25} parent=27 // pred_fallthru
          _
        // Predicated region
        $region37: #{dgcnn_encoder.25} parent=27 // pred_check
          %p283 = pneg %p106
        $region38: #{dgcnn_encoder.25} parent=27 // pred_check_branch
          %285 = sbr.rel (%p283) target = $region40
        $region39: #{dgcnn_encoder.25} parent=27 // pred_region
          %s286 = smul.u32 4, %s24
          %p287 = scmp.lt.s32.totalorder %s23, 1
          %s288 = scalar_select %p287, %s23, 1
          %p289 = scmp.lt.s32.totalorder %s286, 3
          %s290 = scalar_select %p289, %s286, 3
          %s291 = smul.addr %s288, 4
          %s292 = sadd.s32 %s290, %s291
          %s293 = smul.addr %s292, 4
          %s294 = scalar_lea.vmem %s2, %s293
          %s295 = smul.u32 4, %s24
        $region40: #{dgcnn_encoder.25} parent=27 // pred_fallthru
          _
        // Predicated region
        $region41: #{dgcnn_encoder.25} parent=27 // pred_check
          %p296 = pneg %p134
        $region42: #{dgcnn_encoder.25} parent=27 // pred_check_branch
          %298 = sbr.rel (%p296) target = $region44
        $region43: #{dgcnn_encoder.25} parent=27 // pred_region
          %s299 = smul.u32 4, %s24
          %p300 = scmp.lt.s32.totalorder %s23, 1
          %s301 = scalar_select %p300, %s23, 1
          %p302 = scmp.lt.s32.totalorder %s299, 3
          %s303 = scalar_select %p302, %s299, 3
          %s304 = smul.addr %s303, 2
          %s305 = smul.addr %s301, 8
          %s306 = sadd.s32 %s304, %s305
          %s307 = smul.addr %s306, 4
          %s308 = scalar_lea.vmem %s3, %s307
          %s309 = smul.u32 4, %s24
        $region44: #{dgcnn_encoder.25} parent=27 // pred_fallthru
          _
      $region28: #{dgcnn_encoder.25} parent=5 // pred_fallthru
        _
      %p310 = scmp.le.s32.totalorder 1, %s16
      %p311 = scmp.lt.s32.totalorder %s16, 3
      %p312 = pnand %p310, %p311
      %p313 = pneg %p312
      // Predicated region
      $region45: #{dgcnn_encoder.25} parent=5 // pred_check
        _
      $region46: #{dgcnn_encoder.25} parent=5 // pred_check_branch
        %315 = sbr.rel (%p312) target = $region48
      $region47: #{dgcnn_encoder.25} parent=5 // pred_region
        %s316 = ssub.s32 %s16, 1
        %s317 = smul.u32 4, %s26
        %p318 = scmp.lt.s32.totalorder %s25, 1
        %s319 = scalar_select %p318, %s25, 1
        %p320 = scmp.lt.s32.totalorder %s317, 3
        %s321 = scalar_select %p320, %s317, 3
        %s322 = smul.addr %s319, 4
        %s323 = sadd.s32 %s321, %s322
        %s324 = smul.addr %s323, 4
        %s325 = scalar_lea.vmem %s0, %s324
        %p326 = pneg %p56
        %p327 = pneg %p53
        %s328 = smul.u32 4, %s26
        %p329 = scmp.lt.s32.totalorder %s25, 1
        %s330 = scalar_select %p329, %s25, 1
        %p331 = scmp.lt.s32.totalorder %s328, 3
        %s332 = scalar_select %p331, %s328, 3
        %s333 = smul.addr %s330, 4
        %s334 = sadd.s32 %s332, %s333
        %s335 = smul.addr %s334, 4
        %s336 = scalar_lea.vmem %s1, %s335
        %p337 = pneg %p84
        %p338 = pneg %p81
        %s339 = smul.u32 4, %s26
        %p340 = scmp.lt.s32.totalorder %s25, 1
        %s341 = scalar_select %p340, %s25, 1
        %p342 = scmp.lt.s32.totalorder %s339, 3
        %s343 = scalar_select %p342, %s339, 3
        %s344 = smul.addr %s341, 4
        %s345 = sadd.s32 %s343, %s344
        %s346 = smul.addr %s345, 4
        %s347 = scalar_lea.vmem %s2, %s346
        %p348 = pneg %p112
        %p349 = pneg %p109
        %s350 = smul.u32 4, %s26
        %p351 = scmp.lt.s32.totalorder %s25, 1
        %s352 = scalar_select %p351, %s25, 1
        %p353 = scmp.lt.s32.totalorder %s350, 3
        %s354 = scalar_select %p353, %s350, 3
        %s355 = smul.addr %s354, 2
        %s356 = smul.addr %s352, 8
        %s357 = sadd.s32 %s355, %s356
        %s358 = smul.addr %s357, 4
        %s359 = scalar_lea.vmem %s3, %s358
        %p360 = pneg %p140
        %p361 = pneg %p137
        %p362 = pneg %p161
        %p363 = pneg %p158
        %p364 = pneg %p182
        %p365 = pneg %p179
        %p366 = pneg %p203
        %p367 = pneg %p200
        %p368 = pneg %p229
        %p369 = pneg %p226
        %s370 = sand.u32 %s216, 1
        %s371 = scalar_lea.sflag [#allocation4], %s370
        %s372 = sand.u32 %s216, 1
        %s373 = scalar_lea.vmem [#allocation3], %s372
        %s374 = smul.u32 4, %s26
        %p375 = scmp.lt.s32.totalorder %s25, 1
        %s376 = scalar_select %p375, %s25, 1
        %p377 = scmp.lt.s32.totalorder %s374, 3
        %s378 = scalar_select %p377, %s374, 3
        %s379 = smul.addr %s376, 4
        %s380 = sadd.s32 %s378, %s379
        %s381 = smul.addr %s380, 4
        %s382 = scalar_lea.vmem %s0, %s381
        %s383 = smul.u32 4, %s26
        %s384 = smul.u32 4, %s26
        %p385 = scmp.lt.s32.totalorder %s25, 1
        %s386 = scalar_select %p385, %s25, 1
        %p387 = scmp.lt.s32.totalorder %s384, 3
        %s388 = scalar_select %p387, %s384, 3
        %s389 = smul.addr %s386, 4
        %s390 = sadd.s32 %s388, %s389
        %s391 = smul.addr %s390, 4
        %s392 = scalar_lea.vmem %s1, %s391
        %s393 = smul.u32 4, %s26
        %s394 = smul.u32 4, %s26
        %p395 = scmp.lt.s32.totalorder %s25, 1
        %s396 = scalar_select %p395, %s25, 1
        %p397 = scmp.lt.s32.totalorder %s394, 3
        %s398 = scalar_select %p397, %s394, 3
        %s399 = smul.addr %s396, 4
        %s400 = sadd.s32 %s398, %s399
        %s401 = smul.addr %s400, 4
        %s402 = scalar_lea.vmem %s2, %s401
        %s403 = smul.u32 4, %s26
        %s404 = smul.u32 4, %s26
        %p405 = scmp.lt.s32.totalorder %s25, 1
        %s406 = scalar_select %p405, %s25, 1
        %p407 = scmp.lt.s32.totalorder %s404, 3
        %s408 = scalar_select %p407, %s404, 3
        %s409 = smul.addr %s408, 2
        %s410 = smul.addr %s406, 8
        %s411 = sadd.s32 %s409, %s410
        %s412 = smul.addr %s411, 4
        %s413 = scalar_lea.vmem %s3, %s412
        %s414 = smul.u32 4, %s26
        %p416 = scmp.eq.s32.totalorder %s26, 0
        // Predicated region
        $region49: #{dgcnn_encoder.25} parent=47 // pred_check
          %p417 = pneg %p416
        $region50: #{dgcnn_encoder.25} parent=47 // pred_check_branch
          %419 = sbr.rel (%p417) target = $region52
        $region51: #{dgcnn_encoder.25} parent=47 // pred_region
          %v420 = vlaneseq
          %vm421 = vcmp.ge.s32.totalorder %v420, 0
          %vm422 = vcmp.lt.s32.totalorder %v420, 512
          %vm423 = vmand %vm421, %vm422
          %424 = vst.msk [vmem:[#allocation2] sm:$0xf] %vm423, -inf
        $region52: #{dgcnn_encoder.25} parent=47 // pred_fallthru
          _
        %v425 = vld [vmem:[%s382] sm:$0xf]
        %v426 = vld [vmem:[%s382 + $0x4] sm:$0xf]
        %v427 = vld [vmem:[%s382 + $0x8] sm:$0xf]
        %v428 = vld [vmem:[%s382 + $0xc] sm:$0xf]
        %v429 = vld [vmem:[%s392] sm:$0xf]
        %v430 = vld [vmem:[%s392 + $0x4] sm:$0xf]
        %v431 = vld [vmem:[%s392 + $0x8] sm:$0xf]
        %v432 = vld [vmem:[%s392 + $0xc] sm:$0xf]
        %v433 = vld [vmem:[%s402] sm:$0xf]
        %v434 = vld [vmem:[%s402 + $0x4] sm:$0xf]
        %v435 = vld [vmem:[%s402 + $0x8] sm:$0xf]
        %v436 = vld [vmem:[%s402 + $0xc] sm:$0xf]
        %v437 = vld [vmem:[%s413] sm:$0xff]
        %v438 = vld [vmem:[%s413 + $0x8] sm:$0xff]
        %v439 = vld [vmem:[%s413 + $0x10] sm:$0xff]
        %v440 = vld [vmem:[%s413 + $0x18] sm:$0xff]
        %v445 = vunpack.c.l.b16 %v425
        %v446 = vunpack.c.l.b16 %v426
        %v447 = vunpack.c.l.b16 %v427
        %v448 = vunpack.c.l.b16 %v428
        %v449 = vpack.c.b16 %v446, %v445
        %v450 = vpack.c.b16 %v448, %v447
        %v455 = vunpack.c.l.b16 %v429
        %v456 = vunpack.c.l.b16 %v430
        %v457 = vunpack.c.l.b16 %v431
        %v458 = vunpack.c.l.b16 %v432
        %v459 = vpack.c.b16 %v456, %v455
        %v460 = vpack.c.b16 %v458, %v457
        %461 = vrot.lane.b32.xlu0 %v459, 64
        %v462 = vpop.permute.xlu0 %461
        %463 = vrot.lane.b32.xlu0 %v460, 64
        %v464 = vpop.permute.xlu0 %463
        %v469 = vunpack.c.l.b16 %v433
        %v470 = vunpack.c.l.b16 %v434
        %v471 = vunpack.c.l.b16 %v435
        %v472 = vunpack.c.l.b16 %v436
        %v473 = vpack.c.b16 %v470, %v469
        %v474 = vpack.c.b16 %v472, %v471
        %v481 = vunpack.c.l.b16 %v437
        %v482 = vunpack.c.h.b16 %v437
        %v483 = vunpack.c.l.b16 %v438
        %v484 = vunpack.c.h.b16 %v438
        %v485 = vunpack.c.l.b16 %v439
        %v486 = vunpack.c.h.b16 %v439
        %v487 = vunpack.c.l.b16 %v440
        %v488 = vunpack.c.h.b16 %v440
        %v489 = vpack.c.b16 %v483, %v481
        %v490 = vpack.c.b16 %v484, %v482
        %v491 = vpack.c.b16 %v487, %v485
        %v492 = vpack.c.b16 %v488, %v486
        %vm497 = vcmask 523264
        %v500 = vsel %vm497, %v449, %v462
        %v504 = vsel %vm497, %v450, %v464
        %v506 = vld [vmem:[%s4] sm:$0xff]
        %v507 = vld [vmem:[%s4 + $0x8] sm:$0xff]
        %v508 = vld [vmem:[%s4 + $0x10] sm:$0xff]
        %v509 = vld [vmem:[%s4 + $0x18] sm:$0xff]
        %v510 = vld [vmem:[%s4 + $0x20] sm:$0xff]
        %v511 = vld [vmem:[%s4 + $0x28] sm:$0xff]
        %v512 = vld [vmem:[%s4 + $0x30] sm:$0xff]
        %v513 = vld [vmem:[%s4 + $0x38] sm:$0xff]
        %v514 = vld [vmem:[%s4 + $0x40] sm:$0xff]
        %v515 = vld [vmem:[%s4 + $0x48] sm:$0xff]
        %v516 = vld [vmem:[%s4 + $0x50] sm:$0xff]
        %v517 = vld [vmem:[%s4 + $0x58] sm:$0xff]
        %v518 = vld [vmem:[%s4 + $0x60] sm:$0xff]
        %v519 = vld [vmem:[%s4 + $0x68] sm:$0xff]
        %v520 = vld [vmem:[%s4 + $0x70] sm:$0xff]
        %v521 = vld [vmem:[%s4 + $0x78] sm:$0xff]
        %v522 = vld [vmem:[%s4 + $0x80] sm:$0xff]
        %v523 = vld [vmem:[%s4 + $0x88] sm:$0xff]
        %v524 = vld [vmem:[%s4 + $0x90] sm:$0xff]
        %v525 = vld [vmem:[%s4 + $0x98] sm:$0xff]
        %v526 = vld [vmem:[%s4 + $0xa0] sm:$0xff]
        %v527 = vld [vmem:[%s4 + $0xa8] sm:$0xff]
        %v528 = vld [vmem:[%s4 + $0xb0] sm:$0xff]
        %v529 = vld [vmem:[%s4 + $0xb8] sm:$0xff]
        %v530 = vld [vmem:[%s4 + $0xc0] sm:$0xff]
        %v531 = vld [vmem:[%s4 + $0xc8] sm:$0xff]
        %v532 = vld [vmem:[%s4 + $0xd0] sm:$0xff]
        %v533 = vld [vmem:[%s4 + $0xd8] sm:$0xff]
        %v534 = vld [vmem:[%s4 + $0xe0] sm:$0xff]
        %v535 = vld [vmem:[%s4 + $0xe8] sm:$0xff]
        %v536 = vld [vmem:[%s4 + $0xf0] sm:$0xff]
        %v537 = vld [vmem:[%s4 + $0xf8] sm:$0xff]
        %v538 = vld [vmem:[%s4 + $0x100] sm:$0xff]
        %v539 = vld [vmem:[%s4 + $0x108] sm:$0xff]
        %v540 = vld [vmem:[%s4 + $0x110] sm:$0xff]
        %v541 = vld [vmem:[%s4 + $0x118] sm:$0xff]
        %v542 = vld [vmem:[%s4 + $0x120] sm:$0xff]
        %v543 = vld [vmem:[%s4 + $0x128] sm:$0xff]
        %v544 = vld [vmem:[%s4 + $0x130] sm:$0xff]
        %v545 = vld [vmem:[%s4 + $0x138] sm:$0xff]
        %v546 = vld [vmem:[%s4 + $0x140] sm:$0xff]
        %v547 = vld [vmem:[%s4 + $0x148] sm:$0xff]
        %v548 = vld [vmem:[%s4 + $0x150] sm:$0xff]
        %v549 = vld [vmem:[%s4 + $0x158] sm:$0xff]
        %v550 = vld [vmem:[%s4 + $0x160] sm:$0xff]
        %v551 = vld [vmem:[%s4 + $0x168] sm:$0xff]
        %v552 = vld [vmem:[%s4 + $0x170] sm:$0xff]
        %v553 = vld [vmem:[%s4 + $0x178] sm:$0xff]
        %v554 = vld [vmem:[%s4 + $0x180] sm:$0xff]
        %v555 = vld [vmem:[%s4 + $0x188] sm:$0xff]
        %v556 = vld [vmem:[%s4 + $0x190] sm:$0xff]
        %v557 = vld [vmem:[%s4 + $0x198] sm:$0xff]
        %v558 = vld [vmem:[%s4 + $0x1a0] sm:$0xff]
        %v559 = vld [vmem:[%s4 + $0x1a8] sm:$0xff]
        %v560 = vld [vmem:[%s4 + $0x1b0] sm:$0xff]
        %v561 = vld [vmem:[%s4 + $0x1b8] sm:$0xff]
        %v562 = vld [vmem:[%s4 + $0x1c0] sm:$0xff]
        %v563 = vld [vmem:[%s4 + $0x1c8] sm:$0xff]
        %v564 = vld [vmem:[%s4 + $0x1d0] sm:$0xff]
        %v565 = vld [vmem:[%s4 + $0x1d8] sm:$0xff]
        %v566 = vld [vmem:[%s4 + $0x1e0] sm:$0xff]
        %v567 = vld [vmem:[%s4 + $0x1e8] sm:$0xff]
        %v568 = vld [vmem:[%s4 + $0x1f0] sm:$0xff]
        %v569 = vld [vmem:[%s4 + $0x1f8] sm:$0xff]
        %v570 = vld [vmem:[%s4 + $0x200] sm:$0xff]
        %v571 = vld [vmem:[%s4 + $0x208] sm:$0xff]
        %v572 = vld [vmem:[%s4 + $0x210] sm:$0xff]
        %v573 = vld [vmem:[%s4 + $0x218] sm:$0xff]
        %v574 = vld [vmem:[%s4 + $0x220] sm:$0xff]
        %v575 = vld [vmem:[%s4 + $0x228] sm:$0xff]
        %v576 = vld [vmem:[%s4 + $0x230] sm:$0xff]
        %v577 = vld [vmem:[%s4 + $0x238] sm:$0xff]
        %v578 = vld [vmem:[%s4 + $0x240] sm:$0xff]
        %v579 = vld [vmem:[%s4 + $0x248] sm:$0xff]
        %v580 = vld [vmem:[%s4 + $0x250] sm:$0xff]
        %v581 = vld [vmem:[%s4 + $0x258] sm:$0xff]
        %v582 = vld [vmem:[%s4 + $0x260] sm:$0xff]
        %v583 = vld [vmem:[%s4 + $0x268] sm:$0xff]
        %v584 = vld [vmem:[%s4 + $0x270] sm:$0xff]
        %v585 = vld [vmem:[%s4 + $0x278] sm:$0xff]
        %v586 = vld [vmem:[%s4 + $0x280] sm:$0xff]
        %v587 = vld [vmem:[%s4 + $0x288] sm:$0xff]
        %v588 = vld [vmem:[%s4 + $0x290] sm:$0xff]
        %v589 = vld [vmem:[%s4 + $0x298] sm:$0xff]
        %v590 = vld [vmem:[%s4 + $0x2a0] sm:$0xff]
        %v591 = vld [vmem:[%s4 + $0x2a8] sm:$0xff]
        %v592 = vld [vmem:[%s4 + $0x2b0] sm:$0xff]
        %v593 = vld [vmem:[%s4 + $0x2b8] sm:$0xff]
        %v594 = vld [vmem:[%s4 + $0x2c0] sm:$0xff]
        %v595 = vld [vmem:[%s4 + $0x2c8] sm:$0xff]
        %v596 = vld [vmem:[%s4 + $0x2d0] sm:$0xff]
        %v597 = vld [vmem:[%s4 + $0x2d8] sm:$0xff]
        %v598 = vld [vmem:[%s4 + $0x2e0] sm:$0xff]
        %v599 = vld [vmem:[%s4 + $0x2e8] sm:$0xff]
        %v600 = vld [vmem:[%s4 + $0x2f0] sm:$0xff]
        %v601 = vld [vmem:[%s4 + $0x2f8] sm:$0xff]
        %v602 = vld [vmem:[%s4 + $0x300] sm:$0xff]
        %v603 = vld [vmem:[%s4 + $0x308] sm:$0xff]
        %v604 = vld [vmem:[%s4 + $0x310] sm:$0xff]
        %v605 = vld [vmem:[%s4 + $0x318] sm:$0xff]
        %v606 = vld [vmem:[%s4 + $0x320] sm:$0xff]
        %v607 = vld [vmem:[%s4 + $0x328] sm:$0xff]
        %v608 = vld [vmem:[%s4 + $0x330] sm:$0xff]
        %v609 = vld [vmem:[%s4 + $0x338] sm:$0xff]
        %v610 = vld [vmem:[%s4 + $0x340] sm:$0xff]
        %v611 = vld [vmem:[%s4 + $0x348] sm:$0xff]
        %v612 = vld [vmem:[%s4 + $0x350] sm:$0xff]
        %v613 = vld [vmem:[%s4 + $0x358] sm:$0xff]
        %v614 = vld [vmem:[%s4 + $0x360] sm:$0xff]
        %v615 = vld [vmem:[%s4 + $0x368] sm:$0xff]
        %v616 = vld [vmem:[%s4 + $0x370] sm:$0xff]
        %v617 = vld [vmem:[%s4 + $0x378] sm:$0xff]
        %v618 = vld [vmem:[%s4 + $0x380] sm:$0xff]
        %v619 = vld [vmem:[%s4 + $0x388] sm:$0xff]
        %v620 = vld [vmem:[%s4 + $0x390] sm:$0xff]
        %v621 = vld [vmem:[%s4 + $0x398] sm:$0xff]
        %v622 = vld [vmem:[%s4 + $0x3a0] sm:$0xff]
        %v623 = vld [vmem:[%s4 + $0x3a8] sm:$0xff]
        %v624 = vld [vmem:[%s4 + $0x3b0] sm:$0xff]
        %v625 = vld [vmem:[%s4 + $0x3b8] sm:$0xff]
        %v626 = vld [vmem:[%s4 + $0x3c0] sm:$0xff]
        %v627 = vld [vmem:[%s4 + $0x3c8] sm:$0xff]
        %v628 = vld [vmem:[%s4 + $0x3d0] sm:$0xff]
        %v629 = vld [vmem:[%s4 + $0x3d8] sm:$0xff]
        %v630 = vld [vmem:[%s4 + $0x3e0] sm:$0xff]
        %v631 = vld [vmem:[%s4 + $0x3e8] sm:$0xff]
        %v632 = vld [vmem:[%s4 + $0x3f0] sm:$0xff]
        %v633 = vld [vmem:[%s4 + $0x3f8] sm:$0xff]
        %v634 = vld [vmem:[%s5] sm:$0xf]
        %v636 = vlaneseq
        %v637 = vshrl.u32 %v636, 7
        %v638 = vsub.s32 0, %v637
        %v639 = vrot.slane %v634, %v638
        %v640 = vlaneseq
        %v641 = vshrl.u32 %v640, 7
        %v642 = vsub.s32 1, %v641
        %v643 = vrot.slane %v634, %v642
        %v644 = vlaneseq
        %v645 = vshrl.u32 %v644, 7
        %v646 = vsub.s32 2, %v645
        %v647 = vrot.slane %v634, %v646
        %v648 = vlaneseq
        %v649 = vshrl.u32 %v648, 7
        %v650 = vsub.s32 3, %v649
        %v651 = vrot.slane %v634, %v650
        %v784 = vunpack.c.l.b16 %v506
        %v785 = vunpack.c.h.b16 %v506
        %v786 = vunpack.c.l.b16 %v507
        %v787 = vunpack.c.h.b16 %v507
        %v788 = vunpack.c.l.b16 %v508
        %v789 = vunpack.c.h.b16 %v508
        %v790 = vunpack.c.l.b16 %v509
        %v791 = vunpack.c.h.b16 %v509
        %v792 = vunpack.c.l.b16 %v510
        %v793 = vunpack.c.h.b16 %v510
        %v794 = vunpack.c.l.b16 %v511
        %v795 = vunpack.c.h.b16 %v511
        %v796 = vunpack.c.l.b16 %v512
        %v797 = vunpack.c.h.b16 %v512
        %v798 = vunpack.c.l.b16 %v513
        %v799 = vunpack.c.h.b16 %v513
        %v800 = vunpack.c.l.b16 %v514
        %v801 = vunpack.c.h.b16 %v514
        %v802 = vunpack.c.l.b16 %v515
        %v803 = vunpack.c.h.b16 %v515
        %v804 = vunpack.c.l.b16 %v516
        %v805 = vunpack.c.h.b16 %v516
        %v806 = vunpack.c.l.b16 %v517
        %v807 = vunpack.c.h.b16 %v517
        %v808 = vunpack.c.l.b16 %v518
        %v809 = vunpack.c.h.b16 %v518
        %v810 = vunpack.c.l.b16 %v519
        %v811 = vunpack.c.h.b16 %v519
        %v812 = vunpack.c.l.b16 %v520
        %v813 = vunpack.c.h.b16 %v520
        %v814 = vunpack.c.l.b16 %v521
        %v815 = vunpack.c.h.b16 %v521
        %v816 = vunpack.c.l.b16 %v522
        %v817 = vunpack.c.h.b16 %v522
        %v818 = vunpack.c.l.b16 %v523
        %v819 = vunpack.c.h.b16 %v523
        %v820 = vunpack.c.l.b16 %v524
        %v821 = vunpack.c.h.b16 %v524
        %v822 = vunpack.c.l.b16 %v525
        %v823 = vunpack.c.h.b16 %v525
        %v824 = vunpack.c.l.b16 %v526
        %v825 = vunpack.c.h.b16 %v526
        %v826 = vunpack.c.l.b16 %v527
        %v827 = vunpack.c.h.b16 %v527
        %v828 = vunpack.c.l.b16 %v528
        %v829 = vunpack.c.h.b16 %v528
        %v830 = vunpack.c.l.b16 %v529
        %v831 = vunpack.c.h.b16 %v529
        %v832 = vunpack.c.l.b16 %v530
        %v833 = vunpack.c.h.b16 %v530
        %v834 = vunpack.c.l.b16 %v531
        %v835 = vunpack.c.h.b16 %v531
        %v836 = vunpack.c.l.b16 %v532
        %v837 = vunpack.c.h.b16 %v532
        %v838 = vunpack.c.l.b16 %v533
        %v839 = vunpack.c.h.b16 %v533
        %v840 = vunpack.c.l.b16 %v534
        %v841 = vunpack.c.h.b16 %v534
        %v842 = vunpack.c.l.b16 %v535
        %v843 = vunpack.c.h.b16 %v535
        %v844 = vunpack.c.l.b16 %v536
        %v845 = vunpack.c.h.b16 %v536
        %v846 = vunpack.c.l.b16 %v537
        %v847 = vunpack.c.h.b16 %v537
        %v848 = vunpack.c.l.b16 %v538
        %v849 = vunpack.c.h.b16 %v538
        %v850 = vunpack.c.l.b16 %v539
        %v851 = vunpack.c.h.b16 %v539
        %v852 = vunpack.c.l.b16 %v540
        %v853 = vunpack.c.h.b16 %v540
        %v854 = vunpack.c.l.b16 %v541
        %v855 = vunpack.c.h.b16 %v541
        %v856 = vunpack.c.l.b16 %v542
        %v857 = vunpack.c.h.b16 %v542
        %v858 = vunpack.c.l.b16 %v543
        %v859 = vunpack.c.h.b16 %v543
        %v860 = vunpack.c.l.b16 %v544
        %v861 = vunpack.c.h.b16 %v544
        %v862 = vunpack.c.l.b16 %v545
        %v863 = vunpack.c.h.b16 %v545
        %v864 = vunpack.c.l.b16 %v546
        %v865 = vunpack.c.h.b16 %v546
        %v866 = vunpack.c.l.b16 %v547
        %v867 = vunpack.c.h.b16 %v547
        %v868 = vunpack.c.l.b16 %v548
        %v869 = vunpack.c.h.b16 %v548
        %v870 = vunpack.c.l.b16 %v549
        %v871 = vunpack.c.h.b16 %v549
        %v872 = vunpack.c.l.b16 %v550
        %v873 = vunpack.c.h.b16 %v550
        %v874 = vunpack.c.l.b16 %v551
        %v875 = vunpack.c.h.b16 %v551
        %v876 = vunpack.c.l.b16 %v552
        %v877 = vunpack.c.h.b16 %v552
        %v878 = vunpack.c.l.b16 %v553
        %v879 = vunpack.c.h.b16 %v553
        %v880 = vunpack.c.l.b16 %v554
        %v881 = vunpack.c.h.b16 %v554
        %v882 = vunpack.c.l.b16 %v555
        %v883 = vunpack.c.h.b16 %v555
        %v884 = vunpack.c.l.b16 %v556
        %v885 = vunpack.c.h.b16 %v556
        %v886 = vunpack.c.l.b16 %v557
        %v887 = vunpack.c.h.b16 %v557
        %v888 = vunpack.c.l.b16 %v558
        %v889 = vunpack.c.h.b16 %v558
        %v890 = vunpack.c.l.b16 %v559
        %v891 = vunpack.c.h.b16 %v559
        %v892 = vunpack.c.l.b16 %v560
        %v893 = vunpack.c.h.b16 %v560
        %v894 = vunpack.c.l.b16 %v561
        %v895 = vunpack.c.h.b16 %v561
        %v896 = vunpack.c.l.b16 %v562
        %v897 = vunpack.c.h.b16 %v562
        %v898 = vunpack.c.l.b16 %v563
        %v899 = vunpack.c.h.b16 %v563
        %v900 = vunpack.c.l.b16 %v564
        %v901 = vunpack.c.h.b16 %v564
        %v902 = vunpack.c.l.b16 %v565
        %v903 = vunpack.c.h.b16 %v565
        %v904 = vunpack.c.l.b16 %v566
        %v905 = vunpack.c.h.b16 %v566
        %v906 = vunpack.c.l.b16 %v567
        %v907 = vunpack.c.h.b16 %v567
        %v908 = vunpack.c.l.b16 %v568
        %v909 = vunpack.c.h.b16 %v568
        %v910 = vunpack.c.l.b16 %v569
        %v911 = vunpack.c.h.b16 %v569
        %v912 = vunpack.c.l.b16 %v570
        %v913 = vunpack.c.h.b16 %v570
        %v914 = vunpack.c.l.b16 %v571
        %v915 = vunpack.c.h.b16 %v571
        %v916 = vunpack.c.l.b16 %v572
        %v917 = vunpack.c.h.b16 %v572
        %v918 = vunpack.c.l.b16 %v573
        %v919 = vunpack.c.h.b16 %v573
        %v920 = vunpack.c.l.b16 %v574
        %v921 = vunpack.c.h.b16 %v574
        %v922 = vunpack.c.l.b16 %v575
        %v923 = vunpack.c.h.b16 %v575
        %v924 = vunpack.c.l.b16 %v576
        %v925 = vunpack.c.h.b16 %v576
        %v926 = vunpack.c.l.b16 %v577
        %v927 = vunpack.c.h.b16 %v577
        %v928 = vunpack.c.l.b16 %v578
        %v929 = vunpack.c.h.b16 %v578
        %v930 = vunpack.c.l.b16 %v579
        %v931 = vunpack.c.h.b16 %v579
        %v932 = vunpack.c.l.b16 %v580
        %v933 = vunpack.c.h.b16 %v580
        %v934 = vunpack.c.l.b16 %v581
        %v935 = vunpack.c.h.b16 %v581
        %v936 = vunpack.c.l.b16 %v582
        %v937 = vunpack.c.h.b16 %v582
        %v938 = vunpack.c.l.b16 %v583
        %v939 = vunpack.c.h.b16 %v583
        %v940 = vunpack.c.l.b16 %v584
        %v941 = vunpack.c.h.b16 %v584
        %v942 = vunpack.c.l.b16 %v585
        %v943 = vunpack.c.h.b16 %v585
        %v944 = vunpack.c.l.b16 %v586
        %v945 = vunpack.c.h.b16 %v586
        %v946 = vunpack.c.l.b16 %v587
        %v947 = vunpack.c.h.b16 %v587
        %v948 = vunpack.c.l.b16 %v588
        %v949 = vunpack.c.h.b16 %v588
        %v950 = vunpack.c.l.b16 %v589
        %v951 = vunpack.c.h.b16 %v589
        %v952 = vunpack.c.l.b16 %v590
        %v953 = vunpack.c.h.b16 %v590
        %v954 = vunpack.c.l.b16 %v591
        %v955 = vunpack.c.h.b16 %v591
        %v956 = vunpack.c.l.b16 %v592
        %v957 = vunpack.c.h.b16 %v592
        %v958 = vunpack.c.l.b16 %v593
        %v959 = vunpack.c.h.b16 %v593
        %v960 = vunpack.c.l.b16 %v594
        %v961 = vunpack.c.h.b16 %v594
        %v962 = vunpack.c.l.b16 %v595
        %v963 = vunpack.c.h.b16 %v595
        %v964 = vunpack.c.l.b16 %v596
        %v965 = vunpack.c.h.b16 %v596
        %v966 = vunpack.c.l.b16 %v597
        %v967 = vunpack.c.h.b16 %v597
        %v968 = vunpack.c.l.b16 %v598
        %v969 = vunpack.c.h.b16 %v598
        %v970 = vunpack.c.l.b16 %v599
        %v971 = vunpack.c.h.b16 %v599
        %v972 = vunpack.c.l.b16 %v600
        %v973 = vunpack.c.h.b16 %v600
        %v974 = vunpack.c.l.b16 %v601
        %v975 = vunpack.c.h.b16 %v601
        %v976 = vunpack.c.l.b16 %v602
        %v977 = vunpack.c.h.b16 %v602
        %v978 = vunpack.c.l.b16 %v603
        %v979 = vunpack.c.h.b16 %v603
        %v980 = vunpack.c.l.b16 %v604
        %v981 = vunpack.c.h.b16 %v604
        %v982 = vunpack.c.l.b16 %v605
        %v983 = vunpack.c.h.b16 %v605
        %v984 = vunpack.c.l.b16 %v606
        %v985 = vunpack.c.h.b16 %v606
        %v986 = vunpack.c.l.b16 %v607
        %v987 = vunpack.c.h.b16 %v607
        %v988 = vunpack.c.l.b16 %v608
        %v989 = vunpack.c.h.b16 %v608
        %v990 = vunpack.c.l.b16 %v609
        %v991 = vunpack.c.h.b16 %v609
        %v992 = vunpack.c.l.b16 %v610
        %v993 = vunpack.c.h.b16 %v610
        %v994 = vunpack.c.l.b16 %v611
        %v995 = vunpack.c.h.b16 %v611
        %v996 = vunpack.c.l.b16 %v612
        %v997 = vunpack.c.h.b16 %v612
        %v998 = vunpack.c.l.b16 %v613
        %v999 = vunpack.c.h.b16 %v613
        %v1000 = vunpack.c.l.b16 %v614
        %v1001 = vunpack.c.h.b16 %v614
        %v1002 = vunpack.c.l.b16 %v615
        %v1003 = vunpack.c.h.b16 %v615
        %v1004 = vunpack.c.l.b16 %v616
        %v1005 = vunpack.c.h.b16 %v616
        %v1006 = vunpack.c.l.b16 %v617
        %v1007 = vunpack.c.h.b16 %v617
        %v1008 = vunpack.c.l.b16 %v618
        %v1009 = vunpack.c.h.b16 %v618
        %v1010 = vunpack.c.l.b16 %v619
        %v1011 = vunpack.c.h.b16 %v619
        %v1012 = vunpack.c.l.b16 %v620
        %v1013 = vunpack.c.h.b16 %v620
        %v1014 = vunpack.c.l.b16 %v621
        %v1015 = vunpack.c.h.b16 %v621
        %v1016 = vunpack.c.l.b16 %v622
        %v1017 = vunpack.c.h.b16 %v622
        %v1018 = vunpack.c.l.b16 %v623
        %v1019 = vunpack.c.h.b16 %v623
        %v1020 = vunpack.c.l.b16 %v624
        %v1021 = vunpack.c.h.b16 %v624
        %v1022 = vunpack.c.l.b16 %v625
        %v1023 = vunpack.c.h.b16 %v625
        %v1024 = vunpack.c.l.b16 %v626
        %v1025 = vunpack.c.h.b16 %v626
        %v1026 = vunpack.c.l.b16 %v627
        %v1027 = vunpack.c.h.b16 %v627
        %v1028 = vunpack.c.l.b16 %v628
        %v1029 = vunpack.c.h.b16 %v628
        %v1030 = vunpack.c.l.b16 %v629
        %v1031 = vunpack.c.h.b16 %v629
        %v1032 = vunpack.c.l.b16 %v630
        %v1033 = vunpack.c.h.b16 %v630
        %v1034 = vunpack.c.l.b16 %v631
        %v1035 = vunpack.c.h.b16 %v631
        %v1036 = vunpack.c.l.b16 %v632
        %v1037 = vunpack.c.h.b16 %v632
        %v1038 = vunpack.c.l.b16 %v633
        %v1039 = vunpack.c.h.b16 %v633
        %v1040 = vpack.c.b16 %v788, %v784
        %v1041 = vpack.c.b16 %v789, %v785
        %v1042 = vpack.c.b16 %v790, %v786
        %v1043 = vpack.c.b16 %v791, %v787
        %v1044 = vpack.c.b16 %v796, %v792
        %v1045 = vpack.c.b16 %v797, %v793
        %v1046 = vpack.c.b16 %v798, %v794
        %v1047 = vpack.c.b16 %v799, %v795
        %v1048 = vpack.c.b16 %v804, %v800
        %v1049 = vpack.c.b16 %v805, %v801
        %v1050 = vpack.c.b16 %v806, %v802
        %v1051 = vpack.c.b16 %v807, %v803
        %v1052 = vpack.c.b16 %v812, %v808
        %v1053 = vpack.c.b16 %v813, %v809
        %v1054 = vpack.c.b16 %v814, %v810
        %v1055 = vpack.c.b16 %v815, %v811
        %v1056 = vpack.c.b16 %v820, %v816
        %v1057 = vpack.c.b16 %v821, %v817
        %v1058 = vpack.c.b16 %v822, %v818
        %v1059 = vpack.c.b16 %v823, %v819
        %v1060 = vpack.c.b16 %v828, %v824
        %v1061 = vpack.c.b16 %v829, %v825
        %v1062 = vpack.c.b16 %v830, %v826
        %v1063 = vpack.c.b16 %v831, %v827
        %v1064 = vpack.c.b16 %v836, %v832
        %v1065 = vpack.c.b16 %v837, %v833
        %v1066 = vpack.c.b16 %v838, %v834
        %v1067 = vpack.c.b16 %v839, %v835
        %v1068 = vpack.c.b16 %v844, %v840
        %v1069 = vpack.c.b16 %v845, %v841
        %v1070 = vpack.c.b16 %v846, %v842
        %v1071 = vpack.c.b16 %v847, %v843
        %v1072 = vpack.c.b16 %v852, %v848
        %v1073 = vpack.c.b16 %v853, %v849
        %v1074 = vpack.c.b16 %v854, %v850
        %v1075 = vpack.c.b16 %v855, %v851
        %v1076 = vpack.c.b16 %v860, %v856
        %v1077 = vpack.c.b16 %v861, %v857
        %v1078 = vpack.c.b16 %v862, %v858
        %v1079 = vpack.c.b16 %v863, %v859
        %v1080 = vpack.c.b16 %v868, %v864
        %v1081 = vpack.c.b16 %v869, %v865
        %v1082 = vpack.c.b16 %v870, %v866
        %v1083 = vpack.c.b16 %v871, %v867
        %v1084 = vpack.c.b16 %v876, %v872
        %v1085 = vpack.c.b16 %v877, %v873
        %v1086 = vpack.c.b16 %v878, %v874
        %v1087 = vpack.c.b16 %v879, %v875
        %v1088 = vpack.c.b16 %v884, %v880
        %v1089 = vpack.c.b16 %v885, %v881
        %v1090 = vpack.c.b16 %v886, %v882
        %v1091 = vpack.c.b16 %v887, %v883
        %v1092 = vpack.c.b16 %v892, %v888
        %v1093 = vpack.c.b16 %v893, %v889
        %v1094 = vpack.c.b16 %v894, %v890
        %v1095 = vpack.c.b16 %v895, %v891
        %v1096 = vpack.c.b16 %v900, %v896
        %v1097 = vpack.c.b16 %v901, %v897
        %v1098 = vpack.c.b16 %v902, %v898
        %v1099 = vpack.c.b16 %v903, %v899
        %v1100 = vpack.c.b16 %v908, %v904
        %v1101 = vpack.c.b16 %v909, %v905
        %v1102 = vpack.c.b16 %v910, %v906
        %v1103 = vpack.c.b16 %v911, %v907
        %v1104 = vpack.c.b16 %v916, %v912
        %v1105 = vpack.c.b16 %v917, %v913
        %v1106 = vpack.c.b16 %v918, %v914
        %v1107 = vpack.c.b16 %v919, %v915
        %v1108 = vpack.c.b16 %v924, %v920
        %v1109 = vpack.c.b16 %v925, %v921
        %v1110 = vpack.c.b16 %v926, %v922
        %v1111 = vpack.c.b16 %v927, %v923
        %v1112 = vpack.c.b16 %v932, %v928
        %v1113 = vpack.c.b16 %v933, %v929
        %v1114 = vpack.c.b16 %v934, %v930
        %v1115 = vpack.c.b16 %v935, %v931
        %v1116 = vpack.c.b16 %v940, %v936
        %v1117 = vpack.c.b16 %v941, %v937
        %v1118 = vpack.c.b16 %v942, %v938
        %v1119 = vpack.c.b16 %v943, %v939
        %v1120 = vpack.c.b16 %v948, %v944
        %v1121 = vpack.c.b16 %v949, %v945
        %v1122 = vpack.c.b16 %v950, %v946
        %v1123 = vpack.c.b16 %v951, %v947
        %v1124 = vpack.c.b16 %v956, %v952
        %v1125 = vpack.c.b16 %v957, %v953
        %v1126 = vpack.c.b16 %v958, %v954
        %v1127 = vpack.c.b16 %v959, %v955
        %v1128 = vpack.c.b16 %v964, %v960
        %v1129 = vpack.c.b16 %v965, %v961
        %v1130 = vpack.c.b16 %v966, %v962
        %v1131 = vpack.c.b16 %v967, %v963
        %v1132 = vpack.c.b16 %v972, %v968
        %v1133 = vpack.c.b16 %v973, %v969
        %v1134 = vpack.c.b16 %v974, %v970
        %v1135 = vpack.c.b16 %v975, %v971
        %v1136 = vpack.c.b16 %v980, %v976
        %v1137 = vpack.c.b16 %v981, %v977
        %v1138 = vpack.c.b16 %v982, %v978
        %v1139 = vpack.c.b16 %v983, %v979
        %v1140 = vpack.c.b16 %v988, %v984
        %v1141 = vpack.c.b16 %v989, %v985
        %v1142 = vpack.c.b16 %v990, %v986
        %v1143 = vpack.c.b16 %v991, %v987
        %v1144 = vpack.c.b16 %v996, %v992
        %v1145 = vpack.c.b16 %v997, %v993
        %v1146 = vpack.c.b16 %v998, %v994
        %v1147 = vpack.c.b16 %v999, %v995
        %v1148 = vpack.c.b16 %v1004, %v1000
        %v1149 = vpack.c.b16 %v1005, %v1001
        %v1150 = vpack.c.b16 %v1006, %v1002
        %v1151 = vpack.c.b16 %v1007, %v1003
        %v1152 = vpack.c.b16 %v1012, %v1008
        %v1153 = vpack.c.b16 %v1013, %v1009
        %v1154 = vpack.c.b16 %v1014, %v1010
        %v1155 = vpack.c.b16 %v1015, %v1011
        %v1156 = vpack.c.b16 %v1020, %v1016
        %v1157 = vpack.c.b16 %v1021, %v1017
        %v1158 = vpack.c.b16 %v1022, %v1018
        %v1159 = vpack.c.b16 %v1023, %v1019
        %v1160 = vpack.c.b16 %v1028, %v1024
        %v1161 = vpack.c.b16 %v1029, %v1025
        %v1162 = vpack.c.b16 %v1030, %v1026
        %v1163 = vpack.c.b16 %v1031, %v1027
        %v1164 = vpack.c.b16 %v1036, %v1032
        %v1165 = vpack.c.b16 %v1037, %v1033
        %v1166 = vpack.c.b16 %v1038, %v1034
        %v1167 = vpack.c.b16 %v1039, %v1035
        %1296 = vmatprep.subr.bf16.mxu0 %v1041
        %1297 = vmatpush1.bf16.msra.mxu0 %v1040
        %1298 = vmatprep.subr.bf16.mxu0 %v1045
        %1299 = vmatpush1.bf16.msra.mxu0 %v1044
        %1300 = vmatprep.subr.bf16.mxu0 %v1049
        %1301 = vmatpush1.bf16.msra.mxu0 %v1048
        %1302 = vmatprep.subr.bf16.mxu0 %v1053
        %1303 = vmatpush1.bf16.msra.mxu0 %v1052
        %1304 = vmatprep.subr.bf16.mxu0 %v1057
        %1305 = vmatpush1.bf16.msra.mxu0 %v1056
        %1306 = vmatprep.subr.bf16.mxu0 %v1061
        %1307 = vmatpush1.bf16.msra.mxu0 %v1060
        %1308 = vmatprep.subr.bf16.mxu0 %v1065
        %1309 = vmatpush1.bf16.msra.mxu0 %v1064
        %1310 = vmatprep.subr.bf16.mxu0 %v1069
        %1311 = vmatpush1.bf16.msra.mxu0 %v1068
        %1312 = vmatprep.subr.bf16.mxu0 %v1073
        %1313 = vmatpush1.bf16.msra.mxu0 %v1072
        %1314 = vmatprep.subr.bf16.mxu0 %v1077
        %1315 = vmatpush1.bf16.msra.mxu0 %v1076
        %1316 = vmatprep.subr.bf16.mxu0 %v1081
        %1317 = vmatpush1.bf16.msra.mxu0 %v1080
        %1318 = vmatprep.subr.bf16.mxu0 %v1085
        %1319 = vmatpush1.bf16.msra.mxu0 %v1084
        %1320 = vmatprep.subr.bf16.mxu0 %v1089
        %1321 = vmatpush1.bf16.msra.mxu0 %v1088
        %1322 = vmatprep.subr.bf16.mxu0 %v1093
        %1323 = vmatpush1.bf16.msra.mxu0 %v1092
        %1324 = vmatprep.subr.bf16.mxu0 %v1097
        %1325 = vmatpush1.bf16.msra.mxu0 %v1096
        %1326 = vmatprep.subr.bf16.mxu0 %v1101
        %1327 = vmatpush1.bf16.msra.mxu0 %v1100
        %1328 = vmatprep.mubr.bf16.mxu0 %v473
        %1329 = vmatmul.mubr.bf16.gmra.mrb[0].mxu0 %v500
        %v1330 = vpop.f32.mrb[0].mxu0
        %v1331 = vadd.f32 %v639, %v1330
        %v1332 = vpop.f32.mrb[0].mxu0
        %v1333 = vadd.f32 %v643, %v1332
        %v1334 = vpop.f32.mrb[0].mxu0
        %v1335 = vadd.f32 %v639, %v1334
        %v1336 = vpop.f32.mrb[0].mxu0
        %v1337 = vadd.f32 %v643, %v1336
        %1338 = vmatprep.mubr.bf16.mxu0 %v474
        %1339 = vmatmul.mubr.bf16.gmra.mrb[0].mxu0 %v504
        %v1340 = vpop.f32.mrb[0].mxu0
        %v1341 = vadd.f32 %v639, %v1340
        %v1342 = vpop.f32.mrb[0].mxu0
        %v1343 = vadd.f32 %v643, %v1342
        %v1344 = vpop.f32.mrb[0].mxu0
        %v1345 = vadd.f32 %v639, %v1344
        %v1346 = vpop.f32.mrb[0].mxu0
        %v1347 = vadd.f32 %v643, %v1346
        %1348 = vdwg.mxu0
        %1349 = vmatprep.subr.bf16.mxu0 %v1105
        %1350 = vmatpush1.bf16.msra.mxu0 %v1104
        %1351 = vmatprep.subr.bf16.mxu0 %v1109
        %1352 = vmatpush1.bf16.msra.mxu0 %v1108
        %1353 = vmatprep.subr.bf16.mxu0 %v1113
        %1354 = vmatpush1.bf16.msra.mxu0 %v1112
        %1355 = vmatprep.subr.bf16.mxu0 %v1117
        %1356 = vmatpush1.bf16.msra.mxu0 %v1116
        %1357 = vmatprep.subr.bf16.mxu0 %v1121
        %1358 = vmatpush1.bf16.msra.mxu0 %v1120
        %1359 = vmatprep.subr.bf16.mxu0 %v1125
        %1360 = vmatpush1.bf16.msra.mxu0 %v1124
        %1361 = vmatprep.subr.bf16.mxu0 %v1129
        %1362 = vmatpush1.bf16.msra.mxu0 %v1128
        %1363 = vmatprep.subr.bf16.mxu0 %v1133
        %1364 = vmatpush1.bf16.msra.mxu0 %v1132
        %1365 = vmatprep.subr.bf16.mxu0 %v1137
        %1366 = vmatpush1.bf16.msra.mxu0 %v1136
        %1367 = vmatprep.subr.bf16.mxu0 %v1141
        %1368 = vmatpush1.bf16.msra.mxu0 %v1140
        %1369 = vmatprep.subr.bf16.mxu0 %v1145
        %1370 = vmatpush1.bf16.msra.mxu0 %v1144
        %1371 = vmatprep.subr.bf16.mxu0 %v1149
        %1372 = vmatpush1.bf16.msra.mxu0 %v1148
        %1373 = vmatprep.subr.bf16.mxu0 %v1153
        %1374 = vmatpush1.bf16.msra.mxu0 %v1152
        %1375 = vmatprep.subr.bf16.mxu0 %v1157
        %1376 = vmatpush1.bf16.msra.mxu0 %v1156
        %1377 = vmatprep.subr.bf16.mxu0 %v1161
        %1378 = vmatpush1.bf16.msra.mxu0 %v1160
        %1379 = vmatprep.subr.bf16.mxu0 %v1165
        %1380 = vmatpush1.bf16.msra.mxu0 %v1164
        %1381 = vmatprep.mubr.bf16.mxu0 %v490
        %1382 = vmatmul.mubr.bf16.gmra.mrb[0].mxu0 %v489
        %v1383 = vpop.f32.mrb[0].mxu0
        %v1384 = vadd.f32 %v1331, %v1383
        %v1385 = vpop.f32.mrb[0].mxu0
        %v1386 = vadd.f32 %v1333, %v1385
        %v1387 = vpop.f32.mrb[0].mxu0
        %v1388 = vadd.f32 %v1335, %v1387
        %v1389 = vpop.f32.mrb[0].mxu0
        %v1390 = vadd.f32 %v1337, %v1389
        %1391 = vmatprep.mubr.bf16.mxu0 %v492
        %1392 = vmatmul.mubr.bf16.gmra.mrb[0].mxu0 %v491
        %v1393 = vpop.f32.mrb[0].mxu0
        %v1394 = vadd.f32 %v1341, %v1393
        %v1395 = vpop.f32.mrb[0].mxu0
        %v1396 = vadd.f32 %v1343, %v1395
        %v1397 = vpop.f32.mrb[0].mxu0
        %v1398 = vadd.f32 %v1345, %v1397
        %v1399 = vpop.f32.mrb[0].mxu0
        %v1400 = vadd.f32 %v1347, %v1399
        %1401 = vdwg.mxu0
        %1402 = vmatprep.subr.bf16.mxu0 %v1043
        %1403 = vmatpush1.bf16.msra.mxu0 %v1042
        %1404 = vmatprep.subr.bf16.mxu0 %v1047
        %1405 = vmatpush1.bf16.msra.mxu0 %v1046
        %1406 = vmatprep.subr.bf16.mxu0 %v1051
        %1407 = vmatpush1.bf16.msra.mxu0 %v1050
        %1408 = vmatprep.subr.bf16.mxu0 %v1055
        %1409 = vmatpush1.bf16.msra.mxu0 %v1054
        %1410 = vmatprep.subr.bf16.mxu0 %v1059
        %1411 = vmatpush1.bf16.msra.mxu0 %v1058
        %1412 = vmatprep.subr.bf16.mxu0 %v1063
        %1413 = vmatpush1.bf16.msra.mxu0 %v1062
        %1414 = vmatprep.subr.bf16.mxu0 %v1067
        %1415 = vmatpush1.bf16.msra.mxu0 %v1066
        %1416 = vmatprep.subr.bf16.mxu0 %v1071
        %1417 = vmatpush1.bf16.msra.mxu0 %v1070
        %1418 = vmatprep.subr.bf16.mxu0 %v1075
        %1419 = vmatpush1.bf16.msra.mxu0 %v1074
        %1420 = vmatprep.subr.bf16.mxu0 %v1079
        %1421 = vmatpush1.bf16.msra.mxu0 %v1078
        %1422 = vmatprep.subr.bf16.mxu0 %v1083
        %1423 = vmatpush1.bf16.msra.mxu0 %v1082
        %1424 = vmatprep.subr.bf16.mxu0 %v1087
        %1425 = vmatpush1.bf16.msra.mxu0 %v1086
        %1426 = vmatprep.subr.bf16.mxu0 %v1091
        %1427 = vmatpush1.bf16.msra.mxu0 %v1090
        %1428 = vmatprep.subr.bf16.mxu0 %v1095
        %1429 = vmatpush1.bf16.msra.mxu0 %v1094
        %1430 = vmatprep.subr.bf16.mxu0 %v1099
        %1431 = vmatpush1.bf16.msra.mxu0 %v1098
        %1432 = vmatprep.subr.bf16.mxu0 %v1103
        %1433 = vmatpush1.bf16.msra.mxu0 %v1102
        %1434 = vmatprep.mubr.bf16.mxu0 %v473
        %1435 = vmatmul.mubr.bf16.gmra.mrb[0].mxu0 %v500
        %v1436 = vpop.f32.mrb[0].mxu0
        %v1437 = vadd.f32 %v647, %v1436
        %v1438 = vpop.f32.mrb[0].mxu0
        %v1439 = vadd.f32 %v651, %v1438
        %v1440 = vpop.f32.mrb[0].mxu0
        %v1441 = vadd.f32 %v647, %v1440
        %v1442 = vpop.f32.mrb[0].mxu0
        %v1443 = vadd.f32 %v651, %v1442
        %1444 = vmatprep.mubr.bf16.mxu0 %v474
        %1445 = vmatmul.mubr.bf16.gmra.mrb[0].mxu0 %v504
        %v1446 = vpop.f32.mrb[0].mxu0
        %v1447 = vadd.f32 %v647, %v1446
        %v1448 = vpop.f32.mrb[0].mxu0
        %v1449 = vadd.f32 %v651, %v1448
        %v1450 = vpop.f32.mrb[0].mxu0
        %v1451 = vadd.f32 %v647, %v1450
        %v1452 = vpop.f32.mrb[0].mxu0
        %v1453 = vadd.f32 %v651, %v1452
        %1454 = vdwg.mxu0
        %1455 = vmatprep.subr.bf16.mxu0 %v1107
        %1456 = vmatpush1.bf16.msra.mxu0 %v1106
        %1457 = vmatprep.subr.bf16.mxu0 %v1111
        %1458 = vmatpush1.bf16.msra.mxu0 %v1110
        %1459 = vmatprep.subr.bf16.mxu0 %v1115
        %1460 = vmatpush1.bf16.msra.mxu0 %v1114
        %1461 = vmatprep.subr.bf16.mxu0 %v1119
        %1462 = vmatpush1.bf16.msra.mxu0 %v1118
        %1463 = vmatprep.subr.bf16.mxu0 %v1123
        %1464 = vmatpush1.bf16.msra.mxu0 %v1122
        %1465 = vmatprep.subr.bf16.mxu0 %v1127
        %1466 = vmatpush1.bf16.msra.mxu0 %v1126
        %1467 = vmatprep.subr.bf16.mxu0 %v1131
        %1468 = vmatpush1.bf16.msra.mxu0 %v1130
        %1469 = vmatprep.subr.bf16.mxu0 %v1135
        %1470 = vmatpush1.bf16.msra.mxu0 %v1134
        %1471 = vmatprep.subr.bf16.mxu0 %v1139
        %1472 = vmatpush1.bf16.msra.mxu0 %v1138
        %1473 = vmatprep.subr.bf16.mxu0 %v1143
        %1474 = vmatpush1.bf16.msra.mxu0 %v1142
        %1475 = vmatprep.subr.bf16.mxu0 %v1147
        %1476 = vmatpush1.bf16.msra.mxu0 %v1146
        %1477 = vmatprep.subr.bf16.mxu0 %v1151
        %1478 = vmatpush1.bf16.msra.mxu0 %v1150
        %1479 = vmatprep.subr.bf16.mxu0 %v1155
        %1480 = vmatpush1.bf16.msra.mxu0 %v1154
        %1481 = vmatprep.subr.bf16.mxu0 %v1159
        %1482 = vmatpush1.bf16.msra.mxu0 %v1158
        %1483 = vmatprep.subr.bf16.mxu0 %v1163
        %1484 = vmatpush1.bf16.msra.mxu0 %v1162
        %1485 = vmatprep.subr.bf16.mxu0 %v1167
        %1486 = vmatpush1.bf16.msra.mxu0 %v1166
        %1487 = vmatprep.mubr.bf16.mxu0 %v490
        %1488 = vmatmul.mubr.bf16.gmra.mrb[0].mxu0 %v489
        %v1489 = vpop.f32.mrb[0].mxu0
        %v1490 = vadd.f32 %v1437, %v1489
        %v1491 = vpop.f32.mrb[0].mxu0
        %v1492 = vadd.f32 %v1439, %v1491
        %v1493 = vpop.f32.mrb[0].mxu0
        %v1494 = vadd.f32 %v1441, %v1493
        %v1495 = vpop.f32.mrb[0].mxu0
        %v1496 = vadd.f32 %v1443, %v1495
        %1497 = vmatprep.mubr.bf16.mxu0 %v492
        %1498 = vmatmul.mubr.bf16.gmra.mrb[0].mxu0 %v491
        %v1499 = vpop.f32.mrb[0].mxu0
        %v1500 = vadd.f32 %v1447, %v1499
        %v1501 = vpop.f32.mrb[0].mxu0
        %v1502 = vadd.f32 %v1449, %v1501
        %v1503 = vpop.f32.mrb[0].mxu0
        %v1504 = vadd.f32 %v1451, %v1503
        %v1505 = vpop.f32.mrb[0].mxu0
        %v1506 = vadd.f32 %v1453, %v1505
        %1507 = vdwg.mxu0
        %v1508 = vmul.f32 %v1384, 0.2
        %v1509 = vmul.f32 %v1386, 0.2
        %v1510 = vmul.f32 %v1490, 0.2
        %v1511 = vmul.f32 %v1492, 0.2
        %v1512 = vmul.f32 %v1388, 0.2
        %v1513 = vmul.f32 %v1390, 0.2
        %v1514 = vmul.f32 %v1494, 0.2
        %v1515 = vmul.f32 %v1496, 0.2
        %v1516 = vmul.f32 %v1394, 0.2
        %v1517 = vmul.f32 %v1396, 0.2
        %v1518 = vmul.f32 %v1500, 0.2
        %v1519 = vmul.f32 %v1502, 0.2
        %v1520 = vmul.f32 %v1398, 0.2
        %v1521 = vmul.f32 %v1400, 0.2
        %v1522 = vmul.f32 %v1504, 0.2
        %v1523 = vmul.f32 %v1506, 0.2
        %v1524 = vmax.f32 %v1384, %v1508
        %v1525 = vmax.f32 %v1386, %v1509
        %v1526 = vmax.f32 %v1490, %v1510
        %v1527 = vmax.f32 %v1492, %v1511
        %v1528 = vmax.f32 %v1388, %v1512
        %v1529 = vmax.f32 %v1390, %v1513
        %v1530 = vmax.f32 %v1494, %v1514
        %v1531 = vmax.f32 %v1496, %v1515
        %v1532 = vmax.f32 %v1394, %v1516
        %v1533 = vmax.f32 %v1396, %v1517
        %v1534 = vmax.f32 %v1500, %v1518
        %v1535 = vmax.f32 %v1502, %v1519
        %v1536 = vmax.f32 %v1398, %v1520
        %v1537 = vmax.f32 %v1400, %v1521
        %v1538 = vmax.f32 %v1504, %v1522
        %v1539 = vmax.f32 %v1506, %v1523
        %v1540 = vld [vmem:[#allocation2] sm:$0xf]
        %v1541 = vmax.f32 %v1524, %v1528
        %v1542 = vmax.f32 %v1541, %v1532
        %v1543 = vmax.f32 %v1542, %v1536
        %v1544 = vrot.slane %v1543, 4
        %v1545 = vmax.f32 %v1543, %v1544
        %v1546 = vrot.slane %v1545, 2
        %v1547 = vmax.f32 %v1545, %v1546
        %v1548 = vrot.slane %v1547, 1
        %v1549 = vmax.f32 %v1547, %v1548
        %v1550 = vmax.f32 %v1525, %v1529
        %v1551 = vmax.f32 %v1550, %v1533
        %v1552 = vmax.f32 %v1551, %v1537
        %v1553 = vrot.slane %v1552, 4
        %v1554 = vmax.f32 %v1552, %v1553
        %v1555 = vrot.slane %v1554, 2
        %v1556 = vmax.f32 %v1554, %v1555
        %v1557 = vrot.slane %v1556, 1
        %v1558 = vmax.f32 %v1556, %v1557
        %v1559 = vmax.f32 %v1526, %v1530
        %v1560 = vmax.f32 %v1559, %v1534
        %v1561 = vmax.f32 %v1560, %v1538
        %v1562 = vrot.slane %v1561, 4
        %v1563 = vmax.f32 %v1561, %v1562
        %v1564 = vrot.slane %v1563, 2
        %v1565 = vmax.f32 %v1563, %v1564
        %v1566 = vrot.slane %v1565, 1
        %v1567 = vmax.f32 %v1565, %v1566
        %v1568 = vmax.f32 %v1527, %v1531
        %v1569 = vmax.f32 %v1568, %v1535
        %v1570 = vmax.f32 %v1569, %v1539
        %v1571 = vrot.slane %v1570, 4
        %v1572 = vmax.f32 %v1570, %v1571
        %v1573 = vrot.slane %v1572, 2
        %v1574 = vmax.f32 %v1572, %v1573
        %v1575 = vrot.slane %v1574, 1
        %v1576 = vmax.f32 %v1574, %v1575
        %v1581 = vcombine.low %v1549, %v1558
        %v1582 = vcombine.low %v1567, %v1576
        %v1584 = vunpack.c.l.s4 1966171168
        %v1585 = vunpack.c.0.s8 %v1584
        %v1586 = vlaneseq
        %v1587 = vshrl.u32 %v1586, 7
        %v1588 = vsub.s32 %v1585, %v1587
        %v1589 = vrot.slane %v1581, %v1588
        %v1591 = vunpack.c.l.s4 1966171168
        %v1592 = vunpack.c.0.s8 %v1591
        %v1593 = vlaneseq
        %v1594 = vshrl.u32 %v1593, 7
        %v1595 = vsub.s32 %v1592, %v1594
        %v1596 = vrot.slane %v1582, %v1595
        %v1597 = vcombine.low %v1589, %v1596
        %v1599 = vunpack.c.l.s4 1966171168
        %v1600 = vunpack.c.0.s8 %v1599
        %v1601 = vlaneseq
        %v1602 = vshrl.u32 %v1601, 7
        %v1603 = vsub.s32 %v1600, %v1602
        %v1604 = vrot.slane %v1597, %v1603
        %v1606 = vmax.f32 %v1540, %v1604
        %v1607 = vlaneseq
        %vm1608 = vcmp.ge.s32.totalorder %v1607, 0
        %vm1609 = vcmp.lt.s32.totalorder %v1607, 512
        %vm1610 = vmand %vm1608, %vm1609
        %1611 = vst.msk [vmem:[#allocation2] sm:$0xf] %vm1610, %v1606
        // Predicated region
        $region53: #{dgcnn_encoder.25} parent=47 // pred_check
          %p1612 = pneg %p416
        $region54: #{dgcnn_encoder.25} parent=47 // pred_check_branch
          %1614 = sbr.rel (%p1612) target = $region56
        $region55: #{dgcnn_encoder.25} parent=47 // pred_region
          %v1615 = vld [vmem:[#allocation2] sm:$0xf]
          %v1617 = vlaneseq
          %v1618 = vshrl.u32 %v1617, 7
          %v1619 = vsub.s32 0, %v1618
          %v1620 = vrot.slane %v1615, %v1619
          %v1621 = vlaneseq
          %v1622 = vshrl.u32 %v1621, 7
          %v1623 = vsub.s32 1, %v1622
          %v1624 = vrot.slane %v1615, %v1623
          %v1625 = vlaneseq
          %v1626 = vshrl.u32 %v1625, 7
          %v1627 = vsub.s32 2, %v1626
          %v1628 = vrot.slane %v1615, %v1627
          %v1629 = vlaneseq
          %v1630 = vshrl.u32 %v1629, 7
          %v1631 = vsub.s32 3, %v1630
          %v1632 = vrot.slane %v1615, %v1631
          %v1637 = vpack.c.bf16 %v1620, %v1620
          %v1638 = vpack.c.bf16 %v1624, %v1624
          %v1639 = vpack.c.bf16 %v1628, %v1628
          %v1640 = vpack.c.bf16 %v1632, %v1632
          %v1641 = vld [vmem:[%s6] sm:$0xf]
          %v1642 = vld [vmem:[%s6 + $0x4] sm:$0xf]
          %v1643 = vld [vmem:[%s6 + $0x8] sm:$0xf]
          %v1644 = vld [vmem:[%s6 + $0xc] sm:$0xf]
          %v1645 = vld [vmem:[%s6 + $0x10] sm:$0xf]
          %v1646 = vld [vmem:[%s6 + $0x14] sm:$0xf]
          %v1647 = vld [vmem:[%s6 + $0x18] sm:$0xf]
          %v1648 = vld [vmem:[%s6 + $0x1c] sm:$0xf]
          %v1649 = vld [vmem:[%s6 + $0x20] sm:$0xf]
          %v1650 = vld [vmem:[%s6 + $0x24] sm:$0xf]
          %v1651 = vld [vmem:[%s6 + $0x28] sm:$0xf]
          %v1652 = vld [vmem:[%s6 + $0x2c] sm:$0xf]
          %v1653 = vld [vmem:[%s6 + $0x30] sm:$0xf]
          %v1654 = vld [vmem:[%s6 + $0x34] sm:$0xf]
          %v1655 = vld [vmem:[%s6 + $0x38] sm:$0xf]
          %v1656 = vld [vmem:[%s6 + $0x3c] sm:$0xf]
          %v1657 = vld [vmem:[%s6 + $0x40] sm:$0xf]
          %v1658 = vld [vmem:[%s6 + $0x44] sm:$0xf]
          %v1659 = vld [vmem:[%s6 + $0x48] sm:$0xf]
          %v1660 = vld [vmem:[%s6 + $0x4c] sm:$0xf]
          %v1661 = vld [vmem:[%s6 + $0x50] sm:$0xf]
          %v1662 = vld [vmem:[%s6 + $0x54] sm:$0xf]
          %v1663 = vld [vmem:[%s6 + $0x58] sm:$0xf]
          %v1664 = vld [vmem:[%s6 + $0x5c] sm:$0xf]
          %v1665 = vld [vmem:[%s6 + $0x60] sm:$0xf]
          %v1666 = vld [vmem:[%s6 + $0x64] sm:$0xf]
          %v1667 = vld [vmem:[%s6 + $0x68] sm:$0xf]
          %v1668 = vld [vmem:[%s6 + $0x6c] sm:$0xf]
          %v1669 = vld [vmem:[%s6 + $0x70] sm:$0xf]
          %v1670 = vld [vmem:[%s6 + $0x74] sm:$0xf]
          %v1671 = vld [vmem:[%s6 + $0x78] sm:$0xf]
          %v1672 = vld [vmem:[%s6 + $0x7c] sm:$0xf]
          %v1673 = vld [vmem:[%s6 + $0x80] sm:$0xf]
          %v1674 = vld [vmem:[%s6 + $0x84] sm:$0xf]
          %v1675 = vld [vmem:[%s6 + $0x88] sm:$0xf]
          %v1676 = vld [vmem:[%s6 + $0x8c] sm:$0xf]
          %v1677 = vld [vmem:[%s6 + $0x90] sm:$0xf]
          %v1678 = vld [vmem:[%s6 + $0x94] sm:$0xf]
          %v1679 = vld [vmem:[%s6 + $0x98] sm:$0xf]
          %v1680 = vld [vmem:[%s6 + $0x9c] sm:$0xf]
          %v1681 = vld [vmem:[%s6 + $0xa0] sm:$0xf]
          %v1682 = vld [vmem:[%s6 + $0xa4] sm:$0xf]
          %v1683 = vld [vmem:[%s6 + $0xa8] sm:$0xf]
          %v1684 = vld [vmem:[%s6 + $0xac] sm:$0xf]
          %v1685 = vld [vmem:[%s6 + $0xb0] sm:$0xf]
          %v1686 = vld [vmem:[%s6 + $0xb4] sm:$0xf]
          %v1687 = vld [vmem:[%s6 + $0xb8] sm:$0xf]
          %v1688 = vld [vmem:[%s6 + $0xbc] sm:$0xf]
          %v1689 = vld [vmem:[%s6 + $0xc0] sm:$0xf]
          %v1690 = vld [vmem:[%s6 + $0xc4] sm:$0xf]
          %v1691 = vld [vmem:[%s6 + $0xc8] sm:$0xf]
          %v1692 = vld [vmem:[%s6 + $0xcc] sm:$0xf]
          %v1693 = vld [vmem:[%s6 + $0xd0] sm:$0xf]
          %v1694 = vld [vmem:[%s6 + $0xd4] sm:$0xf]
          %v1695 = vld [vmem:[%s6 + $0xd8] sm:$0xf]
          %v1696 = vld [vmem:[%s6 + $0xdc] sm:$0xf]
          %v1697 = vld [vmem:[%s6 + $0xe0] sm:$0xf]
          %v1698 = vld [vmem:[%s6 + $0xe4] sm:$0xf]
          %v1699 = vld [vmem:[%s6 + $0xe8] sm:$0xf]
          %v1700 = vld [vmem:[%s6 + $0xec] sm:$0xf]
          %v1701 = vld [vmem:[%s6 + $0xf0] sm:$0xf]
          %v1702 = vld [vmem:[%s6 + $0xf4] sm:$0xf]
          %v1703 = vld [vmem:[%s6 + $0xf8] sm:$0xf]
          %v1704 = vld [vmem:[%s6 + $0xfc] sm:$0xf]
          %v1769 = vunpack.c.l.b16 %v1641
          %v1770 = vunpack.c.l.b16 %v1642
          %v1771 = vunpack.c.l.b16 %v1643
          %v1772 = vunpack.c.l.b16 %v1644
          %v1773 = vunpack.c.l.b16 %v1645
          %v1774 = vunpack.c.l.b16 %v1646
          %v1775 = vunpack.c.l.b16 %v1647
          %v1776 = vunpack.c.l.b16 %v1648
          %v1777 = vunpack.c.l.b16 %v1649
          %v1778 = vunpack.c.l.b16 %v1650
          %v1779 = vunpack.c.l.b16 %v1651
          %v1780 = vunpack.c.l.b16 %v1652
          %v1781 = vunpack.c.l.b16 %v1653
          %v1782 = vunpack.c.l.b16 %v1654
          %v1783 = vunpack.c.l.b16 %v1655
          %v1784 = vunpack.c.l.b16 %v1656
          %v1785 = vunpack.c.l.b16 %v1657
          %v1786 = vunpack.c.l.b16 %v1658
          %v1787 = vunpack.c.l.b16 %v1659
          %v1788 = vunpack.c.l.b16 %v1660
          %v1789 = vunpack.c.l.b16 %v1661
          %v1790 = vunpack.c.l.b16 %v1662
          %v1791 = vunpack.c.l.b16 %v1663
          %v1792 = vunpack.c.l.b16 %v1664
          %v1793 = vunpack.c.l.b16 %v1665
          %v1794 = vunpack.c.l.b16 %v1666
          %v1795 = vunpack.c.l.b16 %v1667
          %v1796 = vunpack.c.l.b16 %v1668
          %v1797 = vunpack.c.l.b16 %v1669
          %v1798 = vunpack.c.l.b16 %v1670
          %v1799 = vunpack.c.l.b16 %v1671
          %v1800 = vunpack.c.l.b16 %v1672
          %v1801 = vunpack.c.l.b16 %v1673
          %v1802 = vunpack.c.l.b16 %v1674
          %v1803 = vunpack.c.l.b16 %v1675
          %v1804 = vunpack.c.l.b16 %v1676
          %v1805 = vunpack.c.l.b16 %v1677
          %v1806 = vunpack.c.l.b16 %v1678
          %v1807 = vunpack.c.l.b16 %v1679
          %v1808 = vunpack.c.l.b16 %v1680
          %v1809 = vunpack.c.l.b16 %v1681
          %v1810 = vunpack.c.l.b16 %v1682
          %v1811 = vunpack.c.l.b16 %v1683
          %v1812 = vunpack.c.l.b16 %v1684
          %v1813 = vunpack.c.l.b16 %v1685
          %v1814 = vunpack.c.l.b16 %v1686
          %v1815 = vunpack.c.l.b16 %v1687
          %v1816 = vunpack.c.l.b16 %v1688
          %v1817 = vunpack.c.l.b16 %v1689
          %v1818 = vunpack.c.l.b16 %v1690
          %v1819 = vunpack.c.l.b16 %v1691
          %v1820 = vunpack.c.l.b16 %v1692
          %v1821 = vunpack.c.l.b16 %v1693
          %v1822 = vunpack.c.l.b16 %v1694
          %v1823 = vunpack.c.l.b16 %v1695
          %v1824 = vunpack.c.l.b16 %v1696
          %v1825 = vunpack.c.l.b16 %v1697
          %v1826 = vunpack.c.l.b16 %v1698
          %v1827 = vunpack.c.l.b16 %v1699
          %v1828 = vunpack.c.l.b16 %v1700
          %v1829 = vunpack.c.l.b16 %v1701
          %v1830 = vunpack.c.l.b16 %v1702
          %v1831 = vunpack.c.l.b16 %v1703
          %v1832 = vunpack.c.l.b16 %v1704
          %v1833 = vpack.c.b16 %v1770, %v1769
          %v1834 = vpack.c.b16 %v1772, %v1771
          %v1835 = vpack.c.b16 %v1774, %v1773
          %v1836 = vpack.c.b16 %v1776, %v1775
          %v1837 = vpack.c.b16 %v1778, %v1777
          %v1838 = vpack.c.b16 %v1780, %v1779
          %v1839 = vpack.c.b16 %v1782, %v1781
          %v1840 = vpack.c.b16 %v1784, %v1783
          %v1841 = vpack.c.b16 %v1786, %v1785
          %v1842 = vpack.c.b16 %v1788, %v1787
          %v1843 = vpack.c.b16 %v1790, %v1789
          %v1844 = vpack.c.b16 %v1792, %v1791
          %v1845 = vpack.c.b16 %v1794, %v1793
          %v1846 = vpack.c.b16 %v1796, %v1795
          %v1847 = vpack.c.b16 %v1798, %v1797
          %v1848 = vpack.c.b16 %v1800, %v1799
          %v1849 = vpack.c.b16 %v1802, %v1801
          %v1850 = vpack.c.b16 %v1804, %v1803
          %v1851 = vpack.c.b16 %v1806, %v1805
          %v1852 = vpack.c.b16 %v1808, %v1807
          %v1853 = vpack.c.b16 %v1810, %v1809
          %v1854 = vpack.c.b16 %v1812, %v1811
          %v1855 = vpack.c.b16 %v1814, %v1813
          %v1856 = vpack.c.b16 %v1816, %v1815
          %v1857 = vpack.c.b16 %v1818, %v1817
          %v1858 = vpack.c.b16 %v1820, %v1819
          %v1859 = vpack.c.b16 %v1822, %v1821
          %v1860 = vpack.c.b16 %v1824, %v1823
          %v1861 = vpack.c.b16 %v1826, %v1825
          %v1862 = vpack.c.b16 %v1828, %v1827
          %v1863 = vpack.c.b16 %v1830, %v1829
          %v1864 = vpack.c.b16 %v1832, %v1831
          %1897 = vmatprep.subr.bf16.mxu0 0
          %1898 = vmatpush1.bf16.msra.mxu0 %v1833
          %1899 = vmatprep.subr.bf16.mxu0 0
          %1900 = vmatpush1.bf16.msra.mxu0 %v1834
          %1901 = vmatprep.subr.bf16.mxu0 0
          %1902 = vmatpush1.bf16.msra.mxu0 %v1835
          %1903 = vmatprep.subr.bf16.mxu0 0
          %1904 = vmatpush1.bf16.msra.mxu0 %v1836
          %1905 = vmatprep.subr.bf16.mxu0 0
          %1906 = vmatpush1.bf16.msra.mxu0 %v1837
          %1907 = vmatprep.subr.bf16.mxu0 0
          %1908 = vmatpush1.bf16.msra.mxu0 %v1838
          %1909 = vmatprep.subr.bf16.mxu0 0
          %1910 = vmatpush1.bf16.msra.mxu0 %v1839
          %1911 = vmatprep.subr.bf16.mxu0 0
          %1912 = vmatpush1.bf16.msra.mxu0 %v1840
          %1913 = vmatprep.subr.bf16.mxu0 0
          %1914 = vmatpush1.bf16.msra.mxu0 %v1841
          %1915 = vmatprep.subr.bf16.mxu0 0
          %1916 = vmatpush1.bf16.msra.mxu0 %v1842
          %1917 = vmatprep.subr.bf16.mxu0 0
          %1918 = vmatpush1.bf16.msra.mxu0 %v1843
          %1919 = vmatprep.subr.bf16.mxu0 0
          %1920 = vmatpush1.bf16.msra.mxu0 %v1844
          %1921 = vmatprep.subr.bf16.mxu0 0
          %1922 = vmatpush1.bf16.msra.mxu0 %v1845
          %1923 = vmatprep.subr.bf16.mxu0 0
          %1924 = vmatpush1.bf16.msra.mxu0 %v1846
          %1925 = vmatprep.subr.bf16.mxu0 0
          %1926 = vmatpush1.bf16.msra.mxu0 %v1847
          %1927 = vmatprep.subr.bf16.mxu0 0
          %1928 = vmatpush1.bf16.msra.mxu0 %v1848
          %1929 = vmatprep.mubr.bf16.mxu0 %v1638
          %1930 = vmatmul.mubr.bf16.gmra.mrb[0].mxu0 %v1637
          %v1931 = vpop.f32.mrb[0].mxu0
          %v1932 = vadd.f32 0.0, %v1931
          %v1933 = vpop.f32.mrb[0].mxu0
          %v1934 = vpop.f32.mrb[0].mxu0
          %v1935 = vpop.f32.mrb[0].mxu0
          %1936 = vdwg.mxu0
          %1937 = vmatprep.subr.bf16.mxu0 0
          %1938 = vmatpush1.bf16.msra.mxu0 %v1849
          %1939 = vmatprep.subr.bf16.mxu0 0
          %1940 = vmatpush1.bf16.msra.mxu0 %v1850
          %1941 = vmatprep.subr.bf16.mxu0 0
          %1942 = vmatpush1.bf16.msra.mxu0 %v1851
          %1943 = vmatprep.subr.bf16.mxu0 0
          %1944 = vmatpush1.bf16.msra.mxu0 %v1852
          %1945 = vmatprep.subr.bf16.mxu0 0
          %1946 = vmatpush1.bf16.msra.mxu0 %v1853
          %1947 = vmatprep.subr.bf16.mxu0 0
          %1948 = vmatpush1.bf16.msra.mxu0 %v1854
          %1949 = vmatprep.subr.bf16.mxu0 0
          %1950 = vmatpush1.bf16.msra.mxu0 %v1855
          %1951 = vmatprep.subr.bf16.mxu0 0
          %1952 = vmatpush1.bf16.msra.mxu0 %v1856
          %1953 = vmatprep.subr.bf16.mxu0 0
          %1954 = vmatpush1.bf16.msra.mxu0 %v1857
          %1955 = vmatprep.subr.bf16.mxu0 0
          %1956 = vmatpush1.bf16.msra.mxu0 %v1858
          %1957 = vmatprep.subr.bf16.mxu0 0
          %1958 = vmatpush1.bf16.msra.mxu0 %v1859
          %1959 = vmatprep.subr.bf16.mxu0 0
          %1960 = vmatpush1.bf16.msra.mxu0 %v1860
          %1961 = vmatprep.subr.bf16.mxu0 0
          %1962 = vmatpush1.bf16.msra.mxu0 %v1861
          %1963 = vmatprep.subr.bf16.mxu0 0
          %1964 = vmatpush1.bf16.msra.mxu0 %v1862
          %1965 = vmatprep.subr.bf16.mxu0 0
          %1966 = vmatpush1.bf16.msra.mxu0 %v1863
          %1967 = vmatprep.subr.bf16.mxu0 0
          %1968 = vmatpush1.bf16.msra.mxu0 %v1864
          %1969 = vmatprep.mubr.bf16.mxu0 %v1640
          %1970 = vmatmul.mubr.bf16.gmra.mrb[0].mxu0 %v1639
          %v1971 = vpop.f32.mrb[0].mxu0
          %v1972 = vadd.f32 %v1932, %v1971
          %v1973 = vpop.f32.mrb[0].mxu0
          %v1974 = vpop.f32.mrb[0].mxu0
          %v1975 = vpop.f32.mrb[0].mxu0
          %1976 = vdwg.mxu0
          %vm1977 = vcmask 253952
          %1978 = vst.msk [vmem:[%s373] sm:$0x1] %vm1977, %v1972
        $region56: #{dgcnn_encoder.25} parent=47 // pred_fallthru
          _
        %s1979 = sand.u32 %s216, 1
        %s1980 = scalar_lea.sflag [#allocation4], %s1979
        %s1981 = sand.u32 %s216, 1
        %s1982 = scalar_lea.vmem [#allocation3], %s1981
        // Predicated region
        $region57: #{dgcnn_encoder.25} parent=47 // pred_check
          %p1983 = pneg %p226
        $region58: #{dgcnn_encoder.25} parent=47 // pred_check_branch
          %1985 = sbr.rel (%p1983) target = $region60
        $region59: #{dgcnn_encoder.25} parent=47 // pred_region
          %s1987 = ssub.s32 16, 16
          %1988 = vsyncadd %s1980, %s1987
          %s1989 = smul.addr %s25, 16
          %s1990 = scalar_lea.hbm %s7, %s1989
          %s1992 = sshll.u32 %s1982, 4
          %s1993 = int_to_ptr.vmem [resolvable:$true] %s1992
          %1995 = dma.vmem_to_hbm [thread:$0]  %s1993, 16, %s1990, %s1980
        $region60: #{dgcnn_encoder.25} parent=47 // pred_fallthru
          _
      $region48: #{dgcnn_encoder.25} parent=5 // pred_fallthru
        _
      %p1996 = scmp.le.s32.totalorder 2, %s16
      // Predicated region
      $region61: #{dgcnn_encoder.25} parent=5 // pred_check
        %p1997 = pneg %p1996
      $region62: #{dgcnn_encoder.25} parent=5 // pred_check_branch
        %1999 = sbr.rel (%p1997) target = $region64
      $region63: #{dgcnn_encoder.25} parent=5 // pred_region
        %s2000 = ssub.s32 %s16, 2
        // Predicated region
        $region65: #{dgcnn_encoder.25} parent=63 // pred_check
          %p2001 = pneg %p232
        $region66: #{dgcnn_encoder.25} parent=63 // pred_check_branch
          %2003 = sbr.rel (%p2001) target = $region68
        $region67: #{dgcnn_encoder.25} parent=63 // pred_region
          %s2004 = sand.u32 %s217, 1
          %s2005 = scalar_lea.sflag [#allocation4], %s2004
          %s2006 = sand.u32 %s217, 1
          %s2007 = scalar_lea.vmem [#allocation3], %s2006
          %2008 = dma.done %s2005, 16
        $region68: #{dgcnn_encoder.25} parent=63 // pred_fallthru
          _
      $region64: #{dgcnn_encoder.25} parent=5 // pred_fallthru
        _
    $region6: #{dgcnn_encoder.25} parent=1 // loop_footer
      %s20 = sadd.s32 1, %s16
    $region7: #{dgcnn_encoder.25} parent=1 // loop_footer_branch
      %15 = sbr.rel target = $region3
    $region8: #{dgcnn_encoder.25} parent=1 // loop_exit
      _
    %2009 = vsyncpa [#allocation4], 1
    %s2010 = scalar_lea.sflag [#allocation4], 1
    %2011 = vsyncpa %s2010, 1

</llo_original>
